<compile_context>
chip_gen: v7x
topology: tpu7x:2x2x1
jax: 0.10.0
libtpu: 0.0.40
codegen_flags: <defaults>
</compile_context>

<pallas_src>
import functools

import jax
import jax.numpy as jnp
import numpy as np
from jax.experimental import pallas as pl
from jax.experimental.pallas import tpu as pltpu


# ---------------------------------------------------------------------------
# helpers
# ---------------------------------------------------------------------------
def _cdiv(a, b):
    return (a + b - 1) // b


def _round_up(a, b):
    return _cdiv(a, b) * b


def _vmem_capacity_bytes():
    """Physical VMEM capacity. v5e/v6e have 128 MiB/core, v7x 64 MiB/TC."""
    try:
        cap = getattr(pltpu.get_tpu_info(), "vmem_capacity_bytes", None)
        if cap:
            return int(cap)
    except Exception:
        pass
    try:
        kind = jax.devices()[0].device_kind.lower()
        if "v7" in kind:
            return 64 * 1024 * 1024
    except Exception:
        pass
    return 128 * 1024 * 1024


def _compiler_params(semantics, cap):
    return pltpu.CompilerParams(
        dimension_semantics=semantics,
        vmem_limit_bytes=int(cap * 0.7),
    )


# ---------------------------------------------------------------------------
# Kernel A: fused FPN level
#   1x1 lateral conv + bias (+ upsampled top-down residual) + 3x3/s1/p1 smooth.
#   Grid = (batch,), "parallel" (whole level per image stays in VMEM).
# ---------------------------------------------------------------------------
def _fpn_level_kernel(*refs, H, W, WP, F, with_coarse, emit_merged):
    x_ref, w1_ref, b1_ref, w2_ref, b2_ref = refs[:5]
    pos = 5
    res_ref = None
    if with_coarse:
        res_ref = refs[pos]
        pos += 1
    merged_ref = None
    if emit_merged:
        merged_ref = refs[pos]
        pos += 1
    out_ref = refs[pos]
    pad_ref = refs[pos + 1]

    # ---- 1x1 lateral conv as one MXU GEMM (bf16 operands, f32 accumulation) ----
    x_bf = x_ref[0].astype(jnp.bfloat16)                      # (H*W, Cin)
    lat = jnp.dot(x_bf, w1_ref[...], preferred_element_type=jnp.float32)
    lat = lat + b1_ref[...]                                   # (H*W, F) f32
    if with_coarse:
        # FPN top-down merge: residual already upsampled (bf16), added in f32.
        lat = lat + res_ref[0].astype(jnp.float32)
    lat3 = lat.reshape(H, W, F)
    merged3 = lat3.astype(jnp.bfloat16)
    if emit_merged:
        merged_ref[...] = merged3[None]                       # bf16 map for next level

    # ---- build the zero-padded, width-padded, row-flattened merged slab ----
    # (1 zero row top/bottom, 1 zero col left, WP-W-1 zero cols right; WP % 8 == 0
    #  so every row start is sublane-aligned and the kx tap row-wrap lands only in
    #  the discarded >= W columns.)
    zl = jnp.zeros((H, 1, F), jnp.bfloat16)
    zr = jnp.zeros((H, WP - W - 1, F), jnp.bfloat16)
    slab = jnp.concatenate([zl, merged3, zr], axis=1).reshape(H * WP, F)
    pad_ref[pl.ds(0, WP), :] = jnp.zeros((WP, F), jnp.bfloat16)
    pad_ref[pl.ds(WP, H * WP), :] = slab
    pad_ref[pl.ds((H + 1) * WP, WP + 8), :] = jnp.zeros((WP + 8, F), jnp.bfloat16)

    # ---- 3x3 / stride 1 / pad 1 smoothing conv, taps straight off the slab ----
    m = H * WP
    acc = jnp.broadcast_to(b2_ref[...], (m, F))               # bias-initialised acc
    for ky in range(3):
        base = ky * WP                                        # static, multiple of 8
        if F < 128:
            # concatenate the 3 kx taps along the contraction dim -> 3F-deep dots
            taps = [pad_ref[pl.ds(base + kx, m), :] for kx in range(3)]
            tap_cat = jnp.concatenate(taps, axis=1)           # (m, 3F) bf16
            acc = acc + jnp.dot(tap_cat, w2_ref[ky],
                                preferred_element_type=jnp.float32)
        else:
            for kx in range(3):
                acc = acc + jnp.dot(pad_ref[pl.ds(base + kx, m), :],
                                    w2_ref[3 * ky + kx],
                                    preferred_element_type=jnp.float32)

    # drop the width-alignment columns in VMEM and store exactly (1, H, W, F)
    out3 = acc.reshape(H, WP, F)[:, :W, :]
    out_ref[...] = out3[None].astype(out_ref.dtype)


def fpn_level_pallas(x, w1, b1, w2, b2, coarse=None, emit_merged=True):
    """One fused pallas_call per pyramid level. Returns (smoothed_f32, merged_bf16)."""
    n, h, wdim, cin = x.shape
    f = w1.shape[-1]
    with_coarse = coarse is not None
    wp = _round_up(max(wdim + 2, 8), 8)
    cap = _vmem_capacity_bytes()

    x_flat = x.reshape(n, h * wdim, cin)                 # free metadata reshape (f32)
    w1_2d = w1.reshape(cin, f).astype(jnp.bfloat16)
    b1_2d = b1.reshape(1, f).astype(jnp.float32)
    if f < 128:
        w2_k = w2.reshape(3, 3 * f, f).astype(jnp.bfloat16)   # [ky, kx*F + fin, fout]
    else:
        w2_k = w2.reshape(9, f, f).astype(jnp.bfloat16)       # [ky*3 + kx, fin, fout]
    b2_2d = b2.reshape(1, f).astype(jnp.float32)

    in_specs = [
        pl.BlockSpec((1, h * wdim, cin), lambda i: (i, 0, 0)),
        pl.BlockSpec((cin, f), lambda i: (0, 0)),
        pl.BlockSpec((1, f), lambda i: (0, 0)),
        pl.BlockSpec(w2_k.shape, lambda i: (0, 0, 0)),
        pl.BlockSpec((1, f), lambda i: (0, 0)),
    ]
    args = [x_flat, w1_2d, b1_2d, w2_k, b2_2d]
    if with_coarse:
        assert coarse.shape == (n, h // 2, wdim // 2, f), coarse.shape
        # nearest-2x upsample of the bf16 merged map (XLA glue kept in bf16).
        # TODO(synk): repeat rows/cols on-chip instead (read the coarse block).
        res = jnp.repeat(jnp.repeat(coarse, 2, axis=1), 2, axis=2)
        res = res.reshape(n, h * wdim, f)
        in_specs.append(pl.BlockSpec((1, h * wdim, f), lambda i: (i, 0, 0)))
        args.append(res)

    out_shapes = []
    out_specs = []
    if emit_merged:
        out_shapes.append(jax.ShapeDtypeStruct((n, h, wdim, f), jnp.bfloat16))
        out_specs.append(pl.BlockSpec((1, h, wdim, f), lambda i: (i, 0, 0, 0)))
    out_shapes.append(jax.ShapeDtypeStruct((n, h, wdim, f), jnp.float32))
    out_specs.append(pl.BlockSpec((1, h, wdim, f), lambda i: (i, 0, 0, 0)))

    flops = 2 * n * h * wdim * f * (cin + 9 * f)
    bytes_acc = (n * h * wdim * (cin * 4 + f * 4
                                 + (f * 2 if emit_merged else 0)
                                 + (f * 2 if with_coarse else 0))
                 + cin * f * 2 + 9 * f * f * 2 + 2 * f * 4)

    # TODO(synk): for maps whose whole-image blocks do not fit the VMEM budget,
    # band-tile over rows with a 1-row halo (manual DMA) instead of per-image blocks.
    outs = pl.pallas_call(
        functools.partial(_fpn_level_kernel, H=h, W=wdim, WP=wp, F=f,
                          with_coarse=with_coarse, emit_merged=emit_merged),
        out_shape=tuple(out_shapes),
        grid_spec=pltpu.PrefetchScalarGridSpec(
            num_scalar_prefetch=0,
            grid=(n,),
            in_specs=in_specs,
            out_specs=tuple(out_specs),
            scratch_shapes=[pltpu.VMEM(((h + 2) * wp + 8, f), jnp.bfloat16)],
        ),
        compiler_params=_compiler_params(("parallel",), cap),
        cost_estimate=pl.CostEstimate(flops=int(flops), transcendentals=0,
                                      bytes_accessed=int(bytes_acc)),
    )(*args)

    if emit_merged:
        merged, smoothed = outs
        return smoothed, merged
    smoothed = outs[0] if isinstance(outs, (tuple, list)) else outs
    return smoothed, None


# ---------------------------------------------------------------------------
# Kernel B: deep GEMM with K-tiling (used by the stride-2 P6/P7 convs)
# ---------------------------------------------------------------------------
def _gemm_bias_kernel(x_ref, w_ref, b_ref, o_ref, acc_ref):
    @pl.when(pl.program_id(1) == 0)
    def _():
        acc_ref[...] = jnp.broadcast_to(b_ref[...], acc_ref.shape)   # bias-init acc

    acc_ref[...] += jnp.dot(x_ref[...], w_ref[...],
                            preferred_element_type=jnp.float32)

    @pl.when(pl.program_id(1) == pl.num_programs(1) - 1)
    def _():
        o_ref[...] = acc_ref[...].astype(o_ref.dtype)


def _pick_tiles(r, kc, f, cap):
    # K tiling only when the bf16 weight panel is big and kc has a /128 divisor.
    tile_k = kc
    if kc > 2048 and kc % 128 == 0:
        for cand in range(2048, 127, -128):
            if kc % cand == 0:
                tile_k = cand
                break
    if r <= 8:
        return r, tile_k
    budget = int(cap * 0.4)
    fixed = 4 * tile_k * f                         # double-buffered bf16 weight block
    per_row = 4 * tile_k + 8 * f + 4 * f           # x block + out block + f32 acc
    t = max(8, (budget - fixed) // per_row)
    t = min(t, 2048)
    t = t - t % 128 if t >= 128 else t - t % 8     # 128-aligned M tiles (v5e MXU)
    t = max(8, min(t, _round_up(r, 8)))
    if r >= 256:                                   # keep >=2 row tiles (megacore)
        t = min(t, max(128, _round_up(_cdiv(r, 2), 128)))
    return int(t), int(tile_k)


def gemm_bias_pallas(x2d, w2d, b_1f, out_dtype=jnp.float32):
    """out = x2d @ w2d + b; rows tiled ('parallel'), K tiled ('arbitrary')."""
    r, kc = x2d.shape
    f = w2d.shape[1]
    cap = _vmem_capacity_bytes()
    tile_r, tile_k = _pick_tiles(r, kc, f, cap)
    nr, nk = _cdiv(r, tile_r), kc // tile_k        # ragged last row tile, no jnp.pad

    return pl.pallas_call(
        _gemm_bias_kernel,
        out_shape=jax.ShapeDtypeStruct((r, f), out_dtype),
        grid_spec=pltpu.PrefetchScalarGridSpec(
            num_scalar_prefetch=0,
            grid=(nr, nk),
            in_specs=[pl.BlockSpec((tile_r, tile_k), lambda i, k: (i, k)),
                      pl.BlockSpec((tile_k, f), lambda i, k: (k, 0)),
                      pl.BlockSpec((1, f), lambda i, k: (0, 0))],
            out_specs=pl.BlockSpec((tile_r, f), lambda i, k: (i, 0)),
            scratch_shapes=[pltpu.VMEM((tile_r, f), jnp.float32)],
        ),
        compiler_params=_compiler_params(("parallel", "arbitrary"), cap),
        cost_estimate=pl.CostEstimate(
            flops=int(2 * r * kc * f), transcendentals=0,
            bytes_accessed=int(r * kc * 2 + kc * f * 2 + r * f * 4 + f * 4)),
    )(x2d, w2d, b_1f)


def conv2d_gemm(x, w, b, *, stride=1, padding=0, input_relu=False):
    """Small conv lowered to one deep GEMM (rows = N*Hout*Wout, depth = kH*kW*Cin).
    Used only for the tiny stride-2 P6/P7 convs."""
    n, h, wdim, c = x.shape
    kh, kw, _, f = w.shape
    if input_relu:
        x = jnp.maximum(x, 0.0)            # P7 ReLU applied ONCE to the source tensor
    x = x.astype(jnp.bfloat16)             # bf16 MXU operands, f32 accumulation
    hout = (h + 2 * padding - kh) // stride + 1
    wout = (wdim + 2 * padding - kw) // stride + 1
    if kh == 1 and kw == 1 and stride == 1 and padding == 0:
        cols = x.reshape(n * h * wdim, c)
    else:
        xp = jnp.pad(x, ((0, 0), (padding, padding), (padding, padding), (0, 0)))
        taps = []
        for ky in range(kh):
            for kx in range(kw):
                taps.append(
                    xp[:, ky:ky + stride * (hout - 1) + 1:stride,
                          kx:kx + stride * (wout - 1) + 1:stride, :]
                    .reshape(n, hout * wout, c))
        cols = jnp.concatenate(taps, axis=-1).reshape(n * hout * wout, kh * kw * c)
        # TODO(synk): replace this HBM im2col with a tap-loop kernel over a
        # VMEM-resident padded block for very deep Cin backbones.
    w2d = w.reshape(kh * kw * c, f).astype(jnp.bfloat16)
    b_1f = b.reshape(1, f).astype(jnp.float32)
    out2d = gemm_bias_pallas(cols, w2d, b_1f)
    return out2d.reshape(n, hout, wout, f)


def upsample_nearest_2x(x):
    # nn.Upsample(scale_factor=2, mode='nearest'): out[i, j] = in[i // 2, j // 2]
    return jnp.repeat(jnp.repeat(x, 2, axis=1), 2, axis=2)


# ---------------------------------------------------------------------------
# the FPN neck
# ---------------------------------------------------------------------------
class PyramidFeaturesPallas:
    """Pallas port of PyramidFeatures.forward. Inputs/outputs are NHWC."""

    def __init__(self, c3_size, c4_size, c5_size, feature_size=256, key=None):
        key = jax.random.PRNGKey(42) if key is None else key
        ks = jax.random.split(key, 16)
        f = feature_size

        def wconv(k, kh, kw, cin, cout):
            return 0.05 * jax.random.normal(k, (kh, kw, cin, cout), jnp.float32)

        def wbias(k, cout):
            return 0.05 * jax.random.normal(k, (cout,), jnp.float32)

        self.p5_1_w, self.p5_1_b = wconv(ks[0], 1, 1, c5_size, f), wbias(ks[1], f)
        self.p5_2_w, self.p5_2_b = wconv(ks[2], 3, 3, f, f), wbias(ks[3], f)
        self.p4_1_w, self.p4_1_b = wconv(ks[4], 1, 1, c4_size, f), wbias(ks[5], f)
        self.p4_2_w, self.p4_2_b = wconv(ks[6], 3, 3, f, f), wbias(ks[7], f)
        self.p3_1_w, self.p3_1_b = wconv(ks[8], 1, 1, c3_size, f), wbias(ks[9], f)
        self.p3_2_w, self.p3_2_b = wconv(ks[10], 3, 3, f, f), wbias(ks[11], f)
        self.p6_w, self.p6_b = wconv(ks[12], 3, 3, c5_size, f), wbias(ks[13], f)
        self.p7_2_w, self.p7_2_b = wconv(ks[14], 3, 3, f, f), wbias(ks[15], f)

    def __call__(self, c3, c4, c5):
        # P5: lateral + smooth fused; merged map (bf16) kept for the P4 residual.
        p5_out, p5_x = fpn_level_pallas(c5, self.p5_1_w, self.p5_1_b,
                                        self.p5_2_w, self.p5_2_b,
                                        coarse=None, emit_merged=True)
        # P4: lateral + P5-upsampled residual + smooth fused.
        p4_out, p4_x = fpn_level_pallas(c4, self.p4_1_w, self.p4_1_b,
                                        self.p4_2_w, self.p4_2_b,
                                        coarse=p5_x, emit_merged=True)
        # P3: lateral + P4-upsampled residual + smooth fused (merged map not needed).
        p3_out, _ = fpn_level_pallas(c3, self.p3_1_w, self.p3_1_b,
                                     self.p3_2_w, self.p3_2_b,
                                     coarse=p4_x, emit_merged=False)
        # P6 = conv3x3_s2(c5); P7 = conv3x3_s2(ReLU(P6)).
        p6_x = conv2d_gemm(c5, self.p6_w, self.p6_b, stride=2, padding=1)
        p7_x = conv2d_gemm(p6_x, self.p7_2_w, self.p7_2_b, stride=2, padding=1,
                           input_relu=True)
        return [p3_out, p4_out, p5_out, p6_x, p7_x]


# ---------------- pure-JAX reference (lax conv, exact f32) ----------------
def _conv_ref(x, w, b, stride, padding, input_relu=False):
    if input_relu:
        x = jnp.maximum(x, 0.0)
    y = jax.lax.conv_general_dilated(
        x, w, (stride, stride), [(padding, padding)] * 2,
        dimension_numbers=("NHWC", "HWIO", "NHWC"),
        precision=jax.lax.Precision.HIGHEST,
    )
    return y + b


def pyramid_ref(m, c3, c4, c5):
    p5_x = _conv_ref(c5, m.p5_1_w, m.p5_1_b, 1, 0)
    p5_up = upsample_nearest_2x(p5_x)
    p5_out = _conv_ref(p5_x, m.p5_2_w, m.p5_2_b, 1, 1)
    p4_x = _conv_ref(c4, m.p4_1_w, m.p4_1_b, 1, 0) + p5_up
    p4_up = upsample_nearest_2x(p4_x)
    p4_out = _conv_ref(p4_x, m.p4_2_w, m.p4_2_b, 1, 1)
    p3_x = _conv_ref(c3, m.p3_1_w, m.p3_1_b, 1, 0) + p4_up
    p3_out = _conv_ref(p3_x, m.p3_2_w, m.p3_2_b, 1, 1)
    p6_x = _conv_ref(c5, m.p6_w, m.p6_b, 2, 1)
    p7_x = _conv_ref(p6_x, m.p7_2_w, m.p7_2_b, 2, 1, input_relu=True)
    return [p3_out, p4_out, p5_out, p6_x, p7_x]


if __name__ == "__main__":
    key = jax.random.PRNGKey(0)
    k3, k4, k5, kw = jax.random.split(key, 4)

    N = 2
    c3_size, c4_size, c5_size, feat = 16, 32, 64, 64

    # PyTorch-convention NCHW backbone feature maps, converted to NHWC for the kernels.
    c3_nchw = jax.random.normal(k3, (N, c3_size, 16, 16), jnp.float32)
    c4_nchw = jax.random.normal(k4, (N, c4_size, 8, 8), jnp.float32)
    c5_nchw = jax.random.normal(k5, (N, c5_size, 4, 4), jnp.float32)
    to_nhwc = lambda t: jnp.transpose(t, (0, 2, 3, 1))
    c3, c4, c5 = to_nhwc(c3_nchw), to_nhwc(c4_nchw), to_nhwc(c5_nchw)

    model = PyramidFeaturesPallas(c3_size, c4_size, c5_size, feature_size=feat, key=kw)

    fwd = jax.jit(lambda a, b, c: model(a, b, c))
    outs = jax.block_until_ready(fwd(c3, c4, c5))

    refs = jax.block_until_ready(pyramid_ref(model, c3, c4, c5))
    expected = [
        (N, 16, 16, feat),  # P3
        (N, 8, 8, feat),    # P4
        (N, 4, 4, feat),    # P5
        (N, 2, 2, feat),    # P6
        (N, 1, 1, feat),    # P7
    ]
    for o, r, s in zip(outs, refs, expected):
        assert o.shape == s, (o.shape, s)
        # bf16 MXU operands + bf16 intermediate merged maps vs exact-f32 reference.
        np.testing.assert_allclose(np.asarray(o), np.asarray(r), rtol=5e-2, atol=5e-2)

    print("KERNEL_OK")
</pallas_src>

<mosaic_0001>
module attributes {stable_mosaic.version = 11 : i64} {
  func.func @_fpn_level_kernel(%arg0: i32, %arg1: memref<1x16x64xf32, #tpu.memory_space<vmem>>, %arg2: memref<64x64xbf16, #tpu.memory_space<vmem>>, %arg3: memref<1x64xf32, #tpu.memory_space<vmem>>, %arg4: memref<3x192x64xbf16, #tpu.memory_space<vmem>>, %arg5: memref<1x64xf32, #tpu.memory_space<vmem>>, %arg6: memref<1x4x4x64xbf16, #tpu.memory_space<vmem>>, %arg7: memref<1x4x4x64xf32, #tpu.memory_space<vmem>>, %arg8: memref<56x64xbf16, #tpu.memory_space<vmem>>) attributes {dimension_semantics = [#tpu.dimension_semantics<parallel>], iteration_bounds = array<i64: 2>, scalar_prefetch = 0 : i64, scratch_operands = 1 : i64, tpu.core_type = #tpu.core_type<tc>, window_params = [{transform_indices = @transform_0, window_bounds = array<i64: 1, 16, 64>}, {pipeline_mode = #tpu.pipeline_mode<synchronous>, transform_indices = @transform_1, window_bounds = array<i64: 64, 64>}, {pipeline_mode = #tpu.pipeline_mode<synchronous>, transform_indices = @transform_2, window_bounds = array<i64: 1, 64>}, {pipeline_mode = #tpu.pipeline_mode<synchronous>, transform_indices = @transform_3, window_bounds = array<i64: 3, 192, 64>}, {pipeline_mode = #tpu.pipeline_mode<synchronous>, transform_indices = @transform_4, window_bounds = array<i64: 1, 64>}, {transform_indices = @transform_5, window_bounds = array<i64: 1, 4, 4, 64>}, {transform_indices = @transform_6, window_bounds = array<i64: 1, 4, 4, 64>}]} {
    %c0 = arith.constant 0 : index
    %c0_0 = arith.constant 0 : index
    %c0_1 = arith.constant 0 : index
    %0 = vector.load %arg1[%c0, %c0_0, %c0_1] : memref<1x16x64xf32, #tpu.memory_space<vmem>>, vector<1x16x64xf32>
    %1 = vector.shape_cast %0 : vector<1x16x64xf32> to vector<16x64xf32>
    %2 = arith.truncf %1 : vector<16x64xf32> to vector<16x64xbf16>
    %c0_2 = arith.constant 0 : index
    %c0_3 = arith.constant 0 : index
    %3 = vector.load %arg2[%c0_2, %c0_3] : memref<64x64xbf16, #tpu.memory_space<vmem>>, vector<64x64xbf16>
    %cst = arith.constant dense<0.000000e+00> : vector<16x64xf32>
    %4 = tpu.matmul %2, %3, %cst {dimension_numbers = #tpu.dot_dimension_numbers<[1], [0], [0], [1], [0, 0, 1, 1], [], []>} : vector<16x64xbf16>, vector<64x64xbf16>, vector<16x64xf32> -> vector<16x64xf32>
    %c0_4 = arith.constant 0 : index
    %c0_5 = arith.constant 0 : index
    %5 = vector.load %arg3[%c0_4, %c0_5] : memref<1x64xf32, #tpu.memory_space<vmem>>, vector<1x64xf32>
    %6 = vector.broadcast %5 : vector<1x64xf32> to vector<16x64xf32>
    %7 = arith.addf %4, %6 : vector<16x64xf32>
    %8 = vector.shape_cast %7 : vector<16x64xf32> to vector<4x4x64xf32>
    %9 = arith.truncf %8 : vector<4x4x64xf32> to vector<4x4x64xbf16>
    %10 = vector.shape_cast %9 : vector<4x4x64xbf16> to vector<1x4x4x64xbf16>
    %c0_6 = arith.constant 0 : index
    %c0_7 = arith.constant 0 : index
    %c0_8 = arith.constant 0 : index
    %c0_9 = arith.constant 0 : index
    %11 = vector.load %arg6[%c0_6, %c0_7, %c0_8, %c0_9] : memref<1x4x4x64xbf16, #tpu.memory_space<vmem>>, vector<1x4x4x64xbf16>
    tpu.vector_store %arg6[%c0_6, %c0_7, %c0_8, %c0_9], %10 {strides = array<i32>} : memref<1x4x4x64xbf16, #tpu.memory_space<vmem>>, vector<1x4x4x64xbf16>,
    %cst_10 = arith.constant 0.000000e+00 : bf16
    %12 = vector.broadcast %cst_10 : bf16 to vector<4x1x64xbf16>
    %cst_11 = arith.constant 0.000000e+00 : bf16
    %13 = vector.broadcast %cst_11 : bf16 to vector<4x3x64xbf16>
    %14 = tpu.concatenate %12, %9, %13 in 1 : vector<4x1x64xbf16>, vector<4x4x64xbf16>, vector<4x3x64xbf16> -> vector<4x8x64xbf16>
    %15 = vector.shape_cast %14 : vector<4x8x64xbf16> to vector<32x64xbf16>
    %cst_12 = arith.constant 0.000000e+00 : bf16
    %16 = vector.broadcast %cst_12 : bf16 to vector<8x64xbf16>
    %c0_13 = arith.constant 0 : index
    %c0_14 = arith.constant 0 : index
    %17 = vector.load %arg8[%c0_13, %c0_14] : memref<56x64xbf16, #tpu.memory_space<vmem>>, vector<8x64xbf16>
    tpu.vector_store %arg8[%c0_13, %c0_14], %16 {strides = array<i32>} : memref<56x64xbf16, #tpu.memory_space<vmem>>, vector<8x64xbf16>,
    %c8 = arith.constant 8 : index
    %c0_15 = arith.constant 0 : index
    %18 = vector.load %arg8[%c8, %c0_15] : memref<56x64xbf16, #tpu.memory_space<vmem>>, vector<32x64xbf16>
    tpu.vector_store %arg8[%c8, %c0_15], %15 {strides = array<i32>} : memref<56x64xbf16, #tpu.memory_space<vmem>>, vector<32x64xbf16>,
    %cst_16 = arith.constant 0.000000e+00 : bf16
    %19 = vector.broadcast %cst_16 : bf16 to vector<16x64xbf16>
    %c40 = arith.constant 40 : index
    %c0_17 = arith.constant 0 : index
    %20 = vector.load %arg8[%c40, %c0_17] : memref<56x64xbf16, #tpu.memory_space<vmem>>, vector<16x64xbf16>
    tpu.vector_store %arg8[%c40, %c0_17], %19 {strides = array<i32>} : memref<56x64xbf16, #tpu.memory_space<vmem>>, vector<16x64xbf16>,
    %c0_18 = arith.constant 0 : index
    %c0_19 = arith.constant 0 : index
    %21 = vector.load %arg5[%c0_18, %c0_19] : memref<1x64xf32, #tpu.memory_space<vmem>>, vector<1x64xf32>
    %22 = vector.shape_cast %21 : vector<1x64xf32> to vector<1x64xf32>
    %23 = vector.broadcast %22 : vector<1x64xf32> to vector<32x64xf32>
    %c0_20 = arith.constant 0 : index
    %c0_21 = arith.constant 0 : index
    %24 = vector.load %arg8[%c0_20, %c0_21] : memref<56x64xbf16, #tpu.memory_space<vmem>>, vector<32x64xbf16>
    %c1 = arith.constant 1 : index
    %c0_22 = arith.constant 0 : index
    %25 = vector.load %arg8[%c1, %c0_22] : memref<56x64xbf16, #tpu.memory_space<vmem>>, vector<32x64xbf16>
    %c2 = arith.constant 2 : index
    %c0_23 = arith.constant 0 : index
    %26 = vector.load %arg8[%c2, %c0_23] : memref<56x64xbf16, #tpu.memory_space<vmem>>, vector<32x64xbf16>
    %27 = tpu.concatenate %24, %25, %26 in 1 : vector<32x64xbf16>, vector<32x64xbf16>, vector<32x64xbf16> -> vector<32x192xbf16>
    %c0_24 = arith.constant 0 : index
    %c0_25 = arith.constant 0 : index
    %c0_26 = arith.constant 0 : index
    %28 = vector.load %arg4[%c0_24, %c0_25, %c0_26] : memref<3x192x64xbf16, #tpu.memory_space<vmem>>, vector<1x192x64xbf16>
    %29 = vector.shape_cast %28 : vector<1x192x64xbf16> to vector<192x64xbf16>
    %cst_27 = arith.constant dense<0.000000e+00> : vector<32x64xf32>
    %30 = tpu.matmul %27, %29, %cst_27 {dimension_numbers = #tpu.dot_dimension_numbers<[1], [0], [0], [1], [0, 0, 1, 1], [], []>} : vector<32x192xbf16>, vector<192x64xbf16>, vector<32x64xf32> -> vector<32x64xf32>
    %31 = arith.addf %23, %30 : vector<32x64xf32>
    %c8_28 = arith.constant 8 : index
    %c0_29 = arith.constant 0 : index
    %32 = vector.load %arg8[%c8_28, %c0_29] : memref<56x64xbf16, #tpu.memory_space<vmem>>, vector<32x64xbf16>
    %c9 = arith.constant 9 : index
    %c0_30 = arith.constant 0 : index
    %33 = vector.load %arg8[%c9, %c0_30] : memref<56x64xbf16, #tpu.memory_space<vmem>>, vector<32x64xbf16>
    %c10 = arith.constant 10 : index
    %c0_31 = arith.constant 0 : index
    %34 = vector.load %arg8[%c10, %c0_31] : memref<56x64xbf16, #tpu.memory_space<vmem>>, vector<32x64xbf16>
    %35 = tpu.concatenate %32, %33, %34 in 1 : vector<32x64xbf16>, vector<32x64xbf16>, vector<32x64xbf16> -> vector<32x192xbf16>
    %c1_32 = arith.constant 1 : index
    %c0_33 = arith.constant 0 : index
    %c0_34 = arith.constant 0 : index
    %36 = vector.load %arg4[%c1_32, %c0_33, %c0_34] : memref<3x192x64xbf16, #tpu.memory_space<vmem>>, vector<1x192x64xbf16>
    %37 = vector.shape_cast %36 : vector<1x192x64xbf16> to vector<192x64xbf16>
    %cst_35 = arith.constant dense<0.000000e+00> : vector<32x64xf32>
    %38 = tpu.matmul %35, %37, %cst_35 {dimension_numbers = #tpu.dot_dimension_numbers<[1], [0], [0], [1], [0, 0, 1, 1], [], []>} : vector<32x192xbf16>, vector<192x64xbf16>, vector<32x64xf32> -> vector<32x64xf32>
    %39 = arith.addf %31, %38 : vector<32x64xf32>
    %c16 = arith.constant 16 : index
    %c0_36 = arith.constant 0 : index
    %40 = vector.load %arg8[%c16, %c0_36] : memref<56x64xbf16, #tpu.memory_space<vmem>>, vector<32x64xbf16>
    %c17 = arith.constant 17 : index
    %c0_37 = arith.constant 0 : index
    %41 = vector.load %arg8[%c17, %c0_37] : memref<56x64xbf16, #tpu.memory_space<vmem>>, vector<32x64xbf16>
    %c18 = arith.constant 18 : index
    %c0_38 = arith.constant 0 : index
    %42 = vector.load %arg8[%c18, %c0_38] : memref<56x64xbf16, #tpu.memory_space<vmem>>, vector<32x64xbf16>
    %43 = tpu.concatenate %40, %41, %42 in 1 : vector<32x64xbf16>, vector<32x64xbf16>, vector<32x64xbf16> -> vector<32x192xbf16>
    %c2_39 = arith.constant 2 : index
    %c0_40 = arith.constant 0 : index
    %c0_41 = arith.constant 0 : index
    %44 = vector.load %arg4[%c2_39, %c0_40, %c0_41] : memref<3x192x64xbf16, #tpu.memory_space<vmem>>, vector<1x192x64xbf16>
    %45 = vector.shape_cast %44 : vector<1x192x64xbf16> to vector<192x64xbf16>
    %cst_42 = arith.constant dense<0.000000e+00> : vector<32x64xf32>
    %46 = tpu.matmul %43, %45, %cst_42 {dimension_numbers = #tpu.dot_dimension_numbers<[1], [0], [0], [1], [0, 0, 1, 1], [], []>} : vector<32x192xbf16>, vector<192x64xbf16>, vector<32x64xf32> -> vector<32x64xf32>
    %47 = arith.addf %39, %46 : vector<32x64xf32>
    %48 = vector.shape_cast %47 : vector<32x64xf32> to vector<4x8x64xf32>
    %49 = vector.extract_strided_slice %48 {offsets = [0, 0, 0], sizes = [4, 4, 64], strides = [1, 1, 1]} : vector<4x8x64xf32> to vector<4x4x64xf32>
    %50 = vector.shape_cast %49 : vector<4x4x64xf32> to vector<1x4x4x64xf32>
    %c0_43 = arith.constant 0 : index
    %c0_44 = arith.constant 0 : index
    %c0_45 = arith.constant 0 : index
    %c0_46 = arith.constant 0 : index
    %51 = vector.load %arg7[%c0_43, %c0_44, %c0_45, %c0_46] : memref<1x4x4x64xf32, #tpu.memory_space<vmem>>, vector<1x4x4x64xf32>
    tpu.vector_store %arg7[%c0_43, %c0_44, %c0_45, %c0_46], %50 {strides = array<i32>} : memref<1x4x4x64xf32, #tpu.memory_space<vmem>>, vector<1x4x4x64xf32>,
    return
  }
  func.func @transform_0(%arg0: i32) -> (i32, i32, i32) {
    %c0_i32 = arith.constant 0 : i32
    %c0_i32_0 = arith.constant 0 : i32
    %c0_i32_1 = arith.constant 0 : i32
    return %arg0, %c0_i32, %c0_i32_0 : i32, i32, i32
  }
  func.func @transform_1(%arg0: i32) -> (i32, i32) {
    %c0_i32 = arith.constant 0 : i32
    %c0_i32_0 = arith.constant 0 : i32
    %c0_i32_1 = arith.constant 0 : i32
    return %c0_i32, %c0_i32_0 : i32, i32
  }
  func.func @transform_2(%arg0: i32) -> (i32, i32) {
    %c0_i32 = arith.constant 0 : i32
    %c0_i32_0 = arith.constant 0 : i32
    %c0_i32_1 = arith.constant 0 : i32
    return %c0_i32, %c0_i32_0 : i32, i32
  }
  func.func @transform_3(%arg0: i32) -> (i32, i32, i32) {
    %c0_i32 = arith.constant 0 : i32
    %c0_i32_0 = arith.constant 0 : i32
    %c0_i32_1 = arith.constant 0 : i32
    %c0_i32_2 = arith.constant 0 : i32
    return %c0_i32, %c0_i32_0, %c0_i32_1 : i32, i32, i32
  }
  func.func @transform_4(%arg0: i32) -> (i32, i32) {
    %c0_i32 = arith.constant 0 : i32
    %c0_i32_0 = arith.constant 0 : i32
    %c0_i32_1 = arith.constant 0 : i32
    return %c0_i32, %c0_i32_0 : i32, i32
  }
  func.func @transform_5(%arg0: i32) -> (i32, i32, i32, i32) {
    %c0_i32 = arith.constant 0 : i32
    %c0_i32_0 = arith.constant 0 : i32
    %c0_i32_1 = arith.constant 0 : i32
    %c0_i32_2 = arith.constant 0 : i32
    return %arg0, %c0_i32, %c0_i32_0, %c0_i32_1 : i32, i32, i32, i32
  }
  func.func @transform_6(%arg0: i32) -> (i32, i32, i32, i32) {
    %c0_i32 = arith.constant 0 : i32
    %c0_i32_0 = arith.constant 0 : i32
    %c0_i32_1 = arith.constant 0 : i32
    %c0_i32_2 = arith.constant 0 : i32
    return %arg0, %c0_i32, %c0_i32_0, %c0_i32_1 : i32, i32, i32, i32
  }
}

module attributes {stable_mosaic.version = 11 : i64} {
  func.func @_fpn_level_kernel(%arg0: i32, %arg1: memref<1x64x32xf32, #tpu.memory_space<vmem>>, %arg2: memref<32x64xbf16, #tpu.memory_space<vmem>>, %arg3: memref<1x64xf32, #tpu.memory_space<vmem>>, %arg4: memref<3x192x64xbf16, #tpu.memory_space<vmem>>, %arg5: memref<1x64xf32, #tpu.memory_space<vmem>>, %arg6: memref<1x64x64xbf16, #tpu.memory_space<vmem>>, %arg7: memref<1x8x8x64xbf16, #tpu.memory_space<vmem>>, %arg8: memref<1x8x8x64xf32, #tpu.memory_space<vmem>>, %arg9: memref<168x64xbf16, #tpu.memory_space<vmem>>) attributes {dimension_semantics = [#tpu.dimension_semantics<parallel>], iteration_bounds = array<i64: 2>, scalar_prefetch = 0 : i64, scratch_operands = 1 : i64, tpu.core_type = #tpu.core_type<tc>, window_params = [{transform_indices = @transform_0, window_bounds = array<i64: 1, 64, 32>}, {pipeline_mode = #tpu.pipeline_mode<synchronous>, transform_indices = @transform_1, window_bounds = array<i64: 32, 64>}, {pipeline_mode = #tpu.pipeline_mode<synchronous>, transform_indices = @transform_2, window_bounds = array<i64: 1, 64>}, {pipeline_mode = #tpu.pipeline_mode<synchronous>, transform_indices = @transform_3, window_bounds = array<i64: 3, 192, 64>}, {pipeline_mode = #tpu.pipeline_mode<synchronous>, transform_indices = @transform_4, window_bounds = array<i64: 1, 64>}, {transform_indices = @transform_5, window_bounds = array<i64: 1, 64, 64>}, {transform_indices = @transform_6, window_bounds = array<i64: 1, 8, 8, 64>}, {transform_indices = @transform_7, window_bounds = array<i64: 1, 8, 8, 64>}]} {
    %c0 = arith.constant 0 : index
    %c0_0 = arith.constant 0 : index
    %c0_1 = arith.constant 0 : index
    %0 = vector.load %arg1[%c0, %c0_0, %c0_1] : memref<1x64x32xf32, #tpu.memory_space<vmem>>, vector<1x64x32xf32>
    %1 = vector.shape_cast %0 : vector<1x64x32xf32> to vector<64x32xf32>
    %2 = arith.truncf %1 : vector<64x32xf32> to vector<64x32xbf16>
    %c0_2 = arith.constant 0 : index
    %c0_3 = arith.constant 0 : index
    %3 = vector.load %arg2[%c0_2, %c0_3] : memref<32x64xbf16, #tpu.memory_space<vmem>>, vector<32x64xbf16>
    %cst = arith.constant dense<0.000000e+00> : vector<64x64xf32>
    %4 = tpu.matmul %2, %3, %cst {dimension_numbers = #tpu.dot_dimension_numbers<[1], [0], [0], [1], [0, 0, 1, 1], [], []>} : vector<64x32xbf16>, vector<32x64xbf16>, vector<64x64xf32> -> vector<64x64xf32>
    %c0_4 = arith.constant 0 : index
    %c0_5 = arith.constant 0 : index
    %5 = vector.load %arg3[%c0_4, %c0_5] : memref<1x64xf32, #tpu.memory_space<vmem>>, vector<1x64xf32>
    %6 = vector.broadcast %5 : vector<1x64xf32> to vector<64x64xf32>
    %7 = arith.addf %4, %6 : vector<64x64xf32>
    %c0_6 = arith.constant 0 : index
    %c0_7 = arith.constant 0 : index
    %c0_8 = arith.constant 0 : index
    %8 = vector.load %arg6[%c0_6, %c0_7, %c0_8] : memref<1x64x64xbf16, #tpu.memory_space<vmem>>, vector<1x64x64xbf16>
    %9 = vector.shape_cast %8 : vector<1x64x64xbf16> to vector<64x64xbf16>
    %10 = arith.extf %9 : vector<64x64xbf16> to vector<64x64xf32>
    %11 = arith.addf %7, %10 : vector<64x64xf32>
    %12 = vector.shape_cast %11 : vector<64x64xf32> to vector<8x8x64xf32>
    %13 = arith.truncf %12 : vector<8x8x64xf32> to vector<8x8x64xbf16>
    %14 = vector.shape_cast %13 : vector<8x8x64xbf16> to vector<1x8x8x64xbf16>
    %c0_9 = arith.constant 0 : index
    %c0_10 = arith.constant 0 : index
    %c0_11 = arith.constant 0 : index
    %c0_12 = arith.constant 0 : index
    %15 = vector.load %arg7[%c0_9, %c0_10, %c0_11, %c0_12] : memref<1x8x8x64xbf16, #tpu.memory_space<vmem>>, vector<1x8x8x64xbf16>
    tpu.vector_store %arg7[%c0_9, %c0_10, %c0_11, %c0_12], %14 {strides = array<i32>} : memref<1x8x8x64xbf16, #tpu.memory_space<vmem>>, vector<1x8x8x64xbf16>,
    %cst_13 = arith.constant 0.000000e+00 : bf16
    %16 = vector.broadcast %cst_13 : bf16 to vector<8x1x64xbf16>
    %cst_14 = arith.constant 0.000000e+00 : bf16
    %17 = vector.broadcast %cst_14 : bf16 to vector<8x7x64xbf16>
    %18 = tpu.concatenate %16, %13, %17 in 1 : vector<8x1x64xbf16>, vector<8x8x64xbf16>, vector<8x7x64xbf16> -> vector<8x16x64xbf16>
    %19 = vector.shape_cast %18 : vector<8x16x64xbf16> to vector<128x64xbf16>
    %cst_15 = arith.constant 0.000000e+00 : bf16
    %20 = vector.broadcast %cst_15 : bf16 to vector<16x64xbf16>
    %c0_16 = arith.constant 0 : index
    %c0_17 = arith.constant 0 : index
    %21 = vector.load %arg9[%c0_16, %c0_17] : memref<168x64xbf16, #tpu.memory_space<vmem>>, vector<16x64xbf16>
    tpu.vector_store %arg9[%c0_16, %c0_17], %20 {strides = array<i32>} : memref<168x64xbf16, #tpu.memory_space<vmem>>, vector<16x64xbf16>,
    %c16 = arith.constant 16 : index
    %c0_18 = arith.constant 0 : index
    %22 = vector.load %arg9[%c16, %c0_18] : memref<168x64xbf16, #tpu.memory_space<vmem>>, vector<128x64xbf16>
    tpu.vector_store %arg9[%c16, %c0_18], %19 {strides = array<i32>} : memref<168x64xbf16, #tpu.memory_space<vmem>>, vector<128x64xbf16>,
    %cst_19 = arith.constant 0.000000e+00 : bf16
    %23 = vector.broadcast %cst_19 : bf16 to vector<24x64xbf16>
    %c144 = arith.constant 144 : index
    %c0_20 = arith.constant 0 : index
    %24 = vector.load %arg9[%c144, %c0_20] : memref<168x64xbf16, #tpu.memory_space<vmem>>, vector<24x64xbf16>
    tpu.vector_store %arg9[%c144, %c0_20], %23 {strides = array<i32>} : memref<168x64xbf16, #tpu.memory_space<vmem>>, vector<24x64xbf16>,
    %c0_21 = arith.constant 0 : index
    %c0_22 = arith.constant 0 : index
    %25 = vector.load %arg5[%c0_21, %c0_22] : memref<1x64xf32, #tpu.memory_space<vmem>>, vector<1x64xf32>
    %26 = vector.shape_cast %25 : vector<1x64xf32> to vector<1x64xf32>
    %27 = vector.broadcast %26 : vector<1x64xf32> to vector<128x64xf32>
    %c0_23 = arith.constant 0 : index
    %c0_24 = arith.constant 0 : index
    %28 = vector.load %arg9[%c0_23, %c0_24] : memref<168x64xbf16, #tpu.memory_space<vmem>>, vector<128x64xbf16>
    %c1 = arith.constant 1 : index
    %c0_25 = arith.constant 0 : index
    %29 = vector.load %arg9[%c1, %c0_25] : memref<168x64xbf16, #tpu.memory_space<vmem>>, vector<128x64xbf16>
    %c2 = arith.constant 2 : index
    %c0_26 = arith.constant 0 : index
    %30 = vector.load %arg9[%c2, %c0_26] : memref<168x64xbf16, #tpu.memory_space<vmem>>, vector<128x64xbf16>
    %31 = tpu.concatenate %28, %29, %30 in 1 : vector<128x64xbf16>, vector<128x64xbf16>, vector<128x64xbf16> -> vector<128x192xbf16>
    %c0_27 = arith.constant 0 : index
    %c0_28 = arith.constant 0 : index
    %c0_29 = arith.constant 0 : index
    %32 = vector.load %arg4[%c0_27, %c0_28, %c0_29] : memref<3x192x64xbf16, #tpu.memory_space<vmem>>, vector<1x192x64xbf16>
    %33 = vector.shape_cast %32 : vector<1x192x64xbf16> to vector<192x64xbf16>
    %cst_30 = arith.constant dense<0.000000e+00> : vector<128x64xf32>
    %34 = tpu.matmul %31, %33, %cst_30 {dimension_numbers = #tpu.dot_dimension_numbers<[1], [0], [0], [1], [0, 0, 1, 1], [], []>} : vector<128x192xbf16>, vector<192x64xbf16>, vector<128x64xf32> -> vector<128x64xf32>
    %35 = arith.addf %27, %34 : vector<128x64xf32>
    %c16_31 = arith.constant 16 : index
    %c0_32 = arith.constant 0 : index
    %36 = vector.load %arg9[%c16_31, %c0_32] : memref<168x64xbf16, #tpu.memory_space<vmem>>, vector<128x64xbf16>
    %c17 = arith.constant 17 : index
    %c0_33 = arith.constant 0 : index
    %37 = vector.load %arg9[%c17, %c0_33] : memref<168x64xbf16, #tpu.memory_space<vmem>>, vector<128x64xbf16>
    %c18 = arith.constant 18 : index
    %c0_34 = arith.constant 0 : index
    %38 = vector.load %arg9[%c18, %c0_34] : memref<168x64xbf16, #tpu.memory_space<vmem>>, vector<128x64xbf16>
    %39 = tpu.concatenate %36, %37, %38 in 1 : vector<128x64xbf16>, vector<128x64xbf16>, vector<128x64xbf16> -> vector<128x192xbf16>
    %c1_35 = arith.constant 1 : index
    %c0_36 = arith.constant 0 : index
    %c0_37 = arith.constant 0 : index
    %40 = vector.load %arg4[%c1_35, %c0_36, %c0_37] : memref<3x192x64xbf16, #tpu.memory_space<vmem>>, vector<1x192x64xbf16>
    %41 = vector.shape_cast %40 : vector<1x192x64xbf16> to vector<192x64xbf16>
    %cst_38 = arith.constant dense<0.000000e+00> : vector<128x64xf32>
    %42 = tpu.matmul %39, %41, %cst_38 {dimension_numbers = #tpu.dot_dimension_numbers<[1], [0], [0], [1], [0, 0, 1, 1], [], []>} : vector<128x192xbf16>, vector<192x64xbf16>, vector<128x64xf32> -> vector<128x64xf32>
    %43 = arith.addf %35, %42 : vector<128x64xf32>
    %c32 = arith.constant 32 : index
    %c0_39 = arith.constant 0 : index
    %44 = vector.load %arg9[%c32, %c0_39] : memref<168x64xbf16, #tpu.memory_space<vmem>>, vector<128x64xbf16>
    %c33 = arith.constant 33 : index
    %c0_40 = arith.constant 0 : index
    %45 = vector.load %arg9[%c33, %c0_40] : memref<168x64xbf16, #tpu.memory_space<vmem>>, vector<128x64xbf16>
    %c34 = arith.constant 34 : index
    %c0_41 = arith.constant 0 : index
    %46 = vector.load %arg9[%c34, %c0_41] : memref<168x64xbf16, #tpu.memory_space<vmem>>, vector<128x64xbf16>
    %47 = tpu.concatenate %44, %45, %46 in 1 : vector<128x64xbf16>, vector<128x64xbf16>, vector<128x64xbf16> -> vector<128x192xbf16>
    %c2_42 = arith.constant 2 : index
    %c0_43 = arith.constant 0 : index
    %c0_44 = arith.constant 0 : index
    %48 = vector.load %arg4[%c2_42, %c0_43, %c0_44] : memref<3x192x64xbf16, #tpu.memory_space<vmem>>, vector<1x192x64xbf16>
    %49 = vector.shape_cast %48 : vector<1x192x64xbf16> to vector<192x64xbf16>
    %cst_45 = arith.constant dense<0.000000e+00> : vector<128x64xf32>
    %50 = tpu.matmul %47, %49, %cst_45 {dimension_numbers = #tpu.dot_dimension_numbers<[1], [0], [0], [1], [0, 0, 1, 1], [], []>} : vector<128x192xbf16>, vector<192x64xbf16>, vector<128x64xf32> -> vector<128x64xf32>
    %51 = arith.addf %43, %50 : vector<128x64xf32>
    %52 = vector.shape_cast %51 : vector<128x64xf32> to vector<8x16x64xf32>
    %53 = vector.extract_strided_slice %52 {offsets = [0, 0, 0], sizes = [8, 8, 64], strides = [1, 1, 1]} : vector<8x16x64xf32> to vector<8x8x64xf32>
    %54 = vector.shape_cast %53 : vector<8x8x64xf32> to vector<1x8x8x64xf32>
    %c0_46 = arith.constant 0 : index
    %c0_47 = arith.constant 0 : index
    %c0_48 = arith.constant 0 : index
    %c0_49 = arith.constant 0 : index
    %55 = vector.load %arg8[%c0_46, %c0_47, %c0_48, %c0_49] : memref<1x8x8x64xf32, #tpu.memory_space<vmem>>, vector<1x8x8x64xf32>
    tpu.vector_store %arg8[%c0_46, %c0_47, %c0_48, %c0_49], %54 {strides = array<i32>} : memref<1x8x8x64xf32, #tpu.memory_space<vmem>>, vector<1x8x8x64xf32>,
    return
  }
  func.func @transform_0(%arg0: i32) -> (i32, i32, i32) {
    %c0_i32 = arith.constant 0 : i32
    %c0_i32_0 = arith.constant 0 : i32
    %c0_i32_1 = arith.constant 0 : i32
    return %arg0, %c0_i32, %c0_i32_0 : i32, i32, i32
  }
  func.func @transform_1(%arg0: i32) -> (i32, i32) {
    %c0_i32 = arith.constant 0 : i32
    %c0_i32_0 = arith.constant 0 : i32
    %c0_i32_1 = arith.constant 0 : i32
    return %c0_i32, %c0_i32_0 : i32, i32
  }
  func.func @transform_2(%arg0: i32) -> (i32, i32) {
    %c0_i32 = arith.constant 0 : i32
    %c0_i32_0 = arith.constant 0 : i32
    %c0_i32_1 = arith.constant 0 : i32
    return %c0_i32, %c0_i32_0 : i32, i32
  }
  func.func @transform_3(%arg0: i32) -> (i32, i32, i32) {
    %c0_i32 = arith.constant 0 : i32
    %c0_i32_0 = arith.constant 0 : i32
    %c0_i32_1 = arith.constant 0 : i32
    %c0_i32_2 = arith.constant 0 : i32
    return %c0_i32, %c0_i32_0, %c0_i32_1 : i32, i32, i32
  }
  func.func @transform_4(%arg0: i32) -> (i32, i32) {
    %c0_i32 = arith.constant 0 : i32
    %c0_i32_0 = arith.constant 0 : i32
    %c0_i32_1 = arith.constant 0 : i32
    return %c0_i32, %c0_i32_0 : i32, i32
  }
  func.func @transform_5(%arg0: i32) -> (i32, i32, i32) {
    %c0_i32 = arith.constant 0 : i32
    %c0_i32_0 = arith.constant 0 : i32
    %c0_i32_1 = arith.constant 0 : i32
    return %arg0, %c0_i32, %c0_i32_0 : i32, i32, i32
  }
  func.func @transform_6(%arg0: i32) -> (i32, i32, i32, i32) {
    %c0_i32 = arith.constant 0 : i32
    %c0_i32_0 = arith.constant 0 : i32
    %c0_i32_1 = arith.constant 0 : i32
    %c0_i32_2 = arith.constant 0 : i32
    return %arg0, %c0_i32, %c0_i32_0, %c0_i32_1 : i32, i32, i32, i32
  }
  func.func @transform_7(%arg0: i32) -> (i32, i32, i32, i32) {
    %c0_i32 = arith.constant 0 : i32
    %c0_i32_0 = arith.constant 0 : i32
    %c0_i32_1 = arith.constant 0 : i32
    %c0_i32_2 = arith.constant 0 : i32
    return %arg0, %c0_i32, %c0_i32_0, %c0_i32_1 : i32, i32, i32, i32
  }
}

module attributes {stable_mosaic.version = 11 : i64} {
  func.func @_fpn_level_kernel(%arg0: i32, %arg1: memref<1x256x16xf32, #tpu.memory_space<vmem>>, %arg2: memref<16x64xbf16, #tpu.memory_space<vmem>>, %arg3: memref<1x64xf32, #tpu.memory_space<vmem>>, %arg4: memref<3x192x64xbf16, #tpu.memory_space<vmem>>, %arg5: memref<1x64xf32, #tpu.memory_space<vmem>>, %arg6: memref<1x256x64xbf16, #tpu.memory_space<vmem>>, %arg7: memref<1x16x16x64xf32, #tpu.memory_space<vmem>>, %arg8: memref<440x64xbf16, #tpu.memory_space<vmem>>) attributes {dimension_semantics = [#tpu.dimension_semantics<parallel>], iteration_bounds = array<i64: 2>, scalar_prefetch = 0 : i64, scratch_operands = 1 : i64, tpu.core_type = #tpu.core_type<tc>, window_params = [{transform_indices = @transform_0, window_bounds = array<i64: 1, 256, 16>}, {pipeline_mode = #tpu.pipeline_mode<synchronous>, transform_indices = @transform_1, window_bounds = array<i64: 16, 64>}, {pipeline_mode = #tpu.pipeline_mode<synchronous>, transform_indices = @transform_2, window_bounds = array<i64: 1, 64>}, {pipeline_mode = #tpu.pipeline_mode<synchronous>, transform_indices = @transform_3, window_bounds = array<i64: 3, 192, 64>}, {pipeline_mode = #tpu.pipeline_mode<synchronous>, transform_indices = @transform_4, window_bounds = array<i64: 1, 64>}, {transform_indices = @transform_5, window_bounds = array<i64: 1, 256, 64>}, {transform_indices = @transform_6, window_bounds = array<i64: 1, 16, 16, 64>}]} {
    %c0 = arith.constant 0 : index
    %c0_0 = arith.constant 0 : index
    %c0_1 = arith.constant 0 : index
    %0 = vector.load %arg1[%c0, %c0_0, %c0_1] : memref<1x256x16xf32, #tpu.memory_space<vmem>>, vector<1x256x16xf32>
    %1 = vector.shape_cast %0 : vector<1x256x16xf32> to vector<256x16xf32>
    %2 = arith.truncf %1 : vector<256x16xf32> to vector<256x16xbf16>
    %c0_2 = arith.constant 0 : index
    %c0_3 = arith.constant 0 : index
    %3 = vector.load %arg2[%c0_2, %c0_3] : memref<16x64xbf16, #tpu.memory_space<vmem>>, vector<16x64xbf16>
    %cst = arith.constant dense<0.000000e+00> : vector<256x64xf32>
    %4 = tpu.matmul %2, %3, %cst {dimension_numbers = #tpu.dot_dimension_numbers<[1], [0], [0], [1], [0, 0, 1, 1], [], []>} : vector<256x16xbf16>, vector<16x64xbf16>, vector<256x64xf32> -> vector<256x64xf32>
    %c0_4 = arith.constant 0 : index
    %c0_5 = arith.constant 0 : index
    %5 = vector.load %arg3[%c0_4, %c0_5] : memref<1x64xf32, #tpu.memory_space<vmem>>, vector<1x64xf32>
    %6 = vector.broadcast %5 : vector<1x64xf32> to vector<256x64xf32>
    %7 = arith.addf %4, %6 : vector<256x64xf32>
    %c0_6 = arith.constant 0 : index
    %c0_7 = arith.constant 0 : index
    %c0_8 = arith.constant 0 : index
    %8 = vector.load %arg6[%c0_6, %c0_7, %c0_8] : memref<1x256x64xbf16, #tpu.memory_space<vmem>>, vector<1x256x64xbf16>
    %9 = vector.shape_cast %8 : vector<1x256x64xbf16> to vector<256x64xbf16>
    %10 = arith.extf %9 : vector<256x64xbf16> to vector<256x64xf32>
    %11 = arith.addf %7, %10 : vector<256x64xf32>
    %12 = vector.shape_cast %11 : vector<256x64xf32> to vector<16x16x64xf32>
    %13 = arith.truncf %12 : vector<16x16x64xf32> to vector<16x16x64xbf16>
    %cst_9 = arith.constant 0.000000e+00 : bf16
    %14 = vector.broadcast %cst_9 : bf16 to vector<16x1x64xbf16>
    %cst_10 = arith.constant 0.000000e+00 : bf16
    %15 = vector.broadcast %cst_10 : bf16 to vector<16x7x64xbf16>
    %16 = tpu.concatenate %14, %13, %15 in 1 : vector<16x1x64xbf16>, vector<16x16x64xbf16>, vector<16x7x64xbf16> -> vector<16x24x64xbf16>
    %17 = vector.shape_cast %16 : vector<16x24x64xbf16> to vector<384x64xbf16>
    %cst_11 = arith.constant 0.000000e+00 : bf16
    %18 = vector.broadcast %cst_11 : bf16 to vector<24x64xbf16>
    %c0_12 = arith.constant 0 : index
    %c0_13 = arith.constant 0 : index
    %19 = vector.load %arg8[%c0_12, %c0_13] : memref<440x64xbf16, #tpu.memory_space<vmem>>, vector<24x64xbf16>
    tpu.vector_store %arg8[%c0_12, %c0_13], %18 {strides = array<i32>} : memref<440x64xbf16, #tpu.memory_space<vmem>>, vector<24x64xbf16>,
    %c24 = arith.constant 24 : index
    %c0_14 = arith.constant 0 : index
    %20 = vector.load %arg8[%c24, %c0_14] : memref<440x64xbf16, #tpu.memory_space<vmem>>, vector<384x64xbf16>
    tpu.vector_store %arg8[%c24, %c0_14], %17 {strides = array<i32>} : memref<440x64xbf16, #tpu.memory_space<vmem>>, vector<384x64xbf16>,
    %cst_15 = arith.constant 0.000000e+00 : bf16
    %21 = vector.broadcast %cst_15 : bf16 to vector<32x64xbf16>
    %c408 = arith.constant 408 : index
    %c0_16 = arith.constant 0 : index
    %22 = vector.load %arg8[%c408, %c0_16] : memref<440x64xbf16, #tpu.memory_space<vmem>>, vector<32x64xbf16>
    tpu.vector_store %arg8[%c408, %c0_16], %21 {strides = array<i32>} : memref<440x64xbf16, #tpu.memory_space<vmem>>, vector<32x64xbf16>,
    %c0_17 = arith.constant 0 : index
    %c0_18 = arith.constant 0 : index
    %23 = vector.load %arg5[%c0_17, %c0_18] : memref<1x64xf32, #tpu.memory_space<vmem>>, vector<1x64xf32>
    %24 = vector.shape_cast %23 : vector<1x64xf32> to vector<1x64xf32>
    %25 = vector.broadcast %24 : vector<1x64xf32> to vector<384x64xf32>
    %c0_19 = arith.constant 0 : index
    %c0_20 = arith.constant 0 : index
    %26 = vector.load %arg8[%c0_19, %c0_20] : memref<440x64xbf16, #tpu.memory_space<vmem>>, vector<384x64xbf16>
    %c1 = arith.constant 1 : index
    %c0_21 = arith.constant 0 : index
    %27 = vector.load %arg8[%c1, %c0_21] : memref<440x64xbf16, #tpu.memory_space<vmem>>, vector<384x64xbf16>
    %c2 = arith.constant 2 : index
    %c0_22 = arith.constant 0 : index
    %28 = vector.load %arg8[%c2, %c0_22] : memref<440x64xbf16, #tpu.memory_space<vmem>>, vector<384x64xbf16>
    %29 = tpu.concatenate %26, %27, %28 in 1 : vector<384x64xbf16>, vector<384x64xbf16>, vector<384x64xbf16> -> vector<384x192xbf16>
    %c0_23 = arith.constant 0 : index
    %c0_24 = arith.constant 0 : index
    %c0_25 = arith.constant 0 : index
    %30 = vector.load %arg4[%c0_23, %c0_24, %c0_25] : memref<3x192x64xbf16, #tpu.memory_space<vmem>>, vector<1x192x64xbf16>
    %31 = vector.shape_cast %30 : vector<1x192x64xbf16> to vector<192x64xbf16>
    %cst_26 = arith.constant dense<0.000000e+00> : vector<384x64xf32>
    %32 = tpu.matmul %29, %31, %cst_26 {dimension_numbers = #tpu.dot_dimension_numbers<[1], [0], [0], [1], [0, 0, 1, 1], [], []>} : vector<384x192xbf16>, vector<192x64xbf16>, vector<384x64xf32> -> vector<384x64xf32>
    %33 = arith.addf %25, %32 : vector<384x64xf32>
    %c24_27 = arith.constant 24 : index
    %c0_28 = arith.constant 0 : index
    %34 = vector.load %arg8[%c24_27, %c0_28] : memref<440x64xbf16, #tpu.memory_space<vmem>>, vector<384x64xbf16>
    %c25 = arith.constant 25 : index
    %c0_29 = arith.constant 0 : index
    %35 = vector.load %arg8[%c25, %c0_29] : memref<440x64xbf16, #tpu.memory_space<vmem>>, vector<384x64xbf16>
    %c26 = arith.constant 26 : index
    %c0_30 = arith.constant 0 : index
    %36 = vector.load %arg8[%c26, %c0_30] : memref<440x64xbf16, #tpu.memory_space<vmem>>, vector<384x64xbf16>
    %37 = tpu.concatenate %34, %35, %36 in 1 : vector<384x64xbf16>, vector<384x64xbf16>, vector<384x64xbf16> -> vector<384x192xbf16>
    %c1_31 = arith.constant 1 : index
    %c0_32 = arith.constant 0 : index
    %c0_33 = arith.constant 0 : index
    %38 = vector.load %arg4[%c1_31, %c0_32, %c0_33] : memref<3x192x64xbf16, #tpu.memory_space<vmem>>, vector<1x192x64xbf16>
    %39 = vector.shape_cast %38 : vector<1x192x64xbf16> to vector<192x64xbf16>
    %cst_34 = arith.constant dense<0.000000e+00> : vector<384x64xf32>
    %40 = tpu.matmul %37, %39, %cst_34 {dimension_numbers = #tpu.dot_dimension_numbers<[1], [0], [0], [1], [0, 0, 1, 1], [], []>} : vector<384x192xbf16>, vector<192x64xbf16>, vector<384x64xf32> -> vector<384x64xf32>
    %41 = arith.addf %33, %40 : vector<384x64xf32>
    %c48 = arith.constant 48 : index
    %c0_35 = arith.constant 0 : index
    %42 = vector.load %arg8[%c48, %c0_35] : memref<440x64xbf16, #tpu.memory_space<vmem>>, vector<384x64xbf16>
    %c49 = arith.constant 49 : index
    %c0_36 = arith.constant 0 : index
    %43 = vector.load %arg8[%c49, %c0_36] : memref<440x64xbf16, #tpu.memory_space<vmem>>, vector<384x64xbf16>
    %c50 = arith.constant 50 : index
    %c0_37 = arith.constant 0 : index
    %44 = vector.load %arg8[%c50, %c0_37] : memref<440x64xbf16, #tpu.memory_space<vmem>>, vector<384x64xbf16>
    %45 = tpu.concatenate %42, %43, %44 in 1 : vector<384x64xbf16>, vector<384x64xbf16>, vector<384x64xbf16> -> vector<384x192xbf16>
    %c2_38 = arith.constant 2 : index
    %c0_39 = arith.constant 0 : index
    %c0_40 = arith.constant 0 : index
    %46 = vector.load %arg4[%c2_38, %c0_39, %c0_40] : memref<3x192x64xbf16, #tpu.memory_space<vmem>>, vector<1x192x64xbf16>
    %47 = vector.shape_cast %46 : vector<1x192x64xbf16> to vector<192x64xbf16>
    %cst_41 = arith.constant dense<0.000000e+00> : vector<384x64xf32>
    %48 = tpu.matmul %45, %47, %cst_41 {dimension_numbers = #tpu.dot_dimension_numbers<[1], [0], [0], [1], [0, 0, 1, 1], [], []>} : vector<384x192xbf16>, vector<192x64xbf16>, vector<384x64xf32> -> vector<384x64xf32>
    %49 = arith.addf %41, %48 : vector<384x64xf32>
    %50 = vector.shape_cast %49 : vector<384x64xf32> to vector<16x24x64xf32>
    %51 = vector.extract_strided_slice %50 {offsets = [0, 0, 0], sizes = [16, 16, 64], strides = [1, 1, 1]} : vector<16x24x64xf32> to vector<16x16x64xf32>
    %52 = vector.shape_cast %51 : vector<16x16x64xf32> to vector<1x16x16x64xf32>
    %c0_42 = arith.constant 0 : index
    %c0_43 = arith.constant 0 : index
    %c0_44 = arith.constant 0 : index
    %c0_45 = arith.constant 0 : index
    %53 = vector.load %arg7[%c0_42, %c0_43, %c0_44, %c0_45] : memref<1x16x16x64xf32, #tpu.memory_space<vmem>>, vector<1x16x16x64xf32>
    tpu.vector_store %arg7[%c0_42, %c0_43, %c0_44, %c0_45], %52 {strides = array<i32>} : memref<1x16x16x64xf32, #tpu.memory_space<vmem>>, vector<1x16x16x64xf32>,
    return
  }
  func.func @transform_0(%arg0: i32) -> (i32, i32, i32) {
    %c0_i32 = arith.constant 0 : i32
    %c0_i32_0 = arith.constant 0 : i32
    %c0_i32_1 = arith.constant 0 : i32
    return %arg0, %c0_i32, %c0_i32_0 : i32, i32, i32
  }
  func.func @transform_1(%arg0: i32) -> (i32, i32) {
    %c0_i32 = arith.constant 0 : i32
    %c0_i32_0 = arith.constant 0 : i32
    %c0_i32_1 = arith.constant 0 : i32
    return %c0_i32, %c0_i32_0 : i32, i32
  }
  func.func @transform_2(%arg0: i32) -> (i32, i32) {
    %c0_i32 = arith.constant 0 : i32
    %c0_i32_0 = arith.constant 0 : i32
    %c0_i32_1 = arith.constant 0 : i32
    return %c0_i32, %c0_i32_0 : i32, i32
  }
  func.func @transform_3(%arg0: i32) -> (i32, i32, i32) {
    %c0_i32 = arith.constant 0 : i32
    %c0_i32_0 = arith.constant 0 : i32
    %c0_i32_1 = arith.constant 0 : i32
    %c0_i32_2 = arith.constant 0 : i32
    return %c0_i32, %c0_i32_0, %c0_i32_1 : i32, i32, i32
  }
  func.func @transform_4(%arg0: i32) -> (i32, i32) {
    %c0_i32 = arith.constant 0 : i32
    %c0_i32_0 = arith.constant 0 : i32
    %c0_i32_1 = arith.constant 0 : i32
    return %c0_i32, %c0_i32_0 : i32, i32
  }
  func.func @transform_5(%arg0: i32) -> (i32, i32, i32) {
    %c0_i32 = arith.constant 0 : i32
    %c0_i32_0 = arith.constant 0 : i32
    %c0_i32_1 = arith.constant 0 : i32
    return %arg0, %c0_i32, %c0_i32_0 : i32, i32, i32
  }
  func.func @transform_6(%arg0: i32) -> (i32, i32, i32, i32) {
    %c0_i32 = arith.constant 0 : i32
    %c0_i32_0 = arith.constant 0 : i32
    %c0_i32_1 = arith.constant 0 : i32
    %c0_i32_2 = arith.constant 0 : i32
    return %arg0, %c0_i32, %c0_i32_0, %c0_i32_1 : i32, i32, i32, i32
  }
}

module attributes {stable_mosaic.version = 11 : i64} {
  func.func @_gemm_bias_kernel(%arg0: i32, %arg1: i32, %arg2: memref<8x576xbf16, #tpu.memory_space<vmem>>, %arg3: memref<576x64xbf16, #tpu.memory_space<vmem>>, %arg4: memref<1x64xf32, #tpu.memory_space<vmem>>, %arg5: memref<8x64xf32, #tpu.memory_space<vmem>>, %arg6: memref<8x64xf32, #tpu.memory_space<vmem>>) attributes {dimension_semantics = [#tpu.dimension_semantics<parallel>, #tpu.dimension_semantics<arbitrary>], iteration_bounds = array<i64: 1, 1>, scalar_prefetch = 0 : i64, scratch_operands = 1 : i64, tpu.core_type = #tpu.core_type<tc>, window_params = [{transform_indices = @transform_0, window_bounds = array<i64: 8, 576>}, {transform_indices = @transform_1, window_bounds = array<i64: 576, 64>}, {pipeline_mode = #tpu.pipeline_mode<synchronous>, transform_indices = @transform_2, window_bounds = array<i64: 1, 64>}, {transform_indices = @transform_3, window_bounds = array<i64: 8, 64>}]} {
    %c0_i32 = arith.constant 0 : i32
    %0 = arith.cmpi eq, %arg1, %c0_i32 : i32
    %1 = arith.extui %0 : i1 to i32
    %c0_i32_0 = arith.constant 0 : i32
    %2 = arith.cmpi ne, %1, %c0_i32_0 : i32
    scf.if %2 {
      %c0_10 = arith.constant 0 : index
      %c0_11 = arith.constant 0 : index
      %12 = vector.load %arg4[%c0_10, %c0_11] : memref<1x64xf32, #tpu.memory_space<vmem>>, vector<1x64xf32>
      %13 = vector.shape_cast %12 : vector<1x64xf32> to vector<1x64xf32>
      %14 = vector.broadcast %13 : vector<1x64xf32> to vector<8x64xf32>
      %c0_12 = arith.constant 0 : index
      %c0_13 = arith.constant 0 : index
      %15 = vector.load %arg6[%c0_12, %c0_13] : memref<8x64xf32, #tpu.memory_space<vmem>>, vector<8x64xf32>
      tpu.vector_store %arg6[%c0_12, %c0_13], %14 {strides = array<i32>} : memref<8x64xf32, #tpu.memory_space<vmem>>, vector<8x64xf32>,
    } else {
    }
    %c0 = arith.constant 0 : index
    %c0_1 = arith.constant 0 : index
    %3 = vector.load %arg6[%c0, %c0_1] : memref<8x64xf32, #tpu.memory_space<vmem>>, vector<8x64xf32>
    %c0_2 = arith.constant 0 : index
    %c0_3 = arith.constant 0 : index
    %4 = vector.load %arg2[%c0_2, %c0_3] : memref<8x576xbf16, #tpu.memory_space<vmem>>, vector<8x576xbf16>
    %c0_4 = arith.constant 0 : index
    %c0_5 = arith.constant 0 : index
    %5 = vector.load %arg3[%c0_4, %c0_5] : memref<576x64xbf16, #tpu.memory_space<vmem>>, vector<576x64xbf16>
    %cst = arith.constant dense<0.000000e+00> : vector<8x64xf32>
    %6 = tpu.matmul %4, %5, %cst {dimension_numbers = #tpu.dot_dimension_numbers<[1], [0], [0], [1], [0, 0, 1, 1], [], []>} : vector<8x576xbf16>, vector<576x64xbf16>, vector<8x64xf32> -> vector<8x64xf32>
    %7 = arith.addf %3, %6 : vector<8x64xf32>
    %c0_6 = arith.constant 0 : index
    %c0_7 = arith.constant 0 : index
    %8 = vector.load %arg6[%c0_6, %c0_7] : memref<8x64xf32, #tpu.memory_space<vmem>>, vector<8x64xf32>
    tpu.vector_store %arg6[%c0_6, %c0_7], %7 {strides = array<i32>} : memref<8x64xf32, #tpu.memory_space<vmem>>, vector<8x64xf32>,
    %c0_i32_8 = arith.constant 0 : i32
    %9 = arith.cmpi eq, %arg1, %c0_i32_8 : i32
    %10 = arith.extui %9 : i1 to i32
    %c0_i32_9 = arith.constant 0 : i32
    %11 = arith.cmpi ne, %10, %c0_i32_9 : i32
    scf.if %11 {
      %c0_10 = arith.constant 0 : index
      %c0_11 = arith.constant 0 : index
      %12 = vector.load %arg6[%c0_10, %c0_11] : memref<8x64xf32, #tpu.memory_space<vmem>>, vector<8x64xf32>
      %c0_12 = arith.constant 0 : index
      %c0_13 = arith.constant 0 : index
      %13 = vector.load %arg5[%c0_12, %c0_13] : memref<8x64xf32, #tpu.memory_space<vmem>>, vector<8x64xf32>
      tpu.vector_store %arg5[%c0_12, %c0_13], %12 {strides = array<i32>} : memref<8x64xf32, #tpu.memory_space<vmem>>, vector<8x64xf32>,
    } else {
    }
    return
  }
  func.func @transform_0(%arg0: i32, %arg1: i32) -> (i32, i32) {
    %c0_i32 = arith.constant 0 : i32
    return %arg0, %arg1 : i32, i32
  }
  func.func @transform_1(%arg0: i32, %arg1: i32) -> (i32, i32) {
    %c0_i32 = arith.constant 0 : i32
    %c0_i32_0 = arith.constant 0 : i32
    return %arg1, %c0_i32 : i32, i32
  }
  func.func @transform_2(%arg0: i32, %arg1: i32) -> (i32, i32) {
    %c0_i32 = arith.constant 0 : i32
    %c0_i32_0 = arith.constant 0 : i32
    %c0_i32_1 = arith.constant 0 : i32
    return %c0_i32, %c0_i32_0 : i32, i32
  }
  func.func @transform_3(%arg0: i32, %arg1: i32) -> (i32, i32) {
    %c0_i32 = arith.constant 0 : i32
    %c0_i32_0 = arith.constant 0 : i32
    return %arg0, %c0_i32 : i32, i32
  }
}

module attributes {stable_mosaic.version = 11 : i64} {
  func.func @_gemm_bias_kernel(%arg0: i32, %arg1: i32, %arg2: memref<2x576xbf16, #tpu.memory_space<vmem>>, %arg3: memref<576x64xbf16, #tpu.memory_space<vmem>>, %arg4: memref<1x64xf32, #tpu.memory_space<vmem>>, %arg5: memref<2x64xf32, #tpu.memory_space<vmem>>, %arg6: memref<2x64xf32, #tpu.memory_space<vmem>>) attributes {dimension_semantics = [#tpu.dimension_semantics<parallel>, #tpu.dimension_semantics<arbitrary>], iteration_bounds = array<i64: 1, 1>, scalar_prefetch = 0 : i64, scratch_operands = 1 : i64, tpu.core_type = #tpu.core_type<tc>, window_params = [{transform_indices = @transform_0, window_bounds = array<i64: 2, 576>}, {transform_indices = @transform_1, window_bounds = array<i64: 576, 64>}, {pipeline_mode = #tpu.pipeline_mode<synchronous>, transform_indices = @transform_2, window_bounds = array<i64: 1, 64>}, {transform_indices = @transform_3, window_bounds = array<i64: 2, 64>}]} {
    %c0_i32 = arith.constant 0 : i32
    %0 = arith.cmpi eq, %arg1, %c0_i32 : i32
    %1 = arith.extui %0 : i1 to i32
    %c0_i32_0 = arith.constant 0 : i32
    %2 = arith.cmpi ne, %1, %c0_i32_0 : i32
    scf.if %2 {
      %c0_10 = arith.constant 0 : index
      %c0_11 = arith.constant 0 : index
      %12 = vector.load %arg4[%c0_10, %c0_11] : memref<1x64xf32, #tpu.memory_space<vmem>>, vector<1x64xf32>
      %13 = vector.shape_cast %12 : vector<1x64xf32> to vector<1x64xf32>
      %14 = vector.broadcast %13 : vector<1x64xf32> to vector<2x64xf32>
      %c0_12 = arith.constant 0 : index
      %c0_13 = arith.constant 0 : index
      %15 = vector.load %arg6[%c0_12, %c0_13] : memref<2x64xf32, #tpu.memory_space<vmem>>, vector<2x64xf32>
      tpu.vector_store %arg6[%c0_12, %c0_13], %14 {strides = array<i32>} : memref<2x64xf32, #tpu.memory_space<vmem>>, vector<2x64xf32>,
    } else {
    }
    %c0 = arith.constant 0 : index
    %c0_1 = arith.constant 0 : index
    %3 = vector.load %arg6[%c0, %c0_1] : memref<2x64xf32, #tpu.memory_space<vmem>>, vector<2x64xf32>
    %c0_2 = arith.constant 0 : index
    %c0_3 = arith.constant 0 : index
    %4 = vector.load %arg2[%c0_2, %c0_3] : memref<2x576xbf16, #tpu.memory_space<vmem>>, vector<2x576xbf16>
    %c0_4 = arith.constant 0 : index
    %c0_5 = arith.constant 0 : index
    %5 = vector.load %arg3[%c0_4, %c0_5] : memref<576x64xbf16, #tpu.memory_space<vmem>>, vector<576x64xbf16>
    %cst = arith.constant dense<0.000000e+00> : vector<2x64xf32>
    %6 = tpu.matmul %4, %5, %cst {dimension_numbers = #tpu.dot_dimension_numbers<[1], [0], [0], [1], [0, 0, 1, 1], [], []>} : vector<2x576xbf16>, vector<576x64xbf16>, vector<2x64xf32> -> vector<2x64xf32>
    %7 = arith.addf %3, %6 : vector<2x64xf32>
    %c0_6 = arith.constant 0 : index
    %c0_7 = arith.constant 0 : index
    %8 = vector.load %arg6[%c0_6, %c0_7] : memref<2x64xf32, #tpu.memory_space<vmem>>, vector<2x64xf32>
    tpu.vector_store %arg6[%c0_6, %c0_7], %7 {strides = array<i32>} : memref<2x64xf32, #tpu.memory_space<vmem>>, vector<2x64xf32>,
    %c0_i32_8 = arith.constant 0 : i32
    %9 = arith.cmpi eq, %arg1, %c0_i32_8 : i32
    %10 = arith.extui %9 : i1 to i32
    %c0_i32_9 = arith.constant 0 : i32
    %11 = arith.cmpi ne, %10, %c0_i32_9 : i32
    scf.if %11 {
      %c0_10 = arith.constant 0 : index
      %c0_11 = arith.constant 0 : index
      %12 = vector.load %arg6[%c0_10, %c0_11] : memref<2x64xf32, #tpu.memory_space<vmem>>, vector<2x64xf32>
      %c0_12 = arith.constant 0 : index
      %c0_13 = arith.constant 0 : index
      %13 = vector.load %arg5[%c0_12, %c0_13] : memref<2x64xf32, #tpu.memory_space<vmem>>, vector<2x64xf32>
      tpu.vector_store %arg5[%c0_12, %c0_13], %12 {strides = array<i32>} : memref<2x64xf32, #tpu.memory_space<vmem>>, vector<2x64xf32>,
    } else {
    }
    return
  }
  func.func @transform_0(%arg0: i32, %arg1: i32) -> (i32, i32) {
    %c0_i32 = arith.constant 0 : i32
    return %arg0, %arg1 : i32, i32
  }
  func.func @transform_1(%arg0: i32, %arg1: i32) -> (i32, i32) {
    %c0_i32 = arith.constant 0 : i32
    %c0_i32_0 = arith.constant 0 : i32
    return %arg1, %c0_i32 : i32, i32
  }
  func.func @transform_2(%arg0: i32, %arg1: i32) -> (i32, i32) {
    %c0_i32 = arith.constant 0 : i32
    %c0_i32_0 = arith.constant 0 : i32
    %c0_i32_1 = arith.constant 0 : i32
    return %c0_i32, %c0_i32_0 : i32, i32
  }
  func.func @transform_3(%arg0: i32, %arg1: i32) -> (i32, i32) {
    %c0_i32 = arith.constant 0 : i32
    %c0_i32_0 = arith.constant 0 : i32
    return %arg0, %c0_i32 : i32, i32
  }
}

</mosaic_0001>

<llo_original>
// kernel: _lambda_.5
$region0: #{_lambda_.5}
  #allocation0 [shape = 'u32[]', space=smem, size = 0x4, offset = 0x4, fixed_abs, tag = 'smem constant byte address 0x4 - core index']
  #allocation1 [shape = 'u32[144,128]{1,0:T(1,128)}', space=vmem, size = 0x12000, scoped, tag = 'internal scratch']
  #allocation2 [shape = 'bf16[56,64]{1,0:T(8,128)(2,1)}', space=vmem, size = 0x3800, scoped, tag = 'scratch operand']
  %s0 = inlined_call_operand.hbm [shape: f32[2,16,64], index: 0, kind: input, shape index: {}]
  %s1 = inlined_call_operand.hbm [shape: bf16[64,64], index: 1, kind: input, shape index: {}]
  %s2 = inlined_call_operand.hbm [shape: f32[1,64], index: 2, kind: input, shape index: {}]
  %s3 = inlined_call_operand.hbm [shape: bf16[3,192,64], index: 3, kind: input, shape index: {}]
  %s4 = inlined_call_operand.hbm [shape: f32[1,64], index: 4, kind: input, shape index: {}]
  %s5 = inlined_call_operand.hbm [shape: bf16[2,4,4,64], index: 5, kind: output, shape index: {0}]
  %s6 = inlined_call_operand.hbm [shape: f32[2,4,4,64], index: 6, kind: output, shape index: {1}]
  %7 = xla_tuple %s5, %s6
  %s8 = sld [smem:[#allocation0]]
  $region81: #{_lambda_.5} parent=0
    _
  %s10 = ssub.s32 1, %s8
  %s11 = scalar_select 0, %s10, %s8
  $region1: #{_lambda_.5} parent=0
    #allocation3 [shape = 'u8[16384]{0}', space=vmem, size = 0x4000, scoped, tag = 'input window, operand 0']
    #allocation4 [shape = 's32[2]{0}', space=sflag, size = 0x8, scoped, tag = 'scoped memory for _lambda_.5']
    #allocation5 [shape = 's32[2]{0}', space=sflag, size = 0x8, scoped, tag = 'scoped memory for _lambda_.5']
    #allocation6 [shape = 'u8[16384]{0}', space=vmem, size = 0x4000, scoped, tag = 'input window, operand 1, single buffered']
    #allocation7 [shape = 's32[1]{0}', space=sflag, size = 0x4, scoped, tag = 'scoped memory for _lambda_.5']
    #allocation8 [shape = 'u8[512]{0}', space=vmem, size = 0x400, scoped, tag = 'input window, operand 2, single buffered']
    #allocation9 [shape = 'u8[147456]{0}', space=vmem, size = 0x24000, scoped, tag = 'input window, operand 3, single buffered']
    #allocation10 [shape = 's32[1]{0}', space=sflag, size = 0x4, scoped, tag = 'scoped memory for _lambda_.5']
    #allocation11 [shape = 'u8[512]{0}', space=vmem, size = 0x400, scoped, tag = 'input window, operand 4, single buffered']
    #allocation12 [shape = 'u8[8192]{0}', space=vmem, size = 0x2000, scoped, tag = 'output window, operand 0']
    #allocation13 [shape = 'u8[16384]{0}', space=vmem, size = 0x4000, scoped, tag = 'output window, operand 1']
    #allocation14 [shape = 's32[2]{0}', space=sflag, size = 0x8, scoped, tag = 'scoped memory for _lambda_.5']
    %12 = vsyncpa [#allocation4], 0
    %s13 = scalar_lea.sflag [#allocation4], 1
    %14 = vsyncpa %s13, 0
    %15 = vsyncpa [#allocation7], 0
    %16 = vsyncpa [#allocation10], 0
    %17 = vsyncpa [#allocation5], 0
    %s18 = scalar_lea.sflag [#allocation5], 1
    %19 = vsyncpa %s18, 0
    %20 = vsyncpa [#allocation14], 0
    %s21 = scalar_lea.sflag [#allocation14], 1
    %22 = vsyncpa %s21, 0
    loop: start=0, step=1, limit=4
    $region2: #{_lambda_.5} parent=1 // loop_pre_header
      _
    $region3: #{_lambda_.5} parent=1 // loop_header
      %s24 = sphi 0, %s28
      %p25 = scmp.ge.s32.totalorder %s24, 4
      %s34 = sphi 0, %s36
      %s37 = sphi 0, %s34
      %s38 = sphi 0, %s37
      %s54 = sphi 0, %s38
      %s58 = sphi 0, %s58
      %s60 = sphi 0, %s58
      %s61 = sphi 0, %s60
      %s75 = sphi 0, %s61
      %s79 = sphi 0, %s79
      %s81 = sphi 0, %s79
      %s82 = sphi 0, %s81
      %s96 = sphi 0, %s82
      %s100 = sphi 0, %s100
      %s102 = sphi 0, %s100
      %s103 = sphi 0, %s102
      %s117 = sphi 0, %s103
      %s121 = sphi 0, %s121
      %s123 = sphi 0, %s121
      %s124 = sphi 0, %s123
      %s138 = sphi 0, %s124
      %s144 = sphi 0, %s146
      %s147 = sphi 0, %s144
      %s148 = sphi 0, %s147
      %s164 = sphi 0, %s148
      %s170 = sphi 0, %s172
      %s173 = sphi 0, %s170
      %s174 = sphi 0, %s173
      %s190 = sphi 0, %s174
    $region4: #{_lambda_.5} parent=1 // loop_header_branch
      %27 = sbr.rel (%p25) target = $region8
    $region5: #{_lambda_.5} parent=1 // loop_body
      %s29 = ssub.s32 %s24, 1
      %s30 = ssub.s32 %s24, 2
      %s31 = sadd.s32 %s24, 1
      %s32 = ssub.s32 %s24, %s31
      %p33 = scmp.eq.s32.totalorder %s32, 0
      %s35 = sadd.s32 %s34, 1
      %s36 = scalar_select %p33, %s34, %s35
      %p39 = pneg %p33
      %p40 = scmp.eq.s32.totalorder %s24, 1
      %p41 = por %p39, %p40
      %p42 = scmp.ne.s32.totalorder %s34, %s37
      %p43 = scmp.eq.s32.totalorder %s24, 0
      %p44 = por %p42, %p43
      %p45 = scmp.ne.s32.totalorder %s34, %s37
      %p46 = scmp.eq.s32.totalorder %s29, 1
      %p47 = por %p45, %p46
      %p48 = scmp.ne.s32.totalorder %s37, %s38
      %p49 = scmp.eq.s32.totalorder %s29, 0
      %p50 = por %p48, %p49
      %p51 = scmp.ne.s32.totalorder %s37, %s38
      %p52 = scmp.eq.s32.totalorder %s30, 1
      %p53 = por %p51, %p52
      %p55 = scmp.ne.s32.totalorder %s38, %s54
      %p56 = scmp.eq.s32.totalorder %s30, 0
      %p57 = por %p55, %p56
      %s59 = sadd.s32 %s58, 1
      %p62 = scmp.eq.s32.totalorder %s24, 1
      %p63 = scmp.ne.s32.totalorder %s58, %s60
      %p64 = scmp.eq.s32.totalorder %s24, 0
      %p65 = por %p63, %p64
      %p66 = scmp.ne.s32.totalorder %s58, %s60
      %p67 = scmp.eq.s32.totalorder %s29, 1
      %p68 = por %p66, %p67
      %p69 = scmp.ne.s32.totalorder %s60, %s61
      %p70 = scmp.eq.s32.totalorder %s29, 0
      %p71 = por %p69, %p70
      %p72 = scmp.ne.s32.totalorder %s60, %s61
      %p73 = scmp.eq.s32.totalorder %s30, 1
      %p74 = por %p72, %p73
      %p76 = scmp.ne.s32.totalorder %s61, %s75
      %p77 = scmp.eq.s32.totalorder %s30, 0
      %p78 = por %p76, %p77
      %s80 = sadd.s32 %s79, 1
      %p83 = scmp.eq.s32.totalorder %s24, 1
      %p84 = scmp.ne.s32.totalorder %s79, %s81
      %p85 = scmp.eq.s32.totalorder %s24, 0
      %p86 = por %p84, %p85
      %p87 = scmp.ne.s32.totalorder %s79, %s81
      %p88 = scmp.eq.s32.totalorder %s29, 1
      %p89 = por %p87, %p88
      %p90 = scmp.ne.s32.totalorder %s81, %s82
      %p91 = scmp.eq.s32.totalorder %s29, 0
      %p92 = por %p90, %p91
      %p93 = scmp.ne.s32.totalorder %s81, %s82
      %p94 = scmp.eq.s32.totalorder %s30, 1
      %p95 = por %p93, %p94
      %p97 = scmp.ne.s32.totalorder %s82, %s96
      %p98 = scmp.eq.s32.totalorder %s30, 0
      %p99 = por %p97, %p98
      %s101 = sadd.s32 %s100, 1
      %p104 = scmp.eq.s32.totalorder %s24, 1
      %p105 = scmp.ne.s32.totalorder %s100, %s102
      %p106 = scmp.eq.s32.totalorder %s24, 0
      %p107 = por %p105, %p106
      %p108 = scmp.ne.s32.totalorder %s100, %s102
      %p109 = scmp.eq.s32.totalorder %s29, 1
      %p110 = por %p108, %p109
      %p111 = scmp.ne.s32.totalorder %s102, %s103
      %p112 = scmp.eq.s32.totalorder %s29, 0
      %p113 = por %p111, %p112
      %p114 = scmp.ne.s32.totalorder %s102, %s103
      %p115 = scmp.eq.s32.totalorder %s30, 1
      %p116 = por %p114, %p115
      %p118 = scmp.ne.s32.totalorder %s103, %s117
      %p119 = scmp.eq.s32.totalorder %s30, 0
      %p120 = por %p118, %p119
      %s122 = sadd.s32 %s121, 1
      %p125 = scmp.eq.s32.totalorder %s24, 1
      %p126 = scmp.ne.s32.totalorder %s121, %s123
      %p127 = scmp.eq.s32.totalorder %s24, 0
      %p128 = por %p126, %p127
      %p129 = scmp.ne.s32.totalorder %s121, %s123
      %p130 = scmp.eq.s32.totalorder %s29, 1
      %p131 = por %p129, %p130
      %p132 = scmp.ne.s32.totalorder %s123, %s124
      %p133 = scmp.eq.s32.totalorder %s29, 0
      %p134 = por %p132, %p133
      %p135 = scmp.ne.s32.totalorder %s123, %s124
      %p136 = scmp.eq.s32.totalorder %s30, 1
      %p137 = por %p135, %p136
      %p139 = scmp.ne.s32.totalorder %s124, %s138
      %p140 = scmp.eq.s32.totalorder %s30, 0
      %p141 = por %p139, %p140
      %s142 = ssub.s32 %s24, %s31
      %p143 = scmp.eq.s32.totalorder %s142, 0
      %s145 = sadd.s32 %s144, 1
      %s146 = scalar_select %p143, %s144, %s145
      %p149 = pneg %p143
      %p150 = scmp.eq.s32.totalorder %s24, 1
      %p151 = por %p149, %p150
      %p152 = scmp.ne.s32.totalorder %s144, %s147
      %p153 = scmp.eq.s32.totalorder %s24, 0
      %p154 = por %p152, %p153
      %p155 = scmp.ne.s32.totalorder %s144, %s147
      %p156 = scmp.eq.s32.totalorder %s29, 1
      %p157 = por %p155, %p156
      %p158 = scmp.ne.s32.totalorder %s147, %s148
      %p159 = scmp.eq.s32.totalorder %s29, 0
      %p160 = por %p158, %p159
      %p161 = scmp.ne.s32.totalorder %s147, %s148
      %p162 = scmp.eq.s32.totalorder %s30, 1
      %p163 = por %p161, %p162
      %p165 = scmp.ne.s32.totalorder %s148, %s164
      %p166 = scmp.eq.s32.totalorder %s30, 0
      %p167 = por %p165, %p166
      %s168 = ssub.s32 %s24, %s31
      %p169 = scmp.eq.s32.totalorder %s168, 0
      %s171 = sadd.s32 %s170, 1
      %s172 = scalar_select %p169, %s170, %s171
      %p175 = pneg %p169
      %p176 = scmp.eq.s32.totalorder %s24, 1
      %p177 = por %p175, %p176
      %p178 = scmp.ne.s32.totalorder %s170, %s173
      %p179 = scmp.eq.s32.totalorder %s24, 0
      %p180 = por %p178, %p179
      %p181 = scmp.ne.s32.totalorder %s170, %s173
      %p182 = scmp.eq.s32.totalorder %s29, 1
      %p183 = por %p181, %p182
      %p184 = scmp.ne.s32.totalorder %s173, %s174
      %p185 = scmp.eq.s32.totalorder %s29, 0
      %p186 = por %p184, %p185
      %p187 = scmp.ne.s32.totalorder %s173, %s174
      %p188 = scmp.eq.s32.totalorder %s30, 1
      %p189 = por %p187, %p188
      %p191 = scmp.ne.s32.totalorder %s174, %s190
      %p192 = scmp.eq.s32.totalorder %s30, 0
      %p193 = por %p191, %p192
      %p194 = scmp.le.s32.totalorder 1, %s24
      %p195 = scmp.lt.s32.totalorder %s24, 3
      %p196 = pnand %p194, %p195
      %p197 = pneg %p196
      // Predicated region
      $region9: #{_lambda_.5} parent=5 // pred_check
        _
      $region10: #{_lambda_.5} parent=5 // pred_check_branch
        %199 = sbr.rel (%p196) target = $region12
      $region11: #{_lambda_.5} parent=5 // pred_region
        %s200 = ssub.s32 %s24, 1
        // Predicated region
        $region13: #{_lambda_.5} parent=11 // pred_check
          %p201 = pneg %p71
        $region14: #{_lambda_.5} parent=11 // pred_check_branch
          %203 = sbr.rel (%p201) target = $region16
        $region15: #{_lambda_.5} parent=11 // pred_region
          %s205 = ssub.s32 512, 512
          %206 = vsyncadd [#allocation7], %s205
          %s207 = sshll.u32 [#allocation6], 4
          %s208 = int_to_ptr.vmem [resolvable:$true] %s207
          %213 = dma.hbm_to_vmem [thread:$0]  %s1, 512, %s208, [#allocation7], 64, 64, 4
        $region16: #{_lambda_.5} parent=11 // pred_fallthru
          _
        // Predicated region
        $region17: #{_lambda_.5} parent=11 // pred_check
          %p214 = pneg %p92
        $region18: #{_lambda_.5} parent=11 // pred_check_branch
          %216 = sbr.rel (%p214) target = $region20
        $region19: #{_lambda_.5} parent=11 // pred_region
          %s218 = ssub.s32 16, 16
          %219 = vsyncadd [#allocation7], %s218
          %s221 = sshll.u32 [#allocation8], 4
          %s222 = int_to_ptr.vmem [resolvable:$true] %s221
          %224 = dma.hbm_to_vmem [thread:$0]  %s2, 16, %s222, [#allocation7]
        $region20: #{_lambda_.5} parent=11 // pred_fallthru
          _
        // Predicated region
        $region21: #{_lambda_.5} parent=11 // pred_check
          %p225 = pneg %p113
        $region22: #{_lambda_.5} parent=11 // pred_check_branch
          %227 = sbr.rel (%p225) target = $region24
        $region23: #{_lambda_.5} parent=11 // pred_region
          %s229 = ssub.s32 4608, 4608
          %230 = vsyncadd [#allocation10], %s229
          %s231 = sshll.u32 [#allocation9], 4
          %s232 = int_to_ptr.vmem [resolvable:$true] %s231
          %237 = dma.hbm_to_vmem [thread:$0]  %s3, 4608, %s232, [#allocation10], 64, 64, 4
        $region24: #{_lambda_.5} parent=11 // pred_fallthru
          _
        // Predicated region
        $region25: #{_lambda_.5} parent=11 // pred_check
          %p238 = pneg %p134
        $region26: #{_lambda_.5} parent=11 // pred_check_branch
          %240 = sbr.rel (%p238) target = $region28
        $region27: #{_lambda_.5} parent=11 // pred_region
          %s242 = ssub.s32 16, 16
          %243 = vsyncadd [#allocation10], %s242
          %s245 = sshll.u32 [#allocation11], 4
          %s246 = int_to_ptr.vmem [resolvable:$true] %s245
          %248 = dma.hbm_to_vmem [thread:$0]  %s4, 16, %s246, [#allocation10]
        $region28: #{_lambda_.5} parent=11 // pred_fallthru
          _
      $region12: #{_lambda_.5} parent=5 // pred_fallthru
        _
      %p249 = scmp.lt.s32.totalorder %s24, 2
      // Predicated region
      $region29: #{_lambda_.5} parent=5 // pred_check
        %p250 = pneg %p249
      $region30: #{_lambda_.5} parent=5 // pred_check_branch
        %252 = sbr.rel (%p250) target = $region32
      $region31: #{_lambda_.5} parent=5 // pred_region
        // Predicated region
        $region33: #{_lambda_.5} parent=31 // pred_check
          %p253 = pneg %p44
        $region34: #{_lambda_.5} parent=31 // pred_check_branch
          %255 = sbr.rel (%p253) target = $region36
        $region35: #{_lambda_.5} parent=31 // pred_region
          %s256 = sand.u32 %s34, 1
          %s257 = scalar_lea.sflag [#allocation4], %s256
          %s258 = sand.u32 %s34, 1
          %s259 = smul.addr %s258, 16
          %s260 = scalar_lea.vmem [#allocation3], %s259
          %s262 = ssub.s32 256, 256
          %263 = vsyncadd %s257, %s262
          %s264 = smul.addr %s24, 2
          %s265 = smul.addr %s264, 128
          %s266 = scalar_lea.hbm %s0, %s265
          %s267 = sshll.u32 %s260, 4
          %s268 = int_to_ptr.vmem [resolvable:$true] %s267
          %273 = dma.hbm_to_vmem [thread:$0]  %s266, 256, %s268, %s257, 128, 128, 8
        $region36: #{_lambda_.5} parent=31 // pred_fallthru
          _
      $region32: #{_lambda_.5} parent=5 // pred_fallthru
        _
      %p274 = scmp.le.s32.totalorder 1, %s24
      %p275 = scmp.lt.s32.totalorder %s24, 3
      %p276 = pnand %p274, %p275
      %p277 = pneg %p276
      // Predicated region
      $region37: #{_lambda_.5} parent=5 // pred_check
        _
      $region38: #{_lambda_.5} parent=5 // pred_check_branch
        %279 = sbr.rel (%p276) target = $region40
      $region39: #{_lambda_.5} parent=5 // pred_region
        %s280 = ssub.s32 %s24, 1
        %s281 = sand.u32 %s37, 1
        %s282 = scalar_lea.sflag [#allocation4], %s281
        %s283 = sand.u32 %s37, 1
        %s284 = smul.addr %s283, 16
        %s285 = scalar_lea.vmem [#allocation3], %s284
        // Predicated region
        $region41: #{_lambda_.5} parent=39 // pred_check
          %p286 = pneg %p50
        $region42: #{_lambda_.5} parent=39 // pred_check_branch
          %288 = sbr.rel (%p286) target = $region44
        $region43: #{_lambda_.5} parent=39 // pred_region
          %289 = dma.done %s282, 256
        $region44: #{_lambda_.5} parent=39 // pred_fallthru
          _
        // Predicated region
        $region45: #{_lambda_.5} parent=39 // pred_check
          %p290 = pneg %p71
        $region46: #{_lambda_.5} parent=39 // pred_check_branch
          %292 = sbr.rel (%p290) target = $region48
        $region47: #{_lambda_.5} parent=39 // pred_region
          %293 = dma.done [#allocation7], 512
        $region48: #{_lambda_.5} parent=39 // pred_fallthru
          _
        // Predicated region
        $region49: #{_lambda_.5} parent=39 // pred_check
          %p294 = pneg %p92
        $region50: #{_lambda_.5} parent=39 // pred_check_branch
          %296 = sbr.rel (%p294) target = $region52
        $region51: #{_lambda_.5} parent=39 // pred_region
          %297 = dma.done [#allocation7], 16
        $region52: #{_lambda_.5} parent=39 // pred_fallthru
          _
        // Predicated region
        $region53: #{_lambda_.5} parent=39 // pred_check
          %p298 = pneg %p113
        $region54: #{_lambda_.5} parent=39 // pred_check_branch
          %300 = sbr.rel (%p298) target = $region56
        $region55: #{_lambda_.5} parent=39 // pred_region
          %301 = dma.done [#allocation10], 4608
        $region56: #{_lambda_.5} parent=39 // pred_fallthru
          _
        // Predicated region
        $region57: #{_lambda_.5} parent=39 // pred_check
          %p302 = pneg %p134
        $region58: #{_lambda_.5} parent=39 // pred_check_branch
          %304 = sbr.rel (%p302) target = $region60
        $region59: #{_lambda_.5} parent=39 // pred_region
          %305 = dma.done [#allocation10], 16
        $region60: #{_lambda_.5} parent=39 // pred_fallthru
          _
        %s306 = sand.u32 %s37, 1
        %s307 = scalar_lea.sflag [#allocation4], %s306
        %s308 = sand.u32 %s37, 1
        %s309 = smul.addr %s308, 16
        %s310 = scalar_lea.vmem [#allocation3], %s309
        %p311 = pneg %p50
        %p312 = pneg %p47
        %p313 = pneg %p71
        %p314 = pneg %p68
        %p315 = pneg %p92
        %p316 = pneg %p89
        %p317 = pneg %p113
        %p318 = pneg %p110
        %p319 = pneg %p134
        %p320 = pneg %p131
        %p321 = pneg %p160
        %p322 = pneg %p157
        %s323 = sand.u32 %s147, 1
        %s324 = scalar_lea.sflag [#allocation5], %s323
        %s325 = sand.u32 %s147, 1
        %s326 = smul.addr %s325, 8
        %s327 = scalar_lea.vmem [#allocation12], %s326
        %p328 = pneg %p186
        %p329 = pneg %p183
        %s330 = sand.u32 %s173, 1
        %s331 = scalar_lea.sflag [#allocation14], %s330
        %s332 = sand.u32 %s173, 1
        %s333 = smul.addr %s332, 16
        %s334 = scalar_lea.vmem [#allocation13], %s333
        %v336 = vld [vmem:[%s285] sm:$0xff]
        %v337 = vld [vmem:[%s285 + $0x8] sm:$0xff]
        %v338 = vpack.c.bf16 %v337, %v336
        %v339 = vld [vmem:[#allocation6] sm:$0xf]
        %v340 = vld [vmem:[#allocation6 + $0x4] sm:$0xf]
        %v341 = vld [vmem:[#allocation6 + $0x8] sm:$0xf]
        %v342 = vld [vmem:[#allocation6 + $0xc] sm:$0xf]
        %v343 = vld [vmem:[#allocation6 + $0x10] sm:$0xf]
        %v344 = vld [vmem:[#allocation6 + $0x14] sm:$0xf]
        %v345 = vld [vmem:[#allocation6 + $0x18] sm:$0xf]
        %v346 = vld [vmem:[#allocation6 + $0x1c] sm:$0xf]
        %v347 = vld [vmem:[#allocation8] sm:$0x1]
        %v349 = vlaneseq
        %v350 = vshrl.u32 %v349, 7
        %v351 = vsub.s32 0, %v350
        %v352 = vrot.slane %v347, %v351
        %v362 = vunpack.c.l.b16 %v339
        %v363 = vunpack.c.l.b16 %v340
        %v364 = vunpack.c.l.b16 %v341
        %v365 = vunpack.c.l.b16 %v342
        %v366 = vunpack.c.l.b16 %v343
        %v367 = vunpack.c.l.b16 %v344
        %v368 = vunpack.c.l.b16 %v345
        %v369 = vunpack.c.l.b16 %v346
        %v370 = vpack.c.b16 %v363, %v362
        %v371 = vpack.c.b16 %v365, %v364
        %v372 = vpack.c.b16 %v367, %v366
        %v373 = vpack.c.b16 %v369, %v368
        %vm378 = vcmask 523264
        %v380 = vsel %vm378, %v338, 0
        %382 = vmatprep.subr.bf16.mxu0 0
        %383 = vmatpush1.bf16.msra.mxu0 %v370
        %384 = vmatprep.subr.bf16.mxu0 0
        %385 = vmatpush1.bf16.msra.mxu0 %v371
        %386 = vmatprep.subr.bf16.mxu0 0
        %387 = vmatpush1.bf16.msra.mxu0 %v372
        %388 = vmatprep.subr.bf16.mxu0 0
        %389 = vmatpush1.bf16.msra.mxu0 %v373
        %390 = vmatprep.subr.bf16.mxu0 0
        %391 = vmatpush1.bf16.msra.mxu0 0
        %392 = vmatprep.subr.bf16.mxu0 0
        %393 = vmatpush1.bf16.msra.mxu0 0
        %394 = vmatprep.subr.bf16.mxu0 0
        %395 = vmatpush1.bf16.msra.mxu0 0
        %396 = vmatprep.subr.bf16.mxu0 0
        %397 = vmatpush1.bf16.msra.mxu0 0
        %398 = vmatprep.subr.bf16.mxu0 0
        %399 = vmatpush1.bf16.msra.mxu0 0
        %400 = vmatprep.subr.bf16.mxu0 0
        %401 = vmatpush1.bf16.msra.mxu0 0
        %402 = vmatprep.subr.bf16.mxu0 0
        %403 = vmatpush1.bf16.msra.mxu0 0
        %404 = vmatprep.subr.bf16.mxu0 0
        %405 = vmatpush1.bf16.msra.mxu0 0
        %406 = vmatprep.subr.bf16.mxu0 0
        %407 = vmatpush1.bf16.msra.mxu0 0
        %408 = vmatprep.subr.bf16.mxu0 0
        %409 = vmatpush1.bf16.msra.mxu0 0
        %410 = vmatprep.subr.bf16.mxu0 0
        %411 = vmatpush1.bf16.msra.mxu0 0
        %412 = vmatprep.subr.bf16.mxu0 0
        %413 = vmatpush1.bf16.msra.mxu0 0
        %414 = vmatprep.mubr.bf16.mxu0 0
        %415 = vmatmul.mubr.bf16.gmra.mrb[0].mxu0 %v380
        %v416 = vpop.f32.mrb[0].mxu0
        %v417 = vadd.f32 %v352, %v416
        %v418 = vpop.f32.mrb[0].mxu0
        %v419 = vpop.f32.mrb[0].mxu0
        %v420 = vadd.f32 %v352, %v419
        %v421 = vpop.f32.mrb[0].mxu0
        %422 = vdwg.mxu0
        %v425 = vcombine.high %v417, %v417
        %v426 = vcombine.high %v420, %v420
        %v429 = vpack.c.bf16 %v417, %v417
        %v430 = vpack.c.bf16 %v425, %v425
        %v431 = vpack.c.bf16 %v420, %v420
        %v432 = vpack.c.bf16 %v426, %v426
        %vm433 = vcmask 517120
        %434 = vst.msk [vmem:[%s327] sm:$0x3] %vm433, %v429
        %435 = vst.msk [vmem:[%s327 + $0x2] sm:$0x3] %vm433, %v430
        %436 = vst.msk [vmem:[%s327 + $0x4] sm:$0x3] %vm433, %v431
        %437 = vst.msk [vmem:[%s327 + $0x6] sm:$0x3] %vm433, %v432
        %v439 = vshrl.u32 %v429, 16
        %v441 = vrot.slane %v439, 7
        %v442 = vshll.u32 %v429, 16
        %v444 = vor.u32 %v441, %v442
        %v446 = vshrl.u32 %v430, 16
        %v448 = vrot.slane %v446, 7
        %v449 = vshll.u32 %v430, 16
        %v451 = vor.u32 %v448, %v449
        %v453 = vshrl.u32 %v431, 16
        %v455 = vrot.slane %v453, 7
        %v456 = vshll.u32 %v431, 16
        %v458 = vor.u32 %v455, %v456
        %v460 = vshrl.u32 %v432, 16
        %v462 = vrot.slane %v460, 7
        %v463 = vshll.u32 %v432, 16
        %v465 = vor.u32 %v462, %v463
        %vm470 = vcmask 1040384
        %vm471 = vsmask.f32 256
        %vm472 = vmand %vm470, %vm471
        %v473 = vsel %vm472, 0, %v444
        %v474 = vsel %vm472, 0, %v451
        %v475 = vsel %vm472, 0, %v458
        %v476 = vsel %vm472, 0, %v465
        %vm477 = vcmask 1042432
        %vm478 = vsmask.f32 2304
        %vm479 = vmand %vm477, %vm478
        %v480 = vsel %vm479, %v473, 0
        %v481 = vsel %vm479, %v474, 0
        %v482 = vsel %vm479, %v475, 0
        %v483 = vsel %vm479, %v476, 0
        %vm484 = vcmask 519168
        %485 = vst.msk [vmem:[#allocation2] sm:$0xf] %vm484, 0
        %486 = vst.msk [vmem:[#allocation2 + $0x4] sm:$0xf] %vm484, %v480
        %487 = vst.msk [vmem:[#allocation2 + $0x8] sm:$0xf] %vm484, %v481
        %488 = vst.msk [vmem:[#allocation2 + $0xc] sm:$0xf] %vm484, %v482
        %489 = vst.msk [vmem:[#allocation2 + $0x10] sm:$0xf] %vm484, %v483
        %490 = vst.msk [vmem:[#allocation2 + $0x14] sm:$0xf] %vm484, 0
        %491 = vst.msk [vmem:[#allocation2 + $0x18] sm:$0xf] %vm484, 0
        %v492 = vld [vmem:[#allocation11] sm:$0x1]
        %v494 = vlaneseq
        %v495 = vshrl.u32 %v494, 7
        %v496 = vsub.s32 0, %v495
        %v497 = vrot.slane %v492, %v496
        %v499 = vld [vmem:[#allocation2] sm:$0xf]
        %v500 = vld [vmem:[#allocation2 + $0x4] sm:$0xf]
        %v501 = vld [vmem:[#allocation2 + $0x8] sm:$0xf]
        %v502 = vld [vmem:[#allocation2 + $0xc] sm:$0xf]
        %v503 = vld [vmem:[#allocation2 + $0x10] sm:$0x1]
        %v504 = vld [vmem:[#allocation2] sm:$0xe]
        %v509 = vunpack.c.l.b16 %v499
        %v510 = vunpack.c.l.b16 %v500
        %v511 = vunpack.c.l.b16 %v501
        %v512 = vunpack.c.l.b16 %v502
        %v513 = vpack.c.b16 %v510, %v509
        %v514 = vpack.c.b16 %v512, %v511
        %v516 = vunpack.c.l.b16 %v503
        %v517 = vpack.c.b16 %v516, %v516
        %vm518 = vsmask.f32 7424
        %v520 = vshrl.u32 %v513, 16
        %v522 = vshll.u32 %v513, 16
        %v524 = vrot.slane %v522, 1
        %v525 = vor.u32 %v520, %v524
        %v527 = vshll.u32 %v514, 16
        %v529 = vrot.slane %v527, 1
        %v530 = vsel %vm518, %v525, %v529
        %v531 = vshrl.u32 %v514, 16
        %v533 = vor.u32 %v531, %v529
        %v535 = vshll.u32 %v517, 16
        %v537 = vrot.slane %v535, 1
        %v538 = vsel %vm518, %v533, %v537
        %539 = vrot.lane.b32.xlu0 %v530, 64
        %v540 = vpop.permute.xlu0 %539
        %541 = vrot.lane.b32.xlu0 %v538, 64
        %v542 = vpop.permute.xlu0 %541
        %v544 = vunpack.c.l.b16 %v504
        %v545 = vpack.c.b16 %v510, %v544
        %vm546 = vcmask 1046528
        %v547 = vrot.slane %v545, 1
        %v548 = vrot.slane %v514, 1
        %v549 = vsel %vm546, %v547, %v548
        %v550 = vrot.slane %v517, 1
        %v551 = vsel %vm546, %v548, %v550
        %v553 = vsel %vm378, %v513, %v540
        %v556 = vsel %vm378, %v514, %v542
        %v558 = vld [vmem:[#allocation9] sm:$0xf]
        %v559 = vld [vmem:[#allocation9 + $0x4] sm:$0xf]
        %v560 = vld [vmem:[#allocation9 + $0x8] sm:$0xf]
        %v561 = vld [vmem:[#allocation9 + $0xc] sm:$0xf]
        %v562 = vld [vmem:[#allocation9 + $0x10] sm:$0xf]
        %v563 = vld [vmem:[#allocation9 + $0x14] sm:$0xf]
        %v564 = vld [vmem:[#allocation9 + $0x18] sm:$0xf]
        %v565 = vld [vmem:[#allocation9 + $0x1c] sm:$0xf]
        %v566 = vld [vmem:[#allocation9 + $0x20] sm:$0xf]
        %v567 = vld [vmem:[#allocation9 + $0x24] sm:$0xf]
        %v568 = vld [vmem:[#allocation9 + $0x28] sm:$0xf]
        %v569 = vld [vmem:[#allocation9 + $0x2c] sm:$0xf]
        %v570 = vld [vmem:[#allocation9 + $0x30] sm:$0xf]
        %v571 = vld [vmem:[#allocation9 + $0x34] sm:$0xf]
        %v572 = vld [vmem:[#allocation9 + $0x38] sm:$0xf]
        %v573 = vld [vmem:[#allocation9 + $0x3c] sm:$0xf]
        %v574 = vld [vmem:[#allocation9 + $0x40] sm:$0xf]
        %v575 = vld [vmem:[#allocation9 + $0x44] sm:$0xf]
        %v576 = vld [vmem:[#allocation9 + $0x48] sm:$0xf]
        %v577 = vld [vmem:[#allocation9 + $0x4c] sm:$0xf]
        %v578 = vld [vmem:[#allocation9 + $0x50] sm:$0xf]
        %v579 = vld [vmem:[#allocation9 + $0x54] sm:$0xf]
        %v580 = vld [vmem:[#allocation9 + $0x58] sm:$0xf]
        %v581 = vld [vmem:[#allocation9 + $0x5c] sm:$0xf]
        %v606 = vunpack.c.l.b16 %v558
        %v607 = vunpack.c.l.b16 %v559
        %v608 = vunpack.c.l.b16 %v560
        %v609 = vunpack.c.l.b16 %v561
        %v610 = vunpack.c.l.b16 %v562
        %v611 = vunpack.c.l.b16 %v563
        %v612 = vunpack.c.l.b16 %v564
        %v613 = vunpack.c.l.b16 %v565
        %v614 = vunpack.c.l.b16 %v566
        %v615 = vunpack.c.l.b16 %v567
        %v616 = vunpack.c.l.b16 %v568
        %v617 = vunpack.c.l.b16 %v569
        %v618 = vunpack.c.l.b16 %v570
        %v619 = vunpack.c.l.b16 %v571
        %v620 = vunpack.c.l.b16 %v572
        %v621 = vunpack.c.l.b16 %v573
        %v622 = vunpack.c.l.b16 %v574
        %v623 = vunpack.c.l.b16 %v575
        %v624 = vunpack.c.l.b16 %v576
        %v625 = vunpack.c.l.b16 %v577
        %v626 = vunpack.c.l.b16 %v578
        %v627 = vunpack.c.l.b16 %v579
        %v628 = vunpack.c.l.b16 %v580
        %v629 = vunpack.c.l.b16 %v581
        %v630 = vpack.c.b16 %v607, %v606
        %v631 = vpack.c.b16 %v609, %v608
        %v632 = vpack.c.b16 %v611, %v610
        %v633 = vpack.c.b16 %v613, %v612
        %v634 = vpack.c.b16 %v615, %v614
        %v635 = vpack.c.b16 %v617, %v616
        %v636 = vpack.c.b16 %v619, %v618
        %v637 = vpack.c.b16 %v621, %v620
        %v638 = vpack.c.b16 %v623, %v622
        %v639 = vpack.c.b16 %v625, %v624
        %v640 = vpack.c.b16 %v627, %v626
        %v641 = vpack.c.b16 %v629, %v628
        %v655 = vsel %vm378, %v549, 0
        %v658 = vsel %vm378, %v551, 0
        %660 = vmatprep.subr.bf16.mxu0 0
        %661 = vmatpush1.bf16.msra.mxu0 %v630
        %662 = vmatprep.subr.bf16.mxu0 0
        %663 = vmatpush1.bf16.msra.mxu0 %v631
        %664 = vmatprep.subr.bf16.mxu0 0
        %665 = vmatpush1.bf16.msra.mxu0 %v632
        %666 = vmatprep.subr.bf16.mxu0 0
        %667 = vmatpush1.bf16.msra.mxu0 %v633
        %668 = vmatprep.subr.bf16.mxu0 0
        %669 = vmatpush1.bf16.msra.mxu0 %v634
        %670 = vmatprep.subr.bf16.mxu0 0
        %671 = vmatpush1.bf16.msra.mxu0 %v635
        %672 = vmatprep.subr.bf16.mxu0 0
        %673 = vmatpush1.bf16.msra.mxu0 %v636
        %674 = vmatprep.subr.bf16.mxu0 0
        %675 = vmatpush1.bf16.msra.mxu0 %v637
        %676 = vmatprep.subr.bf16.mxu0 0
        %677 = vmatpush1.bf16.msra.mxu0 %v638
        %678 = vmatprep.subr.bf16.mxu0 0
        %679 = vmatpush1.bf16.msra.mxu0 %v639
        %680 = vmatprep.subr.bf16.mxu0 0
        %681 = vmatpush1.bf16.msra.mxu0 %v640
        %682 = vmatprep.subr.bf16.mxu0 0
        %683 = vmatpush1.bf16.msra.mxu0 %v641
        %684 = vmatprep.subr.bf16.mxu0 0
        %685 = vmatpush1.bf16.msra.mxu0 0
        %686 = vmatprep.subr.bf16.mxu0 0
        %687 = vmatpush1.bf16.msra.mxu0 0
        %688 = vmatprep.subr.bf16.mxu0 0
        %689 = vmatpush1.bf16.msra.mxu0 0
        %690 = vmatprep.subr.bf16.mxu0 0
        %691 = vmatpush1.bf16.msra.mxu0 0
        %692 = vmatprep.mubr.bf16.mxu0 %v655
        %693 = vmatmul.mubr.bf16.gmra.mrb[0].mxu0 %v553
        %v694 = vpop.f32.mrb[0].mxu0
        %v695 = vadd.f32 0.0, %v694
        %v696 = vpop.f32.mrb[0].mxu0
        %v697 = vpop.f32.mrb[0].mxu0
        %v698 = vadd.f32 0.0, %v697
        %v699 = vpop.f32.mrb[0].mxu0
        %700 = vmatprep.mubr.bf16.mxu0 %v658
        %701 = vmatmul.mubr.bf16.gmra.mrb[0].mxu0 %v556
        %v702 = vpop.f32.mrb[0].mxu0
        %v703 = vadd.f32 0.0, %v702
        %v704 = vpop.f32.mrb[0].mxu0
        %v705 = vpop.f32.mrb[0].mxu0
        %v706 = vadd.f32 0.0, %v705
        %v707 = vpop.f32.mrb[0].mxu0
        %708 = vdwg.mxu0
        %v709 = vadd.f32 %v497, %v695
        %v710 = vadd.f32 %v497, %v698
        %v711 = vadd.f32 %v497, %v703
        %v712 = vadd.f32 %v497, %v706
        %v713 = vld [vmem:[#allocation2 + $0x10] sm:$0xf]
        %v714 = vld [vmem:[#allocation2 + $0x4] sm:$0xf]
        %v715 = vld [vmem:[#allocation2 + $0x8] sm:$0xf]
        %v716 = vld [vmem:[#allocation2 + $0xc] sm:$0xf]
        %v717 = vld [vmem:[#allocation2 + $0x14] sm:$0x1]
        %v718 = vld [vmem:[#allocation2 + $0x4] sm:$0xe]
        %v720 = vunpack.c.l.b16 %v713
        %v721 = vpack.c.b16 %v511, %v510
        %v722 = vpack.c.b16 %v720, %v512
        %v727 = vunpack.c.l.b16 %v714
        %v728 = vunpack.c.l.b16 %v715
        %v729 = vunpack.c.l.b16 %v716
        %v730 = vunpack.c.l.b16 %v717
        %v731 = vpack.c.b16 %v728, %v727
        %v732 = vpack.c.b16 %v720, %v729
        %v733 = vpack.c.b16 %v730, %v730
        %v735 = vshrl.u32 %v731, 16
        %v737 = vshll.u32 %v731, 16
        %v739 = vrot.slane %v737, 1
        %v740 = vor.u32 %v735, %v739
        %v742 = vshll.u32 %v732, 16
        %v744 = vrot.slane %v742, 1
        %v745 = vsel %vm518, %v740, %v744
        %v746 = vshrl.u32 %v732, 16
        %v748 = vor.u32 %v746, %v744
        %v750 = vshll.u32 %v733, 16
        %v752 = vrot.slane %v750, 1
        %v753 = vsel %vm518, %v748, %v752
        %754 = vrot.lane.b32.xlu0 %v745, 64
        %v755 = vpop.permute.xlu0 %754
        %756 = vrot.lane.b32.xlu0 %v753, 64
        %v757 = vpop.permute.xlu0 %756
        %v759 = vunpack.c.l.b16 %v718
        %v760 = vpack.c.b16 %v728, %v759
        %v761 = vrot.slane %v760, 1
        %v762 = vrot.slane %v732, 1
        %v763 = vsel %vm546, %v761, %v762
        %v764 = vrot.slane %v733, 1
        %v765 = vsel %vm546, %v762, %v764
        %v768 = vsel %vm378, %v721, %v755
        %v772 = vsel %vm378, %v722, %v757
        %s774 = scalar_lea.vmem [#allocation9], 96
        %v775 = vld [vmem:[%s774] sm:$0xf]
        %v776 = vld [vmem:[%s774 + $0x4] sm:$0xf]
        %v777 = vld [vmem:[%s774 + $0x8] sm:$0xf]
        %v778 = vld [vmem:[%s774 + $0xc] sm:$0xf]
        %v779 = vld [vmem:[%s774 + $0x10] sm:$0xf]
        %v780 = vld [vmem:[%s774 + $0x14] sm:$0xf]
        %v781 = vld [vmem:[%s774 + $0x18] sm:$0xf]
        %v782 = vld [vmem:[%s774 + $0x1c] sm:$0xf]
        %v783 = vld [vmem:[%s774 + $0x20] sm:$0xf]
        %v784 = vld [vmem:[%s774 + $0x24] sm:$0xf]
        %v785 = vld [vmem:[%s774 + $0x28] sm:$0xf]
        %v786 = vld [vmem:[%s774 + $0x2c] sm:$0xf]
        %v787 = vld [vmem:[%s774 + $0x30] sm:$0xf]
        %v788 = vld [vmem:[%s774 + $0x34] sm:$0xf]
        %v789 = vld [vmem:[%s774 + $0x38] sm:$0xf]
        %v790 = vld [vmem:[%s774 + $0x3c] sm:$0xf]
        %v791 = vld [vmem:[%s774 + $0x40] sm:$0xf]
        %v792 = vld [vmem:[%s774 + $0x44] sm:$0xf]
        %v793 = vld [vmem:[%s774 + $0x48] sm:$0xf]
        %v794 = vld [vmem:[%s774 + $0x4c] sm:$0xf]
        %v795 = vld [vmem:[%s774 + $0x50] sm:$0xf]
        %v796 = vld [vmem:[%s774 + $0x54] sm:$0xf]
        %v797 = vld [vmem:[%s774 + $0x58] sm:$0xf]
        %v798 = vld [vmem:[%s774 + $0x5c] sm:$0xf]
        %v823 = vunpack.c.l.b16 %v775
        %v824 = vunpack.c.l.b16 %v776
        %v825 = vunpack.c.l.b16 %v777
        %v826 = vunpack.c.l.b16 %v778
        %v827 = vunpack.c.l.b16 %v779
        %v828 = vunpack.c.l.b16 %v780
        %v829 = vunpack.c.l.b16 %v781
        %v830 = vunpack.c.l.b16 %v782
        %v831 = vunpack.c.l.b16 %v783
        %v832 = vunpack.c.l.b16 %v784
        %v833 = vunpack.c.l.b16 %v785
        %v834 = vunpack.c.l.b16 %v786
        %v835 = vunpack.c.l.b16 %v787
        %v836 = vunpack.c.l.b16 %v788
        %v837 = vunpack.c.l.b16 %v789
        %v838 = vunpack.c.l.b16 %v790
        %v839 = vunpack.c.l.b16 %v791
        %v840 = vunpack.c.l.b16 %v792
        %v841 = vunpack.c.l.b16 %v793
        %v842 = vunpack.c.l.b16 %v794
        %v843 = vunpack.c.l.b16 %v795
        %v844 = vunpack.c.l.b16 %v796
        %v845 = vunpack.c.l.b16 %v797
        %v846 = vunpack.c.l.b16 %v798
        %v847 = vpack.c.b16 %v824, %v823
        %v848 = vpack.c.b16 %v826, %v825
        %v849 = vpack.c.b16 %v828, %v827
        %v850 = vpack.c.b16 %v830, %v829
        %v851 = vpack.c.b16 %v832, %v831
        %v852 = vpack.c.b16 %v834, %v833
        %v853 = vpack.c.b16 %v836, %v835
        %v854 = vpack.c.b16 %v838, %v837
        %v855 = vpack.c.b16 %v840, %v839
        %v856 = vpack.c.b16 %v842, %v841
        %v857 = vpack.c.b16 %v844, %v843
        %v858 = vpack.c.b16 %v846, %v845
        %v872 = vsel %vm378, %v763, 0
        %v875 = vsel %vm378, %v765, 0
        %877 = vmatprep.subr.bf16.mxu0 0
        %878 = vmatpush1.bf16.msra.mxu0 %v847
        %879 = vmatprep.subr.bf16.mxu0 0
        %880 = vmatpush1.bf16.msra.mxu0 %v848
        %881 = vmatprep.subr.bf16.mxu0 0
        %882 = vmatpush1.bf16.msra.mxu0 %v849
        %883 = vmatprep.subr.bf16.mxu0 0
        %884 = vmatpush1.bf16.msra.mxu0 %v850
        %885 = vmatprep.subr.bf16.mxu0 0
        %886 = vmatpush1.bf16.msra.mxu0 %v851
        %887 = vmatprep.subr.bf16.mxu0 0
        %888 = vmatpush1.bf16.msra.mxu0 %v852
        %889 = vmatprep.subr.bf16.mxu0 0
        %890 = vmatpush1.bf16.msra.mxu0 %v853
        %891 = vmatprep.subr.bf16.mxu0 0
        %892 = vmatpush1.bf16.msra.mxu0 %v854
        %893 = vmatprep.subr.bf16.mxu0 0
        %894 = vmatpush1.bf16.msra.mxu0 %v855
        %895 = vmatprep.subr.bf16.mxu0 0
        %896 = vmatpush1.bf16.msra.mxu0 %v856
        %897 = vmatprep.subr.bf16.mxu0 0
        %898 = vmatpush1.bf16.msra.mxu0 %v857
        %899 = vmatprep.subr.bf16.mxu0 0
        %900 = vmatpush1.bf16.msra.mxu0 %v858
        %901 = vmatprep.subr.bf16.mxu0 0
        %902 = vmatpush1.bf16.msra.mxu0 0
        %903 = vmatprep.subr.bf16.mxu0 0
        %904 = vmatpush1.bf16.msra.mxu0 0
        %905 = vmatprep.subr.bf16.mxu0 0
        %906 = vmatpush1.bf16.msra.mxu0 0
        %907 = vmatprep.subr.bf16.mxu0 0
        %908 = vmatpush1.bf16.msra.mxu0 0
        %909 = vmatprep.mubr.bf16.mxu0 %v872
        %910 = vmatmul.mubr.bf16.gmra.mrb[0].mxu0 %v768
        %v911 = vpop.f32.mrb[0].mxu0
        %v912 = vadd.f32 0.0, %v911
        %v913 = vpop.f32.mrb[0].mxu0
        %v914 = vpop.f32.mrb[0].mxu0
        %v915 = vadd.f32 0.0, %v914
        %v916 = vpop.f32.mrb[0].mxu0
        %917 = vmatprep.mubr.bf16.mxu0 %v875
        %918 = vmatmul.mubr.bf16.gmra.mrb[0].mxu0 %v772
        %v919 = vpop.f32.mrb[0].mxu0
        %v920 = vadd.f32 0.0, %v919
        %v921 = vpop.f32.mrb[0].mxu0
        %v922 = vpop.f32.mrb[0].mxu0
        %v923 = vadd.f32 0.0, %v922
        %v924 = vpop.f32.mrb[0].mxu0
        %925 = vdwg.mxu0
        %v926 = vadd.f32 %v709, %v912
        %v927 = vadd.f32 %v710, %v915
        %v928 = vadd.f32 %v711, %v920
        %v929 = vadd.f32 %v712, %v923
        %v930 = vld [vmem:[#allocation2 + $0x14] sm:$0xf]
        %v931 = vld [vmem:[#allocation2 + $0x8] sm:$0xf]
        %v932 = vld [vmem:[#allocation2 + $0xc] sm:$0xf]
        %v933 = vld [vmem:[#allocation2 + $0x10] sm:$0xf]
        %v934 = vld [vmem:[#allocation2 + $0x18] sm:$0x1]
        %v935 = vld [vmem:[#allocation2 + $0x8] sm:$0xe]
        %v937 = vunpack.c.l.b16 %v930
        %v938 = vpack.c.b16 %v729, %v728
        %v939 = vpack.c.b16 %v937, %v720
        %v944 = vunpack.c.l.b16 %v931
        %v945 = vunpack.c.l.b16 %v932
        %v946 = vunpack.c.l.b16 %v933
        %v947 = vunpack.c.l.b16 %v934
        %v948 = vpack.c.b16 %v945, %v944
        %v949 = vpack.c.b16 %v937, %v946
        %v950 = vpack.c.b16 %v947, %v947
        %v952 = vshrl.u32 %v948, 16
        %v954 = vshll.u32 %v948, 16
        %v956 = vrot.slane %v954, 1
        %v957 = vor.u32 %v952, %v956
        %v959 = vshll.u32 %v949, 16
        %v961 = vrot.slane %v959, 1
        %v962 = vsel %vm518, %v957, %v961
        %v963 = vshrl.u32 %v949, 16
        %v965 = vor.u32 %v963, %v961
        %v967 = vshll.u32 %v950, 16
        %v969 = vrot.slane %v967, 1
        %v970 = vsel %vm518, %v965, %v969
        %971 = vrot.lane.b32.xlu0 %v962, 64
        %v972 = vpop.permute.xlu0 %971
        %973 = vrot.lane.b32.xlu0 %v970, 64
        %v974 = vpop.permute.xlu0 %973
        %v976 = vunpack.c.l.b16 %v935
        %v977 = vpack.c.b16 %v945, %v976
        %v978 = vrot.slane %v977, 1
        %v979 = vrot.slane %v949, 1
        %v980 = vsel %vm546, %v978, %v979
        %v981 = vrot.slane %v950, 1
        %v982 = vsel %vm546, %v979, %v981
        %v985 = vsel %vm378, %v938, %v972
        %v989 = vsel %vm378, %v939, %v974
        %s991 = scalar_lea.vmem [#allocation9], 192
        %v992 = vld [vmem:[%s991] sm:$0xf]
        %v993 = vld [vmem:[%s991 + $0x4] sm:$0xf]
        %v994 = vld [vmem:[%s991 + $0x8] sm:$0xf]
        %v995 = vld [vmem:[%s991 + $0xc] sm:$0xf]
        %v996 = vld [vmem:[%s991 + $0x10] sm:$0xf]
        %v997 = vld [vmem:[%s991 + $0x14] sm:$0xf]
        %v998 = vld [vmem:[%s991 + $0x18] sm:$0xf]
        %v999 = vld [vmem:[%s991 + $0x1c] sm:$0xf]
        %v1000 = vld [vmem:[%s991 + $0x20] sm:$0xf]
        %v1001 = vld [vmem:[%s991 + $0x24] sm:$0xf]
        %v1002 = vld [vmem:[%s991 + $0x28] sm:$0xf]
        %v1003 = vld [vmem:[%s991 + $0x2c] sm:$0xf]
        %v1004 = vld [vmem:[%s991 + $0x30] sm:$0xf]
        %v1005 = vld [vmem:[%s991 + $0x34] sm:$0xf]
        %v1006 = vld [vmem:[%s991 + $0x38] sm:$0xf]
        %v1007 = vld [vmem:[%s991 + $0x3c] sm:$0xf]
        %v1008 = vld [vmem:[%s991 + $0x40] sm:$0xf]
        %v1009 = vld [vmem:[%s991 + $0x44] sm:$0xf]
        %v1010 = vld [vmem:[%s991 + $0x48] sm:$0xf]
        %v1011 = vld [vmem:[%s991 + $0x4c] sm:$0xf]
        %v1012 = vld [vmem:[%s991 + $0x50] sm:$0xf]
        %v1013 = vld [vmem:[%s991 + $0x54] sm:$0xf]
        %v1014 = vld [vmem:[%s991 + $0x58] sm:$0xf]
        %v1015 = vld [vmem:[%s991 + $0x5c] sm:$0xf]
        %v1040 = vunpack.c.l.b16 %v992
        %v1041 = vunpack.c.l.b16 %v993
        %v1042 = vunpack.c.l.b16 %v994
        %v1043 = vunpack.c.l.b16 %v995
        %v1044 = vunpack.c.l.b16 %v996
        %v1045 = vunpack.c.l.b16 %v997
        %v1046 = vunpack.c.l.b16 %v998
        %v1047 = vunpack.c.l.b16 %v999
        %v1048 = vunpack.c.l.b16 %v1000
        %v1049 = vunpack.c.l.b16 %v1001
        %v1050 = vunpack.c.l.b16 %v1002
        %v1051 = vunpack.c.l.b16 %v1003
        %v1052 = vunpack.c.l.b16 %v1004
        %v1053 = vunpack.c.l.b16 %v1005
        %v1054 = vunpack.c.l.b16 %v1006
        %v1055 = vunpack.c.l.b16 %v1007
        %v1056 = vunpack.c.l.b16 %v1008
        %v1057 = vunpack.c.l.b16 %v1009
        %v1058 = vunpack.c.l.b16 %v1010
        %v1059 = vunpack.c.l.b16 %v1011
        %v1060 = vunpack.c.l.b16 %v1012
        %v1061 = vunpack.c.l.b16 %v1013
        %v1062 = vunpack.c.l.b16 %v1014
        %v1063 = vunpack.c.l.b16 %v1015
        %v1064 = vpack.c.b16 %v1041, %v1040
        %v1065 = vpack.c.b16 %v1043, %v1042
        %v1066 = vpack.c.b16 %v1045, %v1044
        %v1067 = vpack.c.b16 %v1047, %v1046
        %v1068 = vpack.c.b16 %v1049, %v1048
        %v1069 = vpack.c.b16 %v1051, %v1050
        %v1070 = vpack.c.b16 %v1053, %v1052
        %v1071 = vpack.c.b16 %v1055, %v1054
        %v1072 = vpack.c.b16 %v1057, %v1056
        %v1073 = vpack.c.b16 %v1059, %v1058
        %v1074 = vpack.c.b16 %v1061, %v1060
        %v1075 = vpack.c.b16 %v1063, %v1062
        %v1089 = vsel %vm378, %v980, 0
        %v1092 = vsel %vm378, %v982, 0
        %1094 = vmatprep.subr.bf16.mxu0 0
        %1095 = vmatpush1.bf16.msra.mxu0 %v1064
        %1096 = vmatprep.subr.bf16.mxu0 0
        %1097 = vmatpush1.bf16.msra.mxu0 %v1065
        %1098 = vmatprep.subr.bf16.mxu0 0
        %1099 = vmatpush1.bf16.msra.mxu0 %v1066
        %1100 = vmatprep.subr.bf16.mxu0 0
        %1101 = vmatpush1.bf16.msra.mxu0 %v1067
        %1102 = vmatprep.subr.bf16.mxu0 0
        %1103 = vmatpush1.bf16.msra.mxu0 %v1068
        %1104 = vmatprep.subr.bf16.mxu0 0
        %1105 = vmatpush1.bf16.msra.mxu0 %v1069
        %1106 = vmatprep.subr.bf16.mxu0 0
        %1107 = vmatpush1.bf16.msra.mxu0 %v1070
        %1108 = vmatprep.subr.bf16.mxu0 0
        %1109 = vmatpush1.bf16.msra.mxu0 %v1071
        %1110 = vmatprep.subr.bf16.mxu0 0
        %1111 = vmatpush1.bf16.msra.mxu0 %v1072
        %1112 = vmatprep.subr.bf16.mxu0 0
        %1113 = vmatpush1.bf16.msra.mxu0 %v1073
        %1114 = vmatprep.subr.bf16.mxu0 0
        %1115 = vmatpush1.bf16.msra.mxu0 %v1074
        %1116 = vmatprep.subr.bf16.mxu0 0
        %1117 = vmatpush1.bf16.msra.mxu0 %v1075
        %1118 = vmatprep.subr.bf16.mxu0 0
        %1119 = vmatpush1.bf16.msra.mxu0 0
        %1120 = vmatprep.subr.bf16.mxu0 0
        %1121 = vmatpush1.bf16.msra.mxu0 0
        %1122 = vmatprep.subr.bf16.mxu0 0
        %1123 = vmatpush1.bf16.msra.mxu0 0
        %1124 = vmatprep.subr.bf16.mxu0 0
        %1125 = vmatpush1.bf16.msra.mxu0 0
        %1126 = vmatprep.mubr.bf16.mxu0 %v1089
        %1127 = vmatmul.mubr.bf16.gmra.mrb[0].mxu0 %v985
        %v1128 = vpop.f32.mrb[0].mxu0
        %v1129 = vadd.f32 0.0, %v1128
        %v1130 = vpop.f32.mrb[0].mxu0
        %v1131 = vpop.f32.mrb[0].mxu0
        %v1132 = vadd.f32 0.0, %v1131
        %v1133 = vpop.f32.mrb[0].mxu0
        %1134 = vmatprep.mubr.bf16.mxu0 %v1092
        %1135 = vmatmul.mubr.bf16.gmra.mrb[0].mxu0 %v989
        %v1136 = vpop.f32.mrb[0].mxu0
        %v1137 = vadd.f32 0.0, %v1136
        %v1138 = vpop.f32.mrb[0].mxu0
        %v1139 = vpop.f32.mrb[0].mxu0
        %v1140 = vadd.f32 0.0, %v1139
        %v1141 = vpop.f32.mrb[0].mxu0
        %1142 = vdwg.mxu0
        %v1143 = vadd.f32 %v926, %v1129
        %v1144 = vadd.f32 %v927, %v1132
        %v1145 = vadd.f32 %v928, %v1137
        %v1146 = vadd.f32 %v929, %v1140
        %1147 = vst.msk [vmem:[%s334] sm:$0xf] %vm484, %v1143
        %1148 = vst.msk [vmem:[%s334 + $0x4] sm:$0xf] %vm484, %v1144
        %1149 = vst.msk [vmem:[%s334 + $0x8] sm:$0xf] %vm484, %v1145
        %1150 = vst.msk [vmem:[%s334 + $0xc] sm:$0xf] %vm484, %v1146
        %s1151 = sand.u32 %s147, 1
        %s1152 = scalar_lea.sflag [#allocation5], %s1151
        %s1153 = sand.u32 %s147, 1
        %s1154 = smul.addr %s1153, 8
        %s1155 = scalar_lea.vmem [#allocation12], %s1154
        %s1156 = sand.u32 %s173, 1
        %s1157 = scalar_lea.sflag [#allocation14], %s1156
        %s1158 = sand.u32 %s173, 1
        %s1159 = smul.addr %s1158, 16
        %s1160 = scalar_lea.vmem [#allocation13], %s1159
        // Predicated region
        $region61: #{_lambda_.5} parent=39 // pred_check
          %p1161 = pneg %p157
        $region62: #{_lambda_.5} parent=39 // pred_check_branch
          %1163 = sbr.rel (%p1161) target = $region64
        $region63: #{_lambda_.5} parent=39 // pred_region
          %s1165 = ssub.s32 128, 128
          %1166 = vsyncadd %s1152, %s1165
          %s1167 = smul.addr %s29, 4
          %s1168 = smul.addr %s1167, 32
          %s1169 = scalar_lea.hbm %s5, %s1168
          %s1170 = sshll.u32 %s1155, 4
          %s1171 = int_to_ptr.vmem [resolvable:$true] %s1170
          %1176 = dma.vmem_to_hbm [thread:$0]  %s1171, 128, %s1169, %s1152, 32, 32, 2
        $region64: #{_lambda_.5} parent=39 // pred_fallthru
          _
        // Predicated region
        $region65: #{_lambda_.5} parent=39 // pred_check
          %p1177 = pneg %p183
        $region66: #{_lambda_.5} parent=39 // pred_check_branch
          %1179 = sbr.rel (%p1177) target = $region68
        $region67: #{_lambda_.5} parent=39 // pred_region
          %s1181 = ssub.s32 256, 256
          %1182 = vsyncadd %s1157, %s1181
          %s1183 = smul.addr %s29, 4
          %s1184 = smul.addr %s1183, 64
          %s1185 = scalar_lea.hbm %s6, %s1184
          %s1186 = sshll.u32 %s1160, 4
          %s1187 = int_to_ptr.vmem [resolvable:$true] %s1186
          %1192 = dma.vmem_to_hbm [thread:$0]  %s1187, 256, %s1185, %s1157, 64, 64, 4
        $region68: #{_lambda_.5} parent=39 // pred_fallthru
          _
      $region40: #{_lambda_.5} parent=5 // pred_fallthru
        _
      %p1193 = scmp.le.s32.totalorder 2, %s24
      // Predicated region
      $region69: #{_lambda_.5} parent=5 // pred_check
        %p1194 = pneg %p1193
      $region70: #{_lambda_.5} parent=5 // pred_check_branch
        %1196 = sbr.rel (%p1194) target = $region72
      $region71: #{_lambda_.5} parent=5 // pred_region
        %s1197 = ssub.s32 %s24, 2
        // Predicated region
        $region73: #{_lambda_.5} parent=71 // pred_check
          %p1198 = pneg %p163
        $region74: #{_lambda_.5} parent=71 // pred_check_branch
          %1200 = sbr.rel (%p1198) target = $region76
        $region75: #{_lambda_.5} parent=71 // pred_region
          %s1201 = sand.u32 %s148, 1
          %s1202 = scalar_lea.sflag [#allocation5], %s1201
          %s1203 = sand.u32 %s148, 1
          %s1204 = smul.addr %s1203, 8
          %s1205 = scalar_lea.vmem [#allocation12], %s1204
          %1206 = dma.done %s1202, 128
        $region76: #{_lambda_.5} parent=71 // pred_fallthru
          _
        // Predicated region
        $region77: #{_lambda_.5} parent=71 // pred_check
          %p1207 = pneg %p189
        $region78: #{_lambda_.5} parent=71 // pred_check_branch
          %1209 = sbr.rel (%p1207) target = $region80
        $region79: #{_lambda_.5} parent=71 // pred_region
          %s1210 = sand.u32 %s174, 1
          %s1211 = scalar_lea.sflag [#allocation14], %s1210
          %s1212 = sand.u32 %s174, 1
          %s1213 = smul.addr %s1212, 16
          %s1214 = scalar_lea.vmem [#allocation13], %s1213
          %1215 = dma.done %s1211, 256
        $region80: #{_lambda_.5} parent=71 // pred_fallthru
          _
      $region72: #{_lambda_.5} parent=5 // pred_fallthru
        _
    $region6: #{_lambda_.5} parent=1 // loop_footer
      %s28 = sadd.s32 1, %s24
    $region7: #{_lambda_.5} parent=1 // loop_footer_branch
      %23 = sbr.rel target = $region3
    $region8: #{_lambda_.5} parent=1 // loop_exit
      _
    %1216 = vsyncpa [#allocation4], 1
    %s1217 = scalar_lea.sflag [#allocation4], 1
    %1218 = vsyncpa %s1217, 1
    %1219 = vsyncpa [#allocation7], 1
    %1220 = vsyncpa [#allocation10], 1
    %1221 = vsyncpa [#allocation5], 1
    %s1222 = scalar_lea.sflag [#allocation5], 1
    %1223 = vsyncpa %s1222, 1
    %1224 = vsyncpa [#allocation14], 1
    %s1225 = scalar_lea.sflag [#allocation14], 1
    %1226 = vsyncpa %s1225, 1

// kernel: _lambda_.6
$region0: #{_lambda_.6}
  #allocation0 [shape = 'u32[]', space=smem, size = 0x4, offset = 0x4, fixed_abs, tag = 'smem constant byte address 0x4 - core index']
  #allocation1 [shape = 'u32[144,128]{1,0:T(1,128)}', space=vmem, size = 0x12000, scoped, tag = 'internal scratch']
  #allocation2 [shape = 'bf16[168,64]{1,0:T(8,128)(2,1)}', space=vmem, size = 0xa800, scoped, tag = 'scratch operand']
  %s0 = inlined_call_operand.hbm [shape: f32[2,64,32], index: 0, kind: input, shape index: {}]
  %s1 = inlined_call_operand.hbm [shape: bf16[32,64], index: 1, kind: input, shape index: {}]
  %s2 = inlined_call_operand.hbm [shape: f32[1,64], index: 2, kind: input, shape index: {}]
  %s3 = inlined_call_operand.hbm [shape: bf16[3,192,64], index: 3, kind: input, shape index: {}]
  %s4 = inlined_call_operand.hbm [shape: f32[1,64], index: 4, kind: input, shape index: {}]
  %s5 = inlined_call_operand.hbm [shape: bf16[2,64,64], index: 5, kind: input, shape index: {}]
  %s6 = inlined_call_operand.hbm [shape: bf16[2,8,8,64], index: 6, kind: output, shape index: {0}]
  %s7 = inlined_call_operand.hbm [shape: f32[2,8,8,64], index: 7, kind: output, shape index: {1}]
  %8 = xla_tuple %s6, %s7
  %s9 = sld [smem:[#allocation0]]
  $region89: #{_lambda_.6} parent=0
    _
  %s11 = ssub.s32 1, %s9
  %s12 = scalar_select 0, %s11, %s9
  $region1: #{_lambda_.6} parent=0
    #allocation3 [shape = 'u8[65536]{0}', space=vmem, size = 0x10000, scoped, tag = 'input window, operand 0']
    #allocation4 [shape = 's32[2]{0}', space=sflag, size = 0x8, scoped, tag = 'scoped memory for _lambda_.6']
    #allocation5 [shape = 's32[2]{0}', space=sflag, size = 0x8, scoped, tag = 'scoped memory for _lambda_.6']
    #allocation6 [shape = 'u8[8192]{0}', space=vmem, size = 0x2000, scoped, tag = 'input window, operand 1, single buffered']
    #allocation7 [shape = 's32[1]{0}', space=sflag, size = 0x4, scoped, tag = 'scoped memory for _lambda_.6']
    #allocation8 [shape = 'u8[512]{0}', space=vmem, size = 0x400, scoped, tag = 'input window, operand 2, single buffered']
    #allocation9 [shape = 'u8[147456]{0}', space=vmem, size = 0x24000, scoped, tag = 'input window, operand 3, single buffered']
    #allocation10 [shape = 's32[1]{0}', space=sflag, size = 0x4, scoped, tag = 'scoped memory for _lambda_.6']
    #allocation11 [shape = 'u8[512]{0}', space=vmem, size = 0x400, scoped, tag = 'input window, operand 4, single buffered']
    #allocation12 [shape = 'u8[32768]{0}', space=vmem, size = 0x8000, scoped, tag = 'input window, operand 5']
    #allocation13 [shape = 's32[2]{0}', space=sflag, size = 0x8, scoped, tag = 'scoped memory for _lambda_.6']
    #allocation14 [shape = 'u8[32768]{0}', space=vmem, size = 0x8000, scoped, tag = 'output window, operand 0']
    #allocation15 [shape = 'u8[65536]{0}', space=vmem, size = 0x10000, scoped, tag = 'output window, operand 1']
    #allocation16 [shape = 's32[2]{0}', space=sflag, size = 0x8, scoped, tag = 'scoped memory for _lambda_.6']
    %13 = vsyncpa [#allocation4], 0
    %s14 = scalar_lea.sflag [#allocation4], 1
    %15 = vsyncpa %s14, 0
    %16 = vsyncpa [#allocation7], 0
    %17 = vsyncpa [#allocation10], 0
    %18 = vsyncpa [#allocation13], 0
    %s19 = scalar_lea.sflag [#allocation13], 1
    %20 = vsyncpa %s19, 0
    %21 = vsyncpa [#allocation5], 0
    %s22 = scalar_lea.sflag [#allocation5], 1
    %23 = vsyncpa %s22, 0
    %24 = vsyncpa [#allocation16], 0
    %s25 = scalar_lea.sflag [#allocation16], 1
    %26 = vsyncpa %s25, 0
    loop: start=0, step=1, limit=4
    $region2: #{_lambda_.6} parent=1 // loop_pre_header
      _
    $region3: #{_lambda_.6} parent=1 // loop_header
      %s28 = sphi 0, %s32
      %p29 = scmp.ge.s32.totalorder %s28, 4
      %s38 = sphi 0, %s40
      %s41 = sphi 0, %s38
      %s42 = sphi 0, %s41
      %s58 = sphi 0, %s42
      %s62 = sphi 0, %s62
      %s64 = sphi 0, %s62
      %s65 = sphi 0, %s64
      %s79 = sphi 0, %s65
      %s83 = sphi 0, %s83
      %s85 = sphi 0, %s83
      %s86 = sphi 0, %s85
      %s100 = sphi 0, %s86
      %s104 = sphi 0, %s104
      %s106 = sphi 0, %s104
      %s107 = sphi 0, %s106
      %s121 = sphi 0, %s107
      %s125 = sphi 0, %s125
      %s127 = sphi 0, %s125
      %s128 = sphi 0, %s127
      %s142 = sphi 0, %s128
      %s148 = sphi 0, %s150
      %s151 = sphi 0, %s148
      %s152 = sphi 0, %s151
      %s168 = sphi 0, %s152
      %s174 = sphi 0, %s176
      %s177 = sphi 0, %s174
      %s178 = sphi 0, %s177
      %s194 = sphi 0, %s178
      %s200 = sphi 0, %s202
      %s203 = sphi 0, %s200
      %s204 = sphi 0, %s203
      %s220 = sphi 0, %s204
    $region4: #{_lambda_.6} parent=1 // loop_header_branch
      %31 = sbr.rel (%p29) target = $region8
    $region5: #{_lambda_.6} parent=1 // loop_body
      %s33 = ssub.s32 %s28, 1
      %s34 = ssub.s32 %s28, 2
      %s35 = sadd.s32 %s28, 1
      %s36 = ssub.s32 %s28, %s35
      %p37 = scmp.eq.s32.totalorder %s36, 0
      %s39 = sadd.s32 %s38, 1
      %s40 = scalar_select %p37, %s38, %s39
      %p43 = pneg %p37
      %p44 = scmp.eq.s32.totalorder %s28, 1
      %p45 = por %p43, %p44
      %p46 = scmp.ne.s32.totalorder %s38, %s41
      %p47 = scmp.eq.s32.totalorder %s28, 0
      %p48 = por %p46, %p47
      %p49 = scmp.ne.s32.totalorder %s38, %s41
      %p50 = scmp.eq.s32.totalorder %s33, 1
      %p51 = por %p49, %p50
      %p52 = scmp.ne.s32.totalorder %s41, %s42
      %p53 = scmp.eq.s32.totalorder %s33, 0
      %p54 = por %p52, %p53
      %p55 = scmp.ne.s32.totalorder %s41, %s42
      %p56 = scmp.eq.s32.totalorder %s34, 1
      %p57 = por %p55, %p56
      %p59 = scmp.ne.s32.totalorder %s42, %s58
      %p60 = scmp.eq.s32.totalorder %s34, 0
      %p61 = por %p59, %p60
      %s63 = sadd.s32 %s62, 1
      %p66 = scmp.eq.s32.totalorder %s28, 1
      %p67 = scmp.ne.s32.totalorder %s62, %s64
      %p68 = scmp.eq.s32.totalorder %s28, 0
      %p69 = por %p67, %p68
      %p70 = scmp.ne.s32.totalorder %s62, %s64
      %p71 = scmp.eq.s32.totalorder %s33, 1
      %p72 = por %p70, %p71
      %p73 = scmp.ne.s32.totalorder %s64, %s65
      %p74 = scmp.eq.s32.totalorder %s33, 0
      %p75 = por %p73, %p74
      %p76 = scmp.ne.s32.totalorder %s64, %s65
      %p77 = scmp.eq.s32.totalorder %s34, 1
      %p78 = por %p76, %p77
      %p80 = scmp.ne.s32.totalorder %s65, %s79
      %p81 = scmp.eq.s32.totalorder %s34, 0
      %p82 = por %p80, %p81
      %s84 = sadd.s32 %s83, 1
      %p87 = scmp.eq.s32.totalorder %s28, 1
      %p88 = scmp.ne.s32.totalorder %s83, %s85
      %p89 = scmp.eq.s32.totalorder %s28, 0
      %p90 = por %p88, %p89
      %p91 = scmp.ne.s32.totalorder %s83, %s85
      %p92 = scmp.eq.s32.totalorder %s33, 1
      %p93 = por %p91, %p92
      %p94 = scmp.ne.s32.totalorder %s85, %s86
      %p95 = scmp.eq.s32.totalorder %s33, 0
      %p96 = por %p94, %p95
      %p97 = scmp.ne.s32.totalorder %s85, %s86
      %p98 = scmp.eq.s32.totalorder %s34, 1
      %p99 = por %p97, %p98
      %p101 = scmp.ne.s32.totalorder %s86, %s100
      %p102 = scmp.eq.s32.totalorder %s34, 0
      %p103 = por %p101, %p102
      %s105 = sadd.s32 %s104, 1
      %p108 = scmp.eq.s32.totalorder %s28, 1
      %p109 = scmp.ne.s32.totalorder %s104, %s106
      %p110 = scmp.eq.s32.totalorder %s28, 0
      %p111 = por %p109, %p110
      %p112 = scmp.ne.s32.totalorder %s104, %s106
      %p113 = scmp.eq.s32.totalorder %s33, 1
      %p114 = por %p112, %p113
      %p115 = scmp.ne.s32.totalorder %s106, %s107
      %p116 = scmp.eq.s32.totalorder %s33, 0
      %p117 = por %p115, %p116
      %p118 = scmp.ne.s32.totalorder %s106, %s107
      %p119 = scmp.eq.s32.totalorder %s34, 1
      %p120 = por %p118, %p119
      %p122 = scmp.ne.s32.totalorder %s107, %s121
      %p123 = scmp.eq.s32.totalorder %s34, 0
      %p124 = por %p122, %p123
      %s126 = sadd.s32 %s125, 1
      %p129 = scmp.eq.s32.totalorder %s28, 1
      %p130 = scmp.ne.s32.totalorder %s125, %s127
      %p131 = scmp.eq.s32.totalorder %s28, 0
      %p132 = por %p130, %p131
      %p133 = scmp.ne.s32.totalorder %s125, %s127
      %p134 = scmp.eq.s32.totalorder %s33, 1
      %p135 = por %p133, %p134
      %p136 = scmp.ne.s32.totalorder %s127, %s128
      %p137 = scmp.eq.s32.totalorder %s33, 0
      %p138 = por %p136, %p137
      %p139 = scmp.ne.s32.totalorder %s127, %s128
      %p140 = scmp.eq.s32.totalorder %s34, 1
      %p141 = por %p139, %p140
      %p143 = scmp.ne.s32.totalorder %s128, %s142
      %p144 = scmp.eq.s32.totalorder %s34, 0
      %p145 = por %p143, %p144
      %s146 = ssub.s32 %s28, %s35
      %p147 = scmp.eq.s32.totalorder %s146, 0
      %s149 = sadd.s32 %s148, 1
      %s150 = scalar_select %p147, %s148, %s149
      %p153 = pneg %p147
      %p154 = scmp.eq.s32.totalorder %s28, 1
      %p155 = por %p153, %p154
      %p156 = scmp.ne.s32.totalorder %s148, %s151
      %p157 = scmp.eq.s32.totalorder %s28, 0
      %p158 = por %p156, %p157
      %p159 = scmp.ne.s32.totalorder %s148, %s151
      %p160 = scmp.eq.s32.totalorder %s33, 1
      %p161 = por %p159, %p160
      %p162 = scmp.ne.s32.totalorder %s151, %s152
      %p163 = scmp.eq.s32.totalorder %s33, 0
      %p164 = por %p162, %p163
      %p165 = scmp.ne.s32.totalorder %s151, %s152
      %p166 = scmp.eq.s32.totalorder %s34, 1
      %p167 = por %p165, %p166
      %p169 = scmp.ne.s32.totalorder %s152, %s168
      %p170 = scmp.eq.s32.totalorder %s34, 0
      %p171 = por %p169, %p170
      %s172 = ssub.s32 %s28, %s35
      %p173 = scmp.eq.s32.totalorder %s172, 0
      %s175 = sadd.s32 %s174, 1
      %s176 = scalar_select %p173, %s174, %s175
      %p179 = pneg %p173
      %p180 = scmp.eq.s32.totalorder %s28, 1
      %p181 = por %p179, %p180
      %p182 = scmp.ne.s32.totalorder %s174, %s177
      %p183 = scmp.eq.s32.totalorder %s28, 0
      %p184 = por %p182, %p183
      %p185 = scmp.ne.s32.totalorder %s174, %s177
      %p186 = scmp.eq.s32.totalorder %s33, 1
      %p187 = por %p185, %p186
      %p188 = scmp.ne.s32.totalorder %s177, %s178
      %p189 = scmp.eq.s32.totalorder %s33, 0
      %p190 = por %p188, %p189
      %p191 = scmp.ne.s32.totalorder %s177, %s178
      %p192 = scmp.eq.s32.totalorder %s34, 1
      %p193 = por %p191, %p192
      %p195 = scmp.ne.s32.totalorder %s178, %s194
      %p196 = scmp.eq.s32.totalorder %s34, 0
      %p197 = por %p195, %p196
      %s198 = ssub.s32 %s28, %s35
      %p199 = scmp.eq.s32.totalorder %s198, 0
      %s201 = sadd.s32 %s200, 1
      %s202 = scalar_select %p199, %s200, %s201
      %p205 = pneg %p199
      %p206 = scmp.eq.s32.totalorder %s28, 1
      %p207 = por %p205, %p206
      %p208 = scmp.ne.s32.totalorder %s200, %s203
      %p209 = scmp.eq.s32.totalorder %s28, 0
      %p210 = por %p208, %p209
      %p211 = scmp.ne.s32.totalorder %s200, %s203
      %p212 = scmp.eq.s32.totalorder %s33, 1
      %p213 = por %p211, %p212
      %p214 = scmp.ne.s32.totalorder %s203, %s204
      %p215 = scmp.eq.s32.totalorder %s33, 0
      %p216 = por %p214, %p215
      %p217 = scmp.ne.s32.totalorder %s203, %s204
      %p218 = scmp.eq.s32.totalorder %s34, 1
      %p219 = por %p217, %p218
      %p221 = scmp.ne.s32.totalorder %s204, %s220
      %p222 = scmp.eq.s32.totalorder %s34, 0
      %p223 = por %p221, %p222
      %p224 = scmp.le.s32.totalorder 1, %s28
      %p225 = scmp.lt.s32.totalorder %s28, 3
      %p226 = pnand %p224, %p225
      %p227 = pneg %p226
      // Predicated region
      $region9: #{_lambda_.6} parent=5 // pred_check
        _
      $region10: #{_lambda_.6} parent=5 // pred_check_branch
        %229 = sbr.rel (%p226) target = $region12
      $region11: #{_lambda_.6} parent=5 // pred_region
        %s230 = ssub.s32 %s28, 1
        // Predicated region
        $region13: #{_lambda_.6} parent=11 // pred_check
          %p231 = pneg %p75
        $region14: #{_lambda_.6} parent=11 // pred_check_branch
          %233 = sbr.rel (%p231) target = $region16
        $region15: #{_lambda_.6} parent=11 // pred_region
          %s235 = ssub.s32 256, 256
          %236 = vsyncadd [#allocation7], %s235
          %s237 = sshll.u32 [#allocation6], 4
          %s238 = int_to_ptr.vmem [resolvable:$true] %s237
          %243 = dma.hbm_to_vmem [thread:$0]  %s1, 256, %s238, [#allocation7], 64, 64, 4
        $region16: #{_lambda_.6} parent=11 // pred_fallthru
          _
        // Predicated region
        $region17: #{_lambda_.6} parent=11 // pred_check
          %p244 = pneg %p96
        $region18: #{_lambda_.6} parent=11 // pred_check_branch
          %246 = sbr.rel (%p244) target = $region20
        $region19: #{_lambda_.6} parent=11 // pred_region
          %s248 = ssub.s32 16, 16
          %249 = vsyncadd [#allocation7], %s248
          %s251 = sshll.u32 [#allocation8], 4
          %s252 = int_to_ptr.vmem [resolvable:$true] %s251
          %254 = dma.hbm_to_vmem [thread:$0]  %s2, 16, %s252, [#allocation7]
        $region20: #{_lambda_.6} parent=11 // pred_fallthru
          _
        // Predicated region
        $region21: #{_lambda_.6} parent=11 // pred_check
          %p255 = pneg %p117
        $region22: #{_lambda_.6} parent=11 // pred_check_branch
          %257 = sbr.rel (%p255) target = $region24
        $region23: #{_lambda_.6} parent=11 // pred_region
          %s259 = ssub.s32 4608, 4608
          %260 = vsyncadd [#allocation10], %s259
          %s261 = sshll.u32 [#allocation9], 4
          %s262 = int_to_ptr.vmem [resolvable:$true] %s261
          %267 = dma.hbm_to_vmem [thread:$0]  %s3, 4608, %s262, [#allocation10], 64, 64, 4
        $region24: #{_lambda_.6} parent=11 // pred_fallthru
          _
        // Predicated region
        $region25: #{_lambda_.6} parent=11 // pred_check
          %p268 = pneg %p138
        $region26: #{_lambda_.6} parent=11 // pred_check_branch
          %270 = sbr.rel (%p268) target = $region28
        $region27: #{_lambda_.6} parent=11 // pred_region
          %s272 = ssub.s32 16, 16
          %273 = vsyncadd [#allocation10], %s272
          %s275 = sshll.u32 [#allocation11], 4
          %s276 = int_to_ptr.vmem [resolvable:$true] %s275
          %278 = dma.hbm_to_vmem [thread:$0]  %s4, 16, %s276, [#allocation10]
        $region28: #{_lambda_.6} parent=11 // pred_fallthru
          _
      $region12: #{_lambda_.6} parent=5 // pred_fallthru
        _
      %p279 = scmp.lt.s32.totalorder %s28, 2
      // Predicated region
      $region29: #{_lambda_.6} parent=5 // pred_check
        %p280 = pneg %p279
      $region30: #{_lambda_.6} parent=5 // pred_check_branch
        %282 = sbr.rel (%p280) target = $region32
      $region31: #{_lambda_.6} parent=5 // pred_region
        // Predicated region
        $region33: #{_lambda_.6} parent=31 // pred_check
          %p283 = pneg %p48
        $region34: #{_lambda_.6} parent=31 // pred_check_branch
          %285 = sbr.rel (%p283) target = $region36
        $region35: #{_lambda_.6} parent=31 // pred_region
          %s286 = sand.u32 %s38, 1
          %s287 = scalar_lea.sflag [#allocation4], %s286
          %s288 = sand.u32 %s38, 1
          %s289 = smul.addr %s288, 64
          %s290 = scalar_lea.vmem [#allocation3], %s289
          %s292 = ssub.s32 1024, 1024
          %293 = vsyncadd %s287, %s292
          %s294 = smul.addr %s28, 8
          %s295 = smul.addr %s294, 128
          %s296 = scalar_lea.hbm %s0, %s295
          %s297 = sshll.u32 %s290, 4
          %s298 = int_to_ptr.vmem [resolvable:$true] %s297
          %303 = dma.hbm_to_vmem [thread:$0]  %s296, 1024, %s298, %s287, 128, 128, 8
        $region36: #{_lambda_.6} parent=31 // pred_fallthru
          _
        // Predicated region
        $region37: #{_lambda_.6} parent=31 // pred_check
          %p304 = pneg %p158
        $region38: #{_lambda_.6} parent=31 // pred_check_branch
          %306 = sbr.rel (%p304) target = $region40
        $region39: #{_lambda_.6} parent=31 // pred_region
          %s307 = sand.u32 %s148, 1
          %s308 = scalar_lea.sflag [#allocation13], %s307
          %s309 = sand.u32 %s148, 1
          %s310 = smul.addr %s309, 32
          %s311 = scalar_lea.vmem [#allocation12], %s310
          %s313 = ssub.s32 512, 512
          %314 = vsyncadd %s308, %s313
          %s315 = smul.addr %s28, 8
          %s316 = smul.addr %s315, 64
          %s317 = scalar_lea.hbm %s5, %s316
          %s318 = sshll.u32 %s311, 4
          %s319 = int_to_ptr.vmem [resolvable:$true] %s318
          %324 = dma.hbm_to_vmem [thread:$0]  %s317, 512, %s319, %s308, 64, 64, 4
        $region40: #{_lambda_.6} parent=31 // pred_fallthru
          _
      $region32: #{_lambda_.6} parent=5 // pred_fallthru
        _
      %p325 = scmp.le.s32.totalorder 1, %s28
      %p326 = scmp.lt.s32.totalorder %s28, 3
      %p327 = pnand %p325, %p326
      %p328 = pneg %p327
      // Predicated region
      $region41: #{_lambda_.6} parent=5 // pred_check
        _
      $region42: #{_lambda_.6} parent=5 // pred_check_branch
        %330 = sbr.rel (%p327) target = $region44
      $region43: #{_lambda_.6} parent=5 // pred_region
        %s331 = ssub.s32 %s28, 1
        %s332 = sand.u32 %s41, 1
        %s333 = scalar_lea.sflag [#allocation4], %s332
        %s334 = sand.u32 %s41, 1
        %s335 = smul.addr %s334, 64
        %s336 = scalar_lea.vmem [#allocation3], %s335
        // Predicated region
        $region45: #{_lambda_.6} parent=43 // pred_check
          %p337 = pneg %p54
        $region46: #{_lambda_.6} parent=43 // pred_check_branch
          %339 = sbr.rel (%p337) target = $region48
        $region47: #{_lambda_.6} parent=43 // pred_region
          %340 = dma.done %s333, 1024
        $region48: #{_lambda_.6} parent=43 // pred_fallthru
          _
        // Predicated region
        $region49: #{_lambda_.6} parent=43 // pred_check
          %p341 = pneg %p75
        $region50: #{_lambda_.6} parent=43 // pred_check_branch
          %343 = sbr.rel (%p341) target = $region52
        $region51: #{_lambda_.6} parent=43 // pred_region
          %344 = dma.done [#allocation7], 256
        $region52: #{_lambda_.6} parent=43 // pred_fallthru
          _
        // Predicated region
        $region53: #{_lambda_.6} parent=43 // pred_check
          %p345 = pneg %p96
        $region54: #{_lambda_.6} parent=43 // pred_check_branch
          %347 = sbr.rel (%p345) target = $region56
        $region55: #{_lambda_.6} parent=43 // pred_region
          %348 = dma.done [#allocation7], 16
        $region56: #{_lambda_.6} parent=43 // pred_fallthru
          _
        // Predicated region
        $region57: #{_lambda_.6} parent=43 // pred_check
          %p349 = pneg %p117
        $region58: #{_lambda_.6} parent=43 // pred_check_branch
          %351 = sbr.rel (%p349) target = $region60
        $region59: #{_lambda_.6} parent=43 // pred_region
          %352 = dma.done [#allocation10], 4608
        $region60: #{_lambda_.6} parent=43 // pred_fallthru
          _
        // Predicated region
        $region61: #{_lambda_.6} parent=43 // pred_check
          %p353 = pneg %p138
        $region62: #{_lambda_.6} parent=43 // pred_check_branch
          %355 = sbr.rel (%p353) target = $region64
        $region63: #{_lambda_.6} parent=43 // pred_region
          %356 = dma.done [#allocation10], 16
        $region64: #{_lambda_.6} parent=43 // pred_fallthru
          _
        %s357 = sand.u32 %s151, 1
        %s358 = scalar_lea.sflag [#allocation13], %s357
        %s359 = sand.u32 %s151, 1
        %s360 = smul.addr %s359, 32
        %s361 = scalar_lea.vmem [#allocation12], %s360
        // Predicated region
        $region65: #{_lambda_.6} parent=43 // pred_check
          %p362 = pneg %p164
        $region66: #{_lambda_.6} parent=43 // pred_check_branch
          %364 = sbr.rel (%p362) target = $region68
        $region67: #{_lambda_.6} parent=43 // pred_region
          %365 = dma.done %s358, 512
        $region68: #{_lambda_.6} parent=43 // pred_fallthru
          _
        %s366 = sand.u32 %s41, 1
        %s367 = scalar_lea.sflag [#allocation4], %s366
        %s368 = sand.u32 %s41, 1
        %s369 = smul.addr %s368, 64
        %s370 = scalar_lea.vmem [#allocation3], %s369
        %p371 = pneg %p54
        %p372 = pneg %p51
        %p373 = pneg %p75
        %p374 = pneg %p72
        %p375 = pneg %p96
        %p376 = pneg %p93
        %p377 = pneg %p117
        %p378 = pneg %p114
        %p379 = pneg %p138
        %p380 = pneg %p135
        %s381 = sand.u32 %s151, 1
        %s382 = scalar_lea.sflag [#allocation13], %s381
        %s383 = sand.u32 %s151, 1
        %s384 = smul.addr %s383, 32
        %s385 = scalar_lea.vmem [#allocation12], %s384
        %p386 = pneg %p164
        %p387 = pneg %p161
        %p388 = pneg %p190
        %p389 = pneg %p187
        %s390 = sand.u32 %s177, 1
        %s391 = scalar_lea.sflag [#allocation5], %s390
        %s392 = sand.u32 %s177, 1
        %s393 = smul.addr %s392, 32
        %s394 = scalar_lea.vmem [#allocation14], %s393
        %p395 = pneg %p216
        %p396 = pneg %p213
        %s397 = sand.u32 %s203, 1
        %s398 = scalar_lea.sflag [#allocation16], %s397
        %s399 = sand.u32 %s203, 1
        %s400 = smul.addr %s399, 64
        %s401 = scalar_lea.vmem [#allocation15], %s400
        %v403 = vld [vmem:[%s336] sm:$0xff]
        %v404 = vld [vmem:[%s336 + $0x8] sm:$0xff]
        %v405 = vld [vmem:[%s336 + $0x10] sm:$0xff]
        %v406 = vld [vmem:[%s336 + $0x18] sm:$0xff]
        %v407 = vld [vmem:[%s336 + $0x20] sm:$0xff]
        %v408 = vld [vmem:[%s336 + $0x28] sm:$0xff]
        %v409 = vld [vmem:[%s336 + $0x30] sm:$0xff]
        %v410 = vld [vmem:[%s336 + $0x38] sm:$0xff]
        %v411 = vpack.c.bf16 %v404, %v403
        %v412 = vpack.c.bf16 %v406, %v405
        %v413 = vpack.c.bf16 %v408, %v407
        %v414 = vpack.c.bf16 %v410, %v409
        %v415 = vld [vmem:[#allocation6] sm:$0xf]
        %v416 = vld [vmem:[#allocation6 + $0x4] sm:$0xf]
        %v417 = vld [vmem:[#allocation6 + $0x8] sm:$0xf]
        %v418 = vld [vmem:[#allocation6 + $0xc] sm:$0xf]
        %v419 = vld [vmem:[#allocation8] sm:$0x1]
        %v421 = vlaneseq
        %v422 = vshrl.u32 %v421, 7
        %v423 = vsub.s32 0, %v422
        %v424 = vrot.slane %v419, %v423
        %v430 = vunpack.c.l.b16 %v415
        %v431 = vunpack.c.l.b16 %v416
        %v432 = vunpack.c.l.b16 %v417
        %v433 = vunpack.c.l.b16 %v418
        %v434 = vpack.c.b16 %v431, %v430
        %v435 = vpack.c.b16 %v433, %v432
        %vm438 = vcmask 261120
        %v440 = vsel %vm438, %v411, 0
        %v443 = vsel %vm438, %v412, 0
        %v446 = vsel %vm438, %v413, 0
        %v449 = vsel %vm438, %v414, 0
        %451 = vmatprep.subr.bf16.mxu0 0
        %452 = vmatpush1.bf16.msra.mxu0 %v434
        %453 = vmatprep.subr.bf16.mxu0 0
        %454 = vmatpush1.bf16.msra.mxu0 %v435
        %455 = vmatprep.subr.bf16.mxu0 0
        %456 = vmatpush1.bf16.msra.mxu0 0
        %457 = vmatprep.subr.bf16.mxu0 0
        %458 = vmatpush1.bf16.msra.mxu0 0
        %459 = vmatprep.subr.bf16.mxu0 0
        %460 = vmatpush1.bf16.msra.mxu0 0
        %461 = vmatprep.subr.bf16.mxu0 0
        %462 = vmatpush1.bf16.msra.mxu0 0
        %463 = vmatprep.subr.bf16.mxu0 0
        %464 = vmatpush1.bf16.msra.mxu0 0
        %465 = vmatprep.subr.bf16.mxu0 0
        %466 = vmatpush1.bf16.msra.mxu0 0
        %467 = vmatprep.subr.bf16.mxu0 0
        %468 = vmatpush1.bf16.msra.mxu0 0
        %469 = vmatprep.subr.bf16.mxu0 0
        %470 = vmatpush1.bf16.msra.mxu0 0
        %471 = vmatprep.subr.bf16.mxu0 0
        %472 = vmatpush1.bf16.msra.mxu0 0
        %473 = vmatprep.subr.bf16.mxu0 0
        %474 = vmatpush1.bf16.msra.mxu0 0
        %475 = vmatprep.subr.bf16.mxu0 0
        %476 = vmatpush1.bf16.msra.mxu0 0
        %477 = vmatprep.subr.bf16.mxu0 0
        %478 = vmatpush1.bf16.msra.mxu0 0
        %479 = vmatprep.subr.bf16.mxu0 0
        %480 = vmatpush1.bf16.msra.mxu0 0
        %481 = vmatprep.subr.bf16.mxu0 0
        %482 = vmatpush1.bf16.msra.mxu0 0
        %483 = vmatprep.mubr.bf16.mxu0 0
        %484 = vmatmul.mubr.bf16.gmra.mrb[0].mxu0 %v440
        %v485 = vpop.f32.mrb[0].mxu0
        %v486 = vadd.f32 %v424, %v485
        %v487 = vpop.f32.mrb[0].mxu0
        %v488 = vpop.f32.mrb[0].mxu0
        %v489 = vadd.f32 %v424, %v488
        %v490 = vpop.f32.mrb[0].mxu0
        %491 = vmatprep.mubr.bf16.mxu0 0
        %492 = vmatmul.mubr.bf16.gmra.mrb[0].mxu0 %v443
        %v493 = vpop.f32.mrb[0].mxu0
        %v494 = vadd.f32 %v424, %v493
        %v495 = vpop.f32.mrb[0].mxu0
        %v496 = vpop.f32.mrb[0].mxu0
        %v497 = vadd.f32 %v424, %v496
        %v498 = vpop.f32.mrb[0].mxu0
        %499 = vmatprep.mubr.bf16.mxu0 0
        %500 = vmatmul.mubr.bf16.gmra.mrb[0].mxu0 %v446
        %v501 = vpop.f32.mrb[0].mxu0
        %v502 = vadd.f32 %v424, %v501
        %v503 = vpop.f32.mrb[0].mxu0
        %v504 = vpop.f32.mrb[0].mxu0
        %v505 = vadd.f32 %v424, %v504
        %v506 = vpop.f32.mrb[0].mxu0
        %507 = vmatprep.mubr.bf16.mxu0 0
        %508 = vmatmul.mubr.bf16.gmra.mrb[0].mxu0 %v449
        %v509 = vpop.f32.mrb[0].mxu0
        %v510 = vadd.f32 %v424, %v509
        %v511 = vpop.f32.mrb[0].mxu0
        %v512 = vpop.f32.mrb[0].mxu0
        %v513 = vadd.f32 %v424, %v512
        %v514 = vpop.f32.mrb[0].mxu0
        %515 = vdwg.mxu0
        %v516 = vld [vmem:[%s361] sm:$0xf]
        %v517 = vld [vmem:[%s361 + $0x4] sm:$0xf]
        %v518 = vld [vmem:[%s361 + $0x8] sm:$0xf]
        %v519 = vld [vmem:[%s361 + $0xc] sm:$0xf]
        %v520 = vld [vmem:[%s361 + $0x10] sm:$0xf]
        %v521 = vld [vmem:[%s361 + $0x14] sm:$0xf]
        %v522 = vld [vmem:[%s361 + $0x18] sm:$0xf]
        %v523 = vld [vmem:[%s361 + $0x1c] sm:$0xf]
        %v524 = vunpack.c.l.bf16 %v516
        %v525 = vunpack.c.l.bf16 %v517
        %v526 = vunpack.c.l.bf16 %v518
        %v527 = vunpack.c.l.bf16 %v519
        %v528 = vunpack.c.l.bf16 %v520
        %v529 = vunpack.c.l.bf16 %v521
        %v530 = vunpack.c.l.bf16 %v522
        %v531 = vunpack.c.l.bf16 %v523
        %v532 = vadd.f32 %v486, %v524
        %v533 = vadd.f32 %v489, %v525
        %v534 = vadd.f32 %v494, %v526
        %v535 = vadd.f32 %v497, %v527
        %v536 = vadd.f32 %v502, %v528
        %v537 = vadd.f32 %v505, %v529
        %v538 = vadd.f32 %v510, %v530
        %v539 = vadd.f32 %v513, %v531
        %v540 = vpack.c.bf16 %v532, %v532
        %v541 = vpack.c.bf16 %v533, %v533
        %v542 = vpack.c.bf16 %v534, %v534
        %v543 = vpack.c.bf16 %v535, %v535
        %v544 = vpack.c.bf16 %v536, %v536
        %v545 = vpack.c.bf16 %v537, %v537
        %v546 = vpack.c.bf16 %v538, %v538
        %v547 = vpack.c.bf16 %v539, %v539
        %vm548 = vcmask 519168
        %549 = vst.msk [vmem:[%s394] sm:$0xf] %vm548, %v540
        %550 = vst.msk [vmem:[%s394 + $0x4] sm:$0xf] %vm548, %v541
        %551 = vst.msk [vmem:[%s394 + $0x8] sm:$0xf] %vm548, %v542
        %552 = vst.msk [vmem:[%s394 + $0xc] sm:$0xf] %vm548, %v543
        %553 = vst.msk [vmem:[%s394 + $0x10] sm:$0xf] %vm548, %v544
        %554 = vst.msk [vmem:[%s394 + $0x14] sm:$0xf] %vm548, %v545
        %555 = vst.msk [vmem:[%s394 + $0x18] sm:$0xf] %vm548, %v546
        %556 = vst.msk [vmem:[%s394 + $0x1c] sm:$0xf] %vm548, %v547
        %v558 = vshrl.u32 %v540, 16
        %v560 = vrot.slane %v558, 7
        %v561 = vshll.u32 %v540, 16
        %v563 = vor.u32 %v560, %v561
        %v565 = vshrl.u32 %v541, 16
        %v567 = vrot.slane %v565, 7
        %v568 = vshll.u32 %v541, 16
        %v570 = vor.u32 %v567, %v568
        %v572 = vshrl.u32 %v542, 16
        %v574 = vrot.slane %v572, 7
        %v575 = vshll.u32 %v542, 16
        %v577 = vor.u32 %v574, %v575
        %v579 = vshrl.u32 %v543, 16
        %v581 = vrot.slane %v579, 7
        %v582 = vshll.u32 %v543, 16
        %v584 = vor.u32 %v581, %v582
        %v586 = vshrl.u32 %v544, 16
        %v588 = vrot.slane %v586, 7
        %v589 = vshll.u32 %v544, 16
        %v591 = vor.u32 %v588, %v589
        %v593 = vshrl.u32 %v545, 16
        %v595 = vrot.slane %v593, 7
        %v596 = vshll.u32 %v545, 16
        %v598 = vor.u32 %v595, %v596
        %v600 = vshrl.u32 %v546, 16
        %v602 = vrot.slane %v600, 7
        %v603 = vshll.u32 %v546, 16
        %v605 = vor.u32 %v602, %v603
        %v607 = vshrl.u32 %v547, 16
        %v609 = vrot.slane %v607, 7
        %v610 = vshll.u32 %v547, 16
        %v612 = vor.u32 %v609, %v610
        %vm621 = vcmask 1040384
        %vm622 = vsmask.f32 256
        %vm623 = vmand %vm621, %vm622
        %v624 = vsel %vm623, 0, %v563
        %v625 = vsel %vm623, 0, %v570
        %v626 = vsel %vm623, 0, %v577
        %v627 = vsel %vm623, 0, %v584
        %v628 = vsel %vm623, 0, %v591
        %v629 = vsel %vm623, 0, %v598
        %v630 = vsel %vm623, 0, %v605
        %v631 = vsel %vm623, 0, %v612
        %vm632 = vcmask 1044480
        %vm633 = vsmask.f32 4352
        %vm634 = vmand %vm632, %vm633
        %v635 = vsel %vm634, %v624, 0
        %v636 = vsel %vm634, %v625, 0
        %v637 = vsel %vm634, %v626, 0
        %v638 = vsel %vm634, %v627, 0
        %v639 = vsel %vm634, %v628, 0
        %v640 = vsel %vm634, %v629, 0
        %v641 = vsel %vm634, %v630, 0
        %v642 = vsel %vm634, %v631, 0
        %643 = vst.msk [vmem:[#allocation2] sm:$0xf] %vm548, 0
        %644 = vst.msk [vmem:[#allocation2 + $0x4] sm:$0xf] %vm548, 0
        %v653 = vunpack.c.l.b16 %v635
        %v654 = vunpack.c.h.b16 %v635
        %v655 = vunpack.c.l.b16 %v636
        %v656 = vunpack.c.h.b16 %v636
        %v657 = vunpack.c.l.b16 %v637
        %v658 = vunpack.c.h.b16 %v637
        %v659 = vunpack.c.l.b16 %v638
        %v660 = vunpack.c.h.b16 %v638
        %v661 = vunpack.c.l.b16 %v639
        %v662 = vunpack.c.h.b16 %v639
        %v663 = vunpack.c.l.b16 %v640
        %v664 = vunpack.c.h.b16 %v640
        %v665 = vunpack.c.l.b16 %v641
        %v666 = vunpack.c.h.b16 %v641
        %v667 = vunpack.c.l.b16 %v642
        %v668 = vunpack.c.h.b16 %v642
        %v669 = vpack.c.b16 %v653, %v653
        %v670 = vpack.c.b16 %v654, %v654
        %v671 = vpack.c.b16 %v655, %v655
        %v672 = vpack.c.b16 %v656, %v656
        %v673 = vpack.c.b16 %v657, %v657
        %v674 = vpack.c.b16 %v658, %v658
        %v675 = vpack.c.b16 %v659, %v659
        %v676 = vpack.c.b16 %v660, %v660
        %v677 = vpack.c.b16 %v661, %v661
        %v678 = vpack.c.b16 %v662, %v662
        %v679 = vpack.c.b16 %v663, %v663
        %v680 = vpack.c.b16 %v664, %v664
        %v681 = vpack.c.b16 %v665, %v665
        %v682 = vpack.c.b16 %v666, %v666
        %v683 = vpack.c.b16 %v667, %v667
        %v684 = vpack.c.b16 %v668, %v668
        %701 = vst.msk [vmem:[#allocation2 + $0x8] sm:$0xf] %vm548, %v669
        %702 = vst.msk [vmem:[#allocation2 + $0xc] sm:$0xf] %vm548, %v670
        %703 = vst.msk [vmem:[#allocation2 + $0x10] sm:$0xf] %vm548, %v671
        %704 = vst.msk [vmem:[#allocation2 + $0x14] sm:$0xf] %vm548, %v672
        %705 = vst.msk [vmem:[#allocation2 + $0x18] sm:$0xf] %vm548, %v673
        %706 = vst.msk [vmem:[#allocation2 + $0x1c] sm:$0xf] %vm548, %v674
        %707 = vst.msk [vmem:[#allocation2 + $0x20] sm:$0xf] %vm548, %v675
        %708 = vst.msk [vmem:[#allocation2 + $0x24] sm:$0xf] %vm548, %v676
        %709 = vst.msk [vmem:[#allocation2 + $0x28] sm:$0xf] %vm548, %v677
        %710 = vst.msk [vmem:[#allocation2 + $0x2c] sm:$0xf] %vm548, %v678
        %711 = vst.msk [vmem:[#allocation2 + $0x30] sm:$0xf] %vm548, %v679
        %712 = vst.msk [vmem:[#allocation2 + $0x34] sm:$0xf] %vm548, %v680
        %713 = vst.msk [vmem:[#allocation2 + $0x38] sm:$0xf] %vm548, %v681
        %714 = vst.msk [vmem:[#allocation2 + $0x3c] sm:$0xf] %vm548, %v682
        %715 = vst.msk [vmem:[#allocation2 + $0x40] sm:$0xf] %vm548, %v683
        %716 = vst.msk [vmem:[#allocation2 + $0x44] sm:$0xf] %vm548, %v684
        %717 = vst.msk [vmem:[#allocation2 + $0x48] sm:$0xf] %vm548, 0
        %718 = vst.msk [vmem:[#allocation2 + $0x4c] sm:$0xf] %vm548, 0
        %719 = vst.msk [vmem:[#allocation2 + $0x50] sm:$0xf] %vm548, 0
        %v720 = vld [vmem:[#allocation11] sm:$0x1]
        %v722 = vlaneseq
        %v723 = vshrl.u32 %v722, 7
        %v724 = vsub.s32 0, %v723
        %v725 = vrot.slane %v720, %v724
        %v727 = vld [vmem:[#allocation2] sm:$0xf]
        %v728 = vld [vmem:[#allocation2 + $0x4] sm:$0xf]
        %v729 = vld [vmem:[#allocation2 + $0x8] sm:$0xf]
        %v730 = vld [vmem:[#allocation2 + $0xc] sm:$0xf]
        %v731 = vld [vmem:[#allocation2 + $0x10] sm:$0xf]
        %v732 = vld [vmem:[#allocation2 + $0x14] sm:$0xf]
        %v733 = vld [vmem:[#allocation2 + $0x18] sm:$0xf]
        %v734 = vld [vmem:[#allocation2 + $0x1c] sm:$0xf]
        %v735 = vld [vmem:[#allocation2 + $0x20] sm:$0xf]
        %v736 = vld [vmem:[#allocation2 + $0x24] sm:$0xf]
        %v737 = vld [vmem:[#allocation2 + $0x28] sm:$0xf]
        %v738 = vld [vmem:[#allocation2 + $0x2c] sm:$0xf]
        %v739 = vld [vmem:[#allocation2 + $0x30] sm:$0xf]
        %v740 = vld [vmem:[#allocation2 + $0x34] sm:$0xf]
        %v741 = vld [vmem:[#allocation2 + $0x38] sm:$0xf]
        %v742 = vld [vmem:[#allocation2 + $0x3c] sm:$0xf]
        %v743 = vld [vmem:[#allocation2 + $0x40] sm:$0x1]
        %v744 = vld [vmem:[#allocation2] sm:$0xe]
        %v761 = vunpack.c.l.b16 %v727
        %v762 = vunpack.c.l.b16 %v728
        %v763 = vunpack.c.l.b16 %v729
        %v764 = vunpack.c.l.b16 %v730
        %v765 = vunpack.c.l.b16 %v731
        %v766 = vunpack.c.l.b16 %v732
        %v767 = vunpack.c.l.b16 %v733
        %v768 = vunpack.c.l.b16 %v734
        %v769 = vunpack.c.l.b16 %v735
        %v770 = vunpack.c.l.b16 %v736
        %v771 = vunpack.c.l.b16 %v737
        %v772 = vunpack.c.l.b16 %v738
        %v773 = vunpack.c.l.b16 %v739
        %v774 = vunpack.c.l.b16 %v740
        %v775 = vunpack.c.l.b16 %v741
        %v776 = vunpack.c.l.b16 %v742
        %v777 = vpack.c.b16 %v762, %v761
        %v778 = vpack.c.b16 %v764, %v763
        %v779 = vpack.c.b16 %v766, %v765
        %v780 = vpack.c.b16 %v768, %v767
        %v781 = vpack.c.b16 %v770, %v769
        %v782 = vpack.c.b16 %v772, %v771
        %v783 = vpack.c.b16 %v774, %v773
        %v784 = vpack.c.b16 %v776, %v775
        %v786 = vunpack.c.l.b16 %v743
        %v787 = vpack.c.b16 %v786, %v786
        %vm788 = vsmask.f32 7424
        %v790 = vshrl.u32 %v777, 16
        %v792 = vshll.u32 %v777, 16
        %v794 = vrot.slane %v792, 1
        %v795 = vor.u32 %v790, %v794
        %v797 = vshll.u32 %v778, 16
        %v799 = vrot.slane %v797, 1
        %v800 = vsel %vm788, %v795, %v799
        %v801 = vshrl.u32 %v778, 16
        %v803 = vor.u32 %v801, %v799
        %v805 = vshll.u32 %v779, 16
        %v807 = vrot.slane %v805, 1
        %v808 = vsel %vm788, %v803, %v807
        %v809 = vshrl.u32 %v779, 16
        %v811 = vor.u32 %v809, %v807
        %v813 = vshll.u32 %v780, 16
        %v815 = vrot.slane %v813, 1
        %v816 = vsel %vm788, %v811, %v815
        %v817 = vshrl.u32 %v780, 16
        %v819 = vor.u32 %v817, %v815
        %v821 = vshll.u32 %v781, 16
        %v823 = vrot.slane %v821, 1
        %v824 = vsel %vm788, %v819, %v823
        %v825 = vshrl.u32 %v781, 16
        %v827 = vor.u32 %v825, %v823
        %v829 = vshll.u32 %v782, 16
        %v831 = vrot.slane %v829, 1
        %v832 = vsel %vm788, %v827, %v831
        %v833 = vshrl.u32 %v782, 16
        %v835 = vor.u32 %v833, %v831
        %v837 = vshll.u32 %v783, 16
        %v839 = vrot.slane %v837, 1
        %v840 = vsel %vm788, %v835, %v839
        %v841 = vshrl.u32 %v783, 16
        %v843 = vor.u32 %v841, %v839
        %v845 = vshll.u32 %v784, 16
        %v847 = vrot.slane %v845, 1
        %v848 = vsel %vm788, %v843, %v847
        %v849 = vshrl.u32 %v784, 16
        %v851 = vor.u32 %v849, %v847
        %v853 = vshll.u32 %v787, 16
        %v855 = vrot.slane %v853, 1
        %v856 = vsel %vm788, %v851, %v855
        %857 = vrot.lane.b32.xlu0 %v800, 64
        %v858 = vpop.permute.xlu0 %857
        %859 = vrot.lane.b32.xlu0 %v808, 64
        %v860 = vpop.permute.xlu0 %859
        %861 = vrot.lane.b32.xlu0 %v816, 64
        %v862 = vpop.permute.xlu0 %861
        %863 = vrot.lane.b32.xlu0 %v824, 64
        %v864 = vpop.permute.xlu0 %863
        %865 = vrot.lane.b32.xlu0 %v832, 64
        %v866 = vpop.permute.xlu0 %865
        %867 = vrot.lane.b32.xlu0 %v840, 64
        %v868 = vpop.permute.xlu0 %867
        %869 = vrot.lane.b32.xlu0 %v848, 64
        %v870 = vpop.permute.xlu0 %869
        %871 = vrot.lane.b32.xlu0 %v856, 64
        %v872 = vpop.permute.xlu0 %871
        %v874 = vunpack.c.l.b16 %v744
        %v875 = vpack.c.b16 %v762, %v874
        %vm876 = vcmask 1046528
        %v877 = vrot.slane %v875, 1
        %v878 = vrot.slane %v778, 1
        %v879 = vsel %vm876, %v877, %v878
        %v880 = vrot.slane %v779, 1
        %v881 = vsel %vm876, %v878, %v880
        %v882 = vrot.slane %v780, 1
        %v883 = vsel %vm876, %v880, %v882
        %v884 = vrot.slane %v781, 1
        %v885 = vsel %vm876, %v882, %v884
        %v886 = vrot.slane %v782, 1
        %v887 = vsel %vm876, %v884, %v886
        %v888 = vrot.slane %v783, 1
        %v889 = vsel %vm876, %v886, %v888
        %v890 = vrot.slane %v784, 1
        %v891 = vsel %vm876, %v888, %v890
        %v892 = vrot.slane %v787, 1
        %v893 = vsel %vm876, %v890, %v892
        %vm894 = vcmask 523264
        %v896 = vsel %vm894, %v777, %v858
        %v899 = vsel %vm894, %v778, %v860
        %v902 = vsel %vm894, %v779, %v862
        %v905 = vsel %vm894, %v780, %v864
        %v908 = vsel %vm894, %v781, %v866
        %v911 = vsel %vm894, %v782, %v868
        %v914 = vsel %vm894, %v783, %v870
        %v917 = vsel %vm894, %v784, %v872
        %v919 = vld [vmem:[#allocation9] sm:$0xf]
        %v920 = vld [vmem:[#allocation9 + $0x4] sm:$0xf]
        %v921 = vld [vmem:[#allocation9 + $0x8] sm:$0xf]
        %v922 = vld [vmem:[#allocation9 + $0xc] sm:$0xf]
        %v923 = vld [vmem:[#allocation9 + $0x10] sm:$0xf]
        %v924 = vld [vmem:[#allocation9 + $0x14] sm:$0xf]
        %v925 = vld [vmem:[#allocation9 + $0x18] sm:$0xf]
        %v926 = vld [vmem:[#allocation9 + $0x1c] sm:$0xf]
        %v927 = vld [vmem:[#allocation9 + $0x20] sm:$0xf]
        %v928 = vld [vmem:[#allocation9 + $0x24] sm:$0xf]
        %v929 = vld [vmem:[#allocation9 + $0x28] sm:$0xf]
        %v930 = vld [vmem:[#allocation9 + $0x2c] sm:$0xf]
        %v931 = vld [vmem:[#allocation9 + $0x30] sm:$0xf]
        %v932 = vld [vmem:[#allocation9 + $0x34] sm:$0xf]
        %v933 = vld [vmem:[#allocation9 + $0x38] sm:$0xf]
        %v934 = vld [vmem:[#allocation9 + $0x3c] sm:$0xf]
        %v935 = vld [vmem:[#allocation9 + $0x40] sm:$0xf]
        %v936 = vld [vmem:[#allocation9 + $0x44] sm:$0xf]
        %v937 = vld [vmem:[#allocation9 + $0x48] sm:$0xf]
        %v938 = vld [vmem:[#allocation9 + $0x4c] sm:$0xf]
        %v939 = vld [vmem:[#allocation9 + $0x50] sm:$0xf]
        %v940 = vld [vmem:[#allocation9 + $0x54] sm:$0xf]
        %v941 = vld [vmem:[#allocation9 + $0x58] sm:$0xf]
        %v942 = vld [vmem:[#allocation9 + $0x5c] sm:$0xf]
        %v967 = vunpack.c.l.b16 %v919
        %v968 = vunpack.c.l.b16 %v920
        %v969 = vunpack.c.l.b16 %v921
        %v970 = vunpack.c.l.b16 %v922
        %v971 = vunpack.c.l.b16 %v923
        %v972 = vunpack.c.l.b16 %v924
        %v973 = vunpack.c.l.b16 %v925
        %v974 = vunpack.c.l.b16 %v926
        %v975 = vunpack.c.l.b16 %v927
        %v976 = vunpack.c.l.b16 %v928
        %v977 = vunpack.c.l.b16 %v929
        %v978 = vunpack.c.l.b16 %v930
        %v979 = vunpack.c.l.b16 %v931
        %v980 = vunpack.c.l.b16 %v932
        %v981 = vunpack.c.l.b16 %v933
        %v982 = vunpack.c.l.b16 %v934
        %v983 = vunpack.c.l.b16 %v935
        %v984 = vunpack.c.l.b16 %v936
        %v985 = vunpack.c.l.b16 %v937
        %v986 = vunpack.c.l.b16 %v938
        %v987 = vunpack.c.l.b16 %v939
        %v988 = vunpack.c.l.b16 %v940
        %v989 = vunpack.c.l.b16 %v941
        %v990 = vunpack.c.l.b16 %v942
        %v991 = vpack.c.b16 %v968, %v967
        %v992 = vpack.c.b16 %v970, %v969
        %v993 = vpack.c.b16 %v972, %v971
        %v994 = vpack.c.b16 %v974, %v973
        %v995 = vpack.c.b16 %v976, %v975
        %v996 = vpack.c.b16 %v978, %v977
        %v997 = vpack.c.b16 %v980, %v979
        %v998 = vpack.c.b16 %v982, %v981
        %v999 = vpack.c.b16 %v984, %v983
        %v1000 = vpack.c.b16 %v986, %v985
        %v1001 = vpack.c.b16 %v988, %v987
        %v1002 = vpack.c.b16 %v990, %v989
        %v1016 = vsel %vm894, %v879, 0
        %v1019 = vsel %vm894, %v881, 0
        %v1022 = vsel %vm894, %v883, 0
        %v1025 = vsel %vm894, %v885, 0
        %v1028 = vsel %vm894, %v887, 0
        %v1031 = vsel %vm894, %v889, 0
        %v1034 = vsel %vm894, %v891, 0
        %v1037 = vsel %vm894, %v893, 0
        %1039 = vmatprep.subr.bf16.mxu0 0
        %1040 = vmatpush1.bf16.msra.mxu0 %v991
        %1041 = vmatprep.subr.bf16.mxu0 0
        %1042 = vmatpush1.bf16.msra.mxu0 %v992
        %1043 = vmatprep.subr.bf16.mxu0 0
        %1044 = vmatpush1.bf16.msra.mxu0 %v993
        %1045 = vmatprep.subr.bf16.mxu0 0
        %1046 = vmatpush1.bf16.msra.mxu0 %v994
        %1047 = vmatprep.subr.bf16.mxu0 0
        %1048 = vmatpush1.bf16.msra.mxu0 %v995
        %1049 = vmatprep.subr.bf16.mxu0 0
        %1050 = vmatpush1.bf16.msra.mxu0 %v996
        %1051 = vmatprep.subr.bf16.mxu0 0
        %1052 = vmatpush1.bf16.msra.mxu0 %v997
        %1053 = vmatprep.subr.bf16.mxu0 0
        %1054 = vmatpush1.bf16.msra.mxu0 %v998
        %1055 = vmatprep.subr.bf16.mxu0 0
        %1056 = vmatpush1.bf16.msra.mxu0 %v999
        %1057 = vmatprep.subr.bf16.mxu0 0
        %1058 = vmatpush1.bf16.msra.mxu0 %v1000
        %1059 = vmatprep.subr.bf16.mxu0 0
        %1060 = vmatpush1.bf16.msra.mxu0 %v1001
        %1061 = vmatprep.subr.bf16.mxu0 0
        %1062 = vmatpush1.bf16.msra.mxu0 %v1002
        %1063 = vmatprep.subr.bf16.mxu0 0
        %1064 = vmatpush1.bf16.msra.mxu0 0
        %1065 = vmatprep.subr.bf16.mxu0 0
        %1066 = vmatpush1.bf16.msra.mxu0 0
        %1067 = vmatprep.subr.bf16.mxu0 0
        %1068 = vmatpush1.bf16.msra.mxu0 0
        %1069 = vmatprep.subr.bf16.mxu0 0
        %1070 = vmatpush1.bf16.msra.mxu0 0
        %1071 = vmatprep.mubr.bf16.mxu0 %v1016
        %1072 = vmatmul.mubr.bf16.gmra.mrb[0].mxu0 %v896
        %v1073 = vpop.f32.mrb[0].mxu0
        %v1074 = vadd.f32 0.0, %v1073
        %v1075 = vpop.f32.mrb[0].mxu0
        %v1076 = vpop.f32.mrb[0].mxu0
        %v1077 = vpop.f32.mrb[0].mxu0
        %1078 = vmatprep.mubr.bf16.mxu0 %v1019
        %1079 = vmatmul.mubr.bf16.gmra.mrb[0].mxu0 %v899
        %v1080 = vpop.f32.mrb[0].mxu0
        %v1081 = vadd.f32 0.0, %v1080
        %v1082 = vpop.f32.mrb[0].mxu0
        %v1083 = vpop.f32.mrb[0].mxu0
        %v1084 = vpop.f32.mrb[0].mxu0
        %1085 = vmatprep.mubr.bf16.mxu0 %v1022
        %1086 = vmatmul.mubr.bf16.gmra.mrb[0].mxu0 %v902
        %v1087 = vpop.f32.mrb[0].mxu0
        %v1088 = vadd.f32 0.0, %v1087
        %v1089 = vpop.f32.mrb[0].mxu0
        %v1090 = vpop.f32.mrb[0].mxu0
        %v1091 = vpop.f32.mrb[0].mxu0
        %1092 = vmatprep.mubr.bf16.mxu0 %v1025
        %1093 = vmatmul.mubr.bf16.gmra.mrb[0].mxu0 %v905
        %v1094 = vpop.f32.mrb[0].mxu0
        %v1095 = vadd.f32 0.0, %v1094
        %v1096 = vpop.f32.mrb[0].mxu0
        %v1097 = vpop.f32.mrb[0].mxu0
        %v1098 = vpop.f32.mrb[0].mxu0
        %1099 = vmatprep.mubr.bf16.mxu0 %v1028
        %1100 = vmatmul.mubr.bf16.gmra.mrb[0].mxu0 %v908
        %v1101 = vpop.f32.mrb[0].mxu0
        %v1102 = vadd.f32 0.0, %v1101
        %v1103 = vpop.f32.mrb[0].mxu0
        %v1104 = vpop.f32.mrb[0].mxu0
        %v1105 = vpop.f32.mrb[0].mxu0
        %1106 = vmatprep.mubr.bf16.mxu0 %v1031
        %1107 = vmatmul.mubr.bf16.gmra.mrb[0].mxu0 %v911
        %v1108 = vpop.f32.mrb[0].mxu0
        %v1109 = vadd.f32 0.0, %v1108
        %v1110 = vpop.f32.mrb[0].mxu0
        %v1111 = vpop.f32.mrb[0].mxu0
        %v1112 = vpop.f32.mrb[0].mxu0
        %1113 = vmatprep.mubr.bf16.mxu0 %v1034
        %1114 = vmatmul.mubr.bf16.gmra.mrb[0].mxu0 %v914
        %v1115 = vpop.f32.mrb[0].mxu0
        %v1116 = vadd.f32 0.0, %v1115
        %v1117 = vpop.f32.mrb[0].mxu0
        %v1118 = vpop.f32.mrb[0].mxu0
        %v1119 = vpop.f32.mrb[0].mxu0
        %1120 = vmatprep.mubr.bf16.mxu0 %v1037
        %1121 = vmatmul.mubr.bf16.gmra.mrb[0].mxu0 %v917
        %v1122 = vpop.f32.mrb[0].mxu0
        %v1123 = vadd.f32 0.0, %v1122
        %v1124 = vpop.f32.mrb[0].mxu0
        %v1125 = vpop.f32.mrb[0].mxu0
        %v1126 = vpop.f32.mrb[0].mxu0
        %1127 = vdwg.mxu0
        %v1128 = vadd.f32 %v725, %v1074
        %v1129 = vadd.f32 %v725, %v1081
        %v1130 = vadd.f32 %v725, %v1088
        %v1131 = vadd.f32 %v725, %v1095
        %v1132 = vadd.f32 %v725, %v1102
        %v1133 = vadd.f32 %v725, %v1109
        %v1134 = vadd.f32 %v725, %v1116
        %v1135 = vadd.f32 %v725, %v1123
        %v1136 = vld [vmem:[#allocation2 + $0x8] sm:$0xf]
        %v1137 = vld [vmem:[#allocation2 + $0xc] sm:$0xf]
        %v1138 = vld [vmem:[#allocation2 + $0x10] sm:$0xf]
        %v1139 = vld [vmem:[#allocation2 + $0x14] sm:$0xf]
        %v1140 = vld [vmem:[#allocation2 + $0x18] sm:$0xf]
        %v1141 = vld [vmem:[#allocation2 + $0x1c] sm:$0xf]
        %v1142 = vld [vmem:[#allocation2 + $0x20] sm:$0xf]
        %v1143 = vld [vmem:[#allocation2 + $0x24] sm:$0xf]
        %v1144 = vld [vmem:[#allocation2 + $0x28] sm:$0xf]
        %v1145 = vld [vmem:[#allocation2 + $0x2c] sm:$0xf]
        %v1146 = vld [vmem:[#allocation2 + $0x30] sm:$0xf]
        %v1147 = vld [vmem:[#allocation2 + $0x34] sm:$0xf]
        %v1148 = vld [vmem:[#allocation2 + $0x38] sm:$0xf]
        %v1149 = vld [vmem:[#allocation2 + $0x3c] sm:$0xf]
        %v1150 = vld [vmem:[#allocation2 + $0x40] sm:$0xf]
        %v1151 = vld [vmem:[#allocation2 + $0x44] sm:$0xf]
        %v1152 = vld [vmem:[#allocation2 + $0x48] sm:$0x1]
        %v1153 = vld [vmem:[#allocation2 + $0x8] sm:$0xe]
        %v1170 = vunpack.c.l.b16 %v1136
        %v1171 = vunpack.c.l.b16 %v1137
        %v1172 = vunpack.c.l.b16 %v1138
        %v1173 = vunpack.c.l.b16 %v1139
        %v1174 = vunpack.c.l.b16 %v1140
        %v1175 = vunpack.c.l.b16 %v1141
        %v1176 = vunpack.c.l.b16 %v1142
        %v1177 = vunpack.c.l.b16 %v1143
        %v1178 = vunpack.c.l.b16 %v1144
        %v1179 = vunpack.c.l.b16 %v1145
        %v1180 = vunpack.c.l.b16 %v1146
        %v1181 = vunpack.c.l.b16 %v1147
        %v1182 = vunpack.c.l.b16 %v1148
        %v1183 = vunpack.c.l.b16 %v1149
        %v1184 = vunpack.c.l.b16 %v1150
        %v1185 = vunpack.c.l.b16 %v1151
        %v1186 = vpack.c.b16 %v1171, %v1170
        %v1187 = vpack.c.b16 %v1173, %v1172
        %v1188 = vpack.c.b16 %v1175, %v1174
        %v1189 = vpack.c.b16 %v1177, %v1176
        %v1190 = vpack.c.b16 %v1179, %v1178
        %v1191 = vpack.c.b16 %v1181, %v1180
        %v1192 = vpack.c.b16 %v1183, %v1182
        %v1193 = vpack.c.b16 %v1185, %v1184
        %v1195 = vunpack.c.l.b16 %v1152
        %v1196 = vpack.c.b16 %v1195, %v1195
        %v1198 = vshrl.u32 %v1186, 16
        %v1200 = vshll.u32 %v1186, 16
        %v1202 = vrot.slane %v1200, 1
        %v1203 = vor.u32 %v1198, %v1202
        %v1205 = vshll.u32 %v1187, 16
        %v1207 = vrot.slane %v1205, 1
        %v1208 = vsel %vm788, %v1203, %v1207
        %v1209 = vshrl.u32 %v1187, 16
        %v1211 = vor.u32 %v1209, %v1207
        %v1213 = vshll.u32 %v1188, 16
        %v1215 = vrot.slane %v1213, 1
        %v1216 = vsel %vm788, %v1211, %v1215
        %v1217 = vshrl.u32 %v1188, 16
        %v1219 = vor.u32 %v1217, %v1215
        %v1221 = vshll.u32 %v1189, 16
        %v1223 = vrot.slane %v1221, 1
        %v1224 = vsel %vm788, %v1219, %v1223
        %v1225 = vshrl.u32 %v1189, 16
        %v1227 = vor.u32 %v1225, %v1223
        %v1229 = vshll.u32 %v1190, 16
        %v1231 = vrot.slane %v1229, 1
        %v1232 = vsel %vm788, %v1227, %v1231
        %v1233 = vshrl.u32 %v1190, 16
        %v1235 = vor.u32 %v1233, %v1231
        %v1237 = vshll.u32 %v1191, 16
        %v1239 = vrot.slane %v1237, 1
        %v1240 = vsel %vm788, %v1235, %v1239
        %v1241 = vshrl.u32 %v1191, 16
        %v1243 = vor.u32 %v1241, %v1239
        %v1245 = vshll.u32 %v1192, 16
        %v1247 = vrot.slane %v1245, 1
        %v1248 = vsel %vm788, %v1243, %v1247
        %v1249 = vshrl.u32 %v1192, 16
        %v1251 = vor.u32 %v1249, %v1247
        %v1253 = vshll.u32 %v1193, 16
        %v1255 = vrot.slane %v1253, 1
        %v1256 = vsel %vm788, %v1251, %v1255
        %v1257 = vshrl.u32 %v1193, 16
        %v1259 = vor.u32 %v1257, %v1255
        %v1261 = vshll.u32 %v1196, 16
        %v1263 = vrot.slane %v1261, 1
        %v1264 = vsel %vm788, %v1259, %v1263
        %1265 = vrot.lane.b32.xlu0 %v1208, 64
        %v1266 = vpop.permute.xlu0 %1265
        %1267 = vrot.lane.b32.xlu0 %v1216, 64
        %v1268 = vpop.permute.xlu0 %1267
        %1269 = vrot.lane.b32.xlu0 %v1224, 64
        %v1270 = vpop.permute.xlu0 %1269
        %1271 = vrot.lane.b32.xlu0 %v1232, 64
        %v1272 = vpop.permute.xlu0 %1271
        %1273 = vrot.lane.b32.xlu0 %v1240, 64
        %v1274 = vpop.permute.xlu0 %1273
        %1275 = vrot.lane.b32.xlu0 %v1248, 64
        %v1276 = vpop.permute.xlu0 %1275
        %1277 = vrot.lane.b32.xlu0 %v1256, 64
        %v1278 = vpop.permute.xlu0 %1277
        %1279 = vrot.lane.b32.xlu0 %v1264, 64
        %v1280 = vpop.permute.xlu0 %1279
        %v1282 = vunpack.c.l.b16 %v1153
        %v1283 = vpack.c.b16 %v1171, %v1282
        %v1284 = vrot.slane %v1283, 1
        %v1285 = vrot.slane %v1187, 1
        %v1286 = vsel %vm876, %v1284, %v1285
        %v1287 = vrot.slane %v1188, 1
        %v1288 = vsel %vm876, %v1285, %v1287
        %v1289 = vrot.slane %v1189, 1
        %v1290 = vsel %vm876, %v1287, %v1289
        %v1291 = vrot.slane %v1190, 1
        %v1292 = vsel %vm876, %v1289, %v1291
        %v1293 = vrot.slane %v1191, 1
        %v1294 = vsel %vm876, %v1291, %v1293
        %v1295 = vrot.slane %v1192, 1
        %v1296 = vsel %vm876, %v1293, %v1295
        %v1297 = vrot.slane %v1193, 1
        %v1298 = vsel %vm876, %v1295, %v1297
        %v1299 = vrot.slane %v1196, 1
        %v1300 = vsel %vm876, %v1297, %v1299
        %v1302 = vsel %vm894, %v1186, %v1266
        %v1305 = vsel %vm894, %v1187, %v1268
        %v1308 = vsel %vm894, %v1188, %v1270
        %v1311 = vsel %vm894, %v1189, %v1272
        %v1314 = vsel %vm894, %v1190, %v1274
        %v1317 = vsel %vm894, %v1191, %v1276
        %v1320 = vsel %vm894, %v1192, %v1278
        %v1323 = vsel %vm894, %v1193, %v1280
        %s1325 = scalar_lea.vmem [#allocation9], 96
        %v1326 = vld [vmem:[%s1325] sm:$0xf]
        %v1327 = vld [vmem:[%s1325 + $0x4] sm:$0xf]
        %v1328 = vld [vmem:[%s1325 + $0x8] sm:$0xf]
        %v1329 = vld [vmem:[%s1325 + $0xc] sm:$0xf]
        %v1330 = vld [vmem:[%s1325 + $0x10] sm:$0xf]
        %v1331 = vld [vmem:[%s1325 + $0x14] sm:$0xf]
        %v1332 = vld [vmem:[%s1325 + $0x18] sm:$0xf]
        %v1333 = vld [vmem:[%s1325 + $0x1c] sm:$0xf]
        %v1334 = vld [vmem:[%s1325 + $0x20] sm:$0xf]
        %v1335 = vld [vmem:[%s1325 + $0x24] sm:$0xf]
        %v1336 = vld [vmem:[%s1325 + $0x28] sm:$0xf]
        %v1337 = vld [vmem:[%s1325 + $0x2c] sm:$0xf]
        %v1338 = vld [vmem:[%s1325 + $0x30] sm:$0xf]
        %v1339 = vld [vmem:[%s1325 + $0x34] sm:$0xf]
        %v1340 = vld [vmem:[%s1325 + $0x38] sm:$0xf]
        %v1341 = vld [vmem:[%s1325 + $0x3c] sm:$0xf]
        %v1342 = vld [vmem:[%s1325 + $0x40] sm:$0xf]
        %v1343 = vld [vmem:[%s1325 + $0x44] sm:$0xf]
        %v1344 = vld [vmem:[%s1325 + $0x48] sm:$0xf]
        %v1345 = vld [vmem:[%s1325 + $0x4c] sm:$0xf]
        %v1346 = vld [vmem:[%s1325 + $0x50] sm:$0xf]
        %v1347 = vld [vmem:[%s1325 + $0x54] sm:$0xf]
        %v1348 = vld [vmem:[%s1325 + $0x58] sm:$0xf]
        %v1349 = vld [vmem:[%s1325 + $0x5c] sm:$0xf]
        %v1374 = vunpack.c.l.b16 %v1326
        %v1375 = vunpack.c.l.b16 %v1327
        %v1376 = vunpack.c.l.b16 %v1328
        %v1377 = vunpack.c.l.b16 %v1329
        %v1378 = vunpack.c.l.b16 %v1330
        %v1379 = vunpack.c.l.b16 %v1331
        %v1380 = vunpack.c.l.b16 %v1332
        %v1381 = vunpack.c.l.b16 %v1333
        %v1382 = vunpack.c.l.b16 %v1334
        %v1383 = vunpack.c.l.b16 %v1335
        %v1384 = vunpack.c.l.b16 %v1336
        %v1385 = vunpack.c.l.b16 %v1337
        %v1386 = vunpack.c.l.b16 %v1338
        %v1387 = vunpack.c.l.b16 %v1339
        %v1388 = vunpack.c.l.b16 %v1340
        %v1389 = vunpack.c.l.b16 %v1341
        %v1390 = vunpack.c.l.b16 %v1342
        %v1391 = vunpack.c.l.b16 %v1343
        %v1392 = vunpack.c.l.b16 %v1344
        %v1393 = vunpack.c.l.b16 %v1345
        %v1394 = vunpack.c.l.b16 %v1346
        %v1395 = vunpack.c.l.b16 %v1347
        %v1396 = vunpack.c.l.b16 %v1348
        %v1397 = vunpack.c.l.b16 %v1349
        %v1398 = vpack.c.b16 %v1375, %v1374
        %v1399 = vpack.c.b16 %v1377, %v1376
        %v1400 = vpack.c.b16 %v1379, %v1378
        %v1401 = vpack.c.b16 %v1381, %v1380
        %v1402 = vpack.c.b16 %v1383, %v1382
        %v1403 = vpack.c.b16 %v1385, %v1384
        %v1404 = vpack.c.b16 %v1387, %v1386
        %v1405 = vpack.c.b16 %v1389, %v1388
        %v1406 = vpack.c.b16 %v1391, %v1390
        %v1407 = vpack.c.b16 %v1393, %v1392
        %v1408 = vpack.c.b16 %v1395, %v1394
        %v1409 = vpack.c.b16 %v1397, %v1396
        %v1423 = vsel %vm894, %v1286, 0
        %v1426 = vsel %vm894, %v1288, 0
        %v1429 = vsel %vm894, %v1290, 0
        %v1432 = vsel %vm894, %v1292, 0
        %v1435 = vsel %vm894, %v1294, 0
        %v1438 = vsel %vm894, %v1296, 0
        %v1441 = vsel %vm894, %v1298, 0
        %v1444 = vsel %vm894, %v1300, 0
        %1446 = vmatprep.subr.bf16.mxu0 0
        %1447 = vmatpush1.bf16.msra.mxu0 %v1398
        %1448 = vmatprep.subr.bf16.mxu0 0
        %1449 = vmatpush1.bf16.msra.mxu0 %v1399
        %1450 = vmatprep.subr.bf16.mxu0 0
        %1451 = vmatpush1.bf16.msra.mxu0 %v1400
        %1452 = vmatprep.subr.bf16.mxu0 0
        %1453 = vmatpush1.bf16.msra.mxu0 %v1401
        %1454 = vmatprep.subr.bf16.mxu0 0
        %1455 = vmatpush1.bf16.msra.mxu0 %v1402
        %1456 = vmatprep.subr.bf16.mxu0 0
        %1457 = vmatpush1.bf16.msra.mxu0 %v1403
        %1458 = vmatprep.subr.bf16.mxu0 0
        %1459 = vmatpush1.bf16.msra.mxu0 %v1404
        %1460 = vmatprep.subr.bf16.mxu0 0
        %1461 = vmatpush1.bf16.msra.mxu0 %v1405
        %1462 = vmatprep.subr.bf16.mxu0 0
        %1463 = vmatpush1.bf16.msra.mxu0 %v1406
        %1464 = vmatprep.subr.bf16.mxu0 0
        %1465 = vmatpush1.bf16.msra.mxu0 %v1407
        %1466 = vmatprep.subr.bf16.mxu0 0
        %1467 = vmatpush1.bf16.msra.mxu0 %v1408
        %1468 = vmatprep.subr.bf16.mxu0 0
        %1469 = vmatpush1.bf16.msra.mxu0 %v1409
        %1470 = vmatprep.subr.bf16.mxu0 0
        %1471 = vmatpush1.bf16.msra.mxu0 0
        %1472 = vmatprep.subr.bf16.mxu0 0
        %1473 = vmatpush1.bf16.msra.mxu0 0
        %1474 = vmatprep.subr.bf16.mxu0 0
        %1475 = vmatpush1.bf16.msra.mxu0 0
        %1476 = vmatprep.subr.bf16.mxu0 0
        %1477 = vmatpush1.bf16.msra.mxu0 0
        %1478 = vmatprep.mubr.bf16.mxu0 %v1423
        %1479 = vmatmul.mubr.bf16.gmra.mrb[0].mxu0 %v1302
        %v1480 = vpop.f32.mrb[0].mxu0
        %v1481 = vadd.f32 0.0, %v1480
        %v1482 = vpop.f32.mrb[0].mxu0
        %v1483 = vpop.f32.mrb[0].mxu0
        %v1484 = vpop.f32.mrb[0].mxu0
        %1485 = vmatprep.mubr.bf16.mxu0 %v1426
        %1486 = vmatmul.mubr.bf16.gmra.mrb[0].mxu0 %v1305
        %v1487 = vpop.f32.mrb[0].mxu0
        %v1488 = vadd.f32 0.0, %v1487
        %v1489 = vpop.f32.mrb[0].mxu0
        %v1490 = vpop.f32.mrb[0].mxu0
        %v1491 = vpop.f32.mrb[0].mxu0
        %1492 = vmatprep.mubr.bf16.mxu0 %v1429
        %1493 = vmatmul.mubr.bf16.gmra.mrb[0].mxu0 %v1308
        %v1494 = vpop.f32.mrb[0].mxu0
        %v1495 = vadd.f32 0.0, %v1494
        %v1496 = vpop.f32.mrb[0].mxu0
        %v1497 = vpop.f32.mrb[0].mxu0
        %v1498 = vpop.f32.mrb[0].mxu0
        %1499 = vmatprep.mubr.bf16.mxu0 %v1432
        %1500 = vmatmul.mubr.bf16.gmra.mrb[0].mxu0 %v1311
        %v1501 = vpop.f32.mrb[0].mxu0
        %v1502 = vadd.f32 0.0, %v1501
        %v1503 = vpop.f32.mrb[0].mxu0
        %v1504 = vpop.f32.mrb[0].mxu0
        %v1505 = vpop.f32.mrb[0].mxu0
        %1506 = vmatprep.mubr.bf16.mxu0 %v1435
        %1507 = vmatmul.mubr.bf16.gmra.mrb[0].mxu0 %v1314
        %v1508 = vpop.f32.mrb[0].mxu0
        %v1509 = vadd.f32 0.0, %v1508
        %v1510 = vpop.f32.mrb[0].mxu0
        %v1511 = vpop.f32.mrb[0].mxu0
        %v1512 = vpop.f32.mrb[0].mxu0
        %1513 = vmatprep.mubr.bf16.mxu0 %v1438
        %1514 = vmatmul.mubr.bf16.gmra.mrb[0].mxu0 %v1317
        %v1515 = vpop.f32.mrb[0].mxu0
        %v1516 = vadd.f32 0.0, %v1515
        %v1517 = vpop.f32.mrb[0].mxu0
        %v1518 = vpop.f32.mrb[0].mxu0
        %v1519 = vpop.f32.mrb[0].mxu0
        %1520 = vmatprep.mubr.bf16.mxu0 %v1441
        %1521 = vmatmul.mubr.bf16.gmra.mrb[0].mxu0 %v1320
        %v1522 = vpop.f32.mrb[0].mxu0
        %v1523 = vadd.f32 0.0, %v1522
        %v1524 = vpop.f32.mrb[0].mxu0
        %v1525 = vpop.f32.mrb[0].mxu0
        %v1526 = vpop.f32.mrb[0].mxu0
        %1527 = vmatprep.mubr.bf16.mxu0 %v1444
        %1528 = vmatmul.mubr.bf16.gmra.mrb[0].mxu0 %v1323
        %v1529 = vpop.f32.mrb[0].mxu0
        %v1530 = vadd.f32 0.0, %v1529
        %v1531 = vpop.f32.mrb[0].mxu0
        %v1532 = vpop.f32.mrb[0].mxu0
        %v1533 = vpop.f32.mrb[0].mxu0
        %1534 = vdwg.mxu0
        %v1535 = vadd.f32 %v1128, %v1481
        %v1536 = vadd.f32 %v1129, %v1488
        %v1537 = vadd.f32 %v1130, %v1495
        %v1538 = vadd.f32 %v1131, %v1502
        %v1539 = vadd.f32 %v1132, %v1509
        %v1540 = vadd.f32 %v1133, %v1516
        %v1541 = vadd.f32 %v1134, %v1523
        %v1542 = vadd.f32 %v1135, %v1530
        %v1543 = vld [vmem:[#allocation2 + $0x10] sm:$0xf]
        %v1544 = vld [vmem:[#allocation2 + $0x14] sm:$0xf]
        %v1545 = vld [vmem:[#allocation2 + $0x18] sm:$0xf]
        %v1546 = vld [vmem:[#allocation2 + $0x1c] sm:$0xf]
        %v1547 = vld [vmem:[#allocation2 + $0x20] sm:$0xf]
        %v1548 = vld [vmem:[#allocation2 + $0x24] sm:$0xf]
        %v1549 = vld [vmem:[#allocation2 + $0x28] sm:$0xf]
        %v1550 = vld [vmem:[#allocation2 + $0x2c] sm:$0xf]
        %v1551 = vld [vmem:[#allocation2 + $0x30] sm:$0xf]
        %v1552 = vld [vmem:[#allocation2 + $0x34] sm:$0xf]
        %v1553 = vld [vmem:[#allocation2 + $0x38] sm:$0xf]
        %v1554 = vld [vmem:[#allocation2 + $0x3c] sm:$0xf]
        %v1555 = vld [vmem:[#allocation2 + $0x40] sm:$0xf]
        %v1556 = vld [vmem:[#allocation2 + $0x44] sm:$0xf]
        %v1557 = vld [vmem:[#allocation2 + $0x48] sm:$0xf]
        %v1558 = vld [vmem:[#allocation2 + $0x4c] sm:$0xf]
        %v1559 = vld [vmem:[#allocation2 + $0x50] sm:$0x1]
        %v1560 = vld [vmem:[#allocation2 + $0x10] sm:$0xe]
        %v1577 = vunpack.c.l.b16 %v1543
        %v1578 = vunpack.c.l.b16 %v1544
        %v1579 = vunpack.c.l.b16 %v1545
        %v1580 = vunpack.c.l.b16 %v1546
        %v1581 = vunpack.c.l.b16 %v1547
        %v1582 = vunpack.c.l.b16 %v1548
        %v1583 = vunpack.c.l.b16 %v1549
        %v1584 = vunpack.c.l.b16 %v1550
        %v1585 = vunpack.c.l.b16 %v1551
        %v1586 = vunpack.c.l.b16 %v1552
        %v1587 = vunpack.c.l.b16 %v1553
        %v1588 = vunpack.c.l.b16 %v1554
        %v1589 = vunpack.c.l.b16 %v1555
        %v1590 = vunpack.c.l.b16 %v1556
        %v1591 = vunpack.c.l.b16 %v1557
        %v1592 = vunpack.c.l.b16 %v1558
        %v1593 = vpack.c.b16 %v1578, %v1577
        %v1594 = vpack.c.b16 %v1580, %v1579
        %v1595 = vpack.c.b16 %v1582, %v1581
        %v1596 = vpack.c.b16 %v1584, %v1583
        %v1597 = vpack.c.b16 %v1586, %v1585
        %v1598 = vpack.c.b16 %v1588, %v1587
        %v1599 = vpack.c.b16 %v1590, %v1589
        %v1600 = vpack.c.b16 %v1592, %v1591
        %v1602 = vunpack.c.l.b16 %v1559
        %v1603 = vpack.c.b16 %v1602, %v1602
        %v1605 = vshrl.u32 %v1593, 16
        %v1607 = vshll.u32 %v1593, 16
        %v1609 = vrot.slane %v1607, 1
        %v1610 = vor.u32 %v1605, %v1609
        %v1612 = vshll.u32 %v1594, 16
        %v1614 = vrot.slane %v1612, 1
        %v1615 = vsel %vm788, %v1610, %v1614
        %v1616 = vshrl.u32 %v1594, 16
        %v1618 = vor.u32 %v1616, %v1614
        %v1620 = vshll.u32 %v1595, 16
        %v1622 = vrot.slane %v1620, 1
        %v1623 = vsel %vm788, %v1618, %v1622
        %v1624 = vshrl.u32 %v1595, 16
        %v1626 = vor.u32 %v1624, %v1622
        %v1628 = vshll.u32 %v1596, 16
        %v1630 = vrot.slane %v1628, 1
        %v1631 = vsel %vm788, %v1626, %v1630
        %v1632 = vshrl.u32 %v1596, 16
        %v1634 = vor.u32 %v1632, %v1630
        %v1636 = vshll.u32 %v1597, 16
        %v1638 = vrot.slane %v1636, 1
        %v1639 = vsel %vm788, %v1634, %v1638
        %v1640 = vshrl.u32 %v1597, 16
        %v1642 = vor.u32 %v1640, %v1638
        %v1644 = vshll.u32 %v1598, 16
        %v1646 = vrot.slane %v1644, 1
        %v1647 = vsel %vm788, %v1642, %v1646
        %v1648 = vshrl.u32 %v1598, 16
        %v1650 = vor.u32 %v1648, %v1646
        %v1652 = vshll.u32 %v1599, 16
        %v1654 = vrot.slane %v1652, 1
        %v1655 = vsel %vm788, %v1650, %v1654
        %v1656 = vshrl.u32 %v1599, 16
        %v1658 = vor.u32 %v1656, %v1654
        %v1660 = vshll.u32 %v1600, 16
        %v1662 = vrot.slane %v1660, 1
        %v1663 = vsel %vm788, %v1658, %v1662
        %v1664 = vshrl.u32 %v1600, 16
        %v1666 = vor.u32 %v1664, %v1662
        %v1668 = vshll.u32 %v1603, 16
        %v1670 = vrot.slane %v1668, 1
        %v1671 = vsel %vm788, %v1666, %v1670
        %1672 = vrot.lane.b32.xlu0 %v1615, 64
        %v1673 = vpop.permute.xlu0 %1672
        %1674 = vrot.lane.b32.xlu0 %v1623, 64
        %v1675 = vpop.permute.xlu0 %1674
        %1676 = vrot.lane.b32.xlu0 %v1631, 64
        %v1677 = vpop.permute.xlu0 %1676
        %1678 = vrot.lane.b32.xlu0 %v1639, 64
        %v1679 = vpop.permute.xlu0 %1678
        %1680 = vrot.lane.b32.xlu0 %v1647, 64
        %v1681 = vpop.permute.xlu0 %1680
        %1682 = vrot.lane.b32.xlu0 %v1655, 64
        %v1683 = vpop.permute.xlu0 %1682
        %1684 = vrot.lane.b32.xlu0 %v1663, 64
        %v1685 = vpop.permute.xlu0 %1684
        %1686 = vrot.lane.b32.xlu0 %v1671, 64
        %v1687 = vpop.permute.xlu0 %1686
        %v1689 = vunpack.c.l.b16 %v1560
        %v1690 = vpack.c.b16 %v1578, %v1689
        %v1691 = vrot.slane %v1690, 1
        %v1692 = vrot.slane %v1594, 1
        %v1693 = vsel %vm876, %v1691, %v1692
        %v1694 = vrot.slane %v1595, 1
        %v1695 = vsel %vm876, %v1692, %v1694
        %v1696 = vrot.slane %v1596, 1
        %v1697 = vsel %vm876, %v1694, %v1696
        %v1698 = vrot.slane %v1597, 1
        %v1699 = vsel %vm876, %v1696, %v1698
        %v1700 = vrot.slane %v1598, 1
        %v1701 = vsel %vm876, %v1698, %v1700
        %v1702 = vrot.slane %v1599, 1
        %v1703 = vsel %vm876, %v1700, %v1702
        %v1704 = vrot.slane %v1600, 1
        %v1705 = vsel %vm876, %v1702, %v1704
        %v1706 = vrot.slane %v1603, 1
        %v1707 = vsel %vm876, %v1704, %v1706
        %v1709 = vsel %vm894, %v1593, %v1673
        %v1712 = vsel %vm894, %v1594, %v1675
        %v1715 = vsel %vm894, %v1595, %v1677
        %v1718 = vsel %vm894, %v1596, %v1679
        %v1721 = vsel %vm894, %v1597, %v1681
        %v1724 = vsel %vm894, %v1598, %v1683
        %v1727 = vsel %vm894, %v1599, %v1685
        %v1730 = vsel %vm894, %v1600, %v1687
        %s1732 = scalar_lea.vmem [#allocation9], 192
        %v1733 = vld [vmem:[%s1732] sm:$0xf]
        %v1734 = vld [vmem:[%s1732 + $0x4] sm:$0xf]
        %v1735 = vld [vmem:[%s1732 + $0x8] sm:$0xf]
        %v1736 = vld [vmem:[%s1732 + $0xc] sm:$0xf]
        %v1737 = vld [vmem:[%s1732 + $0x10] sm:$0xf]
        %v1738 = vld [vmem:[%s1732 + $0x14] sm:$0xf]
        %v1739 = vld [vmem:[%s1732 + $0x18] sm:$0xf]
        %v1740 = vld [vmem:[%s1732 + $0x1c] sm:$0xf]
        %v1741 = vld [vmem:[%s1732 + $0x20] sm:$0xf]
        %v1742 = vld [vmem:[%s1732 + $0x24] sm:$0xf]
        %v1743 = vld [vmem:[%s1732 + $0x28] sm:$0xf]
        %v1744 = vld [vmem:[%s1732 + $0x2c] sm:$0xf]
        %v1745 = vld [vmem:[%s1732 + $0x30] sm:$0xf]
        %v1746 = vld [vmem:[%s1732 + $0x34] sm:$0xf]
        %v1747 = vld [vmem:[%s1732 + $0x38] sm:$0xf]
        %v1748 = vld [vmem:[%s1732 + $0x3c] sm:$0xf]
        %v1749 = vld [vmem:[%s1732 + $0x40] sm:$0xf]
        %v1750 = vld [vmem:[%s1732 + $0x44] sm:$0xf]
        %v1751 = vld [vmem:[%s1732 + $0x48] sm:$0xf]
        %v1752 = vld [vmem:[%s1732 + $0x4c] sm:$0xf]
        %v1753 = vld [vmem:[%s1732 + $0x50] sm:$0xf]
        %v1754 = vld [vmem:[%s1732 + $0x54] sm:$0xf]
        %v1755 = vld [vmem:[%s1732 + $0x58] sm:$0xf]
        %v1756 = vld [vmem:[%s1732 + $0x5c] sm:$0xf]
        %v1781 = vunpack.c.l.b16 %v1733
        %v1782 = vunpack.c.l.b16 %v1734
        %v1783 = vunpack.c.l.b16 %v1735
        %v1784 = vunpack.c.l.b16 %v1736
        %v1785 = vunpack.c.l.b16 %v1737
        %v1786 = vunpack.c.l.b16 %v1738
        %v1787 = vunpack.c.l.b16 %v1739
        %v1788 = vunpack.c.l.b16 %v1740
        %v1789 = vunpack.c.l.b16 %v1741
        %v1790 = vunpack.c.l.b16 %v1742
        %v1791 = vunpack.c.l.b16 %v1743
        %v1792 = vunpack.c.l.b16 %v1744
        %v1793 = vunpack.c.l.b16 %v1745
        %v1794 = vunpack.c.l.b16 %v1746
        %v1795 = vunpack.c.l.b16 %v1747
        %v1796 = vunpack.c.l.b16 %v1748
        %v1797 = vunpack.c.l.b16 %v1749
        %v1798 = vunpack.c.l.b16 %v1750
        %v1799 = vunpack.c.l.b16 %v1751
        %v1800 = vunpack.c.l.b16 %v1752
        %v1801 = vunpack.c.l.b16 %v1753
        %v1802 = vunpack.c.l.b16 %v1754
        %v1803 = vunpack.c.l.b16 %v1755
        %v1804 = vunpack.c.l.b16 %v1756
        %v1805 = vpack.c.b16 %v1782, %v1781
        %v1806 = vpack.c.b16 %v1784, %v1783
        %v1807 = vpack.c.b16 %v1786, %v1785
        %v1808 = vpack.c.b16 %v1788, %v1787
        %v1809 = vpack.c.b16 %v1790, %v1789
        %v1810 = vpack.c.b16 %v1792, %v1791
        %v1811 = vpack.c.b16 %v1794, %v1793
        %v1812 = vpack.c.b16 %v1796, %v1795
        %v1813 = vpack.c.b16 %v1798, %v1797
        %v1814 = vpack.c.b16 %v1800, %v1799
        %v1815 = vpack.c.b16 %v1802, %v1801
        %v1816 = vpack.c.b16 %v1804, %v1803
        %v1830 = vsel %vm894, %v1693, 0
        %v1833 = vsel %vm894, %v1695, 0
        %v1836 = vsel %vm894, %v1697, 0
        %v1839 = vsel %vm894, %v1699, 0
        %v1842 = vsel %vm894, %v1701, 0
        %v1845 = vsel %vm894, %v1703, 0
        %v1848 = vsel %vm894, %v1705, 0
        %v1851 = vsel %vm894, %v1707, 0
        %1853 = vmatprep.subr.bf16.mxu0 0
        %1854 = vmatpush1.bf16.msra.mxu0 %v1805
        %1855 = vmatprep.subr.bf16.mxu0 0
        %1856 = vmatpush1.bf16.msra.mxu0 %v1806
        %1857 = vmatprep.subr.bf16.mxu0 0
        %1858 = vmatpush1.bf16.msra.mxu0 %v1807
        %1859 = vmatprep.subr.bf16.mxu0 0
        %1860 = vmatpush1.bf16.msra.mxu0 %v1808
        %1861 = vmatprep.subr.bf16.mxu0 0
        %1862 = vmatpush1.bf16.msra.mxu0 %v1809
        %1863 = vmatprep.subr.bf16.mxu0 0
        %1864 = vmatpush1.bf16.msra.mxu0 %v1810
        %1865 = vmatprep.subr.bf16.mxu0 0
        %1866 = vmatpush1.bf16.msra.mxu0 %v1811
        %1867 = vmatprep.subr.bf16.mxu0 0
        %1868 = vmatpush1.bf16.msra.mxu0 %v1812
        %1869 = vmatprep.subr.bf16.mxu0 0
        %1870 = vmatpush1.bf16.msra.mxu0 %v1813
        %1871 = vmatprep.subr.bf16.mxu0 0
        %1872 = vmatpush1.bf16.msra.mxu0 %v1814
        %1873 = vmatprep.subr.bf16.mxu0 0
        %1874 = vmatpush1.bf16.msra.mxu0 %v1815
        %1875 = vmatprep.subr.bf16.mxu0 0
        %1876 = vmatpush1.bf16.msra.mxu0 %v1816
        %1877 = vmatprep.subr.bf16.mxu0 0
        %1878 = vmatpush1.bf16.msra.mxu0 0
        %1879 = vmatprep.subr.bf16.mxu0 0
        %1880 = vmatpush1.bf16.msra.mxu0 0
        %1881 = vmatprep.subr.bf16.mxu0 0
        %1882 = vmatpush1.bf16.msra.mxu0 0
        %1883 = vmatprep.subr.bf16.mxu0 0
        %1884 = vmatpush1.bf16.msra.mxu0 0
        %1885 = vmatprep.mubr.bf16.mxu0 %v1830
        %1886 = vmatmul.mubr.bf16.gmra.mrb[0].mxu0 %v1709
        %v1887 = vpop.f32.mrb[0].mxu0
        %v1888 = vadd.f32 0.0, %v1887
        %v1889 = vpop.f32.mrb[0].mxu0
        %v1890 = vpop.f32.mrb[0].mxu0
        %v1891 = vpop.f32.mrb[0].mxu0
        %1892 = vmatprep.mubr.bf16.mxu0 %v1833
        %1893 = vmatmul.mubr.bf16.gmra.mrb[0].mxu0 %v1712
        %v1894 = vpop.f32.mrb[0].mxu0
        %v1895 = vadd.f32 0.0, %v1894
        %v1896 = vpop.f32.mrb[0].mxu0
        %v1897 = vpop.f32.mrb[0].mxu0
        %v1898 = vpop.f32.mrb[0].mxu0
        %1899 = vmatprep.mubr.bf16.mxu0 %v1836
        %1900 = vmatmul.mubr.bf16.gmra.mrb[0].mxu0 %v1715
        %v1901 = vpop.f32.mrb[0].mxu0
        %v1902 = vadd.f32 0.0, %v1901
        %v1903 = vpop.f32.mrb[0].mxu0
        %v1904 = vpop.f32.mrb[0].mxu0
        %v1905 = vpop.f32.mrb[0].mxu0
        %1906 = vmatprep.mubr.bf16.mxu0 %v1839
        %1907 = vmatmul.mubr.bf16.gmra.mrb[0].mxu0 %v1718
        %v1908 = vpop.f32.mrb[0].mxu0
        %v1909 = vadd.f32 0.0, %v1908
        %v1910 = vpop.f32.mrb[0].mxu0
        %v1911 = vpop.f32.mrb[0].mxu0
        %v1912 = vpop.f32.mrb[0].mxu0
        %1913 = vmatprep.mubr.bf16.mxu0 %v1842
        %1914 = vmatmul.mubr.bf16.gmra.mrb[0].mxu0 %v1721
        %v1915 = vpop.f32.mrb[0].mxu0
        %v1916 = vadd.f32 0.0, %v1915
        %v1917 = vpop.f32.mrb[0].mxu0
        %v1918 = vpop.f32.mrb[0].mxu0
        %v1919 = vpop.f32.mrb[0].mxu0
        %1920 = vmatprep.mubr.bf16.mxu0 %v1845
        %1921 = vmatmul.mubr.bf16.gmra.mrb[0].mxu0 %v1724
        %v1922 = vpop.f32.mrb[0].mxu0
        %v1923 = vadd.f32 0.0, %v1922
        %v1924 = vpop.f32.mrb[0].mxu0
        %v1925 = vpop.f32.mrb[0].mxu0
        %v1926 = vpop.f32.mrb[0].mxu0
        %1927 = vmatprep.mubr.bf16.mxu0 %v1848
        %1928 = vmatmul.mubr.bf16.gmra.mrb[0].mxu0 %v1727
        %v1929 = vpop.f32.mrb[0].mxu0
        %v1930 = vadd.f32 0.0, %v1929
        %v1931 = vpop.f32.mrb[0].mxu0
        %v1932 = vpop.f32.mrb[0].mxu0
        %v1933 = vpop.f32.mrb[0].mxu0
        %1934 = vmatprep.mubr.bf16.mxu0 %v1851
        %1935 = vmatmul.mubr.bf16.gmra.mrb[0].mxu0 %v1730
        %v1936 = vpop.f32.mrb[0].mxu0
        %v1937 = vadd.f32 0.0, %v1936
        %v1938 = vpop.f32.mrb[0].mxu0
        %v1939 = vpop.f32.mrb[0].mxu0
        %v1940 = vpop.f32.mrb[0].mxu0
        %1941 = vdwg.mxu0
        %v1942 = vadd.f32 %v1535, %v1888
        %v1943 = vadd.f32 %v1536, %v1895
        %v1944 = vadd.f32 %v1537, %v1902
        %v1945 = vadd.f32 %v1538, %v1909
        %v1946 = vadd.f32 %v1539, %v1916
        %v1947 = vadd.f32 %v1540, %v1923
        %v1948 = vadd.f32 %v1541, %v1930
        %v1949 = vadd.f32 %v1542, %v1937
        %1950 = vst.msk [vmem:[%s401] sm:$0xff] %vm894, %v1942
        %1951 = vst.msk [vmem:[%s401 + $0x8] sm:$0xff] %vm894, %v1943
        %1952 = vst.msk [vmem:[%s401 + $0x10] sm:$0xff] %vm894, %v1944
        %1953 = vst.msk [vmem:[%s401 + $0x18] sm:$0xff] %vm894, %v1945
        %1954 = vst.msk [vmem:[%s401 + $0x20] sm:$0xff] %vm894, %v1946
        %1955 = vst.msk [vmem:[%s401 + $0x28] sm:$0xff] %vm894, %v1947
        %1956 = vst.msk [vmem:[%s401 + $0x30] sm:$0xff] %vm894, %v1948
        %1957 = vst.msk [vmem:[%s401 + $0x38] sm:$0xff] %vm894, %v1949
        %s1958 = sand.u32 %s177, 1
        %s1959 = scalar_lea.sflag [#allocation5], %s1958
        %s1960 = sand.u32 %s177, 1
        %s1961 = smul.addr %s1960, 32
        %s1962 = scalar_lea.vmem [#allocation14], %s1961
        %s1963 = sand.u32 %s203, 1
        %s1964 = scalar_lea.sflag [#allocation16], %s1963
        %s1965 = sand.u32 %s203, 1
        %s1966 = smul.addr %s1965, 64
        %s1967 = scalar_lea.vmem [#allocation15], %s1966
        // Predicated region
        $region69: #{_lambda_.6} parent=43 // pred_check
          %p1968 = pneg %p187
        $region70: #{_lambda_.6} parent=43 // pred_check_branch
          %1970 = sbr.rel (%p1968) target = $region72
        $region71: #{_lambda_.6} parent=43 // pred_region
          %s1972 = ssub.s32 512, 512
          %1973 = vsyncadd %s1959, %s1972
          %s1974 = smul.addr %s33, 8
          %s1975 = smul.addr %s1974, 64
          %s1976 = scalar_lea.hbm %s6, %s1975
          %s1977 = sshll.u32 %s1962, 4
          %s1978 = int_to_ptr.vmem [resolvable:$true] %s1977
          %1983 = dma.vmem_to_hbm [thread:$0]  %s1978, 512, %s1976, %s1959, 64, 64, 4
        $region72: #{_lambda_.6} parent=43 // pred_fallthru
          _
        // Predicated region
        $region73: #{_lambda_.6} parent=43 // pred_check
          %p1984 = pneg %p213
        $region74: #{_lambda_.6} parent=43 // pred_check_branch
          %1986 = sbr.rel (%p1984) target = $region76
        $region75: #{_lambda_.6} parent=43 // pred_region
          %s1988 = ssub.s32 1024, 1024
          %1989 = vsyncadd %s1964, %s1988
          %s1990 = smul.addr %s33, 8
          %s1991 = smul.addr %s1990, 128
          %s1992 = scalar_lea.hbm %s7, %s1991
          %s1993 = sshll.u32 %s1967, 4
          %s1994 = int_to_ptr.vmem [resolvable:$true] %s1993
          %1999 = dma.vmem_to_hbm [thread:$0]  %s1994, 1024, %s1992, %s1964, 128, 128, 8
        $region76: #{_lambda_.6} parent=43 // pred_fallthru
          _
      $region44: #{_lambda_.6} parent=5 // pred_fallthru
        _
      %p2000 = scmp.le.s32.totalorder 2, %s28
      // Predicated region
      $region77: #{_lambda_.6} parent=5 // pred_check
        %p2001 = pneg %p2000
      $region78: #{_lambda_.6} parent=5 // pred_check_branch
        %2003 = sbr.rel (%p2001) target = $region80
      $region79: #{_lambda_.6} parent=5 // pred_region
        %s2004 = ssub.s32 %s28, 2
        // Predicated region
        $region81: #{_lambda_.6} parent=79 // pred_check
          %p2005 = pneg %p193
        $region82: #{_lambda_.6} parent=79 // pred_check_branch
          %2007 = sbr.rel (%p2005) target = $region84
        $region83: #{_lambda_.6} parent=79 // pred_region
          %s2008 = sand.u32 %s178, 1
          %s2009 = scalar_lea.sflag [#allocation5], %s2008
          %s2010 = sand.u32 %s178, 1
          %s2011 = smul.addr %s2010, 32
          %s2012 = scalar_lea.vmem [#allocation14], %s2011
          %2013 = dma.done %s2009, 512
        $region84: #{_lambda_.6} parent=79 // pred_fallthru
          _
        // Predicated region
        $region85: #{_lambda_.6} parent=79 // pred_check
          %p2014 = pneg %p219
        $region86: #{_lambda_.6} parent=79 // pred_check_branch
          %2016 = sbr.rel (%p2014) target = $region88
        $region87: #{_lambda_.6} parent=79 // pred_region
          %s2017 = sand.u32 %s204, 1
          %s2018 = scalar_lea.sflag [#allocation16], %s2017
          %s2019 = sand.u32 %s204, 1
          %s2020 = smul.addr %s2019, 64
          %s2021 = scalar_lea.vmem [#allocation15], %s2020
          %2022 = dma.done %s2018, 1024
        $region88: #{_lambda_.6} parent=79 // pred_fallthru
          _
      $region80: #{_lambda_.6} parent=5 // pred_fallthru
        _
    $region6: #{_lambda_.6} parent=1 // loop_footer
      %s32 = sadd.s32 1, %s28
    $region7: #{_lambda_.6} parent=1 // loop_footer_branch
      %27 = sbr.rel target = $region3
    $region8: #{_lambda_.6} parent=1 // loop_exit
      _
    %2023 = vsyncpa [#allocation4], 1
    %s2024 = scalar_lea.sflag [#allocation4], 1
    %2025 = vsyncpa %s2024, 1
    %2026 = vsyncpa [#allocation7], 1
    %2027 = vsyncpa [#allocation10], 1
    %2028 = vsyncpa [#allocation13], 1
    %s2029 = scalar_lea.sflag [#allocation13], 1
    %2030 = vsyncpa %s2029, 1
    %2031 = vsyncpa [#allocation5], 1
    %s2032 = scalar_lea.sflag [#allocation5], 1
    %2033 = vsyncpa %s2032, 1
    %2034 = vsyncpa [#allocation16], 1
    %s2035 = scalar_lea.sflag [#allocation16], 1
    %2036 = vsyncpa %s2035, 1

// kernel: _lambda_.8
$region0: #{_lambda_.8}
  #allocation0 [shape = 'u32[]', space=smem, size = 0x4, offset = 0x4, fixed_abs, tag = 'smem constant byte address 0x4 - core index']
  #allocation1 [shape = 'u32[144,128]{1,0:T(1,128)}', space=vmem, size = 0x12000, scoped, tag = 'internal scratch']
  #allocation2 [shape = 'f32[8,64]{1,0:T(8,128)}', space=vmem, size = 0x1000, scoped, tag = 'scratch operand']
  %s0 = inlined_call_operand.hbm [shape: bf16[8,576], index: 0, kind: input, shape index: {}]
  %s1 = inlined_call_operand.hbm [shape: bf16[576,64], index: 1, kind: input, shape index: {}]
  %s2 = inlined_call_operand.hbm [shape: f32[1,64], index: 2, kind: input, shape index: {}]
  %s3 = inlined_call_operand.hbm [shape: f32[8,64], index: 3, kind: output, shape index: {}]
  %s4 = sld [smem:[#allocation0]]
  $region42: #{_lambda_.8} parent=0
    _
  %s6 = ssub.s32 1, %s4
  %s7 = scalar_select 0, %s6, %s4
  $region1: #{_lambda_.8} parent=0
    #allocation3 [shape = 'u8[10240]{0}', space=vmem, size = 0x2800, scoped, tag = 'input window, operand 0, single buffered']
    #allocation4 [shape = 's32[1]{0}', space=sflag, size = 0x4, scoped, tag = 'scoped memory for _lambda_.8']
    #allocation5 [shape = 's32[1]{0}', space=sflag, size = 0x4, scoped, tag = 'scoped memory for _lambda_.8']
    #allocation6 [shape = 'u8[147456]{0}', space=vmem, size = 0x24000, scoped, tag = 'input window, operand 1, single buffered']
    #allocation7 [shape = 's32[1]{0}', space=sflag, size = 0x4, scoped, tag = 'scoped memory for _lambda_.8']
    #allocation8 [shape = 'u8[512]{0}', space=vmem, size = 0x400, scoped, tag = 'input window, operand 2, single buffered']
    #allocation9 [shape = 'u8[4096]{0}', space=vmem, size = 0x1000, scoped, tag = 'output window, operand 0, single buffered']
    %8 = vsyncpa [#allocation4], 0
    %9 = vsyncpa [#allocation7], 0
    %10 = vsyncpa [#allocation5], 0
    // Predicated region
    $region2: #{_lambda_.8} parent=1 // pred_check
      _
    $region3: #{_lambda_.8} parent=1 // pred_check_branch
      %12 = sbr.rel (0) target = $region5
    $region4: #{_lambda_.8} parent=1 // pred_region
      %s14 = ssub.s32 320, 320
      %15 = vsyncadd [#allocation4], %s14
      %s17 = sshll.u32 [#allocation3], 4
      %s18 = int_to_ptr.vmem [resolvable:$true] %s17
      %20 = dma.hbm_to_vmem [thread:$0]  %s0, 320, %s18, [#allocation4]
    $region5: #{_lambda_.8} parent=1 // pred_fallthru
      _
    // Predicated region
    $region6: #{_lambda_.8} parent=1 // pred_check
      _
    $region7: #{_lambda_.8} parent=1 // pred_check_branch
      %22 = sbr.rel (0) target = $region9
    $region8: #{_lambda_.8} parent=1 // pred_region
      %s24 = ssub.s32 4608, 4608
      %25 = vsyncadd [#allocation7], %s24
      %s26 = sshll.u32 [#allocation6], 4
      %s27 = int_to_ptr.vmem [resolvable:$true] %s26
      %32 = dma.hbm_to_vmem [thread:$0]  %s1, 4608, %s27, [#allocation7], 64, 64, 4
    $region9: #{_lambda_.8} parent=1 // pred_fallthru
      _
    // Predicated region
    $region10: #{_lambda_.8} parent=1 // pred_check
      _
    $region11: #{_lambda_.8} parent=1 // pred_check_branch
      %34 = sbr.rel (0) target = $region13
    $region12: #{_lambda_.8} parent=1 // pred_region
      %s36 = ssub.s32 16, 16
      %37 = vsyncadd [#allocation7], %s36
      %s39 = sshll.u32 [#allocation8], 4
      %s40 = int_to_ptr.vmem [resolvable:$true] %s39
      %42 = dma.hbm_to_vmem [thread:$0]  %s2, 16, %s40, [#allocation7]
    $region13: #{_lambda_.8} parent=1 // pred_fallthru
      _
    // Predicated region
    $region14: #{_lambda_.8} parent=1 // pred_check
      _
    $region15: #{_lambda_.8} parent=1 // pred_check_branch
      %44 = sbr.rel (0) target = $region17
    $region16: #{_lambda_.8} parent=1 // pred_region
      %45 = dma.done [#allocation4], 320
    $region17: #{_lambda_.8} parent=1 // pred_fallthru
      _
    // Predicated region
    $region18: #{_lambda_.8} parent=1 // pred_check
      _
    $region19: #{_lambda_.8} parent=1 // pred_check_branch
      %47 = sbr.rel (0) target = $region21
    $region20: #{_lambda_.8} parent=1 // pred_region
      %48 = dma.done [#allocation7], 4608
    $region21: #{_lambda_.8} parent=1 // pred_fallthru
      _
    // Predicated region
    $region22: #{_lambda_.8} parent=1 // pred_check
      _
    $region23: #{_lambda_.8} parent=1 // pred_check_branch
      %50 = sbr.rel (0) target = $region25
    $region24: #{_lambda_.8} parent=1 // pred_region
      %51 = dma.done [#allocation7], 16
    $region25: #{_lambda_.8} parent=1 // pred_fallthru
      _
    %p53 = scmp.eq.s32.totalorder 0, 0
    // Predicated region
    $region26: #{_lambda_.8} parent=1 // pred_check
      %p54 = pneg %p53
    $region27: #{_lambda_.8} parent=1 // pred_check_branch
      %56 = sbr.rel (%p54) target = $region29
    $region28: #{_lambda_.8} parent=1 // pred_region
      %v57 = vld [vmem:[#allocation8] sm:$0x1]
      %v59 = vlaneseq
      %v60 = vshrl.u32 %v59, 7
      %v61 = vsub.s32 0, %v60
      %v62 = vrot.slane %v57, %v61
      %vm64 = vcmask 523264
      %65 = vst.msk [vmem:[#allocation2] sm:$0xff] %vm64, %v62
    $region29: #{_lambda_.8} parent=1 // pred_fallthru
      _
    %v66 = vld [vmem:[#allocation2] sm:$0xff]
    %v67 = vld [vmem:[#allocation3] sm:$0xff]
    %v68 = vld [vmem:[#allocation3 + $0x8] sm:$0xff]
    %v69 = vld [vmem:[#allocation3 + $0x10] sm:$0xf]
    %v70 = vld [vmem:[#allocation6] sm:$0xf]
    %v71 = vld [vmem:[#allocation6 + $0x4] sm:$0xf]
    %v72 = vld [vmem:[#allocation6 + $0x8] sm:$0xf]
    %v73 = vld [vmem:[#allocation6 + $0xc] sm:$0xf]
    %v74 = vld [vmem:[#allocation6 + $0x10] sm:$0xf]
    %v75 = vld [vmem:[#allocation6 + $0x14] sm:$0xf]
    %v76 = vld [vmem:[#allocation6 + $0x18] sm:$0xf]
    %v77 = vld [vmem:[#allocation6 + $0x1c] sm:$0xf]
    %v78 = vld [vmem:[#allocation6 + $0x20] sm:$0xf]
    %v79 = vld [vmem:[#allocation6 + $0x24] sm:$0xf]
    %v80 = vld [vmem:[#allocation6 + $0x28] sm:$0xf]
    %v81 = vld [vmem:[#allocation6 + $0x2c] sm:$0xf]
    %v82 = vld [vmem:[#allocation6 + $0x30] sm:$0xf]
    %v83 = vld [vmem:[#allocation6 + $0x34] sm:$0xf]
    %v84 = vld [vmem:[#allocation6 + $0x38] sm:$0xf]
    %v85 = vld [vmem:[#allocation6 + $0x3c] sm:$0xf]
    %v86 = vld [vmem:[#allocation6 + $0x40] sm:$0xf]
    %v87 = vld [vmem:[#allocation6 + $0x44] sm:$0xf]
    %v88 = vld [vmem:[#allocation6 + $0x48] sm:$0xf]
    %v89 = vld [vmem:[#allocation6 + $0x4c] sm:$0xf]
    %v90 = vld [vmem:[#allocation6 + $0x50] sm:$0xf]
    %v91 = vld [vmem:[#allocation6 + $0x54] sm:$0xf]
    %v92 = vld [vmem:[#allocation6 + $0x58] sm:$0xf]
    %v93 = vld [vmem:[#allocation6 + $0x5c] sm:$0xf]
    %v94 = vld [vmem:[#allocation6 + $0x60] sm:$0xf]
    %v95 = vld [vmem:[#allocation6 + $0x64] sm:$0xf]
    %v96 = vld [vmem:[#allocation6 + $0x68] sm:$0xf]
    %v97 = vld [vmem:[#allocation6 + $0x6c] sm:$0xf]
    %v98 = vld [vmem:[#allocation6 + $0x70] sm:$0xf]
    %v99 = vld [vmem:[#allocation6 + $0x74] sm:$0xf]
    %v100 = vld [vmem:[#allocation6 + $0x78] sm:$0xf]
    %v101 = vld [vmem:[#allocation6 + $0x7c] sm:$0xf]
    %v102 = vld [vmem:[#allocation6 + $0x80] sm:$0xf]
    %v103 = vld [vmem:[#allocation6 + $0x84] sm:$0xf]
    %v104 = vld [vmem:[#allocation6 + $0x88] sm:$0xf]
    %v105 = vld [vmem:[#allocation6 + $0x8c] sm:$0xf]
    %v106 = vld [vmem:[#allocation6 + $0x90] sm:$0xf]
    %v107 = vld [vmem:[#allocation6 + $0x94] sm:$0xf]
    %v108 = vld [vmem:[#allocation6 + $0x98] sm:$0xf]
    %v109 = vld [vmem:[#allocation6 + $0x9c] sm:$0xf]
    %v110 = vld [vmem:[#allocation6 + $0xa0] sm:$0xf]
    %v111 = vld [vmem:[#allocation6 + $0xa4] sm:$0xf]
    %v112 = vld [vmem:[#allocation6 + $0xa8] sm:$0xf]
    %v113 = vld [vmem:[#allocation6 + $0xac] sm:$0xf]
    %v114 = vld [vmem:[#allocation6 + $0xb0] sm:$0xf]
    %v115 = vld [vmem:[#allocation6 + $0xb4] sm:$0xf]
    %v116 = vld [vmem:[#allocation6 + $0xb8] sm:$0xf]
    %v117 = vld [vmem:[#allocation6 + $0xbc] sm:$0xf]
    %v118 = vld [vmem:[#allocation6 + $0xc0] sm:$0xf]
    %v119 = vld [vmem:[#allocation6 + $0xc4] sm:$0xf]
    %v120 = vld [vmem:[#allocation6 + $0xc8] sm:$0xf]
    %v121 = vld [vmem:[#allocation6 + $0xcc] sm:$0xf]
    %v122 = vld [vmem:[#allocation6 + $0xd0] sm:$0xf]
    %v123 = vld [vmem:[#allocation6 + $0xd4] sm:$0xf]
    %v124 = vld [vmem:[#allocation6 + $0xd8] sm:$0xf]
    %v125 = vld [vmem:[#allocation6 + $0xdc] sm:$0xf]
    %v126 = vld [vmem:[#allocation6 + $0xe0] sm:$0xf]
    %v127 = vld [vmem:[#allocation6 + $0xe4] sm:$0xf]
    %v128 = vld [vmem:[#allocation6 + $0xe8] sm:$0xf]
    %v129 = vld [vmem:[#allocation6 + $0xec] sm:$0xf]
    %v130 = vld [vmem:[#allocation6 + $0xf0] sm:$0xf]
    %v131 = vld [vmem:[#allocation6 + $0xf4] sm:$0xf]
    %v132 = vld [vmem:[#allocation6 + $0xf8] sm:$0xf]
    %v133 = vld [vmem:[#allocation6 + $0xfc] sm:$0xf]
    %v134 = vld [vmem:[#allocation6 + $0x100] sm:$0xf]
    %v135 = vld [vmem:[#allocation6 + $0x104] sm:$0xf]
    %v136 = vld [vmem:[#allocation6 + $0x108] sm:$0xf]
    %v137 = vld [vmem:[#allocation6 + $0x10c] sm:$0xf]
    %v138 = vld [vmem:[#allocation6 + $0x110] sm:$0xf]
    %v139 = vld [vmem:[#allocation6 + $0x114] sm:$0xf]
    %v140 = vld [vmem:[#allocation6 + $0x118] sm:$0xf]
    %v141 = vld [vmem:[#allocation6 + $0x11c] sm:$0xf]
    %v145 = vunpack.c.l.b16 %v67
    %v146 = vunpack.c.h.b16 %v67
    %v147 = vunpack.c.l.b16 %v68
    %v148 = vunpack.c.h.b16 %v68
    %v149 = vunpack.c.l.b16 %v69
    %v150 = vpack.c.b16 %v145, %v145
    %v151 = vpack.c.b16 %v146, %v146
    %v152 = vpack.c.b16 %v147, %v147
    %v153 = vpack.c.b16 %v148, %v148
    %v154 = vpack.c.b16 %v149, %v149
    %v231 = vunpack.c.l.b16 %v70
    %v232 = vunpack.c.l.b16 %v71
    %v233 = vunpack.c.l.b16 %v72
    %v234 = vunpack.c.l.b16 %v73
    %v235 = vunpack.c.l.b16 %v74
    %v236 = vunpack.c.l.b16 %v75
    %v237 = vunpack.c.l.b16 %v76
    %v238 = vunpack.c.l.b16 %v77
    %v239 = vunpack.c.l.b16 %v78
    %v240 = vunpack.c.l.b16 %v79
    %v241 = vunpack.c.l.b16 %v80
    %v242 = vunpack.c.l.b16 %v81
    %v243 = vunpack.c.l.b16 %v82
    %v244 = vunpack.c.l.b16 %v83
    %v245 = vunpack.c.l.b16 %v84
    %v246 = vunpack.c.l.b16 %v85
    %v247 = vunpack.c.l.b16 %v86
    %v248 = vunpack.c.l.b16 %v87
    %v249 = vunpack.c.l.b16 %v88
    %v250 = vunpack.c.l.b16 %v89
    %v251 = vunpack.c.l.b16 %v90
    %v252 = vunpack.c.l.b16 %v91
    %v253 = vunpack.c.l.b16 %v92
    %v254 = vunpack.c.l.b16 %v93
    %v255 = vunpack.c.l.b16 %v94
    %v256 = vunpack.c.l.b16 %v95
    %v257 = vunpack.c.l.b16 %v96
    %v258 = vunpack.c.l.b16 %v97
    %v259 = vunpack.c.l.b16 %v98
    %v260 = vunpack.c.l.b16 %v99
    %v261 = vunpack.c.l.b16 %v100
    %v262 = vunpack.c.l.b16 %v101
    %v263 = vunpack.c.l.b16 %v102
    %v264 = vunpack.c.l.b16 %v103
    %v265 = vunpack.c.l.b16 %v104
    %v266 = vunpack.c.l.b16 %v105
    %v267 = vunpack.c.l.b16 %v106
    %v268 = vunpack.c.l.b16 %v107
    %v269 = vunpack.c.l.b16 %v108
    %v270 = vunpack.c.l.b16 %v109
    %v271 = vunpack.c.l.b16 %v110
    %v272 = vunpack.c.l.b16 %v111
    %v273 = vunpack.c.l.b16 %v112
    %v274 = vunpack.c.l.b16 %v113
    %v275 = vunpack.c.l.b16 %v114
    %v276 = vunpack.c.l.b16 %v115
    %v277 = vunpack.c.l.b16 %v116
    %v278 = vunpack.c.l.b16 %v117
    %v279 = vunpack.c.l.b16 %v118
    %v280 = vunpack.c.l.b16 %v119
    %v281 = vunpack.c.l.b16 %v120
    %v282 = vunpack.c.l.b16 %v121
    %v283 = vunpack.c.l.b16 %v122
    %v284 = vunpack.c.l.b16 %v123
    %v285 = vunpack.c.l.b16 %v124
    %v286 = vunpack.c.l.b16 %v125
    %v287 = vunpack.c.l.b16 %v126
    %v288 = vunpack.c.l.b16 %v127
    %v289 = vunpack.c.l.b16 %v128
    %v290 = vunpack.c.l.b16 %v129
    %v291 = vunpack.c.l.b16 %v130
    %v292 = vunpack.c.l.b16 %v131
    %v293 = vunpack.c.l.b16 %v132
    %v294 = vunpack.c.l.b16 %v133
    %v295 = vunpack.c.l.b16 %v134
    %v296 = vunpack.c.l.b16 %v135
    %v297 = vunpack.c.l.b16 %v136
    %v298 = vunpack.c.l.b16 %v137
    %v299 = vunpack.c.l.b16 %v138
    %v300 = vunpack.c.l.b16 %v139
    %v301 = vunpack.c.l.b16 %v140
    %v302 = vunpack.c.l.b16 %v141
    %v303 = vpack.c.b16 %v232, %v231
    %v304 = vpack.c.b16 %v234, %v233
    %v305 = vpack.c.b16 %v236, %v235
    %v306 = vpack.c.b16 %v238, %v237
    %v307 = vpack.c.b16 %v240, %v239
    %v308 = vpack.c.b16 %v242, %v241
    %v309 = vpack.c.b16 %v244, %v243
    %v310 = vpack.c.b16 %v246, %v245
    %v311 = vpack.c.b16 %v248, %v247
    %v312 = vpack.c.b16 %v250, %v249
    %v313 = vpack.c.b16 %v252, %v251
    %v314 = vpack.c.b16 %v254, %v253
    %v315 = vpack.c.b16 %v256, %v255
    %v316 = vpack.c.b16 %v258, %v257
    %v317 = vpack.c.b16 %v260, %v259
    %v318 = vpack.c.b16 %v262, %v261
    %v319 = vpack.c.b16 %v264, %v263
    %v320 = vpack.c.b16 %v266, %v265
    %v321 = vpack.c.b16 %v268, %v267
    %v322 = vpack.c.b16 %v270, %v269
    %v323 = vpack.c.b16 %v272, %v271
    %v324 = vpack.c.b16 %v274, %v273
    %v325 = vpack.c.b16 %v276, %v275
    %v326 = vpack.c.b16 %v278, %v277
    %v327 = vpack.c.b16 %v280, %v279
    %v328 = vpack.c.b16 %v282, %v281
    %v329 = vpack.c.b16 %v284, %v283
    %v330 = vpack.c.b16 %v286, %v285
    %v331 = vpack.c.b16 %v288, %v287
    %v332 = vpack.c.b16 %v290, %v289
    %v333 = vpack.c.b16 %v292, %v291
    %v334 = vpack.c.b16 %v294, %v293
    %v335 = vpack.c.b16 %v296, %v295
    %v336 = vpack.c.b16 %v298, %v297
    %v337 = vpack.c.b16 %v300, %v299
    %v338 = vpack.c.b16 %v302, %v301
    %vm375 = vcmask 523264
    %v377 = vsel %vm375, %v154, 0
    %379 = vmatprep.subr.bf16.mxu0 0
    %380 = vmatpush1.bf16.msra.mxu0 %v303
    %381 = vmatprep.subr.bf16.mxu0 0
    %382 = vmatpush1.bf16.msra.mxu0 %v304
    %383 = vmatprep.subr.bf16.mxu0 0
    %384 = vmatpush1.bf16.msra.mxu0 %v305
    %385 = vmatprep.subr.bf16.mxu0 0
    %386 = vmatpush1.bf16.msra.mxu0 %v306
    %387 = vmatprep.subr.bf16.mxu0 0
    %388 = vmatpush1.bf16.msra.mxu0 %v307
    %389 = vmatprep.subr.bf16.mxu0 0
    %390 = vmatpush1.bf16.msra.mxu0 %v308
    %391 = vmatprep.subr.bf16.mxu0 0
    %392 = vmatpush1.bf16.msra.mxu0 %v309
    %393 = vmatprep.subr.bf16.mxu0 0
    %394 = vmatpush1.bf16.msra.mxu0 %v310
    %395 = vmatprep.subr.bf16.mxu0 0
    %396 = vmatpush1.bf16.msra.mxu0 %v311
    %397 = vmatprep.subr.bf16.mxu0 0
    %398 = vmatpush1.bf16.msra.mxu0 %v312
    %399 = vmatprep.subr.bf16.mxu0 0
    %400 = vmatpush1.bf16.msra.mxu0 %v313
    %401 = vmatprep.subr.bf16.mxu0 0
    %402 = vmatpush1.bf16.msra.mxu0 %v314
    %403 = vmatprep.subr.bf16.mxu0 0
    %404 = vmatpush1.bf16.msra.mxu0 %v315
    %405 = vmatprep.subr.bf16.mxu0 0
    %406 = vmatpush1.bf16.msra.mxu0 %v316
    %407 = vmatprep.subr.bf16.mxu0 0
    %408 = vmatpush1.bf16.msra.mxu0 %v317
    %409 = vmatprep.subr.bf16.mxu0 0
    %410 = vmatpush1.bf16.msra.mxu0 %v318
    %411 = vmatprep.mubr.bf16.mxu0 %v151
    %412 = vmatmul.mubr.bf16.gmra.mrb[0].mxu0 %v150
    %v413 = vpop.f32.mrb[0].mxu0
    %v414 = vadd.f32 0.0, %v413
    %v415 = vpop.f32.mrb[0].mxu0
    %v416 = vpop.f32.mrb[0].mxu0
    %v417 = vpop.f32.mrb[0].mxu0
    %418 = vdwg.mxu0
    %419 = vmatprep.subr.bf16.mxu0 0
    %420 = vmatpush1.bf16.msra.mxu0 %v319
    %421 = vmatprep.subr.bf16.mxu0 0
    %422 = vmatpush1.bf16.msra.mxu0 %v320
    %423 = vmatprep.subr.bf16.mxu0 0
    %424 = vmatpush1.bf16.msra.mxu0 %v321
    %425 = vmatprep.subr.bf16.mxu0 0
    %426 = vmatpush1.bf16.msra.mxu0 %v322
    %427 = vmatprep.subr.bf16.mxu0 0
    %428 = vmatpush1.bf16.msra.mxu0 %v323
    %429 = vmatprep.subr.bf16.mxu0 0
    %430 = vmatpush1.bf16.msra.mxu0 %v324
    %431 = vmatprep.subr.bf16.mxu0 0
    %432 = vmatpush1.bf16.msra.mxu0 %v325
    %433 = vmatprep.subr.bf16.mxu0 0
    %434 = vmatpush1.bf16.msra.mxu0 %v326
    %435 = vmatprep.subr.bf16.mxu0 0
    %436 = vmatpush1.bf16.msra.mxu0 %v327
    %437 = vmatprep.subr.bf16.mxu0 0
    %438 = vmatpush1.bf16.msra.mxu0 %v328
    %439 = vmatprep.subr.bf16.mxu0 0
    %440 = vmatpush1.bf16.msra.mxu0 %v329
    %441 = vmatprep.subr.bf16.mxu0 0
    %442 = vmatpush1.bf16.msra.mxu0 %v330
    %443 = vmatprep.subr.bf16.mxu0 0
    %444 = vmatpush1.bf16.msra.mxu0 %v331
    %445 = vmatprep.subr.bf16.mxu0 0
    %446 = vmatpush1.bf16.msra.mxu0 %v332
    %447 = vmatprep.subr.bf16.mxu0 0
    %448 = vmatpush1.bf16.msra.mxu0 %v333
    %449 = vmatprep.subr.bf16.mxu0 0
    %450 = vmatpush1.bf16.msra.mxu0 %v334
    %451 = vmatprep.mubr.bf16.mxu0 %v153
    %452 = vmatmul.mubr.bf16.gmra.mrb[0].mxu0 %v152
    %v453 = vpop.f32.mrb[0].mxu0
    %v454 = vadd.f32 %v414, %v453
    %v455 = vpop.f32.mrb[0].mxu0
    %v456 = vpop.f32.mrb[0].mxu0
    %v457 = vpop.f32.mrb[0].mxu0
    %458 = vdwg.mxu0
    %459 = vmatprep.subr.bf16.mxu0 0
    %460 = vmatpush1.bf16.msra.mxu0 %v335
    %461 = vmatprep.subr.bf16.mxu0 0
    %462 = vmatpush1.bf16.msra.mxu0 %v336
    %463 = vmatprep.subr.bf16.mxu0 0
    %464 = vmatpush1.bf16.msra.mxu0 %v337
    %465 = vmatprep.subr.bf16.mxu0 0
    %466 = vmatpush1.bf16.msra.mxu0 %v338
    %467 = vmatprep.subr.bf16.mxu0 0
    %468 = vmatpush1.bf16.msra.mxu0 0
    %469 = vmatprep.subr.bf16.mxu0 0
    %470 = vmatpush1.bf16.msra.mxu0 0
    %471 = vmatprep.subr.bf16.mxu0 0
    %472 = vmatpush1.bf16.msra.mxu0 0
    %473 = vmatprep.subr.bf16.mxu0 0
    %474 = vmatpush1.bf16.msra.mxu0 0
    %475 = vmatprep.subr.bf16.mxu0 0
    %476 = vmatpush1.bf16.msra.mxu0 0
    %477 = vmatprep.subr.bf16.mxu0 0
    %478 = vmatpush1.bf16.msra.mxu0 0
    %479 = vmatprep.subr.bf16.mxu0 0
    %480 = vmatpush1.bf16.msra.mxu0 0
    %481 = vmatprep.subr.bf16.mxu0 0
    %482 = vmatpush1.bf16.msra.mxu0 0
    %483 = vmatprep.subr.bf16.mxu0 0
    %484 = vmatpush1.bf16.msra.mxu0 0
    %485 = vmatprep.subr.bf16.mxu0 0
    %486 = vmatpush1.bf16.msra.mxu0 0
    %487 = vmatprep.subr.bf16.mxu0 0
    %488 = vmatpush1.bf16.msra.mxu0 0
    %489 = vmatprep.subr.bf16.mxu0 0
    %490 = vmatpush1.bf16.msra.mxu0 0
    %491 = vmatprep.mubr.bf16.mxu0 0
    %492 = vmatmul.mubr.bf16.gmra.mrb[0].mxu0 %v377
    %v493 = vpop.f32.mrb[0].mxu0
    %v494 = vadd.f32 %v454, %v493
    %v495 = vpop.f32.mrb[0].mxu0
    %v496 = vpop.f32.mrb[0].mxu0
    %v497 = vpop.f32.mrb[0].mxu0
    %498 = vdwg.mxu0
    %v499 = vadd.f32 %v66, %v494
    %500 = vst.msk [vmem:[#allocation2] sm:$0xff] %vm375, %v499
    // Predicated region
    $region30: #{_lambda_.8} parent=1 // pred_check
      %p501 = pneg %p53
    $region31: #{_lambda_.8} parent=1 // pred_check_branch
      %503 = sbr.rel (%p501) target = $region33
    $region32: #{_lambda_.8} parent=1 // pred_region
      %v504 = vld [vmem:[#allocation2] sm:$0xff]
      %505 = vst.msk [vmem:[#allocation9] sm:$0xff] %vm375, %v504
    $region33: #{_lambda_.8} parent=1 // pred_fallthru
      _
    // Predicated region
    $region34: #{_lambda_.8} parent=1 // pred_check
      _
    $region35: #{_lambda_.8} parent=1 // pred_check_branch
      %507 = sbr.rel (0) target = $region37
    $region36: #{_lambda_.8} parent=1 // pred_region
      %s509 = ssub.s32 128, 128
      %510 = vsyncadd [#allocation5], %s509
      %s512 = sshll.u32 [#allocation9], 4
      %s513 = int_to_ptr.vmem [resolvable:$true] %s512
      %515 = dma.vmem_to_hbm [thread:$0]  %s513, 128, %s3, [#allocation5]
    $region37: #{_lambda_.8} parent=1 // pred_fallthru
      _
    // Predicated region
    $region38: #{_lambda_.8} parent=1 // pred_check
      _
    $region39: #{_lambda_.8} parent=1 // pred_check_branch
      %517 = sbr.rel (0) target = $region41
    $region40: #{_lambda_.8} parent=1 // pred_region
      %518 = dma.done [#allocation5], 128
    $region41: #{_lambda_.8} parent=1 // pred_fallthru
      _
    %519 = vsyncpa [#allocation4], 1
    %520 = vsyncpa [#allocation7], 1
    %521 = vsyncpa [#allocation5], 1

// kernel: _lambda_.9
$region0: #{_lambda_.9}
  #allocation0 [shape = 'u32[]', space=smem, size = 0x4, offset = 0x4, fixed_abs, tag = 'smem constant byte address 0x4 - core index']
  #allocation1 [shape = 'u32[144,128]{1,0:T(1,128)}', space=vmem, size = 0x12000, scoped, tag = 'internal scratch']
  #allocation2 [shape = 'f32[2,64]{1,0:T(2,128)}', space=vmem, size = 0x400, scoped, tag = 'scratch operand']
  %s0 = inlined_call_operand.hbm [shape: bf16[2,576], index: 0, kind: input, shape index: {}]
  %s1 = inlined_call_operand.hbm [shape: bf16[576,64], index: 1, kind: input, shape index: {}]
  %s2 = inlined_call_operand.hbm [shape: f32[1,64], index: 2, kind: input, shape index: {}]
  %s3 = inlined_call_operand.hbm [shape: f32[2,64], index: 3, kind: output, shape index: {}]
  %s4 = sld [smem:[#allocation0]]
  $region42: #{_lambda_.9} parent=0
    _
  %s6 = ssub.s32 1, %s4
  %s7 = scalar_select 0, %s6, %s4
  $region1: #{_lambda_.9} parent=0
    #allocation3 [shape = 'u8[2560]{0}', space=vmem, size = 0xc00, scoped, tag = 'input window, operand 0, single buffered']
    #allocation4 [shape = 's32[1]{0}', space=sflag, size = 0x4, scoped, tag = 'scoped memory for _lambda_.9']
    #allocation5 [shape = 's32[1]{0}', space=sflag, size = 0x4, scoped, tag = 'scoped memory for _lambda_.9']
    #allocation6 [shape = 'u8[147456]{0}', space=vmem, size = 0x24000, scoped, tag = 'input window, operand 1, single buffered']
    #allocation7 [shape = 's32[1]{0}', space=sflag, size = 0x4, scoped, tag = 'scoped memory for _lambda_.9']
    #allocation8 [shape = 'u8[512]{0}', space=vmem, size = 0x400, scoped, tag = 'input window, operand 2, single buffered']
    #allocation9 [shape = 'u8[1024]{0}', space=vmem, size = 0x400, scoped, tag = 'output window, operand 0, single buffered']
    %8 = vsyncpa [#allocation4], 0
    %9 = vsyncpa [#allocation7], 0
    %10 = vsyncpa [#allocation5], 0
    // Predicated region
    $region2: #{_lambda_.9} parent=1 // pred_check
      _
    $region3: #{_lambda_.9} parent=1 // pred_check_branch
      %12 = sbr.rel (0) target = $region5
    $region4: #{_lambda_.9} parent=1 // pred_region
      %s14 = ssub.s32 80, 80
      %15 = vsyncadd [#allocation4], %s14
      %s17 = sshll.u32 [#allocation3], 4
      %s18 = int_to_ptr.vmem [resolvable:$true] %s17
      %20 = dma.hbm_to_vmem [thread:$0]  %s0, 80, %s18, [#allocation4]
    $region5: #{_lambda_.9} parent=1 // pred_fallthru
      _
    // Predicated region
    $region6: #{_lambda_.9} parent=1 // pred_check
      _
    $region7: #{_lambda_.9} parent=1 // pred_check_branch
      %22 = sbr.rel (0) target = $region9
    $region8: #{_lambda_.9} parent=1 // pred_region
      %s24 = ssub.s32 4608, 4608
      %25 = vsyncadd [#allocation7], %s24
      %s26 = sshll.u32 [#allocation6], 4
      %s27 = int_to_ptr.vmem [resolvable:$true] %s26
      %32 = dma.hbm_to_vmem [thread:$0]  %s1, 4608, %s27, [#allocation7], 64, 64, 4
    $region9: #{_lambda_.9} parent=1 // pred_fallthru
      _
    // Predicated region
    $region10: #{_lambda_.9} parent=1 // pred_check
      _
    $region11: #{_lambda_.9} parent=1 // pred_check_branch
      %34 = sbr.rel (0) target = $region13
    $region12: #{_lambda_.9} parent=1 // pred_region
      %s36 = ssub.s32 16, 16
      %37 = vsyncadd [#allocation7], %s36
      %s39 = sshll.u32 [#allocation8], 4
      %s40 = int_to_ptr.vmem [resolvable:$true] %s39
      %42 = dma.hbm_to_vmem [thread:$0]  %s2, 16, %s40, [#allocation7]
    $region13: #{_lambda_.9} parent=1 // pred_fallthru
      _
    // Predicated region
    $region14: #{_lambda_.9} parent=1 // pred_check
      _
    $region15: #{_lambda_.9} parent=1 // pred_check_branch
      %44 = sbr.rel (0) target = $region17
    $region16: #{_lambda_.9} parent=1 // pred_region
      %45 = dma.done [#allocation4], 80
    $region17: #{_lambda_.9} parent=1 // pred_fallthru
      _
    // Predicated region
    $region18: #{_lambda_.9} parent=1 // pred_check
      _
    $region19: #{_lambda_.9} parent=1 // pred_check_branch
      %47 = sbr.rel (0) target = $region21
    $region20: #{_lambda_.9} parent=1 // pred_region
      %48 = dma.done [#allocation7], 4608
    $region21: #{_lambda_.9} parent=1 // pred_fallthru
      _
    // Predicated region
    $region22: #{_lambda_.9} parent=1 // pred_check
      _
    $region23: #{_lambda_.9} parent=1 // pred_check_branch
      %50 = sbr.rel (0) target = $region25
    $region24: #{_lambda_.9} parent=1 // pred_region
      %51 = dma.done [#allocation7], 16
    $region25: #{_lambda_.9} parent=1 // pred_fallthru
      _
    %p53 = scmp.eq.s32.totalorder 0, 0
    // Predicated region
    $region26: #{_lambda_.9} parent=1 // pred_check
      %p54 = pneg %p53
    $region27: #{_lambda_.9} parent=1 // pred_check_branch
      %56 = sbr.rel (%p54) target = $region29
    $region28: #{_lambda_.9} parent=1 // pred_region
      %v57 = vld [vmem:[#allocation8] sm:$0x1]
      %v59 = vlaneseq
      %v60 = vshrl.u32 %v59, 7
      %v61 = vsub.s32 0, %v60
      %v62 = vrot.slane %v57, %v61
      %vm64 = vcmask 517120
      %65 = vst.msk [vmem:[#allocation2] sm:$0x3] %vm64, %v62
    $region29: #{_lambda_.9} parent=1 // pred_fallthru
      _
    %v66 = vld [vmem:[#allocation2] sm:$0x3]
    %v67 = vld [vmem:[#allocation3] sm:$0x1f]
    %v68 = vld [vmem:[#allocation6] sm:$0xf]
    %v69 = vld [vmem:[#allocation6 + $0x4] sm:$0xf]
    %v70 = vld [vmem:[#allocation6 + $0x8] sm:$0xf]
    %v71 = vld [vmem:[#allocation6 + $0xc] sm:$0xf]
    %v72 = vld [vmem:[#allocation6 + $0x10] sm:$0xf]
    %v73 = vld [vmem:[#allocation6 + $0x14] sm:$0xf]
    %v74 = vld [vmem:[#allocation6 + $0x18] sm:$0xf]
    %v75 = vld [vmem:[#allocation6 + $0x1c] sm:$0xf]
    %v76 = vld [vmem:[#allocation6 + $0x20] sm:$0xf]
    %v77 = vld [vmem:[#allocation6 + $0x24] sm:$0xf]
    %v78 = vld [vmem:[#allocation6 + $0x28] sm:$0xf]
    %v79 = vld [vmem:[#allocation6 + $0x2c] sm:$0xf]
    %v80 = vld [vmem:[#allocation6 + $0x30] sm:$0xf]
    %v81 = vld [vmem:[#allocation6 + $0x34] sm:$0xf]
    %v82 = vld [vmem:[#allocation6 + $0x38] sm:$0xf]
    %v83 = vld [vmem:[#allocation6 + $0x3c] sm:$0xf]
    %v84 = vld [vmem:[#allocation6 + $0x40] sm:$0xf]
    %v85 = vld [vmem:[#allocation6 + $0x44] sm:$0xf]
    %v86 = vld [vmem:[#allocation6 + $0x48] sm:$0xf]
    %v87 = vld [vmem:[#allocation6 + $0x4c] sm:$0xf]
    %v88 = vld [vmem:[#allocation6 + $0x50] sm:$0xf]
    %v89 = vld [vmem:[#allocation6 + $0x54] sm:$0xf]
    %v90 = vld [vmem:[#allocation6 + $0x58] sm:$0xf]
    %v91 = vld [vmem:[#allocation6 + $0x5c] sm:$0xf]
    %v92 = vld [vmem:[#allocation6 + $0x60] sm:$0xf]
    %v93 = vld [vmem:[#allocation6 + $0x64] sm:$0xf]
    %v94 = vld [vmem:[#allocation6 + $0x68] sm:$0xf]
    %v95 = vld [vmem:[#allocation6 + $0x6c] sm:$0xf]
    %v96 = vld [vmem:[#allocation6 + $0x70] sm:$0xf]
    %v97 = vld [vmem:[#allocation6 + $0x74] sm:$0xf]
    %v98 = vld [vmem:[#allocation6 + $0x78] sm:$0xf]
    %v99 = vld [vmem:[#allocation6 + $0x7c] sm:$0xf]
    %v100 = vld [vmem:[#allocation6 + $0x80] sm:$0xf]
    %v101 = vld [vmem:[#allocation6 + $0x84] sm:$0xf]
    %v102 = vld [vmem:[#allocation6 + $0x88] sm:$0xf]
    %v103 = vld [vmem:[#allocation6 + $0x8c] sm:$0xf]
    %v104 = vld [vmem:[#allocation6 + $0x90] sm:$0xf]
    %v105 = vld [vmem:[#allocation6 + $0x94] sm:$0xf]
    %v106 = vld [vmem:[#allocation6 + $0x98] sm:$0xf]
    %v107 = vld [vmem:[#allocation6 + $0x9c] sm:$0xf]
    %v108 = vld [vmem:[#allocation6 + $0xa0] sm:$0xf]
    %v109 = vld [vmem:[#allocation6 + $0xa4] sm:$0xf]
    %v110 = vld [vmem:[#allocation6 + $0xa8] sm:$0xf]
    %v111 = vld [vmem:[#allocation6 + $0xac] sm:$0xf]
    %v112 = vld [vmem:[#allocation6 + $0xb0] sm:$0xf]
    %v113 = vld [vmem:[#allocation6 + $0xb4] sm:$0xf]
    %v114 = vld [vmem:[#allocation6 + $0xb8] sm:$0xf]
    %v115 = vld [vmem:[#allocation6 + $0xbc] sm:$0xf]
    %v116 = vld [vmem:[#allocation6 + $0xc0] sm:$0xf]
    %v117 = vld [vmem:[#allocation6 + $0xc4] sm:$0xf]
    %v118 = vld [vmem:[#allocation6 + $0xc8] sm:$0xf]
    %v119 = vld [vmem:[#allocation6 + $0xcc] sm:$0xf]
    %v120 = vld [vmem:[#allocation6 + $0xd0] sm:$0xf]
    %v121 = vld [vmem:[#allocation6 + $0xd4] sm:$0xf]
    %v122 = vld [vmem:[#allocation6 + $0xd8] sm:$0xf]
    %v123 = vld [vmem:[#allocation6 + $0xdc] sm:$0xf]
    %v124 = vld [vmem:[#allocation6 + $0xe0] sm:$0xf]
    %v125 = vld [vmem:[#allocation6 + $0xe4] sm:$0xf]
    %v126 = vld [vmem:[#allocation6 + $0xe8] sm:$0xf]
    %v127 = vld [vmem:[#allocation6 + $0xec] sm:$0xf]
    %v128 = vld [vmem:[#allocation6 + $0xf0] sm:$0xf]
    %v129 = vld [vmem:[#allocation6 + $0xf4] sm:$0xf]
    %v130 = vld [vmem:[#allocation6 + $0xf8] sm:$0xf]
    %v131 = vld [vmem:[#allocation6 + $0xfc] sm:$0xf]
    %v132 = vld [vmem:[#allocation6 + $0x100] sm:$0xf]
    %v133 = vld [vmem:[#allocation6 + $0x104] sm:$0xf]
    %v134 = vld [vmem:[#allocation6 + $0x108] sm:$0xf]
    %v135 = vld [vmem:[#allocation6 + $0x10c] sm:$0xf]
    %v136 = vld [vmem:[#allocation6 + $0x110] sm:$0xf]
    %v137 = vld [vmem:[#allocation6 + $0x114] sm:$0xf]
    %v138 = vld [vmem:[#allocation6 + $0x118] sm:$0xf]
    %v139 = vld [vmem:[#allocation6 + $0x11c] sm:$0xf]
    %v141 = vcombine.high %v67, %v67
    %v143 = vunpack.c.l.s4 1966171168
    %v144 = vunpack.c.0.s8 %v143
    %v145 = vlaneseq
    %v146 = vshrl.u32 %v145, 7
    %v147 = vsub.s32 %v144, %v146
    %v148 = vrot.slane %v67, %v147
    %v150 = vunpack.c.l.s4 1966171168
    %v151 = vunpack.c.0.s8 %v150
    %v152 = vlaneseq
    %v153 = vshrl.u32 %v152, 7
    %v154 = vsub.s32 %v151, %v153
    %v155 = vrot.slane %v141, %v154
    %v156 = vcombine.high %v148, %v148
    %v158 = vunpack.c.l.s4 1966171168
    %v159 = vunpack.c.0.s8 %v158
    %v160 = vlaneseq
    %v161 = vshrl.u32 %v160, 7
    %v162 = vsub.s32 %v159, %v161
    %v163 = vrot.slane %v148, %v162
    %v165 = vunpack.c.l.s4 1966171168
    %v166 = vunpack.c.0.s8 %v165
    %v167 = vlaneseq
    %v168 = vshrl.u32 %v167, 7
    %v169 = vsub.s32 %v166, %v168
    %v170 = vrot.slane %v155, %v169
    %v172 = vunpack.c.l.s4 1966171168
    %v173 = vunpack.c.0.s8 %v172
    %v174 = vlaneseq
    %v175 = vshrl.u32 %v174, 7
    %v176 = vsub.s32 %v173, %v175
    %v177 = vrot.slane %v156, %v176
    %v178 = vcombine.high %v163, %v163
    %v179 = vcombine.high %v177, %v177
    %v256 = vunpack.c.l.b16 %v68
    %v257 = vunpack.c.l.b16 %v69
    %v258 = vunpack.c.l.b16 %v70
    %v259 = vunpack.c.l.b16 %v71
    %v260 = vunpack.c.l.b16 %v72
    %v261 = vunpack.c.l.b16 %v73
    %v262 = vunpack.c.l.b16 %v74
    %v263 = vunpack.c.l.b16 %v75
    %v264 = vunpack.c.l.b16 %v76
    %v265 = vunpack.c.l.b16 %v77
    %v266 = vunpack.c.l.b16 %v78
    %v267 = vunpack.c.l.b16 %v79
    %v268 = vunpack.c.l.b16 %v80
    %v269 = vunpack.c.l.b16 %v81
    %v270 = vunpack.c.l.b16 %v82
    %v271 = vunpack.c.l.b16 %v83
    %v272 = vunpack.c.l.b16 %v84
    %v273 = vunpack.c.l.b16 %v85
    %v274 = vunpack.c.l.b16 %v86
    %v275 = vunpack.c.l.b16 %v87
    %v276 = vunpack.c.l.b16 %v88
    %v277 = vunpack.c.l.b16 %v89
    %v278 = vunpack.c.l.b16 %v90
    %v279 = vunpack.c.l.b16 %v91
    %v280 = vunpack.c.l.b16 %v92
    %v281 = vunpack.c.l.b16 %v93
    %v282 = vunpack.c.l.b16 %v94
    %v283 = vunpack.c.l.b16 %v95
    %v284 = vunpack.c.l.b16 %v96
    %v285 = vunpack.c.l.b16 %v97
    %v286 = vunpack.c.l.b16 %v98
    %v287 = vunpack.c.l.b16 %v99
    %v288 = vunpack.c.l.b16 %v100
    %v289 = vunpack.c.l.b16 %v101
    %v290 = vunpack.c.l.b16 %v102
    %v291 = vunpack.c.l.b16 %v103
    %v292 = vunpack.c.l.b16 %v104
    %v293 = vunpack.c.l.b16 %v105
    %v294 = vunpack.c.l.b16 %v106
    %v295 = vunpack.c.l.b16 %v107
    %v296 = vunpack.c.l.b16 %v108
    %v297 = vunpack.c.l.b16 %v109
    %v298 = vunpack.c.l.b16 %v110
    %v299 = vunpack.c.l.b16 %v111
    %v300 = vunpack.c.l.b16 %v112
    %v301 = vunpack.c.l.b16 %v113
    %v302 = vunpack.c.l.b16 %v114
    %v303 = vunpack.c.l.b16 %v115
    %v304 = vunpack.c.l.b16 %v116
    %v305 = vunpack.c.l.b16 %v117
    %v306 = vunpack.c.l.b16 %v118
    %v307 = vunpack.c.l.b16 %v119
    %v308 = vunpack.c.l.b16 %v120
    %v309 = vunpack.c.l.b16 %v121
    %v310 = vunpack.c.l.b16 %v122
    %v311 = vunpack.c.l.b16 %v123
    %v312 = vunpack.c.l.b16 %v124
    %v313 = vunpack.c.l.b16 %v125
    %v314 = vunpack.c.l.b16 %v126
    %v315 = vunpack.c.l.b16 %v127
    %v316 = vunpack.c.l.b16 %v128
    %v317 = vunpack.c.l.b16 %v129
    %v318 = vunpack.c.l.b16 %v130
    %v319 = vunpack.c.l.b16 %v131
    %v320 = vunpack.c.l.b16 %v132
    %v321 = vunpack.c.l.b16 %v133
    %v322 = vunpack.c.l.b16 %v134
    %v323 = vunpack.c.l.b16 %v135
    %v324 = vunpack.c.l.b16 %v136
    %v325 = vunpack.c.l.b16 %v137
    %v326 = vunpack.c.l.b16 %v138
    %v327 = vunpack.c.l.b16 %v139
    %v328 = vpack.c.b16 %v257, %v256
    %v329 = vpack.c.b16 %v259, %v258
    %v330 = vpack.c.b16 %v261, %v260
    %v331 = vpack.c.b16 %v263, %v262
    %v332 = vpack.c.b16 %v265, %v264
    %v333 = vpack.c.b16 %v267, %v266
    %v334 = vpack.c.b16 %v269, %v268
    %v335 = vpack.c.b16 %v271, %v270
    %v336 = vpack.c.b16 %v273, %v272
    %v337 = vpack.c.b16 %v275, %v274
    %v338 = vpack.c.b16 %v277, %v276
    %v339 = vpack.c.b16 %v279, %v278
    %v340 = vpack.c.b16 %v281, %v280
    %v341 = vpack.c.b16 %v283, %v282
    %v342 = vpack.c.b16 %v285, %v284
    %v343 = vpack.c.b16 %v287, %v286
    %v344 = vpack.c.b16 %v289, %v288
    %v345 = vpack.c.b16 %v291, %v290
    %v346 = vpack.c.b16 %v293, %v292
    %v347 = vpack.c.b16 %v295, %v294
    %v348 = vpack.c.b16 %v297, %v296
    %v349 = vpack.c.b16 %v299, %v298
    %v350 = vpack.c.b16 %v301, %v300
    %v351 = vpack.c.b16 %v303, %v302
    %v352 = vpack.c.b16 %v305, %v304
    %v353 = vpack.c.b16 %v307, %v306
    %v354 = vpack.c.b16 %v309, %v308
    %v355 = vpack.c.b16 %v311, %v310
    %v356 = vpack.c.b16 %v313, %v312
    %v357 = vpack.c.b16 %v315, %v314
    %v358 = vpack.c.b16 %v317, %v316
    %v359 = vpack.c.b16 %v319, %v318
    %v360 = vpack.c.b16 %v321, %v320
    %v361 = vpack.c.b16 %v323, %v322
    %v362 = vpack.c.b16 %v325, %v324
    %v363 = vpack.c.b16 %v327, %v326
    %vm400 = vcmask 523264
    %v402 = vsel %vm400, %v170, 0
    %404 = vmatprep.subr.bf16.mxu0 0
    %405 = vmatpush1.bf16.msra.mxu0 %v328
    %406 = vmatprep.subr.bf16.mxu0 0
    %407 = vmatpush1.bf16.msra.mxu0 %v329
    %408 = vmatprep.subr.bf16.mxu0 0
    %409 = vmatpush1.bf16.msra.mxu0 %v330
    %410 = vmatprep.subr.bf16.mxu0 0
    %411 = vmatpush1.bf16.msra.mxu0 %v331
    %412 = vmatprep.subr.bf16.mxu0 0
    %413 = vmatpush1.bf16.msra.mxu0 %v332
    %414 = vmatprep.subr.bf16.mxu0 0
    %415 = vmatpush1.bf16.msra.mxu0 %v333
    %416 = vmatprep.subr.bf16.mxu0 0
    %417 = vmatpush1.bf16.msra.mxu0 %v334
    %418 = vmatprep.subr.bf16.mxu0 0
    %419 = vmatpush1.bf16.msra.mxu0 %v335
    %420 = vmatprep.subr.bf16.mxu0 0
    %421 = vmatpush1.bf16.msra.mxu0 %v336
    %422 = vmatprep.subr.bf16.mxu0 0
    %423 = vmatpush1.bf16.msra.mxu0 %v337
    %424 = vmatprep.subr.bf16.mxu0 0
    %425 = vmatpush1.bf16.msra.mxu0 %v338
    %426 = vmatprep.subr.bf16.mxu0 0
    %427 = vmatpush1.bf16.msra.mxu0 %v339
    %428 = vmatprep.subr.bf16.mxu0 0
    %429 = vmatpush1.bf16.msra.mxu0 %v340
    %430 = vmatprep.subr.bf16.mxu0 0
    %431 = vmatpush1.bf16.msra.mxu0 %v341
    %432 = vmatprep.subr.bf16.mxu0 0
    %433 = vmatpush1.bf16.msra.mxu0 %v342
    %434 = vmatprep.subr.bf16.mxu0 0
    %435 = vmatpush1.bf16.msra.mxu0 %v343
    %436 = vmatprep.mubr.bf16.mxu0 %v177
    %437 = vmatmul.mubr.bf16.gmra.mrb[0].mxu0 %v163
    %v438 = vpop.f32.mrb[0].mxu0
    %v439 = vadd.f32 0.0, %v438
    %v440 = vpop.f32.mrb[0].mxu0
    %v441 = vpop.f32.mrb[0].mxu0
    %v442 = vpop.f32.mrb[0].mxu0
    %443 = vdwg.mxu0
    %444 = vmatprep.subr.bf16.mxu0 0
    %445 = vmatpush1.bf16.msra.mxu0 %v344
    %446 = vmatprep.subr.bf16.mxu0 0
    %447 = vmatpush1.bf16.msra.mxu0 %v345
    %448 = vmatprep.subr.bf16.mxu0 0
    %449 = vmatpush1.bf16.msra.mxu0 %v346
    %450 = vmatprep.subr.bf16.mxu0 0
    %451 = vmatpush1.bf16.msra.mxu0 %v347
    %452 = vmatprep.subr.bf16.mxu0 0
    %453 = vmatpush1.bf16.msra.mxu0 %v348
    %454 = vmatprep.subr.bf16.mxu0 0
    %455 = vmatpush1.bf16.msra.mxu0 %v349
    %456 = vmatprep.subr.bf16.mxu0 0
    %457 = vmatpush1.bf16.msra.mxu0 %v350
    %458 = vmatprep.subr.bf16.mxu0 0
    %459 = vmatpush1.bf16.msra.mxu0 %v351
    %460 = vmatprep.subr.bf16.mxu0 0
    %461 = vmatpush1.bf16.msra.mxu0 %v352
    %462 = vmatprep.subr.bf16.mxu0 0
    %463 = vmatpush1.bf16.msra.mxu0 %v353
    %464 = vmatprep.subr.bf16.mxu0 0
    %465 = vmatpush1.bf16.msra.mxu0 %v354
    %466 = vmatprep.subr.bf16.mxu0 0
    %467 = vmatpush1.bf16.msra.mxu0 %v355
    %468 = vmatprep.subr.bf16.mxu0 0
    %469 = vmatpush1.bf16.msra.mxu0 %v356
    %470 = vmatprep.subr.bf16.mxu0 0
    %471 = vmatpush1.bf16.msra.mxu0 %v357
    %472 = vmatprep.subr.bf16.mxu0 0
    %473 = vmatpush1.bf16.msra.mxu0 %v358
    %474 = vmatprep.subr.bf16.mxu0 0
    %475 = vmatpush1.bf16.msra.mxu0 %v359
    %476 = vmatprep.mubr.bf16.mxu0 %v179
    %477 = vmatmul.mubr.bf16.gmra.mrb[0].mxu0 %v178
    %v478 = vpop.f32.mrb[0].mxu0
    %v479 = vadd.f32 %v439, %v478
    %v480 = vpop.f32.mrb[0].mxu0
    %v481 = vpop.f32.mrb[0].mxu0
    %v482 = vpop.f32.mrb[0].mxu0
    %483 = vdwg.mxu0
    %484 = vmatprep.subr.bf16.mxu0 0
    %485 = vmatpush1.bf16.msra.mxu0 %v360
    %486 = vmatprep.subr.bf16.mxu0 0
    %487 = vmatpush1.bf16.msra.mxu0 %v361
    %488 = vmatprep.subr.bf16.mxu0 0
    %489 = vmatpush1.bf16.msra.mxu0 %v362
    %490 = vmatprep.subr.bf16.mxu0 0
    %491 = vmatpush1.bf16.msra.mxu0 %v363
    %492 = vmatprep.subr.bf16.mxu0 0
    %493 = vmatpush1.bf16.msra.mxu0 0
    %494 = vmatprep.subr.bf16.mxu0 0
    %495 = vmatpush1.bf16.msra.mxu0 0
    %496 = vmatprep.subr.bf16.mxu0 0
    %497 = vmatpush1.bf16.msra.mxu0 0
    %498 = vmatprep.subr.bf16.mxu0 0
    %499 = vmatpush1.bf16.msra.mxu0 0
    %500 = vmatprep.subr.bf16.mxu0 0
    %501 = vmatpush1.bf16.msra.mxu0 0
    %502 = vmatprep.subr.bf16.mxu0 0
    %503 = vmatpush1.bf16.msra.mxu0 0
    %504 = vmatprep.subr.bf16.mxu0 0
    %505 = vmatpush1.bf16.msra.mxu0 0
    %506 = vmatprep.subr.bf16.mxu0 0
    %507 = vmatpush1.bf16.msra.mxu0 0
    %508 = vmatprep.subr.bf16.mxu0 0
    %509 = vmatpush1.bf16.msra.mxu0 0
    %510 = vmatprep.subr.bf16.mxu0 0
    %511 = vmatpush1.bf16.msra.mxu0 0
    %512 = vmatprep.subr.bf16.mxu0 0
    %513 = vmatpush1.bf16.msra.mxu0 0
    %514 = vmatprep.subr.bf16.mxu0 0
    %515 = vmatpush1.bf16.msra.mxu0 0
    %516 = vmatprep.mubr.bf16.mxu0 0
    %517 = vmatmul.mubr.bf16.gmra.mrb[0].mxu0 %v402
    %v518 = vpop.f32.mrb[0].mxu0
    %v519 = vadd.f32 %v479, %v518
    %v520 = vpop.f32.mrb[0].mxu0
    %v521 = vpop.f32.mrb[0].mxu0
    %v522 = vpop.f32.mrb[0].mxu0
    %523 = vdwg.mxu0
    %v524 = vadd.f32 %v66, %v519
    %vm525 = vcmask 517120
    %526 = vst.msk [vmem:[#allocation2] sm:$0x3] %vm525, %v524
    // Predicated region
    $region30: #{_lambda_.9} parent=1 // pred_check
      %p527 = pneg %p53
    $region31: #{_lambda_.9} parent=1 // pred_check_branch
      %529 = sbr.rel (%p527) target = $region33
    $region32: #{_lambda_.9} parent=1 // pred_region
      %v530 = vld [vmem:[#allocation2] sm:$0x3]
      %531 = vst.msk [vmem:[#allocation9] sm:$0x3] %vm525, %v530
    $region33: #{_lambda_.9} parent=1 // pred_fallthru
      _
    // Predicated region
    $region34: #{_lambda_.9} parent=1 // pred_check
      _
    $region35: #{_lambda_.9} parent=1 // pred_check_branch
      %533 = sbr.rel (0) target = $region37
    $region36: #{_lambda_.9} parent=1 // pred_region
      %s535 = ssub.s32 32, 32
      %536 = vsyncadd [#allocation5], %s535
      %s538 = sshll.u32 [#allocation9], 4
      %s539 = int_to_ptr.vmem [resolvable:$true] %s538
      %541 = dma.vmem_to_hbm [thread:$0]  %s539, 32, %s3, [#allocation5]
    $region37: #{_lambda_.9} parent=1 // pred_fallthru
      _
    // Predicated region
    $region38: #{_lambda_.9} parent=1 // pred_check
      _
    $region39: #{_lambda_.9} parent=1 // pred_check_branch
      %543 = sbr.rel (0) target = $region41
    $region40: #{_lambda_.9} parent=1 // pred_region
      %544 = dma.done [#allocation5], 32
    $region41: #{_lambda_.9} parent=1 // pred_fallthru
      _
    %545 = vsyncpa [#allocation4], 1
    %546 = vsyncpa [#allocation7], 1
    %547 = vsyncpa [#allocation5], 1

// kernel: _lambda_.7
$region0: #{_lambda_.7}
  #allocation0 [shape = 'u32[]', space=smem, size = 0x4, offset = 0x4, fixed_abs, tag = 'smem constant byte address 0x4 - core index']
  #allocation1 [shape = 'u32[144,128]{1,0:T(1,128)}', space=vmem, size = 0x12000, scoped, tag = 'internal scratch']
  #allocation2 [shape = 'bf16[440,64]{1,0:T(8,128)(2,1)}', space=vmem, size = 0x1b800, scoped, tag = 'scratch operand']
  %s0 = inlined_call_operand.hbm [shape: f32[2,256,16], index: 0, kind: input, shape index: {}]
  %s1 = inlined_call_operand.hbm [shape: bf16[16,64], index: 1, kind: input, shape index: {}]
  %s2 = inlined_call_operand.hbm [shape: f32[1,64], index: 2, kind: input, shape index: {}]
  %s3 = inlined_call_operand.hbm [shape: bf16[3,192,64], index: 3, kind: input, shape index: {}]
  %s4 = inlined_call_operand.hbm [shape: f32[1,64], index: 4, kind: input, shape index: {}]
  %s5 = inlined_call_operand.hbm [shape: bf16[2,256,64], index: 5, kind: input, shape index: {}]
  %s6 = inlined_call_operand.hbm [shape: f32[2,16,16,64], index: 6, kind: output, shape index: {}]
  %s7 = sld [smem:[#allocation0]]
  $region81: #{_lambda_.7} parent=0
    _
  %s9 = ssub.s32 1, %s7
  %s10 = scalar_select 0, %s9, %s7
  $region1: #{_lambda_.7} parent=0
    #allocation3 [shape = 'u8[262144]{0}', space=vmem, size = 0x40000, scoped, tag = 'input window, operand 0']
    #allocation4 [shape = 's32[2]{0}', space=sflag, size = 0x8, scoped, tag = 'scoped memory for _lambda_.7']
    #allocation5 [shape = 's32[2]{0}', space=sflag, size = 0x8, scoped, tag = 'scoped memory for _lambda_.7']
    #allocation6 [shape = 'u8[4096]{0}', space=vmem, size = 0x1000, scoped, tag = 'input window, operand 1, single buffered']
    #allocation7 [shape = 's32[1]{0}', space=sflag, size = 0x4, scoped, tag = 'scoped memory for _lambda_.7']
    #allocation8 [shape = 'u8[512]{0}', space=vmem, size = 0x400, scoped, tag = 'input window, operand 2, single buffered']
    #allocation9 [shape = 'u8[147456]{0}', space=vmem, size = 0x24000, scoped, tag = 'input window, operand 3, single buffered']
    #allocation10 [shape = 's32[1]{0}', space=sflag, size = 0x4, scoped, tag = 'scoped memory for _lambda_.7']
    #allocation11 [shape = 'u8[512]{0}', space=vmem, size = 0x400, scoped, tag = 'input window, operand 4, single buffered']
    #allocation12 [shape = 'u8[131072]{0}', space=vmem, size = 0x20000, scoped, tag = 'input window, operand 5']
    #allocation13 [shape = 's32[2]{0}', space=sflag, size = 0x8, scoped, tag = 'scoped memory for _lambda_.7']
    #allocation14 [shape = 'u8[262144]{0}', space=vmem, size = 0x40000, scoped, tag = 'output window, operand 0']
    %11 = vsyncpa [#allocation4], 0
    %s12 = scalar_lea.sflag [#allocation4], 1
    %13 = vsyncpa %s12, 0
    %14 = vsyncpa [#allocation7], 0
    %15 = vsyncpa [#allocation10], 0
    %16 = vsyncpa [#allocation13], 0
    %s17 = scalar_lea.sflag [#allocation13], 1
    %18 = vsyncpa %s17, 0
    %19 = vsyncpa [#allocation5], 0
    %s20 = scalar_lea.sflag [#allocation5], 1
    %21 = vsyncpa %s20, 0
    loop: start=0, step=1, limit=4
    $region2: #{_lambda_.7} parent=1 // loop_pre_header
      _
    $region3: #{_lambda_.7} parent=1 // loop_header
      %s23 = sphi 0, %s27
      %p24 = scmp.ge.s32.totalorder %s23, 4
      %s33 = sphi 0, %s35
      %s36 = sphi 0, %s33
      %s37 = sphi 0, %s36
      %s53 = sphi 0, %s37
      %s57 = sphi 0, %s57
      %s59 = sphi 0, %s57
      %s60 = sphi 0, %s59
      %s74 = sphi 0, %s60
      %s78 = sphi 0, %s78
      %s80 = sphi 0, %s78
      %s81 = sphi 0, %s80
      %s95 = sphi 0, %s81
      %s99 = sphi 0, %s99
      %s101 = sphi 0, %s99
      %s102 = sphi 0, %s101
      %s116 = sphi 0, %s102
      %s120 = sphi 0, %s120
      %s122 = sphi 0, %s120
      %s123 = sphi 0, %s122
      %s137 = sphi 0, %s123
      %s143 = sphi 0, %s145
      %s146 = sphi 0, %s143
      %s147 = sphi 0, %s146
      %s163 = sphi 0, %s147
      %s169 = sphi 0, %s171
      %s172 = sphi 0, %s169
      %s173 = sphi 0, %s172
      %s189 = sphi 0, %s173
    $region4: #{_lambda_.7} parent=1 // loop_header_branch
      %26 = sbr.rel (%p24) target = $region8
    $region5: #{_lambda_.7} parent=1 // loop_body
      %s28 = ssub.s32 %s23, 1
      %s29 = ssub.s32 %s23, 2
      %s30 = sadd.s32 %s23, 1
      %s31 = ssub.s32 %s23, %s30
      %p32 = scmp.eq.s32.totalorder %s31, 0
      %s34 = sadd.s32 %s33, 1
      %s35 = scalar_select %p32, %s33, %s34
      %p38 = pneg %p32
      %p39 = scmp.eq.s32.totalorder %s23, 1
      %p40 = por %p38, %p39
      %p41 = scmp.ne.s32.totalorder %s33, %s36
      %p42 = scmp.eq.s32.totalorder %s23, 0
      %p43 = por %p41, %p42
      %p44 = scmp.ne.s32.totalorder %s33, %s36
      %p45 = scmp.eq.s32.totalorder %s28, 1
      %p46 = por %p44, %p45
      %p47 = scmp.ne.s32.totalorder %s36, %s37
      %p48 = scmp.eq.s32.totalorder %s28, 0
      %p49 = por %p47, %p48
      %p50 = scmp.ne.s32.totalorder %s36, %s37
      %p51 = scmp.eq.s32.totalorder %s29, 1
      %p52 = por %p50, %p51
      %p54 = scmp.ne.s32.totalorder %s37, %s53
      %p55 = scmp.eq.s32.totalorder %s29, 0
      %p56 = por %p54, %p55
      %s58 = sadd.s32 %s57, 1
      %p61 = scmp.eq.s32.totalorder %s23, 1
      %p62 = scmp.ne.s32.totalorder %s57, %s59
      %p63 = scmp.eq.s32.totalorder %s23, 0
      %p64 = por %p62, %p63
      %p65 = scmp.ne.s32.totalorder %s57, %s59
      %p66 = scmp.eq.s32.totalorder %s28, 1
      %p67 = por %p65, %p66
      %p68 = scmp.ne.s32.totalorder %s59, %s60
      %p69 = scmp.eq.s32.totalorder %s28, 0
      %p70 = por %p68, %p69
      %p71 = scmp.ne.s32.totalorder %s59, %s60
      %p72 = scmp.eq.s32.totalorder %s29, 1
      %p73 = por %p71, %p72
      %p75 = scmp.ne.s32.totalorder %s60, %s74
      %p76 = scmp.eq.s32.totalorder %s29, 0
      %p77 = por %p75, %p76
      %s79 = sadd.s32 %s78, 1
      %p82 = scmp.eq.s32.totalorder %s23, 1
      %p83 = scmp.ne.s32.totalorder %s78, %s80
      %p84 = scmp.eq.s32.totalorder %s23, 0
      %p85 = por %p83, %p84
      %p86 = scmp.ne.s32.totalorder %s78, %s80
      %p87 = scmp.eq.s32.totalorder %s28, 1
      %p88 = por %p86, %p87
      %p89 = scmp.ne.s32.totalorder %s80, %s81
      %p90 = scmp.eq.s32.totalorder %s28, 0
      %p91 = por %p89, %p90
      %p92 = scmp.ne.s32.totalorder %s80, %s81
      %p93 = scmp.eq.s32.totalorder %s29, 1
      %p94 = por %p92, %p93
      %p96 = scmp.ne.s32.totalorder %s81, %s95
      %p97 = scmp.eq.s32.totalorder %s29, 0
      %p98 = por %p96, %p97
      %s100 = sadd.s32 %s99, 1
      %p103 = scmp.eq.s32.totalorder %s23, 1
      %p104 = scmp.ne.s32.totalorder %s99, %s101
      %p105 = scmp.eq.s32.totalorder %s23, 0
      %p106 = por %p104, %p105
      %p107 = scmp.ne.s32.totalorder %s99, %s101
      %p108 = scmp.eq.s32.totalorder %s28, 1
      %p109 = por %p107, %p108
      %p110 = scmp.ne.s32.totalorder %s101, %s102
      %p111 = scmp.eq.s32.totalorder %s28, 0
      %p112 = por %p110, %p111
      %p113 = scmp.ne.s32.totalorder %s101, %s102
      %p114 = scmp.eq.s32.totalorder %s29, 1
      %p115 = por %p113, %p114
      %p117 = scmp.ne.s32.totalorder %s102, %s116
      %p118 = scmp.eq.s32.totalorder %s29, 0
      %p119 = por %p117, %p118
      %s121 = sadd.s32 %s120, 1
      %p124 = scmp.eq.s32.totalorder %s23, 1
      %p125 = scmp.ne.s32.totalorder %s120, %s122
      %p126 = scmp.eq.s32.totalorder %s23, 0
      %p127 = por %p125, %p126
      %p128 = scmp.ne.s32.totalorder %s120, %s122
      %p129 = scmp.eq.s32.totalorder %s28, 1
      %p130 = por %p128, %p129
      %p131 = scmp.ne.s32.totalorder %s122, %s123
      %p132 = scmp.eq.s32.totalorder %s28, 0
      %p133 = por %p131, %p132
      %p134 = scmp.ne.s32.totalorder %s122, %s123
      %p135 = scmp.eq.s32.totalorder %s29, 1
      %p136 = por %p134, %p135
      %p138 = scmp.ne.s32.totalorder %s123, %s137
      %p139 = scmp.eq.s32.totalorder %s29, 0
      %p140 = por %p138, %p139
      %s141 = ssub.s32 %s23, %s30
      %p142 = scmp.eq.s32.totalorder %s141, 0
      %s144 = sadd.s32 %s143, 1
      %s145 = scalar_select %p142, %s143, %s144
      %p148 = pneg %p142
      %p149 = scmp.eq.s32.totalorder %s23, 1
      %p150 = por %p148, %p149
      %p151 = scmp.ne.s32.totalorder %s143, %s146
      %p152 = scmp.eq.s32.totalorder %s23, 0
      %p153 = por %p151, %p152
      %p154 = scmp.ne.s32.totalorder %s143, %s146
      %p155 = scmp.eq.s32.totalorder %s28, 1
      %p156 = por %p154, %p155
      %p157 = scmp.ne.s32.totalorder %s146, %s147
      %p158 = scmp.eq.s32.totalorder %s28, 0
      %p159 = por %p157, %p158
      %p160 = scmp.ne.s32.totalorder %s146, %s147
      %p161 = scmp.eq.s32.totalorder %s29, 1
      %p162 = por %p160, %p161
      %p164 = scmp.ne.s32.totalorder %s147, %s163
      %p165 = scmp.eq.s32.totalorder %s29, 0
      %p166 = por %p164, %p165
      %s167 = ssub.s32 %s23, %s30
      %p168 = scmp.eq.s32.totalorder %s167, 0
      %s170 = sadd.s32 %s169, 1
      %s171 = scalar_select %p168, %s169, %s170
      %p174 = pneg %p168
      %p175 = scmp.eq.s32.totalorder %s23, 1
      %p176 = por %p174, %p175
      %p177 = scmp.ne.s32.totalorder %s169, %s172
      %p178 = scmp.eq.s32.totalorder %s23, 0
      %p179 = por %p177, %p178
      %p180 = scmp.ne.s32.totalorder %s169, %s172
      %p181 = scmp.eq.s32.totalorder %s28, 1
      %p182 = por %p180, %p181
      %p183 = scmp.ne.s32.totalorder %s172, %s173
      %p184 = scmp.eq.s32.totalorder %s28, 0
      %p185 = por %p183, %p184
      %p186 = scmp.ne.s32.totalorder %s172, %s173
      %p187 = scmp.eq.s32.totalorder %s29, 1
      %p188 = por %p186, %p187
      %p190 = scmp.ne.s32.totalorder %s173, %s189
      %p191 = scmp.eq.s32.totalorder %s29, 0
      %p192 = por %p190, %p191
      %p193 = scmp.le.s32.totalorder 1, %s23
      %p194 = scmp.lt.s32.totalorder %s23, 3
      %p195 = pnand %p193, %p194
      %p196 = pneg %p195
      // Predicated region
      $region9: #{_lambda_.7} parent=5 // pred_check
        _
      $region10: #{_lambda_.7} parent=5 // pred_check_branch
        %198 = sbr.rel (%p195) target = $region12
      $region11: #{_lambda_.7} parent=5 // pred_region
        %s199 = ssub.s32 %s23, 1
        // Predicated region
        $region13: #{_lambda_.7} parent=11 // pred_check
          %p200 = pneg %p70
        $region14: #{_lambda_.7} parent=11 // pred_check_branch
          %202 = sbr.rel (%p200) target = $region16
        $region15: #{_lambda_.7} parent=11 // pred_region
          %s204 = ssub.s32 128, 128
          %205 = vsyncadd [#allocation7], %s204
          %s206 = sshll.u32 [#allocation6], 4
          %s207 = int_to_ptr.vmem [resolvable:$true] %s206
          %212 = dma.hbm_to_vmem [thread:$0]  %s1, 128, %s207, [#allocation7], 64, 64, 4
        $region16: #{_lambda_.7} parent=11 // pred_fallthru
          _
        // Predicated region
        $region17: #{_lambda_.7} parent=11 // pred_check
          %p213 = pneg %p91
        $region18: #{_lambda_.7} parent=11 // pred_check_branch
          %215 = sbr.rel (%p213) target = $region20
        $region19: #{_lambda_.7} parent=11 // pred_region
          %s217 = ssub.s32 16, 16
          %218 = vsyncadd [#allocation7], %s217
          %s220 = sshll.u32 [#allocation8], 4
          %s221 = int_to_ptr.vmem [resolvable:$true] %s220
          %223 = dma.hbm_to_vmem [thread:$0]  %s2, 16, %s221, [#allocation7]
        $region20: #{_lambda_.7} parent=11 // pred_fallthru
          _
        // Predicated region
        $region21: #{_lambda_.7} parent=11 // pred_check
          %p224 = pneg %p112
        $region22: #{_lambda_.7} parent=11 // pred_check_branch
          %226 = sbr.rel (%p224) target = $region24
        $region23: #{_lambda_.7} parent=11 // pred_region
          %s228 = ssub.s32 4608, 4608
          %229 = vsyncadd [#allocation10], %s228
          %s230 = sshll.u32 [#allocation9], 4
          %s231 = int_to_ptr.vmem [resolvable:$true] %s230
          %236 = dma.hbm_to_vmem [thread:$0]  %s3, 4608, %s231, [#allocation10], 64, 64, 4
        $region24: #{_lambda_.7} parent=11 // pred_fallthru
          _
        // Predicated region
        $region25: #{_lambda_.7} parent=11 // pred_check
          %p237 = pneg %p133
        $region26: #{_lambda_.7} parent=11 // pred_check_branch
          %239 = sbr.rel (%p237) target = $region28
        $region27: #{_lambda_.7} parent=11 // pred_region
          %s241 = ssub.s32 16, 16
          %242 = vsyncadd [#allocation10], %s241
          %s244 = sshll.u32 [#allocation11], 4
          %s245 = int_to_ptr.vmem [resolvable:$true] %s244
          %247 = dma.hbm_to_vmem [thread:$0]  %s4, 16, %s245, [#allocation10]
        $region28: #{_lambda_.7} parent=11 // pred_fallthru
          _
      $region12: #{_lambda_.7} parent=5 // pred_fallthru
        _
      %p248 = scmp.lt.s32.totalorder %s23, 2
      // Predicated region
      $region29: #{_lambda_.7} parent=5 // pred_check
        %p249 = pneg %p248
      $region30: #{_lambda_.7} parent=5 // pred_check_branch
        %251 = sbr.rel (%p249) target = $region32
      $region31: #{_lambda_.7} parent=5 // pred_region
        // Predicated region
        $region33: #{_lambda_.7} parent=31 // pred_check
          %p252 = pneg %p43
        $region34: #{_lambda_.7} parent=31 // pred_check_branch
          %254 = sbr.rel (%p252) target = $region36
        $region35: #{_lambda_.7} parent=31 // pred_region
          %s255 = sand.u32 %s33, 1
          %s256 = scalar_lea.sflag [#allocation4], %s255
          %s257 = sand.u32 %s33, 1
          %s258 = smul.addr %s257, 256
          %s259 = scalar_lea.vmem [#allocation3], %s258
          %s261 = ssub.s32 4096, 4096
          %262 = vsyncadd %s256, %s261
          %s263 = smul.addr %s23, 32
          %s264 = smul.addr %s263, 128
          %s265 = scalar_lea.hbm %s0, %s264
          %s266 = sshll.u32 %s259, 4
          %s267 = int_to_ptr.vmem [resolvable:$true] %s266
          %272 = dma.hbm_to_vmem [thread:$0]  %s265, 4096, %s267, %s256, 128, 128, 8
        $region36: #{_lambda_.7} parent=31 // pred_fallthru
          _
        // Predicated region
        $region37: #{_lambda_.7} parent=31 // pred_check
          %p273 = pneg %p153
        $region38: #{_lambda_.7} parent=31 // pred_check_branch
          %275 = sbr.rel (%p273) target = $region40
        $region39: #{_lambda_.7} parent=31 // pred_region
          %s276 = sand.u32 %s143, 1
          %s277 = scalar_lea.sflag [#allocation13], %s276
          %s278 = sand.u32 %s143, 1
          %s279 = smul.addr %s278, 128
          %s280 = scalar_lea.vmem [#allocation12], %s279
          %s282 = ssub.s32 2048, 2048
          %283 = vsyncadd %s277, %s282
          %s284 = smul.addr %s23, 32
          %s285 = smul.addr %s284, 64
          %s286 = scalar_lea.hbm %s5, %s285
          %s287 = sshll.u32 %s280, 4
          %s288 = int_to_ptr.vmem [resolvable:$true] %s287
          %293 = dma.hbm_to_vmem [thread:$0]  %s286, 2048, %s288, %s277, 64, 64, 4
        $region40: #{_lambda_.7} parent=31 // pred_fallthru
          _
      $region32: #{_lambda_.7} parent=5 // pred_fallthru
        _
      %p294 = scmp.le.s32.totalorder 1, %s23
      %p295 = scmp.lt.s32.totalorder %s23, 3
      %p296 = pnand %p294, %p295
      %p297 = pneg %p296
      // Predicated region
      $region41: #{_lambda_.7} parent=5 // pred_check
        _
      $region42: #{_lambda_.7} parent=5 // pred_check_branch
        %299 = sbr.rel (%p296) target = $region44
      $region43: #{_lambda_.7} parent=5 // pred_region
        %s300 = ssub.s32 %s23, 1
        %s301 = sand.u32 %s36, 1
        %s302 = scalar_lea.sflag [#allocation4], %s301
        %s303 = sand.u32 %s36, 1
        %s304 = smul.addr %s303, 256
        %s305 = scalar_lea.vmem [#allocation3], %s304
        // Predicated region
        $region45: #{_lambda_.7} parent=43 // pred_check
          %p306 = pneg %p49
        $region46: #{_lambda_.7} parent=43 // pred_check_branch
          %308 = sbr.rel (%p306) target = $region48
        $region47: #{_lambda_.7} parent=43 // pred_region
          %309 = dma.done %s302, 4096
        $region48: #{_lambda_.7} parent=43 // pred_fallthru
          _
        // Predicated region
        $region49: #{_lambda_.7} parent=43 // pred_check
          %p310 = pneg %p70
        $region50: #{_lambda_.7} parent=43 // pred_check_branch
          %312 = sbr.rel (%p310) target = $region52
        $region51: #{_lambda_.7} parent=43 // pred_region
          %313 = dma.done [#allocation7], 128
        $region52: #{_lambda_.7} parent=43 // pred_fallthru
          _
        // Predicated region
        $region53: #{_lambda_.7} parent=43 // pred_check
          %p314 = pneg %p91
        $region54: #{_lambda_.7} parent=43 // pred_check_branch
          %316 = sbr.rel (%p314) target = $region56
        $region55: #{_lambda_.7} parent=43 // pred_region
          %317 = dma.done [#allocation7], 16
        $region56: #{_lambda_.7} parent=43 // pred_fallthru
          _
        // Predicated region
        $region57: #{_lambda_.7} parent=43 // pred_check
          %p318 = pneg %p112
        $region58: #{_lambda_.7} parent=43 // pred_check_branch
          %320 = sbr.rel (%p318) target = $region60
        $region59: #{_lambda_.7} parent=43 // pred_region
          %321 = dma.done [#allocation10], 4608
        $region60: #{_lambda_.7} parent=43 // pred_fallthru
          _
        // Predicated region
        $region61: #{_lambda_.7} parent=43 // pred_check
          %p322 = pneg %p133
        $region62: #{_lambda_.7} parent=43 // pred_check_branch
          %324 = sbr.rel (%p322) target = $region64
        $region63: #{_lambda_.7} parent=43 // pred_region
          %325 = dma.done [#allocation10], 16
        $region64: #{_lambda_.7} parent=43 // pred_fallthru
          _
        %s326 = sand.u32 %s146, 1
        %s327 = scalar_lea.sflag [#allocation13], %s326
        %s328 = sand.u32 %s146, 1
        %s329 = smul.addr %s328, 128
        %s330 = scalar_lea.vmem [#allocation12], %s329
        // Predicated region
        $region65: #{_lambda_.7} parent=43 // pred_check
          %p331 = pneg %p159
        $region66: #{_lambda_.7} parent=43 // pred_check_branch
          %333 = sbr.rel (%p331) target = $region68
        $region67: #{_lambda_.7} parent=43 // pred_region
          %334 = dma.done %s327, 2048
        $region68: #{_lambda_.7} parent=43 // pred_fallthru
          _
        %s335 = sand.u32 %s36, 1
        %s336 = scalar_lea.sflag [#allocation4], %s335
        %s337 = sand.u32 %s36, 1
        %s338 = smul.addr %s337, 256
        %s339 = scalar_lea.vmem [#allocation3], %s338
        %p340 = pneg %p49
        %p341 = pneg %p46
        %p342 = pneg %p70
        %p343 = pneg %p67
        %p344 = pneg %p91
        %p345 = pneg %p88
        %p346 = pneg %p112
        %p347 = pneg %p109
        %p348 = pneg %p133
        %p349 = pneg %p130
        %s350 = sand.u32 %s146, 1
        %s351 = scalar_lea.sflag [#allocation13], %s350
        %s352 = sand.u32 %s146, 1
        %s353 = smul.addr %s352, 128
        %s354 = scalar_lea.vmem [#allocation12], %s353
        %p355 = pneg %p159
        %p356 = pneg %p156
        %p357 = pneg %p185
        %p358 = pneg %p182
        %s359 = sand.u32 %s172, 1
        %s360 = scalar_lea.sflag [#allocation5], %s359
        %s361 = sand.u32 %s172, 1
        %s362 = smul.addr %s361, 256
        %s363 = scalar_lea.vmem [#allocation14], %s362
        %v365 = vld [vmem:[%s305] sm:$0xff]
        %v366 = vld [vmem:[%s305 + $0x8] sm:$0xff]
        %v367 = vld [vmem:[%s305 + $0x10] sm:$0xff]
        %v368 = vld [vmem:[%s305 + $0x18] sm:$0xff]
        %v369 = vld [vmem:[%s305 + $0x20] sm:$0xff]
        %v370 = vld [vmem:[%s305 + $0x28] sm:$0xff]
        %v371 = vld [vmem:[%s305 + $0x30] sm:$0xff]
        %v372 = vld [vmem:[%s305 + $0x38] sm:$0xff]
        %v373 = vld [vmem:[%s305 + $0x40] sm:$0xff]
        %v374 = vld [vmem:[%s305 + $0x48] sm:$0xff]
        %v375 = vld [vmem:[%s305 + $0x50] sm:$0xff]
        %v376 = vld [vmem:[%s305 + $0x58] sm:$0xff]
        %v377 = vld [vmem:[%s305 + $0x60] sm:$0xff]
        %v378 = vld [vmem:[%s305 + $0x68] sm:$0xff]
        %v379 = vld [vmem:[%s305 + $0x70] sm:$0xff]
        %v380 = vld [vmem:[%s305 + $0x78] sm:$0xff]
        %v381 = vld [vmem:[%s305 + $0x80] sm:$0xff]
        %v382 = vld [vmem:[%s305 + $0x88] sm:$0xff]
        %v383 = vld [vmem:[%s305 + $0x90] sm:$0xff]
        %v384 = vld [vmem:[%s305 + $0x98] sm:$0xff]
        %v385 = vld [vmem:[%s305 + $0xa0] sm:$0xff]
        %v386 = vld [vmem:[%s305 + $0xa8] sm:$0xff]
        %v387 = vld [vmem:[%s305 + $0xb0] sm:$0xff]
        %v388 = vld [vmem:[%s305 + $0xb8] sm:$0xff]
        %v389 = vld [vmem:[%s305 + $0xc0] sm:$0xff]
        %v390 = vld [vmem:[%s305 + $0xc8] sm:$0xff]
        %v391 = vld [vmem:[%s305 + $0xd0] sm:$0xff]
        %v392 = vld [vmem:[%s305 + $0xd8] sm:$0xff]
        %v393 = vld [vmem:[%s305 + $0xe0] sm:$0xff]
        %v394 = vld [vmem:[%s305 + $0xe8] sm:$0xff]
        %v395 = vld [vmem:[%s305 + $0xf0] sm:$0xff]
        %v396 = vld [vmem:[%s305 + $0xf8] sm:$0xff]
        %v397 = vpack.c.bf16 %v366, %v365
        %v398 = vpack.c.bf16 %v368, %v367
        %v399 = vpack.c.bf16 %v370, %v369
        %v400 = vpack.c.bf16 %v372, %v371
        %v401 = vpack.c.bf16 %v374, %v373
        %v402 = vpack.c.bf16 %v376, %v375
        %v403 = vpack.c.bf16 %v378, %v377
        %v404 = vpack.c.bf16 %v380, %v379
        %v405 = vpack.c.bf16 %v382, %v381
        %v406 = vpack.c.bf16 %v384, %v383
        %v407 = vpack.c.bf16 %v386, %v385
        %v408 = vpack.c.bf16 %v388, %v387
        %v409 = vpack.c.bf16 %v390, %v389
        %v410 = vpack.c.bf16 %v392, %v391
        %v411 = vpack.c.bf16 %v394, %v393
        %v412 = vpack.c.bf16 %v396, %v395
        %v413 = vld [vmem:[#allocation6] sm:$0xf]
        %v414 = vld [vmem:[#allocation6 + $0x4] sm:$0xf]
        %v415 = vld [vmem:[#allocation8] sm:$0x1]
        %v417 = vlaneseq
        %v418 = vshrl.u32 %v417, 7
        %v419 = vsub.s32 0, %v418
        %v420 = vrot.slane %v415, %v419
        %v424 = vunpack.c.l.b16 %v413
        %v425 = vunpack.c.l.b16 %v414
        %v426 = vpack.c.b16 %v425, %v424
        %vm428 = vcmask 130048
        %v430 = vsel %vm428, %v397, 0
        %v433 = vsel %vm428, %v398, 0
        %v436 = vsel %vm428, %v399, 0
        %v439 = vsel %vm428, %v400, 0
        %v442 = vsel %vm428, %v401, 0
        %v445 = vsel %vm428, %v402, 0
        %v448 = vsel %vm428, %v403, 0
        %v451 = vsel %vm428, %v404, 0
        %v454 = vsel %vm428, %v405, 0
        %v457 = vsel %vm428, %v406, 0
        %v460 = vsel %vm428, %v407, 0
        %v463 = vsel %vm428, %v408, 0
        %v466 = vsel %vm428, %v409, 0
        %v469 = vsel %vm428, %v410, 0
        %v472 = vsel %vm428, %v411, 0
        %v475 = vsel %vm428, %v412, 0
        %477 = vmatprep.subr.bf16.mxu0 0
        %478 = vmatpush1.bf16.msra.mxu0 %v426
        %479 = vmatprep.subr.bf16.mxu0 0
        %480 = vmatpush1.bf16.msra.mxu0 0
        %481 = vmatprep.subr.bf16.mxu0 0
        %482 = vmatpush1.bf16.msra.mxu0 0
        %483 = vmatprep.subr.bf16.mxu0 0
        %484 = vmatpush1.bf16.msra.mxu0 0
        %485 = vmatprep.subr.bf16.mxu0 0
        %486 = vmatpush1.bf16.msra.mxu0 0
        %487 = vmatprep.subr.bf16.mxu0 0
        %488 = vmatpush1.bf16.msra.mxu0 0
        %489 = vmatprep.subr.bf16.mxu0 0
        %490 = vmatpush1.bf16.msra.mxu0 0
        %491 = vmatprep.subr.bf16.mxu0 0
        %492 = vmatpush1.bf16.msra.mxu0 0
        %493 = vmatprep.subr.bf16.mxu0 0
        %494 = vmatpush1.bf16.msra.mxu0 0
        %495 = vmatprep.subr.bf16.mxu0 0
        %496 = vmatpush1.bf16.msra.mxu0 0
        %497 = vmatprep.subr.bf16.mxu0 0
        %498 = vmatpush1.bf16.msra.mxu0 0
        %499 = vmatprep.subr.bf16.mxu0 0
        %500 = vmatpush1.bf16.msra.mxu0 0
        %501 = vmatprep.subr.bf16.mxu0 0
        %502 = vmatpush1.bf16.msra.mxu0 0
        %503 = vmatprep.subr.bf16.mxu0 0
        %504 = vmatpush1.bf16.msra.mxu0 0
        %505 = vmatprep.subr.bf16.mxu0 0
        %506 = vmatpush1.bf16.msra.mxu0 0
        %507 = vmatprep.subr.bf16.mxu0 0
        %508 = vmatpush1.bf16.msra.mxu0 0
        %509 = vmatprep.mubr.bf16.mxu0 0
        %510 = vmatmul.mubr.bf16.gmra.mrb[0].mxu0 %v430
        %v511 = vpop.f32.mrb[0].mxu0
        %v512 = vadd.f32 %v420, %v511
        %v513 = vpop.f32.mrb[0].mxu0
        %v514 = vpop.f32.mrb[0].mxu0
        %v515 = vadd.f32 %v420, %v514
        %v516 = vpop.f32.mrb[0].mxu0
        %517 = vmatprep.mubr.bf16.mxu0 0
        %518 = vmatmul.mubr.bf16.gmra.mrb[0].mxu0 %v433
        %v519 = vpop.f32.mrb[0].mxu0
        %v520 = vadd.f32 %v420, %v519
        %v521 = vpop.f32.mrb[0].mxu0
        %v522 = vpop.f32.mrb[0].mxu0
        %v523 = vadd.f32 %v420, %v522
        %v524 = vpop.f32.mrb[0].mxu0
        %525 = vmatprep.mubr.bf16.mxu0 0
        %526 = vmatmul.mubr.bf16.gmra.mrb[0].mxu0 %v436
        %v527 = vpop.f32.mrb[0].mxu0
        %v528 = vadd.f32 %v420, %v527
        %v529 = vpop.f32.mrb[0].mxu0
        %v530 = vpop.f32.mrb[0].mxu0
        %v531 = vadd.f32 %v420, %v530
        %v532 = vpop.f32.mrb[0].mxu0
        %533 = vmatprep.mubr.bf16.mxu0 0
        %534 = vmatmul.mubr.bf16.gmra.mrb[0].mxu0 %v439
        %v535 = vpop.f32.mrb[0].mxu0
        %v536 = vadd.f32 %v420, %v535
        %v537 = vpop.f32.mrb[0].mxu0
        %v538 = vpop.f32.mrb[0].mxu0
        %v539 = vadd.f32 %v420, %v538
        %v540 = vpop.f32.mrb[0].mxu0
        %541 = vmatprep.mubr.bf16.mxu0 0
        %542 = vmatmul.mubr.bf16.gmra.mrb[0].mxu0 %v442
        %v543 = vpop.f32.mrb[0].mxu0
        %v544 = vadd.f32 %v420, %v543
        %v545 = vpop.f32.mrb[0].mxu0
        %v546 = vpop.f32.mrb[0].mxu0
        %v547 = vadd.f32 %v420, %v546
        %v548 = vpop.f32.mrb[0].mxu0
        %549 = vmatprep.mubr.bf16.mxu0 0
        %550 = vmatmul.mubr.bf16.gmra.mrb[0].mxu0 %v445
        %v551 = vpop.f32.mrb[0].mxu0
        %v552 = vadd.f32 %v420, %v551
        %v553 = vpop.f32.mrb[0].mxu0
        %v554 = vpop.f32.mrb[0].mxu0
        %v555 = vadd.f32 %v420, %v554
        %v556 = vpop.f32.mrb[0].mxu0
        %557 = vmatprep.mubr.bf16.mxu0 0
        %558 = vmatmul.mubr.bf16.gmra.mrb[0].mxu0 %v448
        %v559 = vpop.f32.mrb[0].mxu0
        %v560 = vadd.f32 %v420, %v559
        %v561 = vpop.f32.mrb[0].mxu0
        %v562 = vpop.f32.mrb[0].mxu0
        %v563 = vadd.f32 %v420, %v562
        %v564 = vpop.f32.mrb[0].mxu0
        %565 = vmatprep.mubr.bf16.mxu0 0
        %566 = vmatmul.mubr.bf16.gmra.mrb[0].mxu0 %v451
        %v567 = vpop.f32.mrb[0].mxu0
        %v568 = vadd.f32 %v420, %v567
        %v569 = vpop.f32.mrb[0].mxu0
        %v570 = vpop.f32.mrb[0].mxu0
        %v571 = vadd.f32 %v420, %v570
        %v572 = vpop.f32.mrb[0].mxu0
        %573 = vmatprep.mubr.bf16.mxu0 0
        %574 = vmatmul.mubr.bf16.gmra.mrb[0].mxu0 %v454
        %v575 = vpop.f32.mrb[0].mxu0
        %v576 = vadd.f32 %v420, %v575
        %v577 = vpop.f32.mrb[0].mxu0
        %v578 = vpop.f32.mrb[0].mxu0
        %v579 = vadd.f32 %v420, %v578
        %v580 = vpop.f32.mrb[0].mxu0
        %581 = vmatprep.mubr.bf16.mxu0 0
        %582 = vmatmul.mubr.bf16.gmra.mrb[0].mxu0 %v457
        %v583 = vpop.f32.mrb[0].mxu0
        %v584 = vadd.f32 %v420, %v583
        %v585 = vpop.f32.mrb[0].mxu0
        %v586 = vpop.f32.mrb[0].mxu0
        %v587 = vadd.f32 %v420, %v586
        %v588 = vpop.f32.mrb[0].mxu0
        %589 = vmatprep.mubr.bf16.mxu0 0
        %590 = vmatmul.mubr.bf16.gmra.mrb[0].mxu0 %v460
        %v591 = vpop.f32.mrb[0].mxu0
        %v592 = vadd.f32 %v420, %v591
        %v593 = vpop.f32.mrb[0].mxu0
        %v594 = vpop.f32.mrb[0].mxu0
        %v595 = vadd.f32 %v420, %v594
        %v596 = vpop.f32.mrb[0].mxu0
        %597 = vmatprep.mubr.bf16.mxu0 0
        %598 = vmatmul.mubr.bf16.gmra.mrb[0].mxu0 %v463
        %v599 = vpop.f32.mrb[0].mxu0
        %v600 = vadd.f32 %v420, %v599
        %v601 = vpop.f32.mrb[0].mxu0
        %v602 = vpop.f32.mrb[0].mxu0
        %v603 = vadd.f32 %v420, %v602
        %v604 = vpop.f32.mrb[0].mxu0
        %605 = vmatprep.mubr.bf16.mxu0 0
        %606 = vmatmul.mubr.bf16.gmra.mrb[0].mxu0 %v466
        %v607 = vpop.f32.mrb[0].mxu0
        %v608 = vadd.f32 %v420, %v607
        %v609 = vpop.f32.mrb[0].mxu0
        %v610 = vpop.f32.mrb[0].mxu0
        %v611 = vadd.f32 %v420, %v610
        %v612 = vpop.f32.mrb[0].mxu0
        %613 = vmatprep.mubr.bf16.mxu0 0
        %614 = vmatmul.mubr.bf16.gmra.mrb[0].mxu0 %v469
        %v615 = vpop.f32.mrb[0].mxu0
        %v616 = vadd.f32 %v420, %v615
        %v617 = vpop.f32.mrb[0].mxu0
        %v618 = vpop.f32.mrb[0].mxu0
        %v619 = vadd.f32 %v420, %v618
        %v620 = vpop.f32.mrb[0].mxu0
        %621 = vmatprep.mubr.bf16.mxu0 0
        %622 = vmatmul.mubr.bf16.gmra.mrb[0].mxu0 %v472
        %v623 = vpop.f32.mrb[0].mxu0
        %v624 = vadd.f32 %v420, %v623
        %v625 = vpop.f32.mrb[0].mxu0
        %v626 = vpop.f32.mrb[0].mxu0
        %v627 = vadd.f32 %v420, %v626
        %v628 = vpop.f32.mrb[0].mxu0
        %629 = vmatprep.mubr.bf16.mxu0 0
        %630 = vmatmul.mubr.bf16.gmra.mrb[0].mxu0 %v475
        %v631 = vpop.f32.mrb[0].mxu0
        %v632 = vadd.f32 %v420, %v631
        %v633 = vpop.f32.mrb[0].mxu0
        %v634 = vpop.f32.mrb[0].mxu0
        %v635 = vadd.f32 %v420, %v634
        %v636 = vpop.f32.mrb[0].mxu0
        %637 = vdwg.mxu0
        %v638 = vld [vmem:[%s330] sm:$0xf]
        %v639 = vld [vmem:[%s330 + $0x4] sm:$0xf]
        %v640 = vld [vmem:[%s330 + $0x8] sm:$0xf]
        %v641 = vld [vmem:[%s330 + $0xc] sm:$0xf]
        %v642 = vld [vmem:[%s330 + $0x10] sm:$0xf]
        %v643 = vld [vmem:[%s330 + $0x14] sm:$0xf]
        %v644 = vld [vmem:[%s330 + $0x18] sm:$0xf]
        %v645 = vld [vmem:[%s330 + $0x1c] sm:$0xf]
        %v646 = vld [vmem:[%s330 + $0x20] sm:$0xf]
        %v647 = vld [vmem:[%s330 + $0x24] sm:$0xf]
        %v648 = vld [vmem:[%s330 + $0x28] sm:$0xf]
        %v649 = vld [vmem:[%s330 + $0x2c] sm:$0xf]
        %v650 = vld [vmem:[%s330 + $0x30] sm:$0xf]
        %v651 = vld [vmem:[%s330 + $0x34] sm:$0xf]
        %v652 = vld [vmem:[%s330 + $0x38] sm:$0xf]
        %v653 = vld [vmem:[%s330 + $0x3c] sm:$0xf]
        %v654 = vld [vmem:[%s330 + $0x40] sm:$0xf]
        %v655 = vld [vmem:[%s330 + $0x44] sm:$0xf]
        %v656 = vld [vmem:[%s330 + $0x48] sm:$0xf]
        %v657 = vld [vmem:[%s330 + $0x4c] sm:$0xf]
        %v658 = vld [vmem:[%s330 + $0x50] sm:$0xf]
        %v659 = vld [vmem:[%s330 + $0x54] sm:$0xf]
        %v660 = vld [vmem:[%s330 + $0x58] sm:$0xf]
        %v661 = vld [vmem:[%s330 + $0x5c] sm:$0xf]
        %v662 = vld [vmem:[%s330 + $0x60] sm:$0xf]
        %v663 = vld [vmem:[%s330 + $0x64] sm:$0xf]
        %v664 = vld [vmem:[%s330 + $0x68] sm:$0xf]
        %v665 = vld [vmem:[%s330 + $0x6c] sm:$0xf]
        %v666 = vld [vmem:[%s330 + $0x70] sm:$0xf]
        %v667 = vld [vmem:[%s330 + $0x74] sm:$0xf]
        %v668 = vld [vmem:[%s330 + $0x78] sm:$0xf]
        %v669 = vld [vmem:[%s330 + $0x7c] sm:$0xf]
        %v670 = vunpack.c.l.bf16 %v638
        %v671 = vunpack.c.l.bf16 %v639
        %v672 = vunpack.c.l.bf16 %v640
        %v673 = vunpack.c.l.bf16 %v641
        %v674 = vunpack.c.l.bf16 %v642
        %v675 = vunpack.c.l.bf16 %v643
        %v676 = vunpack.c.l.bf16 %v644
        %v677 = vunpack.c.l.bf16 %v645
        %v678 = vunpack.c.l.bf16 %v646
        %v679 = vunpack.c.l.bf16 %v647
        %v680 = vunpack.c.l.bf16 %v648
        %v681 = vunpack.c.l.bf16 %v649
        %v682 = vunpack.c.l.bf16 %v650
        %v683 = vunpack.c.l.bf16 %v651
        %v684 = vunpack.c.l.bf16 %v652
        %v685 = vunpack.c.l.bf16 %v653
        %v686 = vunpack.c.l.bf16 %v654
        %v687 = vunpack.c.l.bf16 %v655
        %v688 = vunpack.c.l.bf16 %v656
        %v689 = vunpack.c.l.bf16 %v657
        %v690 = vunpack.c.l.bf16 %v658
        %v691 = vunpack.c.l.bf16 %v659
        %v692 = vunpack.c.l.bf16 %v660
        %v693 = vunpack.c.l.bf16 %v661
        %v694 = vunpack.c.l.bf16 %v662
        %v695 = vunpack.c.l.bf16 %v663
        %v696 = vunpack.c.l.bf16 %v664
        %v697 = vunpack.c.l.bf16 %v665
        %v698 = vunpack.c.l.bf16 %v666
        %v699 = vunpack.c.l.bf16 %v667
        %v700 = vunpack.c.l.bf16 %v668
        %v701 = vunpack.c.l.bf16 %v669
        %v702 = vadd.f32 %v512, %v670
        %v703 = vadd.f32 %v515, %v671
        %v704 = vadd.f32 %v520, %v672
        %v705 = vadd.f32 %v523, %v673
        %v706 = vadd.f32 %v528, %v674
        %v707 = vadd.f32 %v531, %v675
        %v708 = vadd.f32 %v536, %v676
        %v709 = vadd.f32 %v539, %v677
        %v710 = vadd.f32 %v544, %v678
        %v711 = vadd.f32 %v547, %v679
        %v712 = vadd.f32 %v552, %v680
        %v713 = vadd.f32 %v555, %v681
        %v714 = vadd.f32 %v560, %v682
        %v715 = vadd.f32 %v563, %v683
        %v716 = vadd.f32 %v568, %v684
        %v717 = vadd.f32 %v571, %v685
        %v718 = vadd.f32 %v576, %v686
        %v719 = vadd.f32 %v579, %v687
        %v720 = vadd.f32 %v584, %v688
        %v721 = vadd.f32 %v587, %v689
        %v722 = vadd.f32 %v592, %v690
        %v723 = vadd.f32 %v595, %v691
        %v724 = vadd.f32 %v600, %v692
        %v725 = vadd.f32 %v603, %v693
        %v726 = vadd.f32 %v608, %v694
        %v727 = vadd.f32 %v611, %v695
        %v728 = vadd.f32 %v616, %v696
        %v729 = vadd.f32 %v619, %v697
        %v730 = vadd.f32 %v624, %v698
        %v731 = vadd.f32 %v627, %v699
        %v732 = vadd.f32 %v632, %v700
        %v733 = vadd.f32 %v635, %v701
        %v734 = vpack.c.bf16 %v703, %v702
        %v735 = vpack.c.bf16 %v705, %v704
        %v736 = vpack.c.bf16 %v707, %v706
        %v737 = vpack.c.bf16 %v709, %v708
        %v738 = vpack.c.bf16 %v711, %v710
        %v739 = vpack.c.bf16 %v713, %v712
        %v740 = vpack.c.bf16 %v715, %v714
        %v741 = vpack.c.bf16 %v717, %v716
        %v742 = vpack.c.bf16 %v719, %v718
        %v743 = vpack.c.bf16 %v721, %v720
        %v744 = vpack.c.bf16 %v723, %v722
        %v745 = vpack.c.bf16 %v725, %v724
        %v746 = vpack.c.bf16 %v727, %v726
        %v747 = vpack.c.bf16 %v729, %v728
        %v748 = vpack.c.bf16 %v731, %v730
        %v749 = vpack.c.bf16 %v733, %v732
        %v751 = vshrl.u32 %v734, 16
        %v753 = vrot.slane %v751, 7
        %v754 = vshll.u32 %v734, 16
        %v756 = vor.u32 %v753, %v754
        %v758 = vshrl.u32 %v735, 16
        %v760 = vrot.slane %v758, 7
        %v761 = vshll.u32 %v735, 16
        %v763 = vor.u32 %v760, %v761
        %v765 = vshrl.u32 %v736, 16
        %v767 = vrot.slane %v765, 7
        %v768 = vshll.u32 %v736, 16
        %v770 = vor.u32 %v767, %v768
        %v772 = vshrl.u32 %v737, 16
        %v774 = vrot.slane %v772, 7
        %v775 = vshll.u32 %v737, 16
        %v777 = vor.u32 %v774, %v775
        %v779 = vshrl.u32 %v738, 16
        %v781 = vrot.slane %v779, 7
        %v782 = vshll.u32 %v738, 16
        %v784 = vor.u32 %v781, %v782
        %v786 = vshrl.u32 %v739, 16
        %v788 = vrot.slane %v786, 7
        %v789 = vshll.u32 %v739, 16
        %v791 = vor.u32 %v788, %v789
        %v793 = vshrl.u32 %v740, 16
        %v795 = vrot.slane %v793, 7
        %v796 = vshll.u32 %v740, 16
        %v798 = vor.u32 %v795, %v796
        %v800 = vshrl.u32 %v741, 16
        %v802 = vrot.slane %v800, 7
        %v803 = vshll.u32 %v741, 16
        %v805 = vor.u32 %v802, %v803
        %v807 = vshrl.u32 %v742, 16
        %v809 = vrot.slane %v807, 7
        %v810 = vshll.u32 %v742, 16
        %v812 = vor.u32 %v809, %v810
        %v814 = vshrl.u32 %v743, 16
        %v816 = vrot.slane %v814, 7
        %v817 = vshll.u32 %v743, 16
        %v819 = vor.u32 %v816, %v817
        %v821 = vshrl.u32 %v744, 16
        %v823 = vrot.slane %v821, 7
        %v824 = vshll.u32 %v744, 16
        %v826 = vor.u32 %v823, %v824
        %v828 = vshrl.u32 %v745, 16
        %v830 = vrot.slane %v828, 7
        %v831 = vshll.u32 %v745, 16
        %v833 = vor.u32 %v830, %v831
        %v835 = vshrl.u32 %v746, 16
        %v837 = vrot.slane %v835, 7
        %v838 = vshll.u32 %v746, 16
        %v840 = vor.u32 %v837, %v838
        %v842 = vshrl.u32 %v747, 16
        %v844 = vrot.slane %v842, 7
        %v845 = vshll.u32 %v747, 16
        %v847 = vor.u32 %v844, %v845
        %v849 = vshrl.u32 %v748, 16
        %v851 = vrot.slane %v849, 7
        %v852 = vshll.u32 %v748, 16
        %v854 = vor.u32 %v851, %v852
        %v856 = vshrl.u32 %v749, 16
        %v858 = vrot.slane %v856, 7
        %v859 = vshll.u32 %v749, 16
        %v861 = vor.u32 %v858, %v859
        %vm894 = vcmask 1040384
        %vm895 = vsmask.f32 256
        %vm896 = vmand %vm894, %vm895
        %v897 = vsel %vm896, 0, %v756
        %v898 = vsel %vm896, 0, %v763
        %v899 = vsel %vm896, 0, %v770
        %v900 = vsel %vm896, 0, %v777
        %v901 = vsel %vm896, 0, %v784
        %v902 = vsel %vm896, 0, %v791
        %v903 = vsel %vm896, 0, %v798
        %v904 = vsel %vm896, 0, %v805
        %v905 = vsel %vm896, 0, %v812
        %v906 = vsel %vm896, 0, %v819
        %v907 = vsel %vm896, 0, %v826
        %v908 = vsel %vm896, 0, %v833
        %v909 = vsel %vm896, 0, %v840
        %v910 = vsel %vm896, 0, %v847
        %v911 = vsel %vm896, 0, %v854
        %v912 = vsel %vm896, 0, %v861
        %v913 = vsel %vm896, %v753, 0
        %v914 = vsel %vm896, %v760, 0
        %v915 = vsel %vm896, %v767, 0
        %v916 = vsel %vm896, %v774, 0
        %v917 = vsel %vm896, %v781, 0
        %v918 = vsel %vm896, %v788, 0
        %v919 = vsel %vm896, %v795, 0
        %v920 = vsel %vm896, %v802, 0
        %v921 = vsel %vm896, %v809, 0
        %v922 = vsel %vm896, %v816, 0
        %v923 = vsel %vm896, %v823, 0
        %v924 = vsel %vm896, %v830, 0
        %v925 = vsel %vm896, %v837, 0
        %v926 = vsel %vm896, %v844, 0
        %v927 = vsel %vm896, %v851, 0
        %v928 = vsel %vm896, %v858, 0
        %v961 = vunpack.c.l.b16 %v897
        %v962 = vunpack.c.h.b16 %v897
        %v963 = vunpack.c.l.b16 %v913
        %v964 = vunpack.c.l.b16 %v898
        %v965 = vunpack.c.h.b16 %v898
        %v966 = vunpack.c.l.b16 %v914
        %v967 = vunpack.c.l.b16 %v899
        %v968 = vunpack.c.h.b16 %v899
        %v969 = vunpack.c.l.b16 %v915
        %v970 = vunpack.c.l.b16 %v900
        %v971 = vunpack.c.h.b16 %v900
        %v972 = vunpack.c.l.b16 %v916
        %v973 = vunpack.c.l.b16 %v901
        %v974 = vunpack.c.h.b16 %v901
        %v975 = vunpack.c.l.b16 %v917
        %v976 = vunpack.c.l.b16 %v902
        %v977 = vunpack.c.h.b16 %v902
        %v978 = vunpack.c.l.b16 %v918
        %v979 = vunpack.c.l.b16 %v903
        %v980 = vunpack.c.h.b16 %v903
        %v981 = vunpack.c.l.b16 %v919
        %v982 = vunpack.c.l.b16 %v904
        %v983 = vunpack.c.h.b16 %v904
        %v984 = vunpack.c.l.b16 %v920
        %v985 = vunpack.c.l.b16 %v905
        %v986 = vunpack.c.h.b16 %v905
        %v987 = vunpack.c.l.b16 %v921
        %v988 = vunpack.c.l.b16 %v906
        %v989 = vunpack.c.h.b16 %v906
        %v990 = vunpack.c.l.b16 %v922
        %v991 = vunpack.c.l.b16 %v907
        %v992 = vunpack.c.h.b16 %v907
        %v993 = vunpack.c.l.b16 %v923
        %v994 = vunpack.c.l.b16 %v908
        %v995 = vunpack.c.h.b16 %v908
        %v996 = vunpack.c.l.b16 %v924
        %v997 = vunpack.c.l.b16 %v909
        %v998 = vunpack.c.h.b16 %v909
        %v999 = vunpack.c.l.b16 %v925
        %v1000 = vunpack.c.l.b16 %v910
        %v1001 = vunpack.c.h.b16 %v910
        %v1002 = vunpack.c.l.b16 %v926
        %v1003 = vunpack.c.l.b16 %v911
        %v1004 = vunpack.c.h.b16 %v911
        %v1005 = vunpack.c.l.b16 %v927
        %v1006 = vunpack.c.l.b16 %v912
        %v1007 = vunpack.c.h.b16 %v912
        %v1008 = vunpack.c.l.b16 %v928
        %v1009 = vpack.c.b16 %v961, %v961
        %v1010 = vpack.c.b16 %v962, %v962
        %v1011 = vpack.c.b16 %v963, %v963
        %v1012 = vpack.c.b16 %v964, %v964
        %v1013 = vpack.c.b16 %v965, %v965
        %v1014 = vpack.c.b16 %v966, %v966
        %v1015 = vpack.c.b16 %v967, %v967
        %v1016 = vpack.c.b16 %v968, %v968
        %v1017 = vpack.c.b16 %v969, %v969
        %v1018 = vpack.c.b16 %v970, %v970
        %v1019 = vpack.c.b16 %v971, %v971
        %v1020 = vpack.c.b16 %v972, %v972
        %v1021 = vpack.c.b16 %v973, %v973
        %v1022 = vpack.c.b16 %v974, %v974
        %v1023 = vpack.c.b16 %v975, %v975
        %v1024 = vpack.c.b16 %v976, %v976
        %v1025 = vpack.c.b16 %v977, %v977
        %v1026 = vpack.c.b16 %v978, %v978
        %v1027 = vpack.c.b16 %v979, %v979
        %v1028 = vpack.c.b16 %v980, %v980
        %v1029 = vpack.c.b16 %v981, %v981
        %v1030 = vpack.c.b16 %v982, %v982
        %v1031 = vpack.c.b16 %v983, %v983
        %v1032 = vpack.c.b16 %v984, %v984
        %v1033 = vpack.c.b16 %v985, %v985
        %v1034 = vpack.c.b16 %v986, %v986
        %v1035 = vpack.c.b16 %v987, %v987
        %v1036 = vpack.c.b16 %v988, %v988
        %v1037 = vpack.c.b16 %v989, %v989
        %v1038 = vpack.c.b16 %v990, %v990
        %v1039 = vpack.c.b16 %v991, %v991
        %v1040 = vpack.c.b16 %v992, %v992
        %v1041 = vpack.c.b16 %v993, %v993
        %v1042 = vpack.c.b16 %v994, %v994
        %v1043 = vpack.c.b16 %v995, %v995
        %v1044 = vpack.c.b16 %v996, %v996
        %v1045 = vpack.c.b16 %v997, %v997
        %v1046 = vpack.c.b16 %v998, %v998
        %v1047 = vpack.c.b16 %v999, %v999
        %v1048 = vpack.c.b16 %v1000, %v1000
        %v1049 = vpack.c.b16 %v1001, %v1001
        %v1050 = vpack.c.b16 %v1002, %v1002
        %v1051 = vpack.c.b16 %v1003, %v1003
        %v1052 = vpack.c.b16 %v1004, %v1004
        %v1053 = vpack.c.b16 %v1005, %v1005
        %v1054 = vpack.c.b16 %v1006, %v1006
        %v1055 = vpack.c.b16 %v1007, %v1007
        %v1056 = vpack.c.b16 %v1008, %v1008
        %vm1105 = vcmask 519168
        %1106 = vst.msk [vmem:[#allocation2] sm:$0xf] %vm1105, 0
        %1107 = vst.msk [vmem:[#allocation2 + $0x4] sm:$0xf] %vm1105, 0
        %1108 = vst.msk [vmem:[#allocation2 + $0x8] sm:$0xf] %vm1105, 0
        %1109 = vst.msk [vmem:[#allocation2 + $0xc] sm:$0xf] %vm1105, %v1009
        %1110 = vst.msk [vmem:[#allocation2 + $0x10] sm:$0xf] %vm1105, %v1010
        %1111 = vst.msk [vmem:[#allocation2 + $0x14] sm:$0xf] %vm1105, %v1011
        %1112 = vst.msk [vmem:[#allocation2 + $0x18] sm:$0xf] %vm1105, %v1012
        %1113 = vst.msk [vmem:[#allocation2 + $0x1c] sm:$0xf] %vm1105, %v1013
        %1114 = vst.msk [vmem:[#allocation2 + $0x20] sm:$0xf] %vm1105, %v1014
        %1115 = vst.msk [vmem:[#allocation2 + $0x24] sm:$0xf] %vm1105, %v1015
        %1116 = vst.msk [vmem:[#allocation2 + $0x28] sm:$0xf] %vm1105, %v1016
        %1117 = vst.msk [vmem:[#allocation2 + $0x2c] sm:$0xf] %vm1105, %v1017
        %1118 = vst.msk [vmem:[#allocation2 + $0x30] sm:$0xf] %vm1105, %v1018
        %1119 = vst.msk [vmem:[#allocation2 + $0x34] sm:$0xf] %vm1105, %v1019
        %1120 = vst.msk [vmem:[#allocation2 + $0x38] sm:$0xf] %vm1105, %v1020
        %1121 = vst.msk [vmem:[#allocation2 + $0x3c] sm:$0xf] %vm1105, %v1021
        %1122 = vst.msk [vmem:[#allocation2 + $0x40] sm:$0xf] %vm1105, %v1022
        %1123 = vst.msk [vmem:[#allocation2 + $0x44] sm:$0xf] %vm1105, %v1023
        %1124 = vst.msk [vmem:[#allocation2 + $0x48] sm:$0xf] %vm1105, %v1024
        %1125 = vst.msk [vmem:[#allocation2 + $0x4c] sm:$0xf] %vm1105, %v1025
        %1126 = vst.msk [vmem:[#allocation2 + $0x50] sm:$0xf] %vm1105, %v1026
        %1127 = vst.msk [vmem:[#allocation2 + $0x54] sm:$0xf] %vm1105, %v1027
        %1128 = vst.msk [vmem:[#allocation2 + $0x58] sm:$0xf] %vm1105, %v1028
        %1129 = vst.msk [vmem:[#allocation2 + $0x5c] sm:$0xf] %vm1105, %v1029
        %1130 = vst.msk [vmem:[#allocation2 + $0x60] sm:$0xf] %vm1105, %v1030
        %1131 = vst.msk [vmem:[#allocation2 + $0x64] sm:$0xf] %vm1105, %v1031
        %1132 = vst.msk [vmem:[#allocation2 + $0x68] sm:$0xf] %vm1105, %v1032
        %1133 = vst.msk [vmem:[#allocation2 + $0x6c] sm:$0xf] %vm1105, %v1033
        %1134 = vst.msk [vmem:[#allocation2 + $0x70] sm:$0xf] %vm1105, %v1034
        %1135 = vst.msk [vmem:[#allocation2 + $0x74] sm:$0xf] %vm1105, %v1035
        %1136 = vst.msk [vmem:[#allocation2 + $0x78] sm:$0xf] %vm1105, %v1036
        %1137 = vst.msk [vmem:[#allocation2 + $0x7c] sm:$0xf] %vm1105, %v1037
        %1138 = vst.msk [vmem:[#allocation2 + $0x80] sm:$0xf] %vm1105, %v1038
        %1139 = vst.msk [vmem:[#allocation2 + $0x84] sm:$0xf] %vm1105, %v1039
        %1140 = vst.msk [vmem:[#allocation2 + $0x88] sm:$0xf] %vm1105, %v1040
        %1141 = vst.msk [vmem:[#allocation2 + $0x8c] sm:$0xf] %vm1105, %v1041
        %1142 = vst.msk [vmem:[#allocation2 + $0x90] sm:$0xf] %vm1105, %v1042
        %1143 = vst.msk [vmem:[#allocation2 + $0x94] sm:$0xf] %vm1105, %v1043
        %1144 = vst.msk [vmem:[#allocation2 + $0x98] sm:$0xf] %vm1105, %v1044
        %1145 = vst.msk [vmem:[#allocation2 + $0x9c] sm:$0xf] %vm1105, %v1045
        %1146 = vst.msk [vmem:[#allocation2 + $0xa0] sm:$0xf] %vm1105, %v1046
        %1147 = vst.msk [vmem:[#allocation2 + $0xa4] sm:$0xf] %vm1105, %v1047
        %1148 = vst.msk [vmem:[#allocation2 + $0xa8] sm:$0xf] %vm1105, %v1048
        %1149 = vst.msk [vmem:[#allocation2 + $0xac] sm:$0xf] %vm1105, %v1049
        %1150 = vst.msk [vmem:[#allocation2 + $0xb0] sm:$0xf] %vm1105, %v1050
        %1151 = vst.msk [vmem:[#allocation2 + $0xb4] sm:$0xf] %vm1105, %v1051
        %1152 = vst.msk [vmem:[#allocation2 + $0xb8] sm:$0xf] %vm1105, %v1052
        %1153 = vst.msk [vmem:[#allocation2 + $0xbc] sm:$0xf] %vm1105, %v1053
        %1154 = vst.msk [vmem:[#allocation2 + $0xc0] sm:$0xf] %vm1105, %v1054
        %1155 = vst.msk [vmem:[#allocation2 + $0xc4] sm:$0xf] %vm1105, %v1055
        %1156 = vst.msk [vmem:[#allocation2 + $0xc8] sm:$0xf] %vm1105, %v1056
        %1157 = vst.msk [vmem:[#allocation2 + $0xcc] sm:$0xf] %vm1105, 0
        %1158 = vst.msk [vmem:[#allocation2 + $0xd0] sm:$0xf] %vm1105, 0
        %1159 = vst.msk [vmem:[#allocation2 + $0xd4] sm:$0xf] %vm1105, 0
        %1160 = vst.msk [vmem:[#allocation2 + $0xd8] sm:$0xf] %vm1105, 0
        %v1161 = vld [vmem:[#allocation11] sm:$0x1]
        %v1163 = vlaneseq
        %v1164 = vshrl.u32 %v1163, 7
        %v1165 = vsub.s32 0, %v1164
        %v1166 = vrot.slane %v1161, %v1165
        %v1168 = vld [vmem:[#allocation2] sm:$0xf]
        %v1169 = vld [vmem:[#allocation2 + $0x4] sm:$0xf]
        %v1170 = vld [vmem:[#allocation2 + $0x8] sm:$0xf]
        %v1171 = vld [vmem:[#allocation2 + $0xc] sm:$0xf]
        %v1172 = vld [vmem:[#allocation2 + $0x10] sm:$0xf]
        %v1173 = vld [vmem:[#allocation2 + $0x14] sm:$0xf]
        %v1174 = vld [vmem:[#allocation2 + $0x18] sm:$0xf]
        %v1175 = vld [vmem:[#allocation2 + $0x1c] sm:$0xf]
        %v1176 = vld [vmem:[#allocation2 + $0x20] sm:$0xf]
        %v1177 = vld [vmem:[#allocation2 + $0x24] sm:$0xf]
        %v1178 = vld [vmem:[#allocation2 + $0x28] sm:$0xf]
        %v1179 = vld [vmem:[#allocation2 + $0x2c] sm:$0xf]
        %v1180 = vld [vmem:[#allocation2 + $0x30] sm:$0xf]
        %v1181 = vld [vmem:[#allocation2 + $0x34] sm:$0xf]
        %v1182 = vld [vmem:[#allocation2 + $0x38] sm:$0xf]
        %v1183 = vld [vmem:[#allocation2 + $0x3c] sm:$0xf]
        %v1184 = vld [vmem:[#allocation2 + $0x40] sm:$0xf]
        %v1185 = vld [vmem:[#allocation2 + $0x44] sm:$0xf]
        %v1186 = vld [vmem:[#allocation2 + $0x48] sm:$0xf]
        %v1187 = vld [vmem:[#allocation2 + $0x4c] sm:$0xf]
        %v1188 = vld [vmem:[#allocation2 + $0x50] sm:$0xf]
        %v1189 = vld [vmem:[#allocation2 + $0x54] sm:$0xf]
        %v1190 = vld [vmem:[#allocation2 + $0x58] sm:$0xf]
        %v1191 = vld [vmem:[#allocation2 + $0x5c] sm:$0xf]
        %v1192 = vld [vmem:[#allocation2 + $0x60] sm:$0xf]
        %v1193 = vld [vmem:[#allocation2 + $0x64] sm:$0xf]
        %v1194 = vld [vmem:[#allocation2 + $0x68] sm:$0xf]
        %v1195 = vld [vmem:[#allocation2 + $0x6c] sm:$0xf]
        %v1196 = vld [vmem:[#allocation2 + $0x70] sm:$0xf]
        %v1197 = vld [vmem:[#allocation2 + $0x74] sm:$0xf]
        %v1198 = vld [vmem:[#allocation2 + $0x78] sm:$0xf]
        %v1199 = vld [vmem:[#allocation2 + $0x7c] sm:$0xf]
        %v1200 = vld [vmem:[#allocation2 + $0x80] sm:$0xf]
        %v1201 = vld [vmem:[#allocation2 + $0x84] sm:$0xf]
        %v1202 = vld [vmem:[#allocation2 + $0x88] sm:$0xf]
        %v1203 = vld [vmem:[#allocation2 + $0x8c] sm:$0xf]
        %v1204 = vld [vmem:[#allocation2 + $0x90] sm:$0xf]
        %v1205 = vld [vmem:[#allocation2 + $0x94] sm:$0xf]
        %v1206 = vld [vmem:[#allocation2 + $0x98] sm:$0xf]
        %v1207 = vld [vmem:[#allocation2 + $0x9c] sm:$0xf]
        %v1208 = vld [vmem:[#allocation2 + $0xa0] sm:$0xf]
        %v1209 = vld [vmem:[#allocation2 + $0xa4] sm:$0xf]
        %v1210 = vld [vmem:[#allocation2 + $0xa8] sm:$0xf]
        %v1211 = vld [vmem:[#allocation2 + $0xac] sm:$0xf]
        %v1212 = vld [vmem:[#allocation2 + $0xb0] sm:$0xf]
        %v1213 = vld [vmem:[#allocation2 + $0xb4] sm:$0xf]
        %v1214 = vld [vmem:[#allocation2 + $0xb8] sm:$0xf]
        %v1215 = vld [vmem:[#allocation2 + $0xbc] sm:$0xf]
        %v1216 = vld [vmem:[#allocation2 + $0xc0] sm:$0x1]
        %v1217 = vld [vmem:[#allocation2] sm:$0xe]
        %v1266 = vunpack.c.l.b16 %v1168
        %v1267 = vunpack.c.l.b16 %v1169
        %v1268 = vunpack.c.l.b16 %v1170
        %v1269 = vunpack.c.l.b16 %v1171
        %v1270 = vunpack.c.l.b16 %v1172
        %v1271 = vunpack.c.l.b16 %v1173
        %v1272 = vunpack.c.l.b16 %v1174
        %v1273 = vunpack.c.l.b16 %v1175
        %v1274 = vunpack.c.l.b16 %v1176
        %v1275 = vunpack.c.l.b16 %v1177
        %v1276 = vunpack.c.l.b16 %v1178
        %v1277 = vunpack.c.l.b16 %v1179
        %v1278 = vunpack.c.l.b16 %v1180
        %v1279 = vunpack.c.l.b16 %v1181
        %v1280 = vunpack.c.l.b16 %v1182
        %v1281 = vunpack.c.l.b16 %v1183
        %v1282 = vunpack.c.l.b16 %v1184
        %v1283 = vunpack.c.l.b16 %v1185
        %v1284 = vunpack.c.l.b16 %v1186
        %v1285 = vunpack.c.l.b16 %v1187
        %v1286 = vunpack.c.l.b16 %v1188
        %v1287 = vunpack.c.l.b16 %v1189
        %v1288 = vunpack.c.l.b16 %v1190
        %v1289 = vunpack.c.l.b16 %v1191
        %v1290 = vunpack.c.l.b16 %v1192
        %v1291 = vunpack.c.l.b16 %v1193
        %v1292 = vunpack.c.l.b16 %v1194
        %v1293 = vunpack.c.l.b16 %v1195
        %v1294 = vunpack.c.l.b16 %v1196
        %v1295 = vunpack.c.l.b16 %v1197
        %v1296 = vunpack.c.l.b16 %v1198
        %v1297 = vunpack.c.l.b16 %v1199
        %v1298 = vunpack.c.l.b16 %v1200
        %v1299 = vunpack.c.l.b16 %v1201
        %v1300 = vunpack.c.l.b16 %v1202
        %v1301 = vunpack.c.l.b16 %v1203
        %v1302 = vunpack.c.l.b16 %v1204
        %v1303 = vunpack.c.l.b16 %v1205
        %v1304 = vunpack.c.l.b16 %v1206
        %v1305 = vunpack.c.l.b16 %v1207
        %v1306 = vunpack.c.l.b16 %v1208
        %v1307 = vunpack.c.l.b16 %v1209
        %v1308 = vunpack.c.l.b16 %v1210
        %v1309 = vunpack.c.l.b16 %v1211
        %v1310 = vunpack.c.l.b16 %v1212
        %v1311 = vunpack.c.l.b16 %v1213
        %v1312 = vunpack.c.l.b16 %v1214
        %v1313 = vunpack.c.l.b16 %v1215
        %v1314 = vpack.c.b16 %v1267, %v1266
        %v1315 = vpack.c.b16 %v1269, %v1268
        %v1316 = vpack.c.b16 %v1271, %v1270
        %v1317 = vpack.c.b16 %v1273, %v1272
        %v1318 = vpack.c.b16 %v1275, %v1274
        %v1319 = vpack.c.b16 %v1277, %v1276
        %v1320 = vpack.c.b16 %v1279, %v1278
        %v1321 = vpack.c.b16 %v1281, %v1280
        %v1322 = vpack.c.b16 %v1283, %v1282
        %v1323 = vpack.c.b16 %v1285, %v1284
        %v1324 = vpack.c.b16 %v1287, %v1286
        %v1325 = vpack.c.b16 %v1289, %v1288
        %v1326 = vpack.c.b16 %v1291, %v1290
        %v1327 = vpack.c.b16 %v1293, %v1292
        %v1328 = vpack.c.b16 %v1295, %v1294
        %v1329 = vpack.c.b16 %v1297, %v1296
        %v1330 = vpack.c.b16 %v1299, %v1298
        %v1331 = vpack.c.b16 %v1301, %v1300
        %v1332 = vpack.c.b16 %v1303, %v1302
        %v1333 = vpack.c.b16 %v1305, %v1304
        %v1334 = vpack.c.b16 %v1307, %v1306
        %v1335 = vpack.c.b16 %v1309, %v1308
        %v1336 = vpack.c.b16 %v1311, %v1310
        %v1337 = vpack.c.b16 %v1313, %v1312
        %v1339 = vunpack.c.l.b16 %v1216
        %v1340 = vpack.c.b16 %v1339, %v1339
        %vm1341 = vsmask.f32 7424
        %v1343 = vshrl.u32 %v1314, 16
        %v1345 = vshll.u32 %v1314, 16
        %v1347 = vrot.slane %v1345, 1
        %v1348 = vor.u32 %v1343, %v1347
        %v1350 = vshll.u32 %v1315, 16
        %v1352 = vrot.slane %v1350, 1
        %v1353 = vsel %vm1341, %v1348, %v1352
        %v1354 = vshrl.u32 %v1315, 16
        %v1356 = vor.u32 %v1354, %v1352
        %v1358 = vshll.u32 %v1316, 16
        %v1360 = vrot.slane %v1358, 1
        %v1361 = vsel %vm1341, %v1356, %v1360
        %v1362 = vshrl.u32 %v1316, 16
        %v1364 = vor.u32 %v1362, %v1360
        %v1366 = vshll.u32 %v1317, 16
        %v1368 = vrot.slane %v1366, 1
        %v1369 = vsel %vm1341, %v1364, %v1368
        %v1370 = vshrl.u32 %v1317, 16
        %v1372 = vor.u32 %v1370, %v1368
        %v1374 = vshll.u32 %v1318, 16
        %v1376 = vrot.slane %v1374, 1
        %v1377 = vsel %vm1341, %v1372, %v1376
        %v1378 = vshrl.u32 %v1318, 16
        %v1380 = vor.u32 %v1378, %v1376
        %v1382 = vshll.u32 %v1319, 16
        %v1384 = vrot.slane %v1382, 1
        %v1385 = vsel %vm1341, %v1380, %v1384
        %v1386 = vshrl.u32 %v1319, 16
        %v1388 = vor.u32 %v1386, %v1384
        %v1390 = vshll.u32 %v1320, 16
        %v1392 = vrot.slane %v1390, 1
        %v1393 = vsel %vm1341, %v1388, %v1392
        %v1394 = vshrl.u32 %v1320, 16
        %v1396 = vor.u32 %v1394, %v1392
        %v1398 = vshll.u32 %v1321, 16
        %v1400 = vrot.slane %v1398, 1
        %v1401 = vsel %vm1341, %v1396, %v1400
        %v1402 = vshrl.u32 %v1321, 16
        %v1404 = vor.u32 %v1402, %v1400
        %v1406 = vshll.u32 %v1322, 16
        %v1408 = vrot.slane %v1406, 1
        %v1409 = vsel %vm1341, %v1404, %v1408
        %v1410 = vshrl.u32 %v1322, 16
        %v1412 = vor.u32 %v1410, %v1408
        %v1414 = vshll.u32 %v1323, 16
        %v1416 = vrot.slane %v1414, 1
        %v1417 = vsel %vm1341, %v1412, %v1416
        %v1418 = vshrl.u32 %v1323, 16
        %v1420 = vor.u32 %v1418, %v1416
        %v1422 = vshll.u32 %v1324, 16
        %v1424 = vrot.slane %v1422, 1
        %v1425 = vsel %vm1341, %v1420, %v1424
        %v1426 = vshrl.u32 %v1324, 16
        %v1428 = vor.u32 %v1426, %v1424
        %v1430 = vshll.u32 %v1325, 16
        %v1432 = vrot.slane %v1430, 1
        %v1433 = vsel %vm1341, %v1428, %v1432
        %v1434 = vshrl.u32 %v1325, 16
        %v1436 = vor.u32 %v1434, %v1432
        %v1438 = vshll.u32 %v1326, 16
        %v1440 = vrot.slane %v1438, 1
        %v1441 = vsel %vm1341, %v1436, %v1440
        %v1442 = vshrl.u32 %v1326, 16
        %v1444 = vor.u32 %v1442, %v1440
        %v1446 = vshll.u32 %v1327, 16
        %v1448 = vrot.slane %v1446, 1
        %v1449 = vsel %vm1341, %v1444, %v1448
        %v1450 = vshrl.u32 %v1327, 16
        %v1452 = vor.u32 %v1450, %v1448
        %v1454 = vshll.u32 %v1328, 16
        %v1456 = vrot.slane %v1454, 1
        %v1457 = vsel %vm1341, %v1452, %v1456
        %v1458 = vshrl.u32 %v1328, 16
        %v1460 = vor.u32 %v1458, %v1456
        %v1462 = vshll.u32 %v1329, 16
        %v1464 = vrot.slane %v1462, 1
        %v1465 = vsel %vm1341, %v1460, %v1464
        %v1466 = vshrl.u32 %v1329, 16
        %v1468 = vor.u32 %v1466, %v1464
        %v1470 = vshll.u32 %v1330, 16
        %v1472 = vrot.slane %v1470, 1
        %v1473 = vsel %vm1341, %v1468, %v1472
        %v1474 = vshrl.u32 %v1330, 16
        %v1476 = vor.u32 %v1474, %v1472
        %v1478 = vshll.u32 %v1331, 16
        %v1480 = vrot.slane %v1478, 1
        %v1481 = vsel %vm1341, %v1476, %v1480
        %v1482 = vshrl.u32 %v1331, 16
        %v1484 = vor.u32 %v1482, %v1480
        %v1486 = vshll.u32 %v1332, 16
        %v1488 = vrot.slane %v1486, 1
        %v1489 = vsel %vm1341, %v1484, %v1488
        %v1490 = vshrl.u32 %v1332, 16
        %v1492 = vor.u32 %v1490, %v1488
        %v1494 = vshll.u32 %v1333, 16
        %v1496 = vrot.slane %v1494, 1
        %v1497 = vsel %vm1341, %v1492, %v1496
        %v1498 = vshrl.u32 %v1333, 16
        %v1500 = vor.u32 %v1498, %v1496
        %v1502 = vshll.u32 %v1334, 16
        %v1504 = vrot.slane %v1502, 1
        %v1505 = vsel %vm1341, %v1500, %v1504
        %v1506 = vshrl.u32 %v1334, 16
        %v1508 = vor.u32 %v1506, %v1504
        %v1510 = vshll.u32 %v1335, 16
        %v1512 = vrot.slane %v1510, 1
        %v1513 = vsel %vm1341, %v1508, %v1512
        %v1514 = vshrl.u32 %v1335, 16
        %v1516 = vor.u32 %v1514, %v1512
        %v1518 = vshll.u32 %v1336, 16
        %v1520 = vrot.slane %v1518, 1
        %v1521 = vsel %vm1341, %v1516, %v1520
        %v1522 = vshrl.u32 %v1336, 16
        %v1524 = vor.u32 %v1522, %v1520
        %v1526 = vshll.u32 %v1337, 16
        %v1528 = vrot.slane %v1526, 1
        %v1529 = vsel %vm1341, %v1524, %v1528
        %v1530 = vshrl.u32 %v1337, 16
        %v1532 = vor.u32 %v1530, %v1528
        %v1534 = vshll.u32 %v1340, 16
        %v1536 = vrot.slane %v1534, 1
        %v1537 = vsel %vm1341, %v1532, %v1536
        %1538 = vrot.lane.b32.xlu0 %v1353, 64
        %v1539 = vpop.permute.xlu0 %1538
        %1540 = vrot.lane.b32.xlu0 %v1361, 64
        %v1541 = vpop.permute.xlu0 %1540
        %1542 = vrot.lane.b32.xlu0 %v1369, 64
        %v1543 = vpop.permute.xlu0 %1542
        %1544 = vrot.lane.b32.xlu0 %v1377, 64
        %v1545 = vpop.permute.xlu0 %1544
        %1546 = vrot.lane.b32.xlu0 %v1385, 64
        %v1547 = vpop.permute.xlu0 %1546
        %1548 = vrot.lane.b32.xlu0 %v1393, 64
        %v1549 = vpop.permute.xlu0 %1548
        %1550 = vrot.lane.b32.xlu0 %v1401, 64
        %v1551 = vpop.permute.xlu0 %1550
        %1552 = vrot.lane.b32.xlu0 %v1409, 64
        %v1553 = vpop.permute.xlu0 %1552
        %1554 = vrot.lane.b32.xlu0 %v1417, 64
        %v1555 = vpop.permute.xlu0 %1554
        %1556 = vrot.lane.b32.xlu0 %v1425, 64
        %v1557 = vpop.permute.xlu0 %1556
        %1558 = vrot.lane.b32.xlu0 %v1433, 64
        %v1559 = vpop.permute.xlu0 %1558
        %1560 = vrot.lane.b32.xlu0 %v1441, 64
        %v1561 = vpop.permute.xlu0 %1560
        %1562 = vrot.lane.b32.xlu0 %v1449, 64
        %v1563 = vpop.permute.xlu0 %1562
        %1564 = vrot.lane.b32.xlu0 %v1457, 64
        %v1565 = vpop.permute.xlu0 %1564
        %1566 = vrot.lane.b32.xlu0 %v1465, 64
        %v1567 = vpop.permute.xlu0 %1566
        %1568 = vrot.lane.b32.xlu0 %v1473, 64
        %v1569 = vpop.permute.xlu0 %1568
        %1570 = vrot.lane.b32.xlu0 %v1481, 64
        %v1571 = vpop.permute.xlu0 %1570
        %1572 = vrot.lane.b32.xlu0 %v1489, 64
        %v1573 = vpop.permute.xlu0 %1572
        %1574 = vrot.lane.b32.xlu0 %v1497, 64
        %v1575 = vpop.permute.xlu0 %1574
        %1576 = vrot.lane.b32.xlu0 %v1505, 64
        %v1577 = vpop.permute.xlu0 %1576
        %1578 = vrot.lane.b32.xlu0 %v1513, 64
        %v1579 = vpop.permute.xlu0 %1578
        %1580 = vrot.lane.b32.xlu0 %v1521, 64
        %v1581 = vpop.permute.xlu0 %1580
        %1582 = vrot.lane.b32.xlu0 %v1529, 64
        %v1583 = vpop.permute.xlu0 %1582
        %1584 = vrot.lane.b32.xlu0 %v1537, 64
        %v1585 = vpop.permute.xlu0 %1584
        %v1587 = vunpack.c.l.b16 %v1217
        %v1588 = vpack.c.b16 %v1267, %v1587
        %vm1589 = vcmask 1046528
        %v1590 = vrot.slane %v1588, 1
        %v1591 = vrot.slane %v1315, 1
        %v1592 = vsel %vm1589, %v1590, %v1591
        %v1593 = vrot.slane %v1316, 1
        %v1594 = vsel %vm1589, %v1591, %v1593
        %v1595 = vrot.slane %v1317, 1
        %v1596 = vsel %vm1589, %v1593, %v1595
        %v1597 = vrot.slane %v1318, 1
        %v1598 = vsel %vm1589, %v1595, %v1597
        %v1599 = vrot.slane %v1319, 1
        %v1600 = vsel %vm1589, %v1597, %v1599
        %v1601 = vrot.slane %v1320, 1
        %v1602 = vsel %vm1589, %v1599, %v1601
        %v1603 = vrot.slane %v1321, 1
        %v1604 = vsel %vm1589, %v1601, %v1603
        %v1605 = vrot.slane %v1322, 1
        %v1606 = vsel %vm1589, %v1603, %v1605
        %v1607 = vrot.slane %v1323, 1
        %v1608 = vsel %vm1589, %v1605, %v1607
        %v1609 = vrot.slane %v1324, 1
        %v1610 = vsel %vm1589, %v1607, %v1609
        %v1611 = vrot.slane %v1325, 1
        %v1612 = vsel %vm1589, %v1609, %v1611
        %v1613 = vrot.slane %v1326, 1
        %v1614 = vsel %vm1589, %v1611, %v1613
        %v1615 = vrot.slane %v1327, 1
        %v1616 = vsel %vm1589, %v1613, %v1615
        %v1617 = vrot.slane %v1328, 1
        %v1618 = vsel %vm1589, %v1615, %v1617
        %v1619 = vrot.slane %v1329, 1
        %v1620 = vsel %vm1589, %v1617, %v1619
        %v1621 = vrot.slane %v1330, 1
        %v1622 = vsel %vm1589, %v1619, %v1621
        %v1623 = vrot.slane %v1331, 1
        %v1624 = vsel %vm1589, %v1621, %v1623
        %v1625 = vrot.slane %v1332, 1
        %v1626 = vsel %vm1589, %v1623, %v1625
        %v1627 = vrot.slane %v1333, 1
        %v1628 = vsel %vm1589, %v1625, %v1627
        %v1629 = vrot.slane %v1334, 1
        %v1630 = vsel %vm1589, %v1627, %v1629
        %v1631 = vrot.slane %v1335, 1
        %v1632 = vsel %vm1589, %v1629, %v1631
        %v1633 = vrot.slane %v1336, 1
        %v1634 = vsel %vm1589, %v1631, %v1633
        %v1635 = vrot.slane %v1337, 1
        %v1636 = vsel %vm1589, %v1633, %v1635
        %v1637 = vrot.slane %v1340, 1
        %v1638 = vsel %vm1589, %v1635, %v1637
        %vm1639 = vcmask 523264
        %v1641 = vsel %vm1639, %v1314, %v1539
        %v1644 = vsel %vm1639, %v1315, %v1541
        %v1647 = vsel %vm1639, %v1316, %v1543
        %v1650 = vsel %vm1639, %v1317, %v1545
        %v1653 = vsel %vm1639, %v1318, %v1547
        %v1656 = vsel %vm1639, %v1319, %v1549
        %v1659 = vsel %vm1639, %v1320, %v1551
        %v1662 = vsel %vm1639, %v1321, %v1553
        %v1665 = vsel %vm1639, %v1322, %v1555
        %v1668 = vsel %vm1639, %v1323, %v1557
        %v1671 = vsel %vm1639, %v1324, %v1559
        %v1674 = vsel %vm1639, %v1325, %v1561
        %v1677 = vsel %vm1639, %v1326, %v1563
        %v1680 = vsel %vm1639, %v1327, %v1565
        %v1683 = vsel %vm1639, %v1328, %v1567
        %v1686 = vsel %vm1639, %v1329, %v1569
        %v1689 = vsel %vm1639, %v1330, %v1571
        %v1692 = vsel %vm1639, %v1331, %v1573
        %v1695 = vsel %vm1639, %v1332, %v1575
        %v1698 = vsel %vm1639, %v1333, %v1577
        %v1701 = vsel %vm1639, %v1334, %v1579
        %v1704 = vsel %vm1639, %v1335, %v1581
        %v1707 = vsel %vm1639, %v1336, %v1583
        %v1710 = vsel %vm1639, %v1337, %v1585
        %v1712 = vld [vmem:[#allocation9] sm:$0xf]
        %v1713 = vld [vmem:[#allocation9 + $0x4] sm:$0xf]
        %v1714 = vld [vmem:[#allocation9 + $0x8] sm:$0xf]
        %v1715 = vld [vmem:[#allocation9 + $0xc] sm:$0xf]
        %v1716 = vld [vmem:[#allocation9 + $0x10] sm:$0xf]
        %v1717 = vld [vmem:[#allocation9 + $0x14] sm:$0xf]
        %v1718 = vld [vmem:[#allocation9 + $0x18] sm:$0xf]
        %v1719 = vld [vmem:[#allocation9 + $0x1c] sm:$0xf]
        %v1720 = vld [vmem:[#allocation9 + $0x20] sm:$0xf]
        %v1721 = vld [vmem:[#allocation9 + $0x24] sm:$0xf]
        %v1722 = vld [vmem:[#allocation9 + $0x28] sm:$0xf]
        %v1723 = vld [vmem:[#allocation9 + $0x2c] sm:$0xf]
        %v1724 = vld [vmem:[#allocation9 + $0x30] sm:$0xf]
        %v1725 = vld [vmem:[#allocation9 + $0x34] sm:$0xf]
        %v1726 = vld [vmem:[#allocation9 + $0x38] sm:$0xf]
        %v1727 = vld [vmem:[#allocation9 + $0x3c] sm:$0xf]
        %v1728 = vld [vmem:[#allocation9 + $0x40] sm:$0xf]
        %v1729 = vld [vmem:[#allocation9 + $0x44] sm:$0xf]
        %v1730 = vld [vmem:[#allocation9 + $0x48] sm:$0xf]
        %v1731 = vld [vmem:[#allocation9 + $0x4c] sm:$0xf]
        %v1732 = vld [vmem:[#allocation9 + $0x50] sm:$0xf]
        %v1733 = vld [vmem:[#allocation9 + $0x54] sm:$0xf]
        %v1734 = vld [vmem:[#allocation9 + $0x58] sm:$0xf]
        %v1735 = vld [vmem:[#allocation9 + $0x5c] sm:$0xf]
        %v1760 = vunpack.c.l.b16 %v1712
        %v1761 = vunpack.c.l.b16 %v1713
        %v1762 = vunpack.c.l.b16 %v1714
        %v1763 = vunpack.c.l.b16 %v1715
        %v1764 = vunpack.c.l.b16 %v1716
        %v1765 = vunpack.c.l.b16 %v1717
        %v1766 = vunpack.c.l.b16 %v1718
        %v1767 = vunpack.c.l.b16 %v1719
        %v1768 = vunpack.c.l.b16 %v1720
        %v1769 = vunpack.c.l.b16 %v1721
        %v1770 = vunpack.c.l.b16 %v1722
        %v1771 = vunpack.c.l.b16 %v1723
        %v1772 = vunpack.c.l.b16 %v1724
        %v1773 = vunpack.c.l.b16 %v1725
        %v1774 = vunpack.c.l.b16 %v1726
        %v1775 = vunpack.c.l.b16 %v1727
        %v1776 = vunpack.c.l.b16 %v1728
        %v1777 = vunpack.c.l.b16 %v1729
        %v1778 = vunpack.c.l.b16 %v1730
        %v1779 = vunpack.c.l.b16 %v1731
        %v1780 = vunpack.c.l.b16 %v1732
        %v1781 = vunpack.c.l.b16 %v1733
        %v1782 = vunpack.c.l.b16 %v1734
        %v1783 = vunpack.c.l.b16 %v1735
        %v1784 = vpack.c.b16 %v1761, %v1760
        %v1785 = vpack.c.b16 %v1763, %v1762
        %v1786 = vpack.c.b16 %v1765, %v1764
        %v1787 = vpack.c.b16 %v1767, %v1766
        %v1788 = vpack.c.b16 %v1769, %v1768
        %v1789 = vpack.c.b16 %v1771, %v1770
        %v1790 = vpack.c.b16 %v1773, %v1772
        %v1791 = vpack.c.b16 %v1775, %v1774
        %v1792 = vpack.c.b16 %v1777, %v1776
        %v1793 = vpack.c.b16 %v1779, %v1778
        %v1794 = vpack.c.b16 %v1781, %v1780
        %v1795 = vpack.c.b16 %v1783, %v1782
        %v1809 = vsel %vm1639, %v1592, 0
        %v1812 = vsel %vm1639, %v1594, 0
        %v1815 = vsel %vm1639, %v1596, 0
        %v1818 = vsel %vm1639, %v1598, 0
        %v1821 = vsel %vm1639, %v1600, 0
        %v1824 = vsel %vm1639, %v1602, 0
        %v1827 = vsel %vm1639, %v1604, 0
        %v1830 = vsel %vm1639, %v1606, 0
        %v1833 = vsel %vm1639, %v1608, 0
        %v1836 = vsel %vm1639, %v1610, 0
        %v1839 = vsel %vm1639, %v1612, 0
        %v1842 = vsel %vm1639, %v1614, 0
        %v1845 = vsel %vm1639, %v1616, 0
        %v1848 = vsel %vm1639, %v1618, 0
        %v1851 = vsel %vm1639, %v1620, 0
        %v1854 = vsel %vm1639, %v1622, 0
        %v1857 = vsel %vm1639, %v1624, 0
        %v1860 = vsel %vm1639, %v1626, 0
        %v1863 = vsel %vm1639, %v1628, 0
        %v1866 = vsel %vm1639, %v1630, 0
        %v1869 = vsel %vm1639, %v1632, 0
        %v1872 = vsel %vm1639, %v1634, 0
        %v1875 = vsel %vm1639, %v1636, 0
        %v1878 = vsel %vm1639, %v1638, 0
        %1880 = vmatprep.subr.bf16.mxu0 0
        %1881 = vmatpush1.bf16.msra.mxu0 %v1784
        %1882 = vmatprep.subr.bf16.mxu0 0
        %1883 = vmatpush1.bf16.msra.mxu0 %v1785
        %1884 = vmatprep.subr.bf16.mxu0 0
        %1885 = vmatpush1.bf16.msra.mxu0 %v1786
        %1886 = vmatprep.subr.bf16.mxu0 0
        %1887 = vmatpush1.bf16.msra.mxu0 %v1787
        %1888 = vmatprep.subr.bf16.mxu0 0
        %1889 = vmatpush1.bf16.msra.mxu0 %v1788
        %1890 = vmatprep.subr.bf16.mxu0 0
        %1891 = vmatpush1.bf16.msra.mxu0 %v1789
        %1892 = vmatprep.subr.bf16.mxu0 0
        %1893 = vmatpush1.bf16.msra.mxu0 %v1790
        %1894 = vmatprep.subr.bf16.mxu0 0
        %1895 = vmatpush1.bf16.msra.mxu0 %v1791
        %1896 = vmatprep.subr.bf16.mxu0 0
        %1897 = vmatpush1.bf16.msra.mxu0 %v1792
        %1898 = vmatprep.subr.bf16.mxu0 0
        %1899 = vmatpush1.bf16.msra.mxu0 %v1793
        %1900 = vmatprep.subr.bf16.mxu0 0
        %1901 = vmatpush1.bf16.msra.mxu0 %v1794
        %1902 = vmatprep.subr.bf16.mxu0 0
        %1903 = vmatpush1.bf16.msra.mxu0 %v1795
        %1904 = vmatprep.subr.bf16.mxu0 0
        %1905 = vmatpush1.bf16.msra.mxu0 0
        %1906 = vmatprep.subr.bf16.mxu0 0
        %1907 = vmatpush1.bf16.msra.mxu0 0
        %1908 = vmatprep.subr.bf16.mxu0 0
        %1909 = vmatpush1.bf16.msra.mxu0 0
        %1910 = vmatprep.subr.bf16.mxu0 0
        %1911 = vmatpush1.bf16.msra.mxu0 0
        %1912 = vmatprep.mubr.bf16.mxu0 %v1809
        %1913 = vmatmul.mubr.bf16.gmra.mrb[0].mxu0 %v1641
        %v1914 = vpop.f32.mrb[0].mxu0
        %v1915 = vadd.f32 0.0, %v1914
        %v1916 = vpop.f32.mrb[0].mxu0
        %v1917 = vpop.f32.mrb[0].mxu0
        %v1918 = vadd.f32 0.0, %v1917
        %v1919 = vpop.f32.mrb[0].mxu0
        %1920 = vmatprep.mubr.bf16.mxu0 %v1812
        %1921 = vmatmul.mubr.bf16.gmra.mrb[0].mxu0 %v1644
        %v1922 = vpop.f32.mrb[0].mxu0
        %v1923 = vpop.f32.mrb[0].mxu0
        %v1924 = vpop.f32.mrb[0].mxu0
        %v1925 = vadd.f32 0.0, %v1924
        %v1926 = vpop.f32.mrb[0].mxu0
        %1927 = vmatprep.mubr.bf16.mxu0 %v1815
        %1928 = vmatmul.mubr.bf16.gmra.mrb[0].mxu0 %v1647
        %v1929 = vpop.f32.mrb[0].mxu0
        %v1930 = vadd.f32 0.0, %v1929
        %v1931 = vpop.f32.mrb[0].mxu0
        %v1932 = vpop.f32.mrb[0].mxu0
        %v1933 = vpop.f32.mrb[0].mxu0
        %1934 = vmatprep.mubr.bf16.mxu0 %v1818
        %1935 = vmatmul.mubr.bf16.gmra.mrb[0].mxu0 %v1650
        %v1936 = vpop.f32.mrb[0].mxu0
        %v1937 = vadd.f32 0.0, %v1936
        %v1938 = vpop.f32.mrb[0].mxu0
        %v1939 = vpop.f32.mrb[0].mxu0
        %v1940 = vadd.f32 0.0, %v1939
        %v1941 = vpop.f32.mrb[0].mxu0
        %1942 = vmatprep.mubr.bf16.mxu0 %v1821
        %1943 = vmatmul.mubr.bf16.gmra.mrb[0].mxu0 %v1653
        %v1944 = vpop.f32.mrb[0].mxu0
        %v1945 = vpop.f32.mrb[0].mxu0
        %v1946 = vpop.f32.mrb[0].mxu0
        %v1947 = vadd.f32 0.0, %v1946
        %v1948 = vpop.f32.mrb[0].mxu0
        %1949 = vmatprep.mubr.bf16.mxu0 %v1824
        %1950 = vmatmul.mubr.bf16.gmra.mrb[0].mxu0 %v1656
        %v1951 = vpop.f32.mrb[0].mxu0
        %v1952 = vadd.f32 0.0, %v1951
        %v1953 = vpop.f32.mrb[0].mxu0
        %v1954 = vpop.f32.mrb[0].mxu0
        %v1955 = vpop.f32.mrb[0].mxu0
        %1956 = vmatprep.mubr.bf16.mxu0 %v1827
        %1957 = vmatmul.mubr.bf16.gmra.mrb[0].mxu0 %v1659
        %v1958 = vpop.f32.mrb[0].mxu0
        %v1959 = vadd.f32 0.0, %v1958
        %v1960 = vpop.f32.mrb[0].mxu0
        %v1961 = vpop.f32.mrb[0].mxu0
        %v1962 = vadd.f32 0.0, %v1961
        %v1963 = vpop.f32.mrb[0].mxu0
        %1964 = vmatprep.mubr.bf16.mxu0 %v1830
        %1965 = vmatmul.mubr.bf16.gmra.mrb[0].mxu0 %v1662
        %v1966 = vpop.f32.mrb[0].mxu0
        %v1967 = vpop.f32.mrb[0].mxu0
        %v1968 = vpop.f32.mrb[0].mxu0
        %v1969 = vadd.f32 0.0, %v1968
        %v1970 = vpop.f32.mrb[0].mxu0
        %1971 = vmatprep.mubr.bf16.mxu0 %v1833
        %1972 = vmatmul.mubr.bf16.gmra.mrb[0].mxu0 %v1665
        %v1973 = vpop.f32.mrb[0].mxu0
        %v1974 = vadd.f32 0.0, %v1973
        %v1975 = vpop.f32.mrb[0].mxu0
        %v1976 = vpop.f32.mrb[0].mxu0
        %v1977 = vpop.f32.mrb[0].mxu0
        %1978 = vmatprep.mubr.bf16.mxu0 %v1836
        %1979 = vmatmul.mubr.bf16.gmra.mrb[0].mxu0 %v1668
        %v1980 = vpop.f32.mrb[0].mxu0
        %v1981 = vadd.f32 0.0, %v1980
        %v1982 = vpop.f32.mrb[0].mxu0
        %v1983 = vpop.f32.mrb[0].mxu0
        %v1984 = vadd.f32 0.0, %v1983
        %v1985 = vpop.f32.mrb[0].mxu0
        %1986 = vmatprep.mubr.bf16.mxu0 %v1839
        %1987 = vmatmul.mubr.bf16.gmra.mrb[0].mxu0 %v1671
        %v1988 = vpop.f32.mrb[0].mxu0
        %v1989 = vpop.f32.mrb[0].mxu0
        %v1990 = vpop.f32.mrb[0].mxu0
        %v1991 = vadd.f32 0.0, %v1990
        %v1992 = vpop.f32.mrb[0].mxu0
        %1993 = vmatprep.mubr.bf16.mxu0 %v1842
        %1994 = vmatmul.mubr.bf16.gmra.mrb[0].mxu0 %v1674
        %v1995 = vpop.f32.mrb[0].mxu0
        %v1996 = vadd.f32 0.0, %v1995
        %v1997 = vpop.f32.mrb[0].mxu0
        %v1998 = vpop.f32.mrb[0].mxu0
        %v1999 = vpop.f32.mrb[0].mxu0
        %2000 = vmatprep.mubr.bf16.mxu0 %v1845
        %2001 = vmatmul.mubr.bf16.gmra.mrb[0].mxu0 %v1677
        %v2002 = vpop.f32.mrb[0].mxu0
        %v2003 = vadd.f32 0.0, %v2002
        %v2004 = vpop.f32.mrb[0].mxu0
        %v2005 = vpop.f32.mrb[0].mxu0
        %v2006 = vadd.f32 0.0, %v2005
        %v2007 = vpop.f32.mrb[0].mxu0
        %2008 = vmatprep.mubr.bf16.mxu0 %v1848
        %2009 = vmatmul.mubr.bf16.gmra.mrb[0].mxu0 %v1680
        %v2010 = vpop.f32.mrb[0].mxu0
        %v2011 = vpop.f32.mrb[0].mxu0
        %v2012 = vpop.f32.mrb[0].mxu0
        %v2013 = vadd.f32 0.0, %v2012
        %v2014 = vpop.f32.mrb[0].mxu0
        %2015 = vmatprep.mubr.bf16.mxu0 %v1851
        %2016 = vmatmul.mubr.bf16.gmra.mrb[0].mxu0 %v1683
        %v2017 = vpop.f32.mrb[0].mxu0
        %v2018 = vadd.f32 0.0, %v2017
        %v2019 = vpop.f32.mrb[0].mxu0
        %v2020 = vpop.f32.mrb[0].mxu0
        %v2021 = vpop.f32.mrb[0].mxu0
        %2022 = vmatprep.mubr.bf16.mxu0 %v1854
        %2023 = vmatmul.mubr.bf16.gmra.mrb[0].mxu0 %v1686
        %v2024 = vpop.f32.mrb[0].mxu0
        %v2025 = vadd.f32 0.0, %v2024
        %v2026 = vpop.f32.mrb[0].mxu0
        %v2027 = vpop.f32.mrb[0].mxu0
        %v2028 = vadd.f32 0.0, %v2027
        %v2029 = vpop.f32.mrb[0].mxu0
        %2030 = vmatprep.mubr.bf16.mxu0 %v1857
        %2031 = vmatmul.mubr.bf16.gmra.mrb[0].mxu0 %v1689
        %v2032 = vpop.f32.mrb[0].mxu0
        %v2033 = vpop.f32.mrb[0].mxu0
        %v2034 = vpop.f32.mrb[0].mxu0
        %v2035 = vadd.f32 0.0, %v2034
        %v2036 = vpop.f32.mrb[0].mxu0
        %2037 = vmatprep.mubr.bf16.mxu0 %v1860
        %2038 = vmatmul.mubr.bf16.gmra.mrb[0].mxu0 %v1692
        %v2039 = vpop.f32.mrb[0].mxu0
        %v2040 = vadd.f32 0.0, %v2039
        %v2041 = vpop.f32.mrb[0].mxu0
        %v2042 = vpop.f32.mrb[0].mxu0
        %v2043 = vpop.f32.mrb[0].mxu0
        %2044 = vmatprep.mubr.bf16.mxu0 %v1863
        %2045 = vmatmul.mubr.bf16.gmra.mrb[0].mxu0 %v1695
        %v2046 = vpop.f32.mrb[0].mxu0
        %v2047 = vadd.f32 0.0, %v2046
        %v2048 = vpop.f32.mrb[0].mxu0
        %v2049 = vpop.f32.mrb[0].mxu0
        %v2050 = vadd.f32 0.0, %v2049
        %v2051 = vpop.f32.mrb[0].mxu0
        %2052 = vmatprep.mubr.bf16.mxu0 %v1866
        %2053 = vmatmul.mubr.bf16.gmra.mrb[0].mxu0 %v1698
        %v2054 = vpop.f32.mrb[0].mxu0
        %v2055 = vpop.f32.mrb[0].mxu0
        %v2056 = vpop.f32.mrb[0].mxu0
        %v2057 = vadd.f32 0.0, %v2056
        %v2058 = vpop.f32.mrb[0].mxu0
        %2059 = vmatprep.mubr.bf16.mxu0 %v1869
        %2060 = vmatmul.mubr.bf16.gmra.mrb[0].mxu0 %v1701
        %v2061 = vpop.f32.mrb[0].mxu0
        %v2062 = vadd.f32 0.0, %v2061
        %v2063 = vpop.f32.mrb[0].mxu0
        %v2064 = vpop.f32.mrb[0].mxu0
        %v2065 = vpop.f32.mrb[0].mxu0
        %2066 = vmatprep.mubr.bf16.mxu0 %v1872
        %2067 = vmatmul.mubr.bf16.gmra.mrb[0].mxu0 %v1704
        %v2068 = vpop.f32.mrb[0].mxu0
        %v2069 = vadd.f32 0.0, %v2068
        %v2070 = vpop.f32.mrb[0].mxu0
        %v2071 = vpop.f32.mrb[0].mxu0
        %v2072 = vadd.f32 0.0, %v2071
        %v2073 = vpop.f32.mrb[0].mxu0
        %2074 = vmatprep.mubr.bf16.mxu0 %v1875
        %2075 = vmatmul.mubr.bf16.gmra.mrb[0].mxu0 %v1707
        %v2076 = vpop.f32.mrb[0].mxu0
        %v2077 = vpop.f32.mrb[0].mxu0
        %v2078 = vpop.f32.mrb[0].mxu0
        %v2079 = vadd.f32 0.0, %v2078
        %v2080 = vpop.f32.mrb[0].mxu0
        %2081 = vmatprep.mubr.bf16.mxu0 %v1878
        %2082 = vmatmul.mubr.bf16.gmra.mrb[0].mxu0 %v1710
        %v2083 = vpop.f32.mrb[0].mxu0
        %v2084 = vadd.f32 0.0, %v2083
        %v2085 = vpop.f32.mrb[0].mxu0
        %v2086 = vpop.f32.mrb[0].mxu0
        %v2087 = vpop.f32.mrb[0].mxu0
        %2088 = vdwg.mxu0
        %v2089 = vadd.f32 %v1166, %v1915
        %v2090 = vadd.f32 %v1166, %v1918
        %v2091 = vadd.f32 %v1166, %v1925
        %v2092 = vadd.f32 %v1166, %v1930
        %v2093 = vadd.f32 %v1166, %v1937
        %v2094 = vadd.f32 %v1166, %v1940
        %v2095 = vadd.f32 %v1166, %v1947
        %v2096 = vadd.f32 %v1166, %v1952
        %v2097 = vadd.f32 %v1166, %v1959
        %v2098 = vadd.f32 %v1166, %v1962
        %v2099 = vadd.f32 %v1166, %v1969
        %v2100 = vadd.f32 %v1166, %v1974
        %v2101 = vadd.f32 %v1166, %v1981
        %v2102 = vadd.f32 %v1166, %v1984
        %v2103 = vadd.f32 %v1166, %v1991
        %v2104 = vadd.f32 %v1166, %v1996
        %v2105 = vadd.f32 %v1166, %v2003
        %v2106 = vadd.f32 %v1166, %v2006
        %v2107 = vadd.f32 %v1166, %v2013
        %v2108 = vadd.f32 %v1166, %v2018
        %v2109 = vadd.f32 %v1166, %v2025
        %v2110 = vadd.f32 %v1166, %v2028
        %v2111 = vadd.f32 %v1166, %v2035
        %v2112 = vadd.f32 %v1166, %v2040
        %v2113 = vadd.f32 %v1166, %v2047
        %v2114 = vadd.f32 %v1166, %v2050
        %v2115 = vadd.f32 %v1166, %v2057
        %v2116 = vadd.f32 %v1166, %v2062
        %v2117 = vadd.f32 %v1166, %v2069
        %v2118 = vadd.f32 %v1166, %v2072
        %v2119 = vadd.f32 %v1166, %v2079
        %v2120 = vadd.f32 %v1166, %v2084
        %v2121 = vld [vmem:[#allocation2 + $0xc] sm:$0xf]
        %v2122 = vld [vmem:[#allocation2 + $0x10] sm:$0xf]
        %v2123 = vld [vmem:[#allocation2 + $0x14] sm:$0xf]
        %v2124 = vld [vmem:[#allocation2 + $0x18] sm:$0xf]
        %v2125 = vld [vmem:[#allocation2 + $0x1c] sm:$0xf]
        %v2126 = vld [vmem:[#allocation2 + $0x20] sm:$0xf]
        %v2127 = vld [vmem:[#allocation2 + $0x24] sm:$0xf]
        %v2128 = vld [vmem:[#allocation2 + $0x28] sm:$0xf]
        %v2129 = vld [vmem:[#allocation2 + $0x2c] sm:$0xf]
        %v2130 = vld [vmem:[#allocation2 + $0x30] sm:$0xf]
        %v2131 = vld [vmem:[#allocation2 + $0x34] sm:$0xf]
        %v2132 = vld [vmem:[#allocation2 + $0x38] sm:$0xf]
        %v2133 = vld [vmem:[#allocation2 + $0x3c] sm:$0xf]
        %v2134 = vld [vmem:[#allocation2 + $0x40] sm:$0xf]
        %v2135 = vld [vmem:[#allocation2 + $0x44] sm:$0xf]
        %v2136 = vld [vmem:[#allocation2 + $0x48] sm:$0xf]
        %v2137 = vld [vmem:[#allocation2 + $0x4c] sm:$0xf]
        %v2138 = vld [vmem:[#allocation2 + $0x50] sm:$0xf]
        %v2139 = vld [vmem:[#allocation2 + $0x54] sm:$0xf]
        %v2140 = vld [vmem:[#allocation2 + $0x58] sm:$0xf]
        %v2141 = vld [vmem:[#allocation2 + $0x5c] sm:$0xf]
        %v2142 = vld [vmem:[#allocation2 + $0x60] sm:$0xf]
        %v2143 = vld [vmem:[#allocation2 + $0x64] sm:$0xf]
        %v2144 = vld [vmem:[#allocation2 + $0x68] sm:$0xf]
        %v2145 = vld [vmem:[#allocation2 + $0x6c] sm:$0xf]
        %v2146 = vld [vmem:[#allocation2 + $0x70] sm:$0xf]
        %v2147 = vld [vmem:[#allocation2 + $0x74] sm:$0xf]
        %v2148 = vld [vmem:[#allocation2 + $0x78] sm:$0xf]
        %v2149 = vld [vmem:[#allocation2 + $0x7c] sm:$0xf]
        %v2150 = vld [vmem:[#allocation2 + $0x80] sm:$0xf]
        %v2151 = vld [vmem:[#allocation2 + $0x84] sm:$0xf]
        %v2152 = vld [vmem:[#allocation2 + $0x88] sm:$0xf]
        %v2153 = vld [vmem:[#allocation2 + $0x8c] sm:$0xf]
        %v2154 = vld [vmem:[#allocation2 + $0x90] sm:$0xf]
        %v2155 = vld [vmem:[#allocation2 + $0x94] sm:$0xf]
        %v2156 = vld [vmem:[#allocation2 + $0x98] sm:$0xf]
        %v2157 = vld [vmem:[#allocation2 + $0x9c] sm:$0xf]
        %v2158 = vld [vmem:[#allocation2 + $0xa0] sm:$0xf]
        %v2159 = vld [vmem:[#allocation2 + $0xa4] sm:$0xf]
        %v2160 = vld [vmem:[#allocation2 + $0xa8] sm:$0xf]
        %v2161 = vld [vmem:[#allocation2 + $0xac] sm:$0xf]
        %v2162 = vld [vmem:[#allocation2 + $0xb0] sm:$0xf]
        %v2163 = vld [vmem:[#allocation2 + $0xb4] sm:$0xf]
        %v2164 = vld [vmem:[#allocation2 + $0xb8] sm:$0xf]
        %v2165 = vld [vmem:[#allocation2 + $0xbc] sm:$0xf]
        %v2166 = vld [vmem:[#allocation2 + $0xc0] sm:$0xf]
        %v2167 = vld [vmem:[#allocation2 + $0xc4] sm:$0xf]
        %v2168 = vld [vmem:[#allocation2 + $0xc8] sm:$0xf]
        %v2169 = vld [vmem:[#allocation2 + $0xcc] sm:$0x1]
        %v2170 = vld [vmem:[#allocation2 + $0xc] sm:$0xe]
        %v2219 = vunpack.c.l.b16 %v2121
        %v2220 = vunpack.c.l.b16 %v2122
        %v2221 = vunpack.c.l.b16 %v2123
        %v2222 = vunpack.c.l.b16 %v2124
        %v2223 = vunpack.c.l.b16 %v2125
        %v2224 = vunpack.c.l.b16 %v2126
        %v2225 = vunpack.c.l.b16 %v2127
        %v2226 = vunpack.c.l.b16 %v2128
        %v2227 = vunpack.c.l.b16 %v2129
        %v2228 = vunpack.c.l.b16 %v2130
        %v2229 = vunpack.c.l.b16 %v2131
        %v2230 = vunpack.c.l.b16 %v2132
        %v2231 = vunpack.c.l.b16 %v2133
        %v2232 = vunpack.c.l.b16 %v2134
        %v2233 = vunpack.c.l.b16 %v2135
        %v2234 = vunpack.c.l.b16 %v2136
        %v2235 = vunpack.c.l.b16 %v2137
        %v2236 = vunpack.c.l.b16 %v2138
        %v2237 = vunpack.c.l.b16 %v2139
        %v2238 = vunpack.c.l.b16 %v2140
        %v2239 = vunpack.c.l.b16 %v2141
        %v2240 = vunpack.c.l.b16 %v2142
        %v2241 = vunpack.c.l.b16 %v2143
        %v2242 = vunpack.c.l.b16 %v2144
        %v2243 = vunpack.c.l.b16 %v2145
        %v2244 = vunpack.c.l.b16 %v2146
        %v2245 = vunpack.c.l.b16 %v2147
        %v2246 = vunpack.c.l.b16 %v2148
        %v2247 = vunpack.c.l.b16 %v2149
        %v2248 = vunpack.c.l.b16 %v2150
        %v2249 = vunpack.c.l.b16 %v2151
        %v2250 = vunpack.c.l.b16 %v2152
        %v2251 = vunpack.c.l.b16 %v2153
        %v2252 = vunpack.c.l.b16 %v2154
        %v2253 = vunpack.c.l.b16 %v2155
        %v2254 = vunpack.c.l.b16 %v2156
        %v2255 = vunpack.c.l.b16 %v2157
        %v2256 = vunpack.c.l.b16 %v2158
        %v2257 = vunpack.c.l.b16 %v2159
        %v2258 = vunpack.c.l.b16 %v2160
        %v2259 = vunpack.c.l.b16 %v2161
        %v2260 = vunpack.c.l.b16 %v2162
        %v2261 = vunpack.c.l.b16 %v2163
        %v2262 = vunpack.c.l.b16 %v2164
        %v2263 = vunpack.c.l.b16 %v2165
        %v2264 = vunpack.c.l.b16 %v2166
        %v2265 = vunpack.c.l.b16 %v2167
        %v2266 = vunpack.c.l.b16 %v2168
        %v2267 = vpack.c.b16 %v2220, %v2219
        %v2268 = vpack.c.b16 %v2222, %v2221
        %v2269 = vpack.c.b16 %v2224, %v2223
        %v2270 = vpack.c.b16 %v2226, %v2225
        %v2271 = vpack.c.b16 %v2228, %v2227
        %v2272 = vpack.c.b16 %v2230, %v2229
        %v2273 = vpack.c.b16 %v2232, %v2231
        %v2274 = vpack.c.b16 %v2234, %v2233
        %v2275 = vpack.c.b16 %v2236, %v2235
        %v2276 = vpack.c.b16 %v2238, %v2237
        %v2277 = vpack.c.b16 %v2240, %v2239
        %v2278 = vpack.c.b16 %v2242, %v2241
        %v2279 = vpack.c.b16 %v2244, %v2243
        %v2280 = vpack.c.b16 %v2246, %v2245
        %v2281 = vpack.c.b16 %v2248, %v2247
        %v2282 = vpack.c.b16 %v2250, %v2249
        %v2283 = vpack.c.b16 %v2252, %v2251
        %v2284 = vpack.c.b16 %v2254, %v2253
        %v2285 = vpack.c.b16 %v2256, %v2255
        %v2286 = vpack.c.b16 %v2258, %v2257
        %v2287 = vpack.c.b16 %v2260, %v2259
        %v2288 = vpack.c.b16 %v2262, %v2261
        %v2289 = vpack.c.b16 %v2264, %v2263
        %v2290 = vpack.c.b16 %v2266, %v2265
        %v2292 = vunpack.c.l.b16 %v2169
        %v2293 = vpack.c.b16 %v2292, %v2292
        %v2295 = vshrl.u32 %v2267, 16
        %v2297 = vshll.u32 %v2267, 16
        %v2299 = vrot.slane %v2297, 1
        %v2300 = vor.u32 %v2295, %v2299
        %v2302 = vshll.u32 %v2268, 16
        %v2304 = vrot.slane %v2302, 1
        %v2305 = vsel %vm1341, %v2300, %v2304
        %v2306 = vshrl.u32 %v2268, 16
        %v2308 = vor.u32 %v2306, %v2304
        %v2310 = vshll.u32 %v2269, 16
        %v2312 = vrot.slane %v2310, 1
        %v2313 = vsel %vm1341, %v2308, %v2312
        %v2314 = vshrl.u32 %v2269, 16
        %v2316 = vor.u32 %v2314, %v2312
        %v2318 = vshll.u32 %v2270, 16
        %v2320 = vrot.slane %v2318, 1
        %v2321 = vsel %vm1341, %v2316, %v2320
        %v2322 = vshrl.u32 %v2270, 16
        %v2324 = vor.u32 %v2322, %v2320
        %v2326 = vshll.u32 %v2271, 16
        %v2328 = vrot.slane %v2326, 1
        %v2329 = vsel %vm1341, %v2324, %v2328
        %v2330 = vshrl.u32 %v2271, 16
        %v2332 = vor.u32 %v2330, %v2328
        %v2334 = vshll.u32 %v2272, 16
        %v2336 = vrot.slane %v2334, 1
        %v2337 = vsel %vm1341, %v2332, %v2336
        %v2338 = vshrl.u32 %v2272, 16
        %v2340 = vor.u32 %v2338, %v2336
        %v2342 = vshll.u32 %v2273, 16
        %v2344 = vrot.slane %v2342, 1
        %v2345 = vsel %vm1341, %v2340, %v2344
        %v2346 = vshrl.u32 %v2273, 16
        %v2348 = vor.u32 %v2346, %v2344
        %v2350 = vshll.u32 %v2274, 16
        %v2352 = vrot.slane %v2350, 1
        %v2353 = vsel %vm1341, %v2348, %v2352
        %v2354 = vshrl.u32 %v2274, 16
        %v2356 = vor.u32 %v2354, %v2352
        %v2358 = vshll.u32 %v2275, 16
        %v2360 = vrot.slane %v2358, 1
        %v2361 = vsel %vm1341, %v2356, %v2360
        %v2362 = vshrl.u32 %v2275, 16
        %v2364 = vor.u32 %v2362, %v2360
        %v2366 = vshll.u32 %v2276, 16
        %v2368 = vrot.slane %v2366, 1
        %v2369 = vsel %vm1341, %v2364, %v2368
        %v2370 = vshrl.u32 %v2276, 16
        %v2372 = vor.u32 %v2370, %v2368
        %v2374 = vshll.u32 %v2277, 16
        %v2376 = vrot.slane %v2374, 1
        %v2377 = vsel %vm1341, %v2372, %v2376
        %v2378 = vshrl.u32 %v2277, 16
        %v2380 = vor.u32 %v2378, %v2376
        %v2382 = vshll.u32 %v2278, 16
        %v2384 = vrot.slane %v2382, 1
        %v2385 = vsel %vm1341, %v2380, %v2384
        %v2386 = vshrl.u32 %v2278, 16
        %v2388 = vor.u32 %v2386, %v2384
        %v2390 = vshll.u32 %v2279, 16
        %v2392 = vrot.slane %v2390, 1
        %v2393 = vsel %vm1341, %v2388, %v2392
        %v2394 = vshrl.u32 %v2279, 16
        %v2396 = vor.u32 %v2394, %v2392
        %v2398 = vshll.u32 %v2280, 16
        %v2400 = vrot.slane %v2398, 1
        %v2401 = vsel %vm1341, %v2396, %v2400
        %v2402 = vshrl.u32 %v2280, 16
        %v2404 = vor.u32 %v2402, %v2400
        %v2406 = vshll.u32 %v2281, 16
        %v2408 = vrot.slane %v2406, 1
        %v2409 = vsel %vm1341, %v2404, %v2408
        %v2410 = vshrl.u32 %v2281, 16
        %v2412 = vor.u32 %v2410, %v2408
        %v2414 = vshll.u32 %v2282, 16
        %v2416 = vrot.slane %v2414, 1
        %v2417 = vsel %vm1341, %v2412, %v2416
        %v2418 = vshrl.u32 %v2282, 16
        %v2420 = vor.u32 %v2418, %v2416
        %v2422 = vshll.u32 %v2283, 16
        %v2424 = vrot.slane %v2422, 1
        %v2425 = vsel %vm1341, %v2420, %v2424
        %v2426 = vshrl.u32 %v2283, 16
        %v2428 = vor.u32 %v2426, %v2424
        %v2430 = vshll.u32 %v2284, 16
        %v2432 = vrot.slane %v2430, 1
        %v2433 = vsel %vm1341, %v2428, %v2432
        %v2434 = vshrl.u32 %v2284, 16
        %v2436 = vor.u32 %v2434, %v2432
        %v2438 = vshll.u32 %v2285, 16
        %v2440 = vrot.slane %v2438, 1
        %v2441 = vsel %vm1341, %v2436, %v2440
        %v2442 = vshrl.u32 %v2285, 16
        %v2444 = vor.u32 %v2442, %v2440
        %v2446 = vshll.u32 %v2286, 16
        %v2448 = vrot.slane %v2446, 1
        %v2449 = vsel %vm1341, %v2444, %v2448
        %v2450 = vshrl.u32 %v2286, 16
        %v2452 = vor.u32 %v2450, %v2448
        %v2454 = vshll.u32 %v2287, 16
        %v2456 = vrot.slane %v2454, 1
        %v2457 = vsel %vm1341, %v2452, %v2456
        %v2458 = vshrl.u32 %v2287, 16
        %v2460 = vor.u32 %v2458, %v2456
        %v2462 = vshll.u32 %v2288, 16
        %v2464 = vrot.slane %v2462, 1
        %v2465 = vsel %vm1341, %v2460, %v2464
        %v2466 = vshrl.u32 %v2288, 16
        %v2468 = vor.u32 %v2466, %v2464
        %v2470 = vshll.u32 %v2289, 16
        %v2472 = vrot.slane %v2470, 1
        %v2473 = vsel %vm1341, %v2468, %v2472
        %v2474 = vshrl.u32 %v2289, 16
        %v2476 = vor.u32 %v2474, %v2472
        %v2478 = vshll.u32 %v2290, 16
        %v2480 = vrot.slane %v2478, 1
        %v2481 = vsel %vm1341, %v2476, %v2480
        %v2482 = vshrl.u32 %v2290, 16
        %v2484 = vor.u32 %v2482, %v2480
        %v2486 = vshll.u32 %v2293, 16
        %v2488 = vrot.slane %v2486, 1
        %v2489 = vsel %vm1341, %v2484, %v2488
        %2490 = vrot.lane.b32.xlu0 %v2305, 64
        %v2491 = vpop.permute.xlu0 %2490
        %2492 = vrot.lane.b32.xlu0 %v2313, 64
        %v2493 = vpop.permute.xlu0 %2492
        %2494 = vrot.lane.b32.xlu0 %v2321, 64
        %v2495 = vpop.permute.xlu0 %2494
        %2496 = vrot.lane.b32.xlu0 %v2329, 64
        %v2497 = vpop.permute.xlu0 %2496
        %2498 = vrot.lane.b32.xlu0 %v2337, 64
        %v2499 = vpop.permute.xlu0 %2498
        %2500 = vrot.lane.b32.xlu0 %v2345, 64
        %v2501 = vpop.permute.xlu0 %2500
        %2502 = vrot.lane.b32.xlu0 %v2353, 64
        %v2503 = vpop.permute.xlu0 %2502
        %2504 = vrot.lane.b32.xlu0 %v2361, 64
        %v2505 = vpop.permute.xlu0 %2504
        %2506 = vrot.lane.b32.xlu0 %v2369, 64
        %v2507 = vpop.permute.xlu0 %2506
        %2508 = vrot.lane.b32.xlu0 %v2377, 64
        %v2509 = vpop.permute.xlu0 %2508
        %2510 = vrot.lane.b32.xlu0 %v2385, 64
        %v2511 = vpop.permute.xlu0 %2510
        %2512 = vrot.lane.b32.xlu0 %v2393, 64
        %v2513 = vpop.permute.xlu0 %2512
        %2514 = vrot.lane.b32.xlu0 %v2401, 64
        %v2515 = vpop.permute.xlu0 %2514
        %2516 = vrot.lane.b32.xlu0 %v2409, 64
        %v2517 = vpop.permute.xlu0 %2516
        %2518 = vrot.lane.b32.xlu0 %v2417, 64
        %v2519 = vpop.permute.xlu0 %2518
        %2520 = vrot.lane.b32.xlu0 %v2425, 64
        %v2521 = vpop.permute.xlu0 %2520
        %2522 = vrot.lane.b32.xlu0 %v2433, 64
        %v2523 = vpop.permute.xlu0 %2522
        %2524 = vrot.lane.b32.xlu0 %v2441, 64
        %v2525 = vpop.permute.xlu0 %2524
        %2526 = vrot.lane.b32.xlu0 %v2449, 64
        %v2527 = vpop.permute.xlu0 %2526
        %2528 = vrot.lane.b32.xlu0 %v2457, 64
        %v2529 = vpop.permute.xlu0 %2528
        %2530 = vrot.lane.b32.xlu0 %v2465, 64
        %v2531 = vpop.permute.xlu0 %2530
        %2532 = vrot.lane.b32.xlu0 %v2473, 64
        %v2533 = vpop.permute.xlu0 %2532
        %2534 = vrot.lane.b32.xlu0 %v2481, 64
        %v2535 = vpop.permute.xlu0 %2534
        %2536 = vrot.lane.b32.xlu0 %v2489, 64
        %v2537 = vpop.permute.xlu0 %2536
        %v2539 = vunpack.c.l.b16 %v2170
        %v2540 = vpack.c.b16 %v2220, %v2539
        %v2541 = vrot.slane %v2540, 1
        %v2542 = vrot.slane %v2268, 1
        %v2543 = vsel %vm1589, %v2541, %v2542
        %v2544 = vrot.slane %v2269, 1
        %v2545 = vsel %vm1589, %v2542, %v2544
        %v2546 = vrot.slane %v2270, 1
        %v2547 = vsel %vm1589, %v2544, %v2546
        %v2548 = vrot.slane %v2271, 1
        %v2549 = vsel %vm1589, %v2546, %v2548
        %v2550 = vrot.slane %v2272, 1
        %v2551 = vsel %vm1589, %v2548, %v2550
        %v2552 = vrot.slane %v2273, 1
        %v2553 = vsel %vm1589, %v2550, %v2552
        %v2554 = vrot.slane %v2274, 1
        %v2555 = vsel %vm1589, %v2552, %v2554
        %v2556 = vrot.slane %v2275, 1
        %v2557 = vsel %vm1589, %v2554, %v2556
        %v2558 = vrot.slane %v2276, 1
        %v2559 = vsel %vm1589, %v2556, %v2558
        %v2560 = vrot.slane %v2277, 1
        %v2561 = vsel %vm1589, %v2558, %v2560
        %v2562 = vrot.slane %v2278, 1
        %v2563 = vsel %vm1589, %v2560, %v2562
        %v2564 = vrot.slane %v2279, 1
        %v2565 = vsel %vm1589, %v2562, %v2564
        %v2566 = vrot.slane %v2280, 1
        %v2567 = vsel %vm1589, %v2564, %v2566
        %v2568 = vrot.slane %v2281, 1
        %v2569 = vsel %vm1589, %v2566, %v2568
        %v2570 = vrot.slane %v2282, 1
        %v2571 = vsel %vm1589, %v2568, %v2570
        %v2572 = vrot.slane %v2283, 1
        %v2573 = vsel %vm1589, %v2570, %v2572
        %v2574 = vrot.slane %v2284, 1
        %v2575 = vsel %vm1589, %v2572, %v2574
        %v2576 = vrot.slane %v2285, 1
        %v2577 = vsel %vm1589, %v2574, %v2576
        %v2578 = vrot.slane %v2286, 1
        %v2579 = vsel %vm1589, %v2576, %v2578
        %v2580 = vrot.slane %v2287, 1
        %v2581 = vsel %vm1589, %v2578, %v2580
        %v2582 = vrot.slane %v2288, 1
        %v2583 = vsel %vm1589, %v2580, %v2582
        %v2584 = vrot.slane %v2289, 1
        %v2585 = vsel %vm1589, %v2582, %v2584
        %v2586 = vrot.slane %v2290, 1
        %v2587 = vsel %vm1589, %v2584, %v2586
        %v2588 = vrot.slane %v2293, 1
        %v2589 = vsel %vm1589, %v2586, %v2588
        %v2591 = vsel %vm1639, %v2267, %v2491
        %v2594 = vsel %vm1639, %v2268, %v2493
        %v2597 = vsel %vm1639, %v2269, %v2495
        %v2600 = vsel %vm1639, %v2270, %v2497
        %v2603 = vsel %vm1639, %v2271, %v2499
        %v2606 = vsel %vm1639, %v2272, %v2501
        %v2609 = vsel %vm1639, %v2273, %v2503
        %v2612 = vsel %vm1639, %v2274, %v2505
        %v2615 = vsel %vm1639, %v2275, %v2507
        %v2618 = vsel %vm1639, %v2276, %v2509
        %v2621 = vsel %vm1639, %v2277, %v2511
        %v2624 = vsel %vm1639, %v2278, %v2513
        %v2627 = vsel %vm1639, %v2279, %v2515
        %v2630 = vsel %vm1639, %v2280, %v2517
        %v2633 = vsel %vm1639, %v2281, %v2519
        %v2636 = vsel %vm1639, %v2282, %v2521
        %v2639 = vsel %vm1639, %v2283, %v2523
        %v2642 = vsel %vm1639, %v2284, %v2525
        %v2645 = vsel %vm1639, %v2285, %v2527
        %v2648 = vsel %vm1639, %v2286, %v2529
        %v2651 = vsel %vm1639, %v2287, %v2531
        %v2654 = vsel %vm1639, %v2288, %v2533
        %v2657 = vsel %vm1639, %v2289, %v2535
        %v2660 = vsel %vm1639, %v2290, %v2537
        %s2662 = scalar_lea.vmem [#allocation9], 96
        %v2663 = vld [vmem:[%s2662] sm:$0xf]
        %v2664 = vld [vmem:[%s2662 + $0x4] sm:$0xf]
        %v2665 = vld [vmem:[%s2662 + $0x8] sm:$0xf]
        %v2666 = vld [vmem:[%s2662 + $0xc] sm:$0xf]
        %v2667 = vld [vmem:[%s2662 + $0x10] sm:$0xf]
        %v2668 = vld [vmem:[%s2662 + $0x14] sm:$0xf]
        %v2669 = vld [vmem:[%s2662 + $0x18] sm:$0xf]
        %v2670 = vld [vmem:[%s2662 + $0x1c] sm:$0xf]
        %v2671 = vld [vmem:[%s2662 + $0x20] sm:$0xf]
        %v2672 = vld [vmem:[%s2662 + $0x24] sm:$0xf]
        %v2673 = vld [vmem:[%s2662 + $0x28] sm:$0xf]
        %v2674 = vld [vmem:[%s2662 + $0x2c] sm:$0xf]
        %v2675 = vld [vmem:[%s2662 + $0x30] sm:$0xf]
        %v2676 = vld [vmem:[%s2662 + $0x34] sm:$0xf]
        %v2677 = vld [vmem:[%s2662 + $0x38] sm:$0xf]
        %v2678 = vld [vmem:[%s2662 + $0x3c] sm:$0xf]
        %v2679 = vld [vmem:[%s2662 + $0x40] sm:$0xf]
        %v2680 = vld [vmem:[%s2662 + $0x44] sm:$0xf]
        %v2681 = vld [vmem:[%s2662 + $0x48] sm:$0xf]
        %v2682 = vld [vmem:[%s2662 + $0x4c] sm:$0xf]
        %v2683 = vld [vmem:[%s2662 + $0x50] sm:$0xf]
        %v2684 = vld [vmem:[%s2662 + $0x54] sm:$0xf]
        %v2685 = vld [vmem:[%s2662 + $0x58] sm:$0xf]
        %v2686 = vld [vmem:[%s2662 + $0x5c] sm:$0xf]
        %v2711 = vunpack.c.l.b16 %v2663
        %v2712 = vunpack.c.l.b16 %v2664
        %v2713 = vunpack.c.l.b16 %v2665
        %v2714 = vunpack.c.l.b16 %v2666
        %v2715 = vunpack.c.l.b16 %v2667
        %v2716 = vunpack.c.l.b16 %v2668
        %v2717 = vunpack.c.l.b16 %v2669
        %v2718 = vunpack.c.l.b16 %v2670
        %v2719 = vunpack.c.l.b16 %v2671
        %v2720 = vunpack.c.l.b16 %v2672
        %v2721 = vunpack.c.l.b16 %v2673
        %v2722 = vunpack.c.l.b16 %v2674
        %v2723 = vunpack.c.l.b16 %v2675
        %v2724 = vunpack.c.l.b16 %v2676
        %v2725 = vunpack.c.l.b16 %v2677
        %v2726 = vunpack.c.l.b16 %v2678
        %v2727 = vunpack.c.l.b16 %v2679
        %v2728 = vunpack.c.l.b16 %v2680
        %v2729 = vunpack.c.l.b16 %v2681
        %v2730 = vunpack.c.l.b16 %v2682
        %v2731 = vunpack.c.l.b16 %v2683
        %v2732 = vunpack.c.l.b16 %v2684
        %v2733 = vunpack.c.l.b16 %v2685
        %v2734 = vunpack.c.l.b16 %v2686
        %v2735 = vpack.c.b16 %v2712, %v2711
        %v2736 = vpack.c.b16 %v2714, %v2713
        %v2737 = vpack.c.b16 %v2716, %v2715
        %v2738 = vpack.c.b16 %v2718, %v2717
        %v2739 = vpack.c.b16 %v2720, %v2719
        %v2740 = vpack.c.b16 %v2722, %v2721
        %v2741 = vpack.c.b16 %v2724, %v2723
        %v2742 = vpack.c.b16 %v2726, %v2725
        %v2743 = vpack.c.b16 %v2728, %v2727
        %v2744 = vpack.c.b16 %v2730, %v2729
        %v2745 = vpack.c.b16 %v2732, %v2731
        %v2746 = vpack.c.b16 %v2734, %v2733
        %v2760 = vsel %vm1639, %v2543, 0
        %v2763 = vsel %vm1639, %v2545, 0
        %v2766 = vsel %vm1639, %v2547, 0
        %v2769 = vsel %vm1639, %v2549, 0
        %v2772 = vsel %vm1639, %v2551, 0
        %v2775 = vsel %vm1639, %v2553, 0
        %v2778 = vsel %vm1639, %v2555, 0
        %v2781 = vsel %vm1639, %v2557, 0
        %v2784 = vsel %vm1639, %v2559, 0
        %v2787 = vsel %vm1639, %v2561, 0
        %v2790 = vsel %vm1639, %v2563, 0
        %v2793 = vsel %vm1639, %v2565, 0
        %v2796 = vsel %vm1639, %v2567, 0
        %v2799 = vsel %vm1639, %v2569, 0
        %v2802 = vsel %vm1639, %v2571, 0
        %v2805 = vsel %vm1639, %v2573, 0
        %v2808 = vsel %vm1639, %v2575, 0
        %v2811 = vsel %vm1639, %v2577, 0
        %v2814 = vsel %vm1639, %v2579, 0
        %v2817 = vsel %vm1639, %v2581, 0
        %v2820 = vsel %vm1639, %v2583, 0
        %v2823 = vsel %vm1639, %v2585, 0
        %v2826 = vsel %vm1639, %v2587, 0
        %v2829 = vsel %vm1639, %v2589, 0
        %2831 = vmatprep.subr.bf16.mxu0 0
        %2832 = vmatpush1.bf16.msra.mxu0 %v2735
        %2833 = vmatprep.subr.bf16.mxu0 0
        %2834 = vmatpush1.bf16.msra.mxu0 %v2736
        %2835 = vmatprep.subr.bf16.mxu0 0
        %2836 = vmatpush1.bf16.msra.mxu0 %v2737
        %2837 = vmatprep.subr.bf16.mxu0 0
        %2838 = vmatpush1.bf16.msra.mxu0 %v2738
        %2839 = vmatprep.subr.bf16.mxu0 0
        %2840 = vmatpush1.bf16.msra.mxu0 %v2739
        %2841 = vmatprep.subr.bf16.mxu0 0
        %2842 = vmatpush1.bf16.msra.mxu0 %v2740
        %2843 = vmatprep.subr.bf16.mxu0 0
        %2844 = vmatpush1.bf16.msra.mxu0 %v2741
        %2845 = vmatprep.subr.bf16.mxu0 0
        %2846 = vmatpush1.bf16.msra.mxu0 %v2742
        %2847 = vmatprep.subr.bf16.mxu0 0
        %2848 = vmatpush1.bf16.msra.mxu0 %v2743
        %2849 = vmatprep.subr.bf16.mxu0 0
        %2850 = vmatpush1.bf16.msra.mxu0 %v2744
        %2851 = vmatprep.subr.bf16.mxu0 0
        %2852 = vmatpush1.bf16.msra.mxu0 %v2745
        %2853 = vmatprep.subr.bf16.mxu0 0
        %2854 = vmatpush1.bf16.msra.mxu0 %v2746
        %2855 = vmatprep.subr.bf16.mxu0 0
        %2856 = vmatpush1.bf16.msra.mxu0 0
        %2857 = vmatprep.subr.bf16.mxu0 0
        %2858 = vmatpush1.bf16.msra.mxu0 0
        %2859 = vmatprep.subr.bf16.mxu0 0
        %2860 = vmatpush1.bf16.msra.mxu0 0
        %2861 = vmatprep.subr.bf16.mxu0 0
        %2862 = vmatpush1.bf16.msra.mxu0 0
        %2863 = vmatprep.mubr.bf16.mxu0 %v2760
        %2864 = vmatmul.mubr.bf16.gmra.mrb[0].mxu0 %v2591
        %v2865 = vpop.f32.mrb[0].mxu0
        %v2866 = vadd.f32 0.0, %v2865
        %v2867 = vpop.f32.mrb[0].mxu0
        %v2868 = vpop.f32.mrb[0].mxu0
        %v2869 = vadd.f32 0.0, %v2868
        %v2870 = vpop.f32.mrb[0].mxu0
        %2871 = vmatprep.mubr.bf16.mxu0 %v2763
        %2872 = vmatmul.mubr.bf16.gmra.mrb[0].mxu0 %v2594
        %v2873 = vpop.f32.mrb[0].mxu0
        %v2874 = vpop.f32.mrb[0].mxu0
        %v2875 = vpop.f32.mrb[0].mxu0
        %v2876 = vadd.f32 0.0, %v2875
        %v2877 = vpop.f32.mrb[0].mxu0
        %2878 = vmatprep.mubr.bf16.mxu0 %v2766
        %2879 = vmatmul.mubr.bf16.gmra.mrb[0].mxu0 %v2597
        %v2880 = vpop.f32.mrb[0].mxu0
        %v2881 = vadd.f32 0.0, %v2880
        %v2882 = vpop.f32.mrb[0].mxu0
        %v2883 = vpop.f32.mrb[0].mxu0
        %v2884 = vpop.f32.mrb[0].mxu0
        %2885 = vmatprep.mubr.bf16.mxu0 %v2769
        %2886 = vmatmul.mubr.bf16.gmra.mrb[0].mxu0 %v2600
        %v2887 = vpop.f32.mrb[0].mxu0
        %v2888 = vadd.f32 0.0, %v2887
        %v2889 = vpop.f32.mrb[0].mxu0
        %v2890 = vpop.f32.mrb[0].mxu0
        %v2891 = vadd.f32 0.0, %v2890
        %v2892 = vpop.f32.mrb[0].mxu0
        %2893 = vmatprep.mubr.bf16.mxu0 %v2772
        %2894 = vmatmul.mubr.bf16.gmra.mrb[0].mxu0 %v2603
        %v2895 = vpop.f32.mrb[0].mxu0
        %v2896 = vpop.f32.mrb[0].mxu0
        %v2897 = vpop.f32.mrb[0].mxu0
        %v2898 = vadd.f32 0.0, %v2897
        %v2899 = vpop.f32.mrb[0].mxu0
        %2900 = vmatprep.mubr.bf16.mxu0 %v2775
        %2901 = vmatmul.mubr.bf16.gmra.mrb[0].mxu0 %v2606
        %v2902 = vpop.f32.mrb[0].mxu0
        %v2903 = vadd.f32 0.0, %v2902
        %v2904 = vpop.f32.mrb[0].mxu0
        %v2905 = vpop.f32.mrb[0].mxu0
        %v2906 = vpop.f32.mrb[0].mxu0
        %2907 = vmatprep.mubr.bf16.mxu0 %v2778
        %2908 = vmatmul.mubr.bf16.gmra.mrb[0].mxu0 %v2609
        %v2909 = vpop.f32.mrb[0].mxu0
        %v2910 = vadd.f32 0.0, %v2909
        %v2911 = vpop.f32.mrb[0].mxu0
        %v2912 = vpop.f32.mrb[0].mxu0
        %v2913 = vadd.f32 0.0, %v2912
        %v2914 = vpop.f32.mrb[0].mxu0
        %2915 = vmatprep.mubr.bf16.mxu0 %v2781
        %2916 = vmatmul.mubr.bf16.gmra.mrb[0].mxu0 %v2612
        %v2917 = vpop.f32.mrb[0].mxu0
        %v2918 = vpop.f32.mrb[0].mxu0
        %v2919 = vpop.f32.mrb[0].mxu0
        %v2920 = vadd.f32 0.0, %v2919
        %v2921 = vpop.f32.mrb[0].mxu0
        %2922 = vmatprep.mubr.bf16.mxu0 %v2784
        %2923 = vmatmul.mubr.bf16.gmra.mrb[0].mxu0 %v2615
        %v2924 = vpop.f32.mrb[0].mxu0
        %v2925 = vadd.f32 0.0, %v2924
        %v2926 = vpop.f32.mrb[0].mxu0
        %v2927 = vpop.f32.mrb[0].mxu0
        %v2928 = vpop.f32.mrb[0].mxu0
        %2929 = vmatprep.mubr.bf16.mxu0 %v2787
        %2930 = vmatmul.mubr.bf16.gmra.mrb[0].mxu0 %v2618
        %v2931 = vpop.f32.mrb[0].mxu0
        %v2932 = vadd.f32 0.0, %v2931
        %v2933 = vpop.f32.mrb[0].mxu0
        %v2934 = vpop.f32.mrb[0].mxu0
        %v2935 = vadd.f32 0.0, %v2934
        %v2936 = vpop.f32.mrb[0].mxu0
        %2937 = vmatprep.mubr.bf16.mxu0 %v2790
        %2938 = vmatmul.mubr.bf16.gmra.mrb[0].mxu0 %v2621
        %v2939 = vpop.f32.mrb[0].mxu0
        %v2940 = vpop.f32.mrb[0].mxu0
        %v2941 = vpop.f32.mrb[0].mxu0
        %v2942 = vadd.f32 0.0, %v2941
        %v2943 = vpop.f32.mrb[0].mxu0
        %2944 = vmatprep.mubr.bf16.mxu0 %v2793
        %2945 = vmatmul.mubr.bf16.gmra.mrb[0].mxu0 %v2624
        %v2946 = vpop.f32.mrb[0].mxu0
        %v2947 = vadd.f32 0.0, %v2946
        %v2948 = vpop.f32.mrb[0].mxu0
        %v2949 = vpop.f32.mrb[0].mxu0
        %v2950 = vpop.f32.mrb[0].mxu0
        %2951 = vmatprep.mubr.bf16.mxu0 %v2796
        %2952 = vmatmul.mubr.bf16.gmra.mrb[0].mxu0 %v2627
        %v2953 = vpop.f32.mrb[0].mxu0
        %v2954 = vadd.f32 0.0, %v2953
        %v2955 = vpop.f32.mrb[0].mxu0
        %v2956 = vpop.f32.mrb[0].mxu0
        %v2957 = vadd.f32 0.0, %v2956
        %v2958 = vpop.f32.mrb[0].mxu0
        %2959 = vmatprep.mubr.bf16.mxu0 %v2799
        %2960 = vmatmul.mubr.bf16.gmra.mrb[0].mxu0 %v2630
        %v2961 = vpop.f32.mrb[0].mxu0
        %v2962 = vpop.f32.mrb[0].mxu0
        %v2963 = vpop.f32.mrb[0].mxu0
        %v2964 = vadd.f32 0.0, %v2963
        %v2965 = vpop.f32.mrb[0].mxu0
        %2966 = vmatprep.mubr.bf16.mxu0 %v2802
        %2967 = vmatmul.mubr.bf16.gmra.mrb[0].mxu0 %v2633
        %v2968 = vpop.f32.mrb[0].mxu0
        %v2969 = vadd.f32 0.0, %v2968
        %v2970 = vpop.f32.mrb[0].mxu0
        %v2971 = vpop.f32.mrb[0].mxu0
        %v2972 = vpop.f32.mrb[0].mxu0
        %2973 = vmatprep.mubr.bf16.mxu0 %v2805
        %2974 = vmatmul.mubr.bf16.gmra.mrb[0].mxu0 %v2636
        %v2975 = vpop.f32.mrb[0].mxu0
        %v2976 = vadd.f32 0.0, %v2975
        %v2977 = vpop.f32.mrb[0].mxu0
        %v2978 = vpop.f32.mrb[0].mxu0
        %v2979 = vadd.f32 0.0, %v2978
        %v2980 = vpop.f32.mrb[0].mxu0
        %2981 = vmatprep.mubr.bf16.mxu0 %v2808
        %2982 = vmatmul.mubr.bf16.gmra.mrb[0].mxu0 %v2639
        %v2983 = vpop.f32.mrb[0].mxu0
        %v2984 = vpop.f32.mrb[0].mxu0
        %v2985 = vpop.f32.mrb[0].mxu0
        %v2986 = vadd.f32 0.0, %v2985
        %v2987 = vpop.f32.mrb[0].mxu0
        %2988 = vmatprep.mubr.bf16.mxu0 %v2811
        %2989 = vmatmul.mubr.bf16.gmra.mrb[0].mxu0 %v2642
        %v2990 = vpop.f32.mrb[0].mxu0
        %v2991 = vadd.f32 0.0, %v2990
        %v2992 = vpop.f32.mrb[0].mxu0
        %v2993 = vpop.f32.mrb[0].mxu0
        %v2994 = vpop.f32.mrb[0].mxu0
        %2995 = vmatprep.mubr.bf16.mxu0 %v2814
        %2996 = vmatmul.mubr.bf16.gmra.mrb[0].mxu0 %v2645
        %v2997 = vpop.f32.mrb[0].mxu0
        %v2998 = vadd.f32 0.0, %v2997
        %v2999 = vpop.f32.mrb[0].mxu0
        %v3000 = vpop.f32.mrb[0].mxu0
        %v3001 = vadd.f32 0.0, %v3000
        %v3002 = vpop.f32.mrb[0].mxu0
        %3003 = vmatprep.mubr.bf16.mxu0 %v2817
        %3004 = vmatmul.mubr.bf16.gmra.mrb[0].mxu0 %v2648
        %v3005 = vpop.f32.mrb[0].mxu0
        %v3006 = vpop.f32.mrb[0].mxu0
        %v3007 = vpop.f32.mrb[0].mxu0
        %v3008 = vadd.f32 0.0, %v3007
        %v3009 = vpop.f32.mrb[0].mxu0
        %3010 = vmatprep.mubr.bf16.mxu0 %v2820
        %3011 = vmatmul.mubr.bf16.gmra.mrb[0].mxu0 %v2651
        %v3012 = vpop.f32.mrb[0].mxu0
        %v3013 = vadd.f32 0.0, %v3012
        %v3014 = vpop.f32.mrb[0].mxu0
        %v3015 = vpop.f32.mrb[0].mxu0
        %v3016 = vpop.f32.mrb[0].mxu0
        %3017 = vmatprep.mubr.bf16.mxu0 %v2823
        %3018 = vmatmul.mubr.bf16.gmra.mrb[0].mxu0 %v2654
        %v3019 = vpop.f32.mrb[0].mxu0
        %v3020 = vadd.f32 0.0, %v3019
        %v3021 = vpop.f32.mrb[0].mxu0
        %v3022 = vpop.f32.mrb[0].mxu0
        %v3023 = vadd.f32 0.0, %v3022
        %v3024 = vpop.f32.mrb[0].mxu0
        %3025 = vmatprep.mubr.bf16.mxu0 %v2826
        %3026 = vmatmul.mubr.bf16.gmra.mrb[0].mxu0 %v2657
        %v3027 = vpop.f32.mrb[0].mxu0
        %v3028 = vpop.f32.mrb[0].mxu0
        %v3029 = vpop.f32.mrb[0].mxu0
        %v3030 = vadd.f32 0.0, %v3029
        %v3031 = vpop.f32.mrb[0].mxu0
        %3032 = vmatprep.mubr.bf16.mxu0 %v2829
        %3033 = vmatmul.mubr.bf16.gmra.mrb[0].mxu0 %v2660
        %v3034 = vpop.f32.mrb[0].mxu0
        %v3035 = vadd.f32 0.0, %v3034
        %v3036 = vpop.f32.mrb[0].mxu0
        %v3037 = vpop.f32.mrb[0].mxu0
        %v3038 = vpop.f32.mrb[0].mxu0
        %3039 = vdwg.mxu0
        %v3040 = vadd.f32 %v2089, %v2866
        %v3041 = vadd.f32 %v2090, %v2869
        %v3042 = vadd.f32 %v2091, %v2876
        %v3043 = vadd.f32 %v2092, %v2881
        %v3044 = vadd.f32 %v2093, %v2888
        %v3045 = vadd.f32 %v2094, %v2891
        %v3046 = vadd.f32 %v2095, %v2898
        %v3047 = vadd.f32 %v2096, %v2903
        %v3048 = vadd.f32 %v2097, %v2910
        %v3049 = vadd.f32 %v2098, %v2913
        %v3050 = vadd.f32 %v2099, %v2920
        %v3051 = vadd.f32 %v2100, %v2925
        %v3052 = vadd.f32 %v2101, %v2932
        %v3053 = vadd.f32 %v2102, %v2935
        %v3054 = vadd.f32 %v2103, %v2942
        %v3055 = vadd.f32 %v2104, %v2947
        %v3056 = vadd.f32 %v2105, %v2954
        %v3057 = vadd.f32 %v2106, %v2957
        %v3058 = vadd.f32 %v2107, %v2964
        %v3059 = vadd.f32 %v2108, %v2969
        %v3060 = vadd.f32 %v2109, %v2976
        %v3061 = vadd.f32 %v2110, %v2979
        %v3062 = vadd.f32 %v2111, %v2986
        %v3063 = vadd.f32 %v2112, %v2991
        %v3064 = vadd.f32 %v2113, %v2998
        %v3065 = vadd.f32 %v2114, %v3001
        %v3066 = vadd.f32 %v2115, %v3008
        %v3067 = vadd.f32 %v2116, %v3013
        %v3068 = vadd.f32 %v2117, %v3020
        %v3069 = vadd.f32 %v2118, %v3023
        %v3070 = vadd.f32 %v2119, %v3030
        %v3071 = vadd.f32 %v2120, %v3035
        %v3072 = vld [vmem:[#allocation2 + $0x18] sm:$0xf]
        %v3073 = vld [vmem:[#allocation2 + $0x1c] sm:$0xf]
        %v3074 = vld [vmem:[#allocation2 + $0x20] sm:$0xf]
        %v3075 = vld [vmem:[#allocation2 + $0x24] sm:$0xf]
        %v3076 = vld [vmem:[#allocation2 + $0x28] sm:$0xf]
        %v3077 = vld [vmem:[#allocation2 + $0x2c] sm:$0xf]
        %v3078 = vld [vmem:[#allocation2 + $0x30] sm:$0xf]
        %v3079 = vld [vmem:[#allocation2 + $0x34] sm:$0xf]
        %v3080 = vld [vmem:[#allocation2 + $0x38] sm:$0xf]
        %v3081 = vld [vmem:[#allocation2 + $0x3c] sm:$0xf]
        %v3082 = vld [vmem:[#allocation2 + $0x40] sm:$0xf]
        %v3083 = vld [vmem:[#allocation2 + $0x44] sm:$0xf]
        %v3084 = vld [vmem:[#allocation2 + $0x48] sm:$0xf]
        %v3085 = vld [vmem:[#allocation2 + $0x4c] sm:$0xf]
        %v3086 = vld [vmem:[#allocation2 + $0x50] sm:$0xf]
        %v3087 = vld [vmem:[#allocation2 + $0x54] sm:$0xf]
        %v3088 = vld [vmem:[#allocation2 + $0x58] sm:$0xf]
        %v3089 = vld [vmem:[#allocation2 + $0x5c] sm:$0xf]
        %v3090 = vld [vmem:[#allocation2 + $0x60] sm:$0xf]
        %v3091 = vld [vmem:[#allocation2 + $0x64] sm:$0xf]
        %v3092 = vld [vmem:[#allocation2 + $0x68] sm:$0xf]
        %v3093 = vld [vmem:[#allocation2 + $0x6c] sm:$0xf]
        %v3094 = vld [vmem:[#allocation2 + $0x70] sm:$0xf]
        %v3095 = vld [vmem:[#allocation2 + $0x74] sm:$0xf]
        %v3096 = vld [vmem:[#allocation2 + $0x78] sm:$0xf]
        %v3097 = vld [vmem:[#allocation2 + $0x7c] sm:$0xf]
        %v3098 = vld [vmem:[#allocation2 + $0x80] sm:$0xf]
        %v3099 = vld [vmem:[#allocation2 + $0x84] sm:$0xf]
        %v3100 = vld [vmem:[#allocation2 + $0x88] sm:$0xf]
        %v3101 = vld [vmem:[#allocation2 + $0x8c] sm:$0xf]
        %v3102 = vld [vmem:[#allocation2 + $0x90] sm:$0xf]
        %v3103 = vld [vmem:[#allocation2 + $0x94] sm:$0xf]
        %v3104 = vld [vmem:[#allocation2 + $0x98] sm:$0xf]
        %v3105 = vld [vmem:[#allocation2 + $0x9c] sm:$0xf]
        %v3106 = vld [vmem:[#allocation2 + $0xa0] sm:$0xf]
        %v3107 = vld [vmem:[#allocation2 + $0xa4] sm:$0xf]
        %v3108 = vld [vmem:[#allocation2 + $0xa8] sm:$0xf]
        %v3109 = vld [vmem:[#allocation2 + $0xac] sm:$0xf]
        %v3110 = vld [vmem:[#allocation2 + $0xb0] sm:$0xf]
        %v3111 = vld [vmem:[#allocation2 + $0xb4] sm:$0xf]
        %v3112 = vld [vmem:[#allocation2 + $0xb8] sm:$0xf]
        %v3113 = vld [vmem:[#allocation2 + $0xbc] sm:$0xf]
        %v3114 = vld [vmem:[#allocation2 + $0xc0] sm:$0xf]
        %v3115 = vld [vmem:[#allocation2 + $0xc4] sm:$0xf]
        %v3116 = vld [vmem:[#allocation2 + $0xc8] sm:$0xf]
        %v3117 = vld [vmem:[#allocation2 + $0xcc] sm:$0xf]
        %v3118 = vld [vmem:[#allocation2 + $0xd0] sm:$0xf]
        %v3119 = vld [vmem:[#allocation2 + $0xd4] sm:$0xf]
        %v3120 = vld [vmem:[#allocation2 + $0xd8] sm:$0x1]
        %v3121 = vld [vmem:[#allocation2 + $0x18] sm:$0xe]
        %v3170 = vunpack.c.l.b16 %v3072
        %v3171 = vunpack.c.l.b16 %v3073
        %v3172 = vunpack.c.l.b16 %v3074
        %v3173 = vunpack.c.l.b16 %v3075
        %v3174 = vunpack.c.l.b16 %v3076
        %v3175 = vunpack.c.l.b16 %v3077
        %v3176 = vunpack.c.l.b16 %v3078
        %v3177 = vunpack.c.l.b16 %v3079
        %v3178 = vunpack.c.l.b16 %v3080
        %v3179 = vunpack.c.l.b16 %v3081
        %v3180 = vunpack.c.l.b16 %v3082
        %v3181 = vunpack.c.l.b16 %v3083
        %v3182 = vunpack.c.l.b16 %v3084
        %v3183 = vunpack.c.l.b16 %v3085
        %v3184 = vunpack.c.l.b16 %v3086
        %v3185 = vunpack.c.l.b16 %v3087
        %v3186 = vunpack.c.l.b16 %v3088
        %v3187 = vunpack.c.l.b16 %v3089
        %v3188 = vunpack.c.l.b16 %v3090
        %v3189 = vunpack.c.l.b16 %v3091
        %v3190 = vunpack.c.l.b16 %v3092
        %v3191 = vunpack.c.l.b16 %v3093
        %v3192 = vunpack.c.l.b16 %v3094
        %v3193 = vunpack.c.l.b16 %v3095
        %v3194 = vunpack.c.l.b16 %v3096
        %v3195 = vunpack.c.l.b16 %v3097
        %v3196 = vunpack.c.l.b16 %v3098
        %v3197 = vunpack.c.l.b16 %v3099
        %v3198 = vunpack.c.l.b16 %v3100
        %v3199 = vunpack.c.l.b16 %v3101
        %v3200 = vunpack.c.l.b16 %v3102
        %v3201 = vunpack.c.l.b16 %v3103
        %v3202 = vunpack.c.l.b16 %v3104
        %v3203 = vunpack.c.l.b16 %v3105
        %v3204 = vunpack.c.l.b16 %v3106
        %v3205 = vunpack.c.l.b16 %v3107
        %v3206 = vunpack.c.l.b16 %v3108
        %v3207 = vunpack.c.l.b16 %v3109
        %v3208 = vunpack.c.l.b16 %v3110
        %v3209 = vunpack.c.l.b16 %v3111
        %v3210 = vunpack.c.l.b16 %v3112
        %v3211 = vunpack.c.l.b16 %v3113
        %v3212 = vunpack.c.l.b16 %v3114
        %v3213 = vunpack.c.l.b16 %v3115
        %v3214 = vunpack.c.l.b16 %v3116
        %v3215 = vunpack.c.l.b16 %v3117
        %v3216 = vunpack.c.l.b16 %v3118
        %v3217 = vunpack.c.l.b16 %v3119
        %v3218 = vpack.c.b16 %v3171, %v3170
        %v3219 = vpack.c.b16 %v3173, %v3172
        %v3220 = vpack.c.b16 %v3175, %v3174
        %v3221 = vpack.c.b16 %v3177, %v3176
        %v3222 = vpack.c.b16 %v3179, %v3178
        %v3223 = vpack.c.b16 %v3181, %v3180
        %v3224 = vpack.c.b16 %v3183, %v3182
        %v3225 = vpack.c.b16 %v3185, %v3184
        %v3226 = vpack.c.b16 %v3187, %v3186
        %v3227 = vpack.c.b16 %v3189, %v3188
        %v3228 = vpack.c.b16 %v3191, %v3190
        %v3229 = vpack.c.b16 %v3193, %v3192
        %v3230 = vpack.c.b16 %v3195, %v3194
        %v3231 = vpack.c.b16 %v3197, %v3196
        %v3232 = vpack.c.b16 %v3199, %v3198
        %v3233 = vpack.c.b16 %v3201, %v3200
        %v3234 = vpack.c.b16 %v3203, %v3202
        %v3235 = vpack.c.b16 %v3205, %v3204
        %v3236 = vpack.c.b16 %v3207, %v3206
        %v3237 = vpack.c.b16 %v3209, %v3208
        %v3238 = vpack.c.b16 %v3211, %v3210
        %v3239 = vpack.c.b16 %v3213, %v3212
        %v3240 = vpack.c.b16 %v3215, %v3214
        %v3241 = vpack.c.b16 %v3217, %v3216
        %v3243 = vunpack.c.l.b16 %v3120
        %v3244 = vpack.c.b16 %v3243, %v3243
        %v3246 = vshrl.u32 %v3218, 16
        %v3248 = vshll.u32 %v3218, 16
        %v3250 = vrot.slane %v3248, 1
        %v3251 = vor.u32 %v3246, %v3250
        %v3253 = vshll.u32 %v3219, 16
        %v3255 = vrot.slane %v3253, 1
        %v3256 = vsel %vm1341, %v3251, %v3255
        %v3257 = vshrl.u32 %v3219, 16
        %v3259 = vor.u32 %v3257, %v3255
        %v3261 = vshll.u32 %v3220, 16
        %v3263 = vrot.slane %v3261, 1
        %v3264 = vsel %vm1341, %v3259, %v3263
        %v3265 = vshrl.u32 %v3220, 16
        %v3267 = vor.u32 %v3265, %v3263
        %v3269 = vshll.u32 %v3221, 16
        %v3271 = vrot.slane %v3269, 1
        %v3272 = vsel %vm1341, %v3267, %v3271
        %v3273 = vshrl.u32 %v3221, 16
        %v3275 = vor.u32 %v3273, %v3271
        %v3277 = vshll.u32 %v3222, 16
        %v3279 = vrot.slane %v3277, 1
        %v3280 = vsel %vm1341, %v3275, %v3279
        %v3281 = vshrl.u32 %v3222, 16
        %v3283 = vor.u32 %v3281, %v3279
        %v3285 = vshll.u32 %v3223, 16
        %v3287 = vrot.slane %v3285, 1
        %v3288 = vsel %vm1341, %v3283, %v3287
        %v3289 = vshrl.u32 %v3223, 16
        %v3291 = vor.u32 %v3289, %v3287
        %v3293 = vshll.u32 %v3224, 16
        %v3295 = vrot.slane %v3293, 1
        %v3296 = vsel %vm1341, %v3291, %v3295
        %v3297 = vshrl.u32 %v3224, 16
        %v3299 = vor.u32 %v3297, %v3295
        %v3301 = vshll.u32 %v3225, 16
        %v3303 = vrot.slane %v3301, 1
        %v3304 = vsel %vm1341, %v3299, %v3303
        %v3305 = vshrl.u32 %v3225, 16
        %v3307 = vor.u32 %v3305, %v3303
        %v3309 = vshll.u32 %v3226, 16
        %v3311 = vrot.slane %v3309, 1
        %v3312 = vsel %vm1341, %v3307, %v3311
        %v3313 = vshrl.u32 %v3226, 16
        %v3315 = vor.u32 %v3313, %v3311
        %v3317 = vshll.u32 %v3227, 16
        %v3319 = vrot.slane %v3317, 1
        %v3320 = vsel %vm1341, %v3315, %v3319
        %v3321 = vshrl.u32 %v3227, 16
        %v3323 = vor.u32 %v3321, %v3319
        %v3325 = vshll.u32 %v3228, 16
        %v3327 = vrot.slane %v3325, 1
        %v3328 = vsel %vm1341, %v3323, %v3327
        %v3329 = vshrl.u32 %v3228, 16
        %v3331 = vor.u32 %v3329, %v3327
        %v3333 = vshll.u32 %v3229, 16
        %v3335 = vrot.slane %v3333, 1
        %v3336 = vsel %vm1341, %v3331, %v3335
        %v3337 = vshrl.u32 %v3229, 16
        %v3339 = vor.u32 %v3337, %v3335
        %v3341 = vshll.u32 %v3230, 16
        %v3343 = vrot.slane %v3341, 1
        %v3344 = vsel %vm1341, %v3339, %v3343
        %v3345 = vshrl.u32 %v3230, 16
        %v3347 = vor.u32 %v3345, %v3343
        %v3349 = vshll.u32 %v3231, 16
        %v3351 = vrot.slane %v3349, 1
        %v3352 = vsel %vm1341, %v3347, %v3351
        %v3353 = vshrl.u32 %v3231, 16
        %v3355 = vor.u32 %v3353, %v3351
        %v3357 = vshll.u32 %v3232, 16
        %v3359 = vrot.slane %v3357, 1
        %v3360 = vsel %vm1341, %v3355, %v3359
        %v3361 = vshrl.u32 %v3232, 16
        %v3363 = vor.u32 %v3361, %v3359
        %v3365 = vshll.u32 %v3233, 16
        %v3367 = vrot.slane %v3365, 1
        %v3368 = vsel %vm1341, %v3363, %v3367
        %v3369 = vshrl.u32 %v3233, 16
        %v3371 = vor.u32 %v3369, %v3367
        %v3373 = vshll.u32 %v3234, 16
        %v3375 = vrot.slane %v3373, 1
        %v3376 = vsel %vm1341, %v3371, %v3375
        %v3377 = vshrl.u32 %v3234, 16
        %v3379 = vor.u32 %v3377, %v3375
        %v3381 = vshll.u32 %v3235, 16
        %v3383 = vrot.slane %v3381, 1
        %v3384 = vsel %vm1341, %v3379, %v3383
        %v3385 = vshrl.u32 %v3235, 16
        %v3387 = vor.u32 %v3385, %v3383
        %v3389 = vshll.u32 %v3236, 16
        %v3391 = vrot.slane %v3389, 1
        %v3392 = vsel %vm1341, %v3387, %v3391
        %v3393 = vshrl.u32 %v3236, 16
        %v3395 = vor.u32 %v3393, %v3391
        %v3397 = vshll.u32 %v3237, 16
        %v3399 = vrot.slane %v3397, 1
        %v3400 = vsel %vm1341, %v3395, %v3399
        %v3401 = vshrl.u32 %v3237, 16
        %v3403 = vor.u32 %v3401, %v3399
        %v3405 = vshll.u32 %v3238, 16
        %v3407 = vrot.slane %v3405, 1
        %v3408 = vsel %vm1341, %v3403, %v3407
        %v3409 = vshrl.u32 %v3238, 16
        %v3411 = vor.u32 %v3409, %v3407
        %v3413 = vshll.u32 %v3239, 16
        %v3415 = vrot.slane %v3413, 1
        %v3416 = vsel %vm1341, %v3411, %v3415
        %v3417 = vshrl.u32 %v3239, 16
        %v3419 = vor.u32 %v3417, %v3415
        %v3421 = vshll.u32 %v3240, 16
        %v3423 = vrot.slane %v3421, 1
        %v3424 = vsel %vm1341, %v3419, %v3423
        %v3425 = vshrl.u32 %v3240, 16
        %v3427 = vor.u32 %v3425, %v3423
        %v3429 = vshll.u32 %v3241, 16
        %v3431 = vrot.slane %v3429, 1
        %v3432 = vsel %vm1341, %v3427, %v3431
        %v3433 = vshrl.u32 %v3241, 16
        %v3435 = vor.u32 %v3433, %v3431
        %v3437 = vshll.u32 %v3244, 16
        %v3439 = vrot.slane %v3437, 1
        %v3440 = vsel %vm1341, %v3435, %v3439
        %3441 = vrot.lane.b32.xlu0 %v3256, 64
        %v3442 = vpop.permute.xlu0 %3441
        %3443 = vrot.lane.b32.xlu0 %v3264, 64
        %v3444 = vpop.permute.xlu0 %3443
        %3445 = vrot.lane.b32.xlu0 %v3272, 64
        %v3446 = vpop.permute.xlu0 %3445
        %3447 = vrot.lane.b32.xlu0 %v3280, 64
        %v3448 = vpop.permute.xlu0 %3447
        %3449 = vrot.lane.b32.xlu0 %v3288, 64
        %v3450 = vpop.permute.xlu0 %3449
        %3451 = vrot.lane.b32.xlu0 %v3296, 64
        %v3452 = vpop.permute.xlu0 %3451
        %3453 = vrot.lane.b32.xlu0 %v3304, 64
        %v3454 = vpop.permute.xlu0 %3453
        %3455 = vrot.lane.b32.xlu0 %v3312, 64
        %v3456 = vpop.permute.xlu0 %3455
        %3457 = vrot.lane.b32.xlu0 %v3320, 64
        %v3458 = vpop.permute.xlu0 %3457
        %3459 = vrot.lane.b32.xlu0 %v3328, 64
        %v3460 = vpop.permute.xlu0 %3459
        %3461 = vrot.lane.b32.xlu0 %v3336, 64
        %v3462 = vpop.permute.xlu0 %3461
        %3463 = vrot.lane.b32.xlu0 %v3344, 64
        %v3464 = vpop.permute.xlu0 %3463
        %3465 = vrot.lane.b32.xlu0 %v3352, 64
        %v3466 = vpop.permute.xlu0 %3465
        %3467 = vrot.lane.b32.xlu0 %v3360, 64
        %v3468 = vpop.permute.xlu0 %3467
        %3469 = vrot.lane.b32.xlu0 %v3368, 64
        %v3470 = vpop.permute.xlu0 %3469
        %3471 = vrot.lane.b32.xlu0 %v3376, 64
        %v3472 = vpop.permute.xlu0 %3471
        %3473 = vrot.lane.b32.xlu0 %v3384, 64
        %v3474 = vpop.permute.xlu0 %3473
        %3475 = vrot.lane.b32.xlu0 %v3392, 64
        %v3476 = vpop.permute.xlu0 %3475
        %3477 = vrot.lane.b32.xlu0 %v3400, 64
        %v3478 = vpop.permute.xlu0 %3477
        %3479 = vrot.lane.b32.xlu0 %v3408, 64
        %v3480 = vpop.permute.xlu0 %3479
        %3481 = vrot.lane.b32.xlu0 %v3416, 64
        %v3482 = vpop.permute.xlu0 %3481
        %3483 = vrot.lane.b32.xlu0 %v3424, 64
        %v3484 = vpop.permute.xlu0 %3483
        %3485 = vrot.lane.b32.xlu0 %v3432, 64
        %v3486 = vpop.permute.xlu0 %3485
        %3487 = vrot.lane.b32.xlu0 %v3440, 64
        %v3488 = vpop.permute.xlu0 %3487
        %v3490 = vunpack.c.l.b16 %v3121
        %v3491 = vpack.c.b16 %v3171, %v3490
        %v3492 = vrot.slane %v3491, 1
        %v3493 = vrot.slane %v3219, 1
        %v3494 = vsel %vm1589, %v3492, %v3493
        %v3495 = vrot.slane %v3220, 1
        %v3496 = vsel %vm1589, %v3493, %v3495
        %v3497 = vrot.slane %v3221, 1
        %v3498 = vsel %vm1589, %v3495, %v3497
        %v3499 = vrot.slane %v3222, 1
        %v3500 = vsel %vm1589, %v3497, %v3499
        %v3501 = vrot.slane %v3223, 1
        %v3502 = vsel %vm1589, %v3499, %v3501
        %v3503 = vrot.slane %v3224, 1
        %v3504 = vsel %vm1589, %v3501, %v3503
        %v3505 = vrot.slane %v3225, 1
        %v3506 = vsel %vm1589, %v3503, %v3505
        %v3507 = vrot.slane %v3226, 1
        %v3508 = vsel %vm1589, %v3505, %v3507
        %v3509 = vrot.slane %v3227, 1
        %v3510 = vsel %vm1589, %v3507, %v3509
        %v3511 = vrot.slane %v3228, 1
        %v3512 = vsel %vm1589, %v3509, %v3511
        %v3513 = vrot.slane %v3229, 1
        %v3514 = vsel %vm1589, %v3511, %v3513
        %v3515 = vrot.slane %v3230, 1
        %v3516 = vsel %vm1589, %v3513, %v3515
        %v3517 = vrot.slane %v3231, 1
        %v3518 = vsel %vm1589, %v3515, %v3517
        %v3519 = vrot.slane %v3232, 1
        %v3520 = vsel %vm1589, %v3517, %v3519
        %v3521 = vrot.slane %v3233, 1
        %v3522 = vsel %vm1589, %v3519, %v3521
        %v3523 = vrot.slane %v3234, 1
        %v3524 = vsel %vm1589, %v3521, %v3523
        %v3525 = vrot.slane %v3235, 1
        %v3526 = vsel %vm1589, %v3523, %v3525
        %v3527 = vrot.slane %v3236, 1
        %v3528 = vsel %vm1589, %v3525, %v3527
        %v3529 = vrot.slane %v3237, 1
        %v3530 = vsel %vm1589, %v3527, %v3529
        %v3531 = vrot.slane %v3238, 1
        %v3532 = vsel %vm1589, %v3529, %v3531
        %v3533 = vrot.slane %v3239, 1
        %v3534 = vsel %vm1589, %v3531, %v3533
        %v3535 = vrot.slane %v3240, 1
        %v3536 = vsel %vm1589, %v3533, %v3535
        %v3537 = vrot.slane %v3241, 1
        %v3538 = vsel %vm1589, %v3535, %v3537
        %v3539 = vrot.slane %v3244, 1
        %v3540 = vsel %vm1589, %v3537, %v3539
        %v3542 = vsel %vm1639, %v3218, %v3442
        %v3545 = vsel %vm1639, %v3219, %v3444
        %v3548 = vsel %vm1639, %v3220, %v3446
        %v3551 = vsel %vm1639, %v3221, %v3448
        %v3554 = vsel %vm1639, %v3222, %v3450
        %v3557 = vsel %vm1639, %v3223, %v3452
        %v3560 = vsel %vm1639, %v3224, %v3454
        %v3563 = vsel %vm1639, %v3225, %v3456
        %v3566 = vsel %vm1639, %v3226, %v3458
        %v3569 = vsel %vm1639, %v3227, %v3460
        %v3572 = vsel %vm1639, %v3228, %v3462
        %v3575 = vsel %vm1639, %v3229, %v3464
        %v3578 = vsel %vm1639, %v3230, %v3466
        %v3581 = vsel %vm1639, %v3231, %v3468
        %v3584 = vsel %vm1639, %v3232, %v3470
        %v3587 = vsel %vm1639, %v3233, %v3472
        %v3590 = vsel %vm1639, %v3234, %v3474
        %v3593 = vsel %vm1639, %v3235, %v3476
        %v3596 = vsel %vm1639, %v3236, %v3478
        %v3599 = vsel %vm1639, %v3237, %v3480
        %v3602 = vsel %vm1639, %v3238, %v3482
        %v3605 = vsel %vm1639, %v3239, %v3484
        %v3608 = vsel %vm1639, %v3240, %v3486
        %v3611 = vsel %vm1639, %v3241, %v3488
        %s3613 = scalar_lea.vmem [#allocation9], 192
        %v3614 = vld [vmem:[%s3613] sm:$0xf]
        %v3615 = vld [vmem:[%s3613 + $0x4] sm:$0xf]
        %v3616 = vld [vmem:[%s3613 + $0x8] sm:$0xf]
        %v3617 = vld [vmem:[%s3613 + $0xc] sm:$0xf]
        %v3618 = vld [vmem:[%s3613 + $0x10] sm:$0xf]
        %v3619 = vld [vmem:[%s3613 + $0x14] sm:$0xf]
        %v3620 = vld [vmem:[%s3613 + $0x18] sm:$0xf]
        %v3621 = vld [vmem:[%s3613 + $0x1c] sm:$0xf]
        %v3622 = vld [vmem:[%s3613 + $0x20] sm:$0xf]
        %v3623 = vld [vmem:[%s3613 + $0x24] sm:$0xf]
        %v3624 = vld [vmem:[%s3613 + $0x28] sm:$0xf]
        %v3625 = vld [vmem:[%s3613 + $0x2c] sm:$0xf]
        %v3626 = vld [vmem:[%s3613 + $0x30] sm:$0xf]
        %v3627 = vld [vmem:[%s3613 + $0x34] sm:$0xf]
        %v3628 = vld [vmem:[%s3613 + $0x38] sm:$0xf]
        %v3629 = vld [vmem:[%s3613 + $0x3c] sm:$0xf]
        %v3630 = vld [vmem:[%s3613 + $0x40] sm:$0xf]
        %v3631 = vld [vmem:[%s3613 + $0x44] sm:$0xf]
        %v3632 = vld [vmem:[%s3613 + $0x48] sm:$0xf]
        %v3633 = vld [vmem:[%s3613 + $0x4c] sm:$0xf]
        %v3634 = vld [vmem:[%s3613 + $0x50] sm:$0xf]
        %v3635 = vld [vmem:[%s3613 + $0x54] sm:$0xf]
        %v3636 = vld [vmem:[%s3613 + $0x58] sm:$0xf]
        %v3637 = vld [vmem:[%s3613 + $0x5c] sm:$0xf]
        %v3662 = vunpack.c.l.b16 %v3614
        %v3663 = vunpack.c.l.b16 %v3615
        %v3664 = vunpack.c.l.b16 %v3616
        %v3665 = vunpack.c.l.b16 %v3617
        %v3666 = vunpack.c.l.b16 %v3618
        %v3667 = vunpack.c.l.b16 %v3619
        %v3668 = vunpack.c.l.b16 %v3620
        %v3669 = vunpack.c.l.b16 %v3621
        %v3670 = vunpack.c.l.b16 %v3622
        %v3671 = vunpack.c.l.b16 %v3623
        %v3672 = vunpack.c.l.b16 %v3624
        %v3673 = vunpack.c.l.b16 %v3625
        %v3674 = vunpack.c.l.b16 %v3626
        %v3675 = vunpack.c.l.b16 %v3627
        %v3676 = vunpack.c.l.b16 %v3628
        %v3677 = vunpack.c.l.b16 %v3629
        %v3678 = vunpack.c.l.b16 %v3630
        %v3679 = vunpack.c.l.b16 %v3631
        %v3680 = vunpack.c.l.b16 %v3632
        %v3681 = vunpack.c.l.b16 %v3633
        %v3682 = vunpack.c.l.b16 %v3634
        %v3683 = vunpack.c.l.b16 %v3635
        %v3684 = vunpack.c.l.b16 %v3636
        %v3685 = vunpack.c.l.b16 %v3637
        %v3686 = vpack.c.b16 %v3663, %v3662
        %v3687 = vpack.c.b16 %v3665, %v3664
        %v3688 = vpack.c.b16 %v3667, %v3666
        %v3689 = vpack.c.b16 %v3669, %v3668
        %v3690 = vpack.c.b16 %v3671, %v3670
        %v3691 = vpack.c.b16 %v3673, %v3672
        %v3692 = vpack.c.b16 %v3675, %v3674
        %v3693 = vpack.c.b16 %v3677, %v3676
        %v3694 = vpack.c.b16 %v3679, %v3678
        %v3695 = vpack.c.b16 %v3681, %v3680
        %v3696 = vpack.c.b16 %v3683, %v3682
        %v3697 = vpack.c.b16 %v3685, %v3684
        %v3711 = vsel %vm1639, %v3494, 0
        %v3714 = vsel %vm1639, %v3496, 0
        %v3717 = vsel %vm1639, %v3498, 0
        %v3720 = vsel %vm1639, %v3500, 0
        %v3723 = vsel %vm1639, %v3502, 0
        %v3726 = vsel %vm1639, %v3504, 0
        %v3729 = vsel %vm1639, %v3506, 0
        %v3732 = vsel %vm1639, %v3508, 0
        %v3735 = vsel %vm1639, %v3510, 0
        %v3738 = vsel %vm1639, %v3512, 0
        %v3741 = vsel %vm1639, %v3514, 0
        %v3744 = vsel %vm1639, %v3516, 0
        %v3747 = vsel %vm1639, %v3518, 0
        %v3750 = vsel %vm1639, %v3520, 0
        %v3753 = vsel %vm1639, %v3522, 0
        %v3756 = vsel %vm1639, %v3524, 0
        %v3759 = vsel %vm1639, %v3526, 0
        %v3762 = vsel %vm1639, %v3528, 0
        %v3765 = vsel %vm1639, %v3530, 0
        %v3768 = vsel %vm1639, %v3532, 0
        %v3771 = vsel %vm1639, %v3534, 0
        %v3774 = vsel %vm1639, %v3536, 0
        %v3777 = vsel %vm1639, %v3538, 0
        %v3780 = vsel %vm1639, %v3540, 0
        %3782 = vmatprep.subr.bf16.mxu0 0
        %3783 = vmatpush1.bf16.msra.mxu0 %v3686
        %3784 = vmatprep.subr.bf16.mxu0 0
        %3785 = vmatpush1.bf16.msra.mxu0 %v3687
        %3786 = vmatprep.subr.bf16.mxu0 0
        %3787 = vmatpush1.bf16.msra.mxu0 %v3688
        %3788 = vmatprep.subr.bf16.mxu0 0
        %3789 = vmatpush1.bf16.msra.mxu0 %v3689
        %3790 = vmatprep.subr.bf16.mxu0 0
        %3791 = vmatpush1.bf16.msra.mxu0 %v3690
        %3792 = vmatprep.subr.bf16.mxu0 0
        %3793 = vmatpush1.bf16.msra.mxu0 %v3691
        %3794 = vmatprep.subr.bf16.mxu0 0
        %3795 = vmatpush1.bf16.msra.mxu0 %v3692
        %3796 = vmatprep.subr.bf16.mxu0 0
        %3797 = vmatpush1.bf16.msra.mxu0 %v3693
        %3798 = vmatprep.subr.bf16.mxu0 0
        %3799 = vmatpush1.bf16.msra.mxu0 %v3694
        %3800 = vmatprep.subr.bf16.mxu0 0
        %3801 = vmatpush1.bf16.msra.mxu0 %v3695
        %3802 = vmatprep.subr.bf16.mxu0 0
        %3803 = vmatpush1.bf16.msra.mxu0 %v3696
        %3804 = vmatprep.subr.bf16.mxu0 0
        %3805 = vmatpush1.bf16.msra.mxu0 %v3697
        %3806 = vmatprep.subr.bf16.mxu0 0
        %3807 = vmatpush1.bf16.msra.mxu0 0
        %3808 = vmatprep.subr.bf16.mxu0 0
        %3809 = vmatpush1.bf16.msra.mxu0 0
        %3810 = vmatprep.subr.bf16.mxu0 0
        %3811 = vmatpush1.bf16.msra.mxu0 0
        %3812 = vmatprep.subr.bf16.mxu0 0
        %3813 = vmatpush1.bf16.msra.mxu0 0
        %3814 = vmatprep.mubr.bf16.mxu0 %v3711
        %3815 = vmatmul.mubr.bf16.gmra.mrb[0].mxu0 %v3542
        %v3816 = vpop.f32.mrb[0].mxu0
        %v3817 = vadd.f32 0.0, %v3816
        %v3818 = vpop.f32.mrb[0].mxu0
        %v3819 = vpop.f32.mrb[0].mxu0
        %v3820 = vadd.f32 0.0, %v3819
        %v3821 = vpop.f32.mrb[0].mxu0
        %3822 = vmatprep.mubr.bf16.mxu0 %v3714
        %3823 = vmatmul.mubr.bf16.gmra.mrb[0].mxu0 %v3545
        %v3824 = vpop.f32.mrb[0].mxu0
        %v3825 = vpop.f32.mrb[0].mxu0
        %v3826 = vpop.f32.mrb[0].mxu0
        %v3827 = vadd.f32 0.0, %v3826
        %v3828 = vpop.f32.mrb[0].mxu0
        %3829 = vmatprep.mubr.bf16.mxu0 %v3717
        %3830 = vmatmul.mubr.bf16.gmra.mrb[0].mxu0 %v3548
        %v3831 = vpop.f32.mrb[0].mxu0
        %v3832 = vadd.f32 0.0, %v3831
        %v3833 = vpop.f32.mrb[0].mxu0
        %v3834 = vpop.f32.mrb[0].mxu0
        %v3835 = vpop.f32.mrb[0].mxu0
        %3836 = vmatprep.mubr.bf16.mxu0 %v3720
        %3837 = vmatmul.mubr.bf16.gmra.mrb[0].mxu0 %v3551
        %v3838 = vpop.f32.mrb[0].mxu0
        %v3839 = vadd.f32 0.0, %v3838
        %v3840 = vpop.f32.mrb[0].mxu0
        %v3841 = vpop.f32.mrb[0].mxu0
        %v3842 = vadd.f32 0.0, %v3841
        %v3843 = vpop.f32.mrb[0].mxu0
        %3844 = vmatprep.mubr.bf16.mxu0 %v3723
        %3845 = vmatmul.mubr.bf16.gmra.mrb[0].mxu0 %v3554
        %v3846 = vpop.f32.mrb[0].mxu0
        %v3847 = vpop.f32.mrb[0].mxu0
        %v3848 = vpop.f32.mrb[0].mxu0
        %v3849 = vadd.f32 0.0, %v3848
        %v3850 = vpop.f32.mrb[0].mxu0
        %3851 = vmatprep.mubr.bf16.mxu0 %v3726
        %3852 = vmatmul.mubr.bf16.gmra.mrb[0].mxu0 %v3557
        %v3853 = vpop.f32.mrb[0].mxu0
        %v3854 = vadd.f32 0.0, %v3853
        %v3855 = vpop.f32.mrb[0].mxu0
        %v3856 = vpop.f32.mrb[0].mxu0
        %v3857 = vpop.f32.mrb[0].mxu0
        %3858 = vmatprep.mubr.bf16.mxu0 %v3729
        %3859 = vmatmul.mubr.bf16.gmra.mrb[0].mxu0 %v3560
        %v3860 = vpop.f32.mrb[0].mxu0
        %v3861 = vadd.f32 0.0, %v3860
        %v3862 = vpop.f32.mrb[0].mxu0
        %v3863 = vpop.f32.mrb[0].mxu0
        %v3864 = vadd.f32 0.0, %v3863
        %v3865 = vpop.f32.mrb[0].mxu0
        %3866 = vmatprep.mubr.bf16.mxu0 %v3732
        %3867 = vmatmul.mubr.bf16.gmra.mrb[0].mxu0 %v3563
        %v3868 = vpop.f32.mrb[0].mxu0
        %v3869 = vpop.f32.mrb[0].mxu0
        %v3870 = vpop.f32.mrb[0].mxu0
        %v3871 = vadd.f32 0.0, %v3870
        %v3872 = vpop.f32.mrb[0].mxu0
        %3873 = vmatprep.mubr.bf16.mxu0 %v3735
        %3874 = vmatmul.mubr.bf16.gmra.mrb[0].mxu0 %v3566
        %v3875 = vpop.f32.mrb[0].mxu0
        %v3876 = vadd.f32 0.0, %v3875
        %v3877 = vpop.f32.mrb[0].mxu0
        %v3878 = vpop.f32.mrb[0].mxu0
        %v3879 = vpop.f32.mrb[0].mxu0
        %3880 = vmatprep.mubr.bf16.mxu0 %v3738
        %3881 = vmatmul.mubr.bf16.gmra.mrb[0].mxu0 %v3569
        %v3882 = vpop.f32.mrb[0].mxu0
        %v3883 = vadd.f32 0.0, %v3882
        %v3884 = vpop.f32.mrb[0].mxu0
        %v3885 = vpop.f32.mrb[0].mxu0
        %v3886 = vadd.f32 0.0, %v3885
        %v3887 = vpop.f32.mrb[0].mxu0
        %3888 = vmatprep.mubr.bf16.mxu0 %v3741
        %3889 = vmatmul.mubr.bf16.gmra.mrb[0].mxu0 %v3572
        %v3890 = vpop.f32.mrb[0].mxu0
        %v3891 = vpop.f32.mrb[0].mxu0
        %v3892 = vpop.f32.mrb[0].mxu0
        %v3893 = vadd.f32 0.0, %v3892
        %v3894 = vpop.f32.mrb[0].mxu0
        %3895 = vmatprep.mubr.bf16.mxu0 %v3744
        %3896 = vmatmul.mubr.bf16.gmra.mrb[0].mxu0 %v3575
        %v3897 = vpop.f32.mrb[0].mxu0
        %v3898 = vadd.f32 0.0, %v3897
        %v3899 = vpop.f32.mrb[0].mxu0
        %v3900 = vpop.f32.mrb[0].mxu0
        %v3901 = vpop.f32.mrb[0].mxu0
        %3902 = vmatprep.mubr.bf16.mxu0 %v3747
        %3903 = vmatmul.mubr.bf16.gmra.mrb[0].mxu0 %v3578
        %v3904 = vpop.f32.mrb[0].mxu0
        %v3905 = vadd.f32 0.0, %v3904
        %v3906 = vpop.f32.mrb[0].mxu0
        %v3907 = vpop.f32.mrb[0].mxu0
        %v3908 = vadd.f32 0.0, %v3907
        %v3909 = vpop.f32.mrb[0].mxu0
        %3910 = vmatprep.mubr.bf16.mxu0 %v3750
        %3911 = vmatmul.mubr.bf16.gmra.mrb[0].mxu0 %v3581
        %v3912 = vpop.f32.mrb[0].mxu0
        %v3913 = vpop.f32.mrb[0].mxu0
        %v3914 = vpop.f32.mrb[0].mxu0
        %v3915 = vadd.f32 0.0, %v3914
        %v3916 = vpop.f32.mrb[0].mxu0
        %3917 = vmatprep.mubr.bf16.mxu0 %v3753
        %3918 = vmatmul.mubr.bf16.gmra.mrb[0].mxu0 %v3584
        %v3919 = vpop.f32.mrb[0].mxu0
        %v3920 = vadd.f32 0.0, %v3919
        %v3921 = vpop.f32.mrb[0].mxu0
        %v3922 = vpop.f32.mrb[0].mxu0
        %v3923 = vpop.f32.mrb[0].mxu0
        %3924 = vmatprep.mubr.bf16.mxu0 %v3756
        %3925 = vmatmul.mubr.bf16.gmra.mrb[0].mxu0 %v3587
        %v3926 = vpop.f32.mrb[0].mxu0
        %v3927 = vadd.f32 0.0, %v3926
        %v3928 = vpop.f32.mrb[0].mxu0
        %v3929 = vpop.f32.mrb[0].mxu0
        %v3930 = vadd.f32 0.0, %v3929
        %v3931 = vpop.f32.mrb[0].mxu0
        %3932 = vmatprep.mubr.bf16.mxu0 %v3759
        %3933 = vmatmul.mubr.bf16.gmra.mrb[0].mxu0 %v3590
        %v3934 = vpop.f32.mrb[0].mxu0
        %v3935 = vpop.f32.mrb[0].mxu0
        %v3936 = vpop.f32.mrb[0].mxu0
        %v3937 = vadd.f32 0.0, %v3936
        %v3938 = vpop.f32.mrb[0].mxu0
        %3939 = vmatprep.mubr.bf16.mxu0 %v3762
        %3940 = vmatmul.mubr.bf16.gmra.mrb[0].mxu0 %v3593
        %v3941 = vpop.f32.mrb[0].mxu0
        %v3942 = vadd.f32 0.0, %v3941
        %v3943 = vpop.f32.mrb[0].mxu0
        %v3944 = vpop.f32.mrb[0].mxu0
        %v3945 = vpop.f32.mrb[0].mxu0
        %3946 = vmatprep.mubr.bf16.mxu0 %v3765
        %3947 = vmatmul.mubr.bf16.gmra.mrb[0].mxu0 %v3596
        %v3948 = vpop.f32.mrb[0].mxu0
        %v3949 = vadd.f32 0.0, %v3948
        %v3950 = vpop.f32.mrb[0].mxu0
        %v3951 = vpop.f32.mrb[0].mxu0
        %v3952 = vadd.f32 0.0, %v3951
        %v3953 = vpop.f32.mrb[0].mxu0
        %3954 = vmatprep.mubr.bf16.mxu0 %v3768
        %3955 = vmatmul.mubr.bf16.gmra.mrb[0].mxu0 %v3599
        %v3956 = vpop.f32.mrb[0].mxu0
        %v3957 = vpop.f32.mrb[0].mxu0
        %v3958 = vpop.f32.mrb[0].mxu0
        %v3959 = vadd.f32 0.0, %v3958
        %v3960 = vpop.f32.mrb[0].mxu0
        %3961 = vmatprep.mubr.bf16.mxu0 %v3771
        %3962 = vmatmul.mubr.bf16.gmra.mrb[0].mxu0 %v3602
        %v3963 = vpop.f32.mrb[0].mxu0
        %v3964 = vadd.f32 0.0, %v3963
        %v3965 = vpop.f32.mrb[0].mxu0
        %v3966 = vpop.f32.mrb[0].mxu0
        %v3967 = vpop.f32.mrb[0].mxu0
        %3968 = vmatprep.mubr.bf16.mxu0 %v3774
        %3969 = vmatmul.mubr.bf16.gmra.mrb[0].mxu0 %v3605
        %v3970 = vpop.f32.mrb[0].mxu0
        %v3971 = vadd.f32 0.0, %v3970
        %v3972 = vpop.f32.mrb[0].mxu0
        %v3973 = vpop.f32.mrb[0].mxu0
        %v3974 = vadd.f32 0.0, %v3973
        %v3975 = vpop.f32.mrb[0].mxu0
        %3976 = vmatprep.mubr.bf16.mxu0 %v3777
        %3977 = vmatmul.mubr.bf16.gmra.mrb[0].mxu0 %v3608
        %v3978 = vpop.f32.mrb[0].mxu0
        %v3979 = vpop.f32.mrb[0].mxu0
        %v3980 = vpop.f32.mrb[0].mxu0
        %v3981 = vadd.f32 0.0, %v3980
        %v3982 = vpop.f32.mrb[0].mxu0
        %3983 = vmatprep.mubr.bf16.mxu0 %v3780
        %3984 = vmatmul.mubr.bf16.gmra.mrb[0].mxu0 %v3611
        %v3985 = vpop.f32.mrb[0].mxu0
        %v3986 = vadd.f32 0.0, %v3985
        %v3987 = vpop.f32.mrb[0].mxu0
        %v3988 = vpop.f32.mrb[0].mxu0
        %v3989 = vpop.f32.mrb[0].mxu0
        %3990 = vdwg.mxu0
        %v3991 = vadd.f32 %v3040, %v3817
        %v3992 = vadd.f32 %v3041, %v3820
        %v3993 = vadd.f32 %v3042, %v3827
        %v3994 = vadd.f32 %v3043, %v3832
        %v3995 = vadd.f32 %v3044, %v3839
        %v3996 = vadd.f32 %v3045, %v3842
        %v3997 = vadd.f32 %v3046, %v3849
        %v3998 = vadd.f32 %v3047, %v3854
        %v3999 = vadd.f32 %v3048, %v3861
        %v4000 = vadd.f32 %v3049, %v3864
        %v4001 = vadd.f32 %v3050, %v3871
        %v4002 = vadd.f32 %v3051, %v3876
        %v4003 = vadd.f32 %v3052, %v3883
        %v4004 = vadd.f32 %v3053, %v3886
        %v4005 = vadd.f32 %v3054, %v3893
        %v4006 = vadd.f32 %v3055, %v3898
        %v4007 = vadd.f32 %v3056, %v3905
        %v4008 = vadd.f32 %v3057, %v3908
        %v4009 = vadd.f32 %v3058, %v3915
        %v4010 = vadd.f32 %v3059, %v3920
        %v4011 = vadd.f32 %v3060, %v3927
        %v4012 = vadd.f32 %v3061, %v3930
        %v4013 = vadd.f32 %v3062, %v3937
        %v4014 = vadd.f32 %v3063, %v3942
        %v4015 = vadd.f32 %v3064, %v3949
        %v4016 = vadd.f32 %v3065, %v3952
        %v4017 = vadd.f32 %v3066, %v3959
        %v4018 = vadd.f32 %v3067, %v3964
        %v4019 = vadd.f32 %v3068, %v3971
        %v4020 = vadd.f32 %v3069, %v3974
        %v4021 = vadd.f32 %v3070, %v3981
        %v4022 = vadd.f32 %v3071, %v3986
        %4023 = vst.msk [vmem:[%s363] sm:$0xff] %vm1639, %v3991
        %4024 = vst.msk [vmem:[%s363 + $0x8] sm:$0xff] %vm1639, %v3992
        %4025 = vst.msk [vmem:[%s363 + $0x10] sm:$0xff] %vm1639, %v3993
        %4026 = vst.msk [vmem:[%s363 + $0x18] sm:$0xff] %vm1639, %v3994
        %4027 = vst.msk [vmem:[%s363 + $0x20] sm:$0xff] %vm1639, %v3995
        %4028 = vst.msk [vmem:[%s363 + $0x28] sm:$0xff] %vm1639, %v3996
        %4029 = vst.msk [vmem:[%s363 + $0x30] sm:$0xff] %vm1639, %v3997
        %4030 = vst.msk [vmem:[%s363 + $0x38] sm:$0xff] %vm1639, %v3998
        %4031 = vst.msk [vmem:[%s363 + $0x40] sm:$0xff] %vm1639, %v3999
        %4032 = vst.msk [vmem:[%s363 + $0x48] sm:$0xff] %vm1639, %v4000
        %4033 = vst.msk [vmem:[%s363 + $0x50] sm:$0xff] %vm1639, %v4001
        %4034 = vst.msk [vmem:[%s363 + $0x58] sm:$0xff] %vm1639, %v4002
        %4035 = vst.msk [vmem:[%s363 + $0x60] sm:$0xff] %vm1639, %v4003
        %4036 = vst.msk [vmem:[%s363 + $0x68] sm:$0xff] %vm1639, %v4004
        %4037 = vst.msk [vmem:[%s363 + $0x70] sm:$0xff] %vm1639, %v4005
        %4038 = vst.msk [vmem:[%s363 + $0x78] sm:$0xff] %vm1639, %v4006
        %4039 = vst.msk [vmem:[%s363 + $0x80] sm:$0xff] %vm1639, %v4007
        %4040 = vst.msk [vmem:[%s363 + $0x88] sm:$0xff] %vm1639, %v4008
        %4041 = vst.msk [vmem:[%s363 + $0x90] sm:$0xff] %vm1639, %v4009
        %4042 = vst.msk [vmem:[%s363 + $0x98] sm:$0xff] %vm1639, %v4010
        %4043 = vst.msk [vmem:[%s363 + $0xa0] sm:$0xff] %vm1639, %v4011
        %4044 = vst.msk [vmem:[%s363 + $0xa8] sm:$0xff] %vm1639, %v4012
        %4045 = vst.msk [vmem:[%s363 + $0xb0] sm:$0xff] %vm1639, %v4013
        %4046 = vst.msk [vmem:[%s363 + $0xb8] sm:$0xff] %vm1639, %v4014
        %4047 = vst.msk [vmem:[%s363 + $0xc0] sm:$0xff] %vm1639, %v4015
        %4048 = vst.msk [vmem:[%s363 + $0xc8] sm:$0xff] %vm1639, %v4016
        %4049 = vst.msk [vmem:[%s363 + $0xd0] sm:$0xff] %vm1639, %v4017
        %4050 = vst.msk [vmem:[%s363 + $0xd8] sm:$0xff] %vm1639, %v4018
        %4051 = vst.msk [vmem:[%s363 + $0xe0] sm:$0xff] %vm1639, %v4019
        %4052 = vst.msk [vmem:[%s363 + $0xe8] sm:$0xff] %vm1639, %v4020
        %4053 = vst.msk [vmem:[%s363 + $0xf0] sm:$0xff] %vm1639, %v4021
        %4054 = vst.msk [vmem:[%s363 + $0xf8] sm:$0xff] %vm1639, %v4022
        %s4055 = sand.u32 %s172, 1
        %s4056 = scalar_lea.sflag [#allocation5], %s4055
        %s4057 = sand.u32 %s172, 1
        %s4058 = smul.addr %s4057, 256
        %s4059 = scalar_lea.vmem [#allocation14], %s4058
        // Predicated region
        $region69: #{_lambda_.7} parent=43 // pred_check
          %p4060 = pneg %p182
        $region70: #{_lambda_.7} parent=43 // pred_check_branch
          %4062 = sbr.rel (%p4060) target = $region72
        $region71: #{_lambda_.7} parent=43 // pred_region
          %s4064 = ssub.s32 4096, 4096
          %4065 = vsyncadd %s4056, %s4064
          %s4066 = smul.addr %s28, 32
          %s4067 = smul.addr %s4066, 128
          %s4068 = scalar_lea.hbm %s6, %s4067
          %s4069 = sshll.u32 %s4059, 4
          %s4070 = int_to_ptr.vmem [resolvable:$true] %s4069
          %4075 = dma.vmem_to_hbm [thread:$0]  %s4070, 4096, %s4068, %s4056, 128, 128, 8
        $region72: #{_lambda_.7} parent=43 // pred_fallthru
          _
      $region44: #{_lambda_.7} parent=5 // pred_fallthru
        _
      %p4076 = scmp.le.s32.totalorder 2, %s23
      // Predicated region
      $region73: #{_lambda_.7} parent=5 // pred_check
        %p4077 = pneg %p4076
      $region74: #{_lambda_.7} parent=5 // pred_check_branch
        %4079 = sbr.rel (%p4077) target = $region76
      $region75: #{_lambda_.7} parent=5 // pred_region
        %s4080 = ssub.s32 %s23, 2
        // Predicated region
        $region77: #{_lambda_.7} parent=75 // pred_check
          %p4081 = pneg %p188
        $region78: #{_lambda_.7} parent=75 // pred_check_branch
          %4083 = sbr.rel (%p4081) target = $region80
        $region79: #{_lambda_.7} parent=75 // pred_region
          %s4084 = sand.u32 %s173, 1
          %s4085 = scalar_lea.sflag [#allocation5], %s4084
          %s4086 = sand.u32 %s173, 1
          %s4087 = smul.addr %s4086, 256
          %s4088 = scalar_lea.vmem [#allocation14], %s4087
          %4089 = dma.done %s4085, 4096
        $region80: #{_lambda_.7} parent=75 // pred_fallthru
          _
      $region76: #{_lambda_.7} parent=5 // pred_fallthru
        _
    $region6: #{_lambda_.7} parent=1 // loop_footer
      %s27 = sadd.s32 1, %s23
    $region7: #{_lambda_.7} parent=1 // loop_footer_branch
      %22 = sbr.rel target = $region3
    $region8: #{_lambda_.7} parent=1 // loop_exit
      _
    %4090 = vsyncpa [#allocation4], 1
    %s4091 = scalar_lea.sflag [#allocation4], 1
    %4092 = vsyncpa %s4091, 1
    %4093 = vsyncpa [#allocation7], 1
    %4094 = vsyncpa [#allocation10], 1
    %4095 = vsyncpa [#allocation13], 1
    %s4096 = scalar_lea.sflag [#allocation13], 1
    %4097 = vsyncpa %s4096, 1
    %4098 = vsyncpa [#allocation5], 1
    %s4099 = scalar_lea.sflag [#allocation5], 1
    %4100 = vsyncpa %s4099, 1

</llo_original>
